<compile_context>
chip_gen: v5e
topology: v5e:2x2
jax: 0.10.0
libtpu: 0.0.40
codegen_flags: <defaults>
</compile_context>

<pallas_src>
import jax
import jax.numpy as jnp
from jax.experimental import pallas as pl
from jax.experimental.pallas import tpu as pltpu


# --------------------------------------------------------------------------- kernels
def _conv_pool_kernel(p_ref, w1_ref, b1_ref, w2_ref, b2_ref, o_ref):
    """conv1 + relu + conv2 (single K=288 dot) + relu + 2x2 max-pool for TB images.

    p_ref : [TB, 9, 832]  f32   conv1 im2col, t = 3*i+j on sublanes, p = h*32+w on lanes
                                (w padded 26->32 with zeros)
    w1    : [32, 9]       bf16  conv1 weight, transposed
    b1    : [32, 1]       f32
    w2    : [288, 64]     bf16  conv2 weight, rows k = (3*i+j)*32 + c
    b2    : [1, 64]       f32
    o_ref : [TB, 12, 768] bf16  pooled features, row = h2, lanes = w2*64 + c
    """
    tb = p_ref.shape[0]

    # ---- conv1 + relu: batched MXU matmul [32, 9] @ [9, 832] per image ----
    p = p_ref[...].astype(jnp.bfloat16)
    w1b = jnp.broadcast_to(w1_ref[...], (tb, 32, 9))
    y1t = jax.lax.dot_general(w1b, p, (((2,), (1,)), ((0,), (0,))),
                              preferred_element_type=jnp.float32)        # [TB, 32, 832]
    y1t = jnp.maximum(y1t + b1_ref[...], 0.0)
    # -> [TB, 26(h), 32(w pad), 32(c)].  Padded w columns 26..31 hold relu(b1) garbage
    #    but are never read below: the conv2 shifts only touch w + j <= 23 + 2 = 25.
    y1 = jnp.swapaxes(y1t, 1, 2).reshape(tb, 26, 32, 32)

    # ---- conv2 + relu: single fused K=288 dot on an in-kernel im2col ----
    pieces = [y1[:, i:i + 24, j:j + 24, :].astype(jnp.bfloat16)          # 9 x [TB,24,24,32]
              for i in range(3) for j in range(3)]
    im2col = jnp.concatenate(pieces, axis=-1).reshape(tb * 576, 288)     # k = (3i+j)*32+c
    y2 = jnp.dot(im2col, w2_ref[...], preferred_element_type=jnp.float32)
    y2 = jnp.maximum(y2 + b2_ref[...], 0.0)                              # [TB*576, 64]

    # ---- 2x2 max-pool: pure slicing + max (no selection matmuls) ----
    y2 = y2.reshape(tb, 12, 2, 24, 64)                                   # (b, h2, hp, w, c)
    ph = jnp.maximum(y2[:, :, 0], y2[:, :, 1])                           # height: [TB,12,24,64]
    cols = [jnp.maximum(ph[:, :, 2 * w, :], ph[:, :, 2 * w + 1, :])      # width:  12 x [TB,12,64]
            for w in range(12)]
    # Lane-dense bf16 output: row = h2, lane = w2*64 + c  (NHWC flatten order).
    o_ref[...] = jnp.concatenate(cols, axis=-1).astype(o_ref.dtype)      # [TB, 12, 768]


def _fc_kernel(x_ref, w1_ref, b1_ref, w2_ref, b2_ref, probs_ref, feat_ref):
    """Fused fc1 + tanh + fc2 (N padded 10 -> 128) + softmax for one batch tile."""
    h = jnp.dot(x_ref[...], w1_ref[...], preferred_element_type=jnp.float32) + b1_ref[...]
    h = jnp.tanh(h)                                                      # [TB, 128] f32
    feat_ref[...] = h.astype(feat_ref.dtype)

    logits = jnp.dot(h.astype(jnp.bfloat16), w2_ref[...],
                     preferred_element_type=jnp.float32) + b2_ref[...]
    m = jnp.max(logits, axis=-1, keepdims=True)
    e = jnp.exp(logits - m)                                              # padded cols -> 0
    probs_ref[...] = (e / jnp.sum(e, axis=-1, keepdims=True)).astype(probs_ref.dtype)


# --------------------------------------------------------------------------- params
def init_params(key):
    """Parameters in the PyTorch-equivalent layout (f32)."""
    ks = jax.random.split(key, 6)
    scale = 0.05
    return {
        "w1": jax.random.normal(ks[0], (3 * 3 * 1, 32), jnp.float32) * scale,   # k=(3i+j)*1+c
        "b1": jax.random.normal(ks[1], (32,), jnp.float32) * scale,
        "w2": jax.random.normal(ks[2], (3 * 3 * 32, 64), jnp.float32) * scale,  # k=(3i+j)*32+c
        "b2": jax.random.normal(ks[3], (64,), jnp.float32) * scale,
        "wfc1": jax.random.normal(ks[4], (9216, 128), jnp.float32) * 0.01,      # torch-flatten rows
        "bfc1": jnp.zeros((128,), jnp.float32),
        "wfc2": jax.random.normal(ks[5], (128, 10), jnp.float32) * 0.05,
        "bfc2": jnp.zeros((10,), jnp.float32),
    }


def prepare_params(params):
    """One-time re-layout: bf16 MXU weights, permuted fc1 rows, padded fc2."""
    w1 = params["w1"].T.astype(jnp.bfloat16)                             # [32, 9]
    b1 = params["b1"].reshape(32, 1).astype(jnp.float32)
    w2 = params["w2"].astype(jnp.bfloat16)                               # [288, 64]
    b2 = params["b2"].reshape(1, 64).astype(jnp.float32)

    # fc1 rows: kernel-1 flat index n = h*768 + w*64 + c  ->  torch index c*144 + h*12 + w
    hh, ww, cc = jnp.meshgrid(jnp.arange(12), jnp.arange(12), jnp.arange(64), indexing="ij")
    t_of_n = (cc * 144 + hh * 12 + ww).reshape(9216)
    wfc1 = params["wfc1"][t_of_n, :].astype(jnp.bfloat16)                # [9216, 128]
    bfc1 = params["bfc1"].reshape(1, 128).astype(jnp.float32)

    # fc2 padded N 10 -> 128 (lane-dense); padded columns get weight 0 and bias -1e30.
    wfc2 = jnp.zeros((128, 128), jnp.float32).at[:, :10].set(params["wfc2"]).astype(jnp.bfloat16)
    bfc2 = jnp.full((1, 128), -1e30, jnp.float32).at[0, :10].set(params["bfc2"])

    return {"w1": w1, "b1": b1, "w2": w2, "b2": b2,
            "wfc1": wfc1, "bfc1": bfc1, "wfc2": wfc2, "bfc2": bfc2}


# --------------------------------------------------------------------------- forward
def generator_forward(prep, x_nchw):
    """x_nchw: [B, 1, 28, 28] f32 -> (softmax [B, 10] f32, tanh features [B, 128] f32)."""
    B = x_nchw.shape[0]
    x = x_nchw.reshape(B, 28, 28)

    # conv1 im2col, lane-dense [B, 9, 832] (t on sublanes, p = h*32 + w on lanes; ~30 KB/img).
    cols = [x[:, i:i + 26, j:j + 26] for i in range(3) for j in range(3)]
    patches = jnp.stack(cols, axis=1)                                    # [B, 9, 26, 26]
    patches = jnp.pad(patches, ((0, 0), (0, 0), (0, 0), (0, 6)))         # pad w 26 -> 32 (zeros)
    patches = patches.reshape(B, 9, 832)

    # ---- kernel 1: conv1 -> relu -> conv2 -> relu -> maxpool, TB images per grid step ----
    tb_img = 4 if B >= 8 else max(1, (B + 1) // 2)
    b1_pad = pl.cdiv(B, tb_img) * tb_img
    if b1_pad != B:
        patches = jnp.pad(patches, ((0, b1_pad - B), (0, 0), (0, 0)))

    pooled = pl.pallas_call(
        _conv_pool_kernel,
        out_shape=jax.ShapeDtypeStruct((b1_pad, 12, 768), jnp.bfloat16),
        grid=(b1_pad // tb_img,),
        in_specs=[
            pl.BlockSpec((tb_img, 9, 832), lambda b: (b, 0, 0)),
            pl.BlockSpec((32, 9), lambda b: (0, 0)),
            pl.BlockSpec((32, 1), lambda b: (0, 0)),
            pl.BlockSpec((288, 64), lambda b: (0, 0)),
            pl.BlockSpec((1, 64), lambda b: (0, 0)),
        ],
        out_specs=pl.BlockSpec((tb_img, 12, 768), lambda b: (b, 0, 0)),
        compiler_params=pltpu.CompilerParams(
            dimension_semantics=("parallel",),
            vmem_limit_bytes=32 * 1024 * 1024),
        cost_estimate=pl.CostEstimate(
            flops=b1_pad * 2 * (32 * 9 * 832 + 576 * 288 * 64),
            transcendentals=0,
            bytes_accessed=b1_pad * (9 * 832 * 4 + 12 * 768 * 2) + 288 * 64 * 2),
    )(patches, prep["w1"], prep["b1"], prep["w2"], prep["b2"])

    # dropout1 (Dropout2d) is identity in inference.
    # TODO(synk): training-mode channel dropout not implemented (eval semantics used).

    # Kernel 1 already emitted lane-dense, NHWC-flat bf16 features; the torch NCHW flatten
    # order is folded into wfc1's rows, and this reshape is a free row-major flatten.
    flat = pooled.reshape(b1_pad, 9216)

    # ---- kernel 2: fc1 + tanh + fc2 + softmax over batch tiles ----
    b_pad8 = pl.cdiv(B, 8) * 8
    if B >= 512:
        tile_b = 256
    elif B > 128:
        tile_b = 128
    else:
        tile_b = b_pad8
    b2_pad = pl.cdiv(B, tile_b) * tile_b
    if b2_pad < b1_pad:
        flat = flat[:b2_pad]
    elif b2_pad > b1_pad:
        flat = jnp.pad(flat, ((0, b2_pad - b1_pad), (0, 0)))

    probs_pad, feats = pl.pallas_call(
        _fc_kernel,
        out_shape=(jax.ShapeDtypeStruct((b2_pad, 128), jnp.float32),
                   jax.ShapeDtypeStruct((b2_pad, 128), jnp.float32)),
        grid=(b2_pad // tile_b,),
        in_specs=[
            pl.BlockSpec((tile_b, 9216), lambda i: (i, 0)),
            pl.BlockSpec((9216, 128), lambda i: (0, 0)),
            pl.BlockSpec((1, 128), lambda i: (0, 0)),
            pl.BlockSpec((128, 128), lambda i: (0, 0)),
            pl.BlockSpec((1, 128), lambda i: (0, 0)),
        ],
        out_specs=(pl.BlockSpec((tile_b, 128), lambda i: (i, 0)),
                   pl.BlockSpec((tile_b, 128), lambda i: (i, 0))),
        compiler_params=pltpu.CompilerParams(
            dimension_semantics=("parallel",),
            vmem_limit_bytes=32 * 1024 * 1024),
        cost_estimate=pl.CostEstimate(
            flops=b2_pad * 2 * (9216 * 128 + 128 * 128),
            transcendentals=b2_pad * 256,
            bytes_accessed=b2_pad * 9216 * 2 + 9216 * 128 * 2 + b2_pad * 128 * 8),
    )(flat, prep["wfc1"], prep["bfc1"], prep["wfc2"], prep["bfc2"])

    return probs_pad[:B, :10], feats[:B]


# --------------------------------------------------------------------------- pure-JAX reference
def reference_forward(params, x_nchw):
    B = x_nchw.shape[0]
    w1 = params["w1"].reshape(3, 3, 1, 32)     # HWIO
    y = jax.lax.conv_general_dilated(x_nchw, w1, (1, 1), "VALID",
                                     dimension_numbers=("NCHW", "HWIO", "NCHW"))
    y = jax.nn.relu(y + params["b1"].reshape(1, 32, 1, 1))
    w2 = params["w2"].reshape(3, 3, 32, 64)
    y = jax.lax.conv_general_dilated(y, w2, (1, 1), "VALID",
                                     dimension_numbers=("NCHW", "HWIO", "NCHW"))
    y = jax.nn.relu(y + params["b2"].reshape(1, 64, 1, 1))
    y = jax.lax.reduce_window(y, -jnp.inf, jax.lax.max, (1, 1, 2, 2), (1, 1, 2, 2), "VALID")
    flat = y.reshape(B, -1)                    # torch.flatten on NCHW (channel-major)
    x1 = jnp.tanh(flat @ params["wfc1"] + params["bfc1"])
    logits = x1 @ params["wfc2"] + params["bfc2"]
    return jax.nn.softmax(logits, axis=1), x1


# --------------------------------------------------------------------------- main
if __name__ == "__main__":
    batch = 2  # input spatial size 28x28 is fixed by fc1's 9216 = 64*12*12
    x = jax.random.normal(jax.random.PRNGKey(0), (batch, 1, 28, 28), jnp.float32)
    params = init_params(jax.random.PRNGKey(1))
    prep = prepare_params(params)

    fwd = jax.jit(generator_forward)
    out, x1 = fwd(prep, x)
    jax.block_until_ready((out, x1))

    assert out.shape == (batch, 10) and out.dtype == jnp.float32
    assert x1.shape == (batch, 128) and x1.dtype == jnp.float32
    assert bool(jnp.all(jnp.abs(jnp.sum(out, axis=1) - 1.0) < 1e-4))

    # cross-check against a pure-JAX f32 reference (loose tolerance: bf16 MXU operands)
    ref_out, ref_x1 = reference_forward(params, x)
    assert bool(jnp.max(jnp.abs(out - ref_out)) < 2e-2)
    assert bool(jnp.max(jnp.abs(x1 - ref_x1)) < 2e-2)

    print("KERNEL_OK")
</pallas_src>

<mosaic_0001>
module attributes {stable_mosaic.version = 11 : i64} {
  func.func @_conv_pool_kernel(%arg0: i32, %arg1: memref<1x9x832xf32, #tpu.memory_space<vmem>>, %arg2: memref<32x9xbf16, #tpu.memory_space<vmem>>, %arg3: memref<32x1xf32, #tpu.memory_space<vmem>>, %arg4: memref<288x64xbf16, #tpu.memory_space<vmem>>, %arg5: memref<1x64xf32, #tpu.memory_space<vmem>>, %arg6: memref<1x12x768xbf16, #tpu.memory_space<vmem>>) attributes {dimension_semantics = [#tpu.dimension_semantics<parallel>], iteration_bounds = array<i64: 2>, scalar_prefetch = 0 : i64, scratch_operands = 0 : i64, tpu.core_type = #tpu.core_type<tc>, window_params = [{transform_indices = @transform_0, window_bounds = array<i64: 1, 9, 832>}, {pipeline_mode = #tpu.pipeline_mode<synchronous>, transform_indices = @transform_1, window_bounds = array<i64: 32, 9>}, {pipeline_mode = #tpu.pipeline_mode<synchronous>, transform_indices = @transform_2, window_bounds = array<i64: 32, 1>}, {pipeline_mode = #tpu.pipeline_mode<synchronous>, transform_indices = @transform_3, window_bounds = array<i64: 288, 64>}, {pipeline_mode = #tpu.pipeline_mode<synchronous>, transform_indices = @transform_4, window_bounds = array<i64: 1, 64>}, {transform_indices = @transform_5, window_bounds = array<i64: 1, 12, 768>}]} {
    %c0 = arith.constant 0 : index
    %c0_0 = arith.constant 0 : index
    %c0_1 = arith.constant 0 : index
    %0 = vector.load %arg1[%c0, %c0_0, %c0_1] : memref<1x9x832xf32, #tpu.memory_space<vmem>>, vector<1x9x832xf32>
    %1 = arith.truncf %0 : vector<1x9x832xf32> to vector<1x9x832xbf16>
    %c0_2 = arith.constant 0 : index
    %c0_3 = arith.constant 0 : index
    %2 = vector.load %arg2[%c0_2, %c0_3] : memref<32x9xbf16, #tpu.memory_space<vmem>>, vector<32x9xbf16>
    %3 = vector.shape_cast %2 : vector<32x9xbf16> to vector<1x32x9xbf16>
    %cst = arith.constant dense<0.000000e+00> : vector<1x32x832xf32>
    %4 = tpu.matmul %3, %1, %cst {dimension_numbers = #tpu.dot_dimension_numbers<[2], [1], [1], [2], [0, 0, 0, 1, 1, 2], [0], [0]>} : vector<1x32x9xbf16>, vector<1x9x832xbf16>, vector<1x32x832xf32> -> vector<1x32x832xf32>
    %c0_4 = arith.constant 0 : index
    %c0_5 = arith.constant 0 : index
    %5 = vector.load %arg3[%c0_4, %c0_5] : memref<32x1xf32, #tpu.memory_space<vmem>>, vector<32x1xf32>
    %6 = vector.shape_cast %5 : vector<32x1xf32> to vector<1x32x1xf32>
    %7 = vector.broadcast %6 : vector<1x32x1xf32> to vector<1x32x832xf32>
    %8 = arith.addf %4, %7 : vector<1x32x832xf32>
    %cst_6 = arith.constant 0.000000e+00 : f32
    %9 = vector.broadcast %cst_6 : f32 to vector<1x32x832xf32>
    %10 = arith.maximumf %8, %9 : vector<1x32x832xf32>
    %11 = tpu.transpose %10, [0, 2, 1] : vector<1x32x832xf32> -> vector<1x832x32xf32>
    %12 = vector.shape_cast %11 : vector<1x832x32xf32> to vector<1x26x32x32xf32>
    %13 = vector.extract_strided_slice %12 {offsets = [0, 0, 0, 0], sizes = [1, 24, 24, 32], strides = [1, 1, 1, 1]} : vector<1x26x32x32xf32> to vector<1x24x24x32xf32>
    %14 = arith.truncf %13 : vector<1x24x24x32xf32> to vector<1x24x24x32xbf16>
    %15 = vector.extract_strided_slice %12 {offsets = [0, 0, 1, 0], sizes = [1, 24, 24, 32], strides = [1, 1, 1, 1]} : vector<1x26x32x32xf32> to vector<1x24x24x32xf32>
    %16 = arith.truncf %15 : vector<1x24x24x32xf32> to vector<1x24x24x32xbf16>
    %17 = vector.extract_strided_slice %12 {offsets = [0, 0, 2, 0], sizes = [1, 24, 24, 32], strides = [1, 1, 1, 1]} : vector<1x26x32x32xf32> to vector<1x24x24x32xf32>
    %18 = arith.truncf %17 : vector<1x24x24x32xf32> to vector<1x24x24x32xbf16>
    %19 = vector.extract_strided_slice %12 {offsets = [0, 1, 0, 0], sizes = [1, 24, 24, 32], strides = [1, 1, 1, 1]} : vector<1x26x32x32xf32> to vector<1x24x24x32xf32>
    %20 = arith.truncf %19 : vector<1x24x24x32xf32> to vector<1x24x24x32xbf16>
    %21 = vector.extract_strided_slice %12 {offsets = [0, 1, 1, 0], sizes = [1, 24, 24, 32], strides = [1, 1, 1, 1]} : vector<1x26x32x32xf32> to vector<1x24x24x32xf32>
    %22 = arith.truncf %21 : vector<1x24x24x32xf32> to vector<1x24x24x32xbf16>
    %23 = vector.extract_strided_slice %12 {offsets = [0, 1, 2, 0], sizes = [1, 24, 24, 32], strides = [1, 1, 1, 1]} : vector<1x26x32x32xf32> to vector<1x24x24x32xf32>
    %24 = arith.truncf %23 : vector<1x24x24x32xf32> to vector<1x24x24x32xbf16>
    %25 = vector.extract_strided_slice %12 {offsets = [0, 2, 0, 0], sizes = [1, 24, 24, 32], strides = [1, 1, 1, 1]} : vector<1x26x32x32xf32> to vector<1x24x24x32xf32>
    %26 = arith.truncf %25 : vector<1x24x24x32xf32> to vector<1x24x24x32xbf16>
    %27 = vector.extract_strided_slice %12 {offsets = [0, 2, 1, 0], sizes = [1, 24, 24, 32], strides = [1, 1, 1, 1]} : vector<1x26x32x32xf32> to vector<1x24x24x32xf32>
    %28 = arith.truncf %27 : vector<1x24x24x32xf32> to vector<1x24x24x32xbf16>
    %29 = vector.extract_strided_slice %12 {offsets = [0, 2, 2, 0], sizes = [1, 24, 24, 32], strides = [1, 1, 1, 1]} : vector<1x26x32x32xf32> to vector<1x24x24x32xf32>
    %30 = arith.truncf %29 : vector<1x24x24x32xf32> to vector<1x24x24x32xbf16>
    %31 = tpu.concatenate %14, %16, %18, %20, %22, %24, %26, %28, %30 in 3 : vector<1x24x24x32xbf16>, vector<1x24x24x32xbf16>, vector<1x24x24x32xbf16>, vector<1x24x24x32xbf16>, vector<1x24x24x32xbf16>, vector<1x24x24x32xbf16>, vector<1x24x24x32xbf16>, vector<1x24x24x32xbf16>, vector<1x24x24x32xbf16> -> vector<1x24x24x288xbf16>
    %32 = vector.shape_cast %31 : vector<1x24x24x288xbf16> to vector<576x288xbf16>
    %c0_7 = arith.constant 0 : index
    %c0_8 = arith.constant 0 : index
    %33 = vector.load %arg4[%c0_7, %c0_8] : memref<288x64xbf16, #tpu.memory_space<vmem>>, vector<288x64xbf16>
    %cst_9 = arith.constant dense<0.000000e+00> : vector<576x64xf32>
    %34 = tpu.matmul %32, %33, %cst_9 {dimension_numbers = #tpu.dot_dimension_numbers<[1], [0], [0], [1], [0, 0, 1, 1], [], []>} : vector<576x288xbf16>, vector<288x64xbf16>, vector<576x64xf32> -> vector<576x64xf32>
    %c0_10 = arith.constant 0 : index
    %c0_11 = arith.constant 0 : index
    %35 = vector.load %arg5[%c0_10, %c0_11] : memref<1x64xf32, #tpu.memory_space<vmem>>, vector<1x64xf32>
    %36 = vector.broadcast %35 : vector<1x64xf32> to vector<576x64xf32>
    %37 = arith.addf %34, %36 : vector<576x64xf32>
    %cst_12 = arith.constant 0.000000e+00 : f32
    %38 = vector.broadcast %cst_12 : f32 to vector<576x64xf32>
    %39 = arith.maximumf %37, %38 : vector<576x64xf32>
    %40 = vector.shape_cast %39 : vector<576x64xf32> to vector<1x12x2x24x64xf32>
    %41 = vector.extract_strided_slice %40 {offsets = [0, 0, 0, 0, 0], sizes = [1, 12, 1, 24, 64], strides = [1, 1, 1, 1, 1]} : vector<1x12x2x24x64xf32> to vector<1x12x1x24x64xf32>
    %42 = vector.shape_cast %41 : vector<1x12x1x24x64xf32> to vector<1x12x24x64xf32>
    %43 = vector.extract_strided_slice %40 {offsets = [0, 0, 1, 0, 0], sizes = [1, 12, 1, 24, 64], strides = [1, 1, 1, 1, 1]} : vector<1x12x2x24x64xf32> to vector<1x12x1x24x64xf32>
    %44 = vector.shape_cast %43 : vector<1x12x1x24x64xf32> to vector<1x12x24x64xf32>
    %45 = arith.maximumf %42, %44 : vector<1x12x24x64xf32>
    %46 = vector.extract_strided_slice %45 {offsets = [0, 0, 0, 0], sizes = [1, 12, 1, 64], strides = [1, 1, 1, 1]} : vector<1x12x24x64xf32> to vector<1x12x1x64xf32>
    %47 = vector.shape_cast %46 : vector<1x12x1x64xf32> to vector<1x12x64xf32>
    %48 = vector.extract_strided_slice %45 {offsets = [0, 0, 1, 0], sizes = [1, 12, 1, 64], strides = [1, 1, 1, 1]} : vector<1x12x24x64xf32> to vector<1x12x1x64xf32>
    %49 = vector.shape_cast %48 : vector<1x12x1x64xf32> to vector<1x12x64xf32>
    %50 = arith.maximumf %47, %49 : vector<1x12x64xf32>
    %51 = vector.extract_strided_slice %45 {offsets = [0, 0, 2, 0], sizes = [1, 12, 1, 64], strides = [1, 1, 1, 1]} : vector<1x12x24x64xf32> to vector<1x12x1x64xf32>
    %52 = vector.shape_cast %51 : vector<1x12x1x64xf32> to vector<1x12x64xf32>
    %53 = vector.extract_strided_slice %45 {offsets = [0, 0, 3, 0], sizes = [1, 12, 1, 64], strides = [1, 1, 1, 1]} : vector<1x12x24x64xf32> to vector<1x12x1x64xf32>
    %54 = vector.shape_cast %53 : vector<1x12x1x64xf32> to vector<1x12x64xf32>
    %55 = arith.maximumf %52, %54 : vector<1x12x64xf32>
    %56 = vector.extract_strided_slice %45 {offsets = [0, 0, 4, 0], sizes = [1, 12, 1, 64], strides = [1, 1, 1, 1]} : vector<1x12x24x64xf32> to vector<1x12x1x64xf32>
    %57 = vector.shape_cast %56 : vector<1x12x1x64xf32> to vector<1x12x64xf32>
    %58 = vector.extract_strided_slice %45 {offsets = [0, 0, 5, 0], sizes = [1, 12, 1, 64], strides = [1, 1, 1, 1]} : vector<1x12x24x64xf32> to vector<1x12x1x64xf32>
    %59 = vector.shape_cast %58 : vector<1x12x1x64xf32> to vector<1x12x64xf32>
    %60 = arith.maximumf %57, %59 : vector<1x12x64xf32>
    %61 = vector.extract_strided_slice %45 {offsets = [0, 0, 6, 0], sizes = [1, 12, 1, 64], strides = [1, 1, 1, 1]} : vector<1x12x24x64xf32> to vector<1x12x1x64xf32>
    %62 = vector.shape_cast %61 : vector<1x12x1x64xf32> to vector<1x12x64xf32>
    %63 = vector.extract_strided_slice %45 {offsets = [0, 0, 7, 0], sizes = [1, 12, 1, 64], strides = [1, 1, 1, 1]} : vector<1x12x24x64xf32> to vector<1x12x1x64xf32>
    %64 = vector.shape_cast %63 : vector<1x12x1x64xf32> to vector<1x12x64xf32>
    %65 = arith.maximumf %62, %64 : vector<1x12x64xf32>
    %66 = vector.extract_strided_slice %45 {offsets = [0, 0, 8, 0], sizes = [1, 12, 1, 64], strides = [1, 1, 1, 1]} : vector<1x12x24x64xf32> to vector<1x12x1x64xf32>
    %67 = vector.shape_cast %66 : vector<1x12x1x64xf32> to vector<1x12x64xf32>
    %68 = vector.extract_strided_slice %45 {offsets = [0, 0, 9, 0], sizes = [1, 12, 1, 64], strides = [1, 1, 1, 1]} : vector<1x12x24x64xf32> to vector<1x12x1x64xf32>
    %69 = vector.shape_cast %68 : vector<1x12x1x64xf32> to vector<1x12x64xf32>
    %70 = arith.maximumf %67, %69 : vector<1x12x64xf32>
    %71 = vector.extract_strided_slice %45 {offsets = [0, 0, 10, 0], sizes = [1, 12, 1, 64], strides = [1, 1, 1, 1]} : vector<1x12x24x64xf32> to vector<1x12x1x64xf32>
    %72 = vector.shape_cast %71 : vector<1x12x1x64xf32> to vector<1x12x64xf32>
    %73 = vector.extract_strided_slice %45 {offsets = [0, 0, 11, 0], sizes = [1, 12, 1, 64], strides = [1, 1, 1, 1]} : vector<1x12x24x64xf32> to vector<1x12x1x64xf32>
    %74 = vector.shape_cast %73 : vector<1x12x1x64xf32> to vector<1x12x64xf32>
    %75 = arith.maximumf %72, %74 : vector<1x12x64xf32>
    %76 = vector.extract_strided_slice %45 {offsets = [0, 0, 12, 0], sizes = [1, 12, 1, 64], strides = [1, 1, 1, 1]} : vector<1x12x24x64xf32> to vector<1x12x1x64xf32>
    %77 = vector.shape_cast %76 : vector<1x12x1x64xf32> to vector<1x12x64xf32>
    %78 = vector.extract_strided_slice %45 {offsets = [0, 0, 13, 0], sizes = [1, 12, 1, 64], strides = [1, 1, 1, 1]} : vector<1x12x24x64xf32> to vector<1x12x1x64xf32>
    %79 = vector.shape_cast %78 : vector<1x12x1x64xf32> to vector<1x12x64xf32>
    %80 = arith.maximumf %77, %79 : vector<1x12x64xf32>
    %81 = vector.extract_strided_slice %45 {offsets = [0, 0, 14, 0], sizes = [1, 12, 1, 64], strides = [1, 1, 1, 1]} : vector<1x12x24x64xf32> to vector<1x12x1x64xf32>
    %82 = vector.shape_cast %81 : vector<1x12x1x64xf32> to vector<1x12x64xf32>
    %83 = vector.extract_strided_slice %45 {offsets = [0, 0, 15, 0], sizes = [1, 12, 1, 64], strides = [1, 1, 1, 1]} : vector<1x12x24x64xf32> to vector<1x12x1x64xf32>
    %84 = vector.shape_cast %83 : vector<1x12x1x64xf32> to vector<1x12x64xf32>
    %85 = arith.maximumf %82, %84 : vector<1x12x64xf32>
    %86 = vector.extract_strided_slice %45 {offsets = [0, 0, 16, 0], sizes = [1, 12, 1, 64], strides = [1, 1, 1, 1]} : vector<1x12x24x64xf32> to vector<1x12x1x64xf32>
    %87 = vector.shape_cast %86 : vector<1x12x1x64xf32> to vector<1x12x64xf32>
    %88 = vector.extract_strided_slice %45 {offsets = [0, 0, 17, 0], sizes = [1, 12, 1, 64], strides = [1, 1, 1, 1]} : vector<1x12x24x64xf32> to vector<1x12x1x64xf32>
    %89 = vector.shape_cast %88 : vector<1x12x1x64xf32> to vector<1x12x64xf32>
    %90 = arith.maximumf %87, %89 : vector<1x12x64xf32>
    %91 = vector.extract_strided_slice %45 {offsets = [0, 0, 18, 0], sizes = [1, 12, 1, 64], strides = [1, 1, 1, 1]} : vector<1x12x24x64xf32> to vector<1x12x1x64xf32>
    %92 = vector.shape_cast %91 : vector<1x12x1x64xf32> to vector<1x12x64xf32>
    %93 = vector.extract_strided_slice %45 {offsets = [0, 0, 19, 0], sizes = [1, 12, 1, 64], strides = [1, 1, 1, 1]} : vector<1x12x24x64xf32> to vector<1x12x1x64xf32>
    %94 = vector.shape_cast %93 : vector<1x12x1x64xf32> to vector<1x12x64xf32>
    %95 = arith.maximumf %92, %94 : vector<1x12x64xf32>
    %96 = vector.extract_strided_slice %45 {offsets = [0, 0, 20, 0], sizes = [1, 12, 1, 64], strides = [1, 1, 1, 1]} : vector<1x12x24x64xf32> to vector<1x12x1x64xf32>
    %97 = vector.shape_cast %96 : vector<1x12x1x64xf32> to vector<1x12x64xf32>
    %98 = vector.extract_strided_slice %45 {offsets = [0, 0, 21, 0], sizes = [1, 12, 1, 64], strides = [1, 1, 1, 1]} : vector<1x12x24x64xf32> to vector<1x12x1x64xf32>
    %99 = vector.shape_cast %98 : vector<1x12x1x64xf32> to vector<1x12x64xf32>
    %100 = arith.maximumf %97, %99 : vector<1x12x64xf32>
    %101 = vector.extract_strided_slice %45 {offsets = [0, 0, 22, 0], sizes = [1, 12, 1, 64], strides = [1, 1, 1, 1]} : vector<1x12x24x64xf32> to vector<1x12x1x64xf32>
    %102 = vector.shape_cast %101 : vector<1x12x1x64xf32> to vector<1x12x64xf32>
    %103 = vector.extract_strided_slice %45 {offsets = [0, 0, 23, 0], sizes = [1, 12, 1, 64], strides = [1, 1, 1, 1]} : vector<1x12x24x64xf32> to vector<1x12x1x64xf32>
    %104 = vector.shape_cast %103 : vector<1x12x1x64xf32> to vector<1x12x64xf32>
    %105 = arith.maximumf %102, %104 : vector<1x12x64xf32>
    %106 = tpu.concatenate %50, %55, %60, %65, %70, %75, %80, %85, %90, %95, %100, %105 in 2 : vector<1x12x64xf32>, vector<1x12x64xf32>, vector<1x12x64xf32>, vector<1x12x64xf32>, vector<1x12x64xf32>, vector<1x12x64xf32>, vector<1x12x64xf32>, vector<1x12x64xf32>, vector<1x12x64xf32>, vector<1x12x64xf32>, vector<1x12x64xf32>, vector<1x12x64xf32> -> vector<1x12x768xf32>
    %107 = arith.truncf %106 : vector<1x12x768xf32> to vector<1x12x768xbf16>
    %c0_13 = arith.constant 0 : index
    %c0_14 = arith.constant 0 : index
    %c0_15 = arith.constant 0 : index
    %108 = vector.load %arg6[%c0_13, %c0_14, %c0_15] : memref<1x12x768xbf16, #tpu.memory_space<vmem>>, vector<1x12x768xbf16>
    tpu.vector_store %arg6[%c0_13, %c0_14, %c0_15], %107 {strides = array<i32>} : memref<1x12x768xbf16, #tpu.memory_space<vmem>>, vector<1x12x768xbf16>,
    return
  }
  func.func @transform_0(%arg0: i32) -> (i32, i32, i32) {
    %c0_i32 = arith.constant 0 : i32
    %c0_i32_0 = arith.constant 0 : i32
    %c0_i32_1 = arith.constant 0 : i32
    return %arg0, %c0_i32, %c0_i32_0 : i32, i32, i32
  }
  func.func @transform_1(%arg0: i32) -> (i32, i32) {
    %c0_i32 = arith.constant 0 : i32
    %c0_i32_0 = arith.constant 0 : i32
    %c0_i32_1 = arith.constant 0 : i32
    return %c0_i32, %c0_i32_0 : i32, i32
  }
  func.func @transform_2(%arg0: i32) -> (i32, i32) {
    %c0_i32 = arith.constant 0 : i32
    %c0_i32_0 = arith.constant 0 : i32
    %c0_i32_1 = arith.constant 0 : i32
    return %c0_i32, %c0_i32_0 : i32, i32
  }
  func.func @transform_3(%arg0: i32) -> (i32, i32) {
    %c0_i32 = arith.constant 0 : i32
    %c0_i32_0 = arith.constant 0 : i32
    %c0_i32_1 = arith.constant 0 : i32
    return %c0_i32, %c0_i32_0 : i32, i32
  }
  func.func @transform_4(%arg0: i32) -> (i32, i32) {
    %c0_i32 = arith.constant 0 : i32
    %c0_i32_0 = arith.constant 0 : i32
    %c0_i32_1 = arith.constant 0 : i32
    return %c0_i32, %c0_i32_0 : i32, i32
  }
  func.func @transform_5(%arg0: i32) -> (i32, i32, i32) {
    %c0_i32 = arith.constant 0 : i32
    %c0_i32_0 = arith.constant 0 : i32
    %c0_i32_1 = arith.constant 0 : i32
    return %arg0, %c0_i32, %c0_i32_0 : i32, i32, i32
  }
}

module attributes {stable_mosaic.version = 11 : i64} {
  func.func @_fc_kernel(%arg0: i32, %arg1: memref<8x9216xbf16, #tpu.memory_space<vmem>>, %arg2: memref<9216x128xbf16, #tpu.memory_space<vmem>>, %arg3: memref<1x128xf32, #tpu.memory_space<vmem>>, %arg4: memref<128x128xbf16, #tpu.memory_space<vmem>>, %arg5: memref<1x128xf32, #tpu.memory_space<vmem>>, %arg6: memref<8x128xf32, #tpu.memory_space<vmem>>, %arg7: memref<8x128xf32, #tpu.memory_space<vmem>>) attributes {dimension_semantics = [#tpu.dimension_semantics<parallel>], iteration_bounds = array<i64: 1>, scalar_prefetch = 0 : i64, scratch_operands = 0 : i64, tpu.core_type = #tpu.core_type<tc>, window_params = [{transform_indices = @transform_0, window_bounds = array<i64: 8, 9216>}, {pipeline_mode = #tpu.pipeline_mode<synchronous>, transform_indices = @transform_1, window_bounds = array<i64: 9216, 128>}, {pipeline_mode = #tpu.pipeline_mode<synchronous>, transform_indices = @transform_2, window_bounds = array<i64: 1, 128>}, {pipeline_mode = #tpu.pipeline_mode<synchronous>, transform_indices = @transform_3, window_bounds = array<i64: 128, 128>}, {pipeline_mode = #tpu.pipeline_mode<synchronous>, transform_indices = @transform_4, window_bounds = array<i64: 1, 128>}, {transform_indices = @transform_5, window_bounds = array<i64: 8, 128>}, {transform_indices = @transform_6, window_bounds = array<i64: 8, 128>}]} {
    %c0 = arith.constant 0 : index
    %c0_0 = arith.constant 0 : index
    %0 = vector.load %arg1[%c0, %c0_0] : memref<8x9216xbf16, #tpu.memory_space<vmem>>, vector<8x9216xbf16>
    %c0_1 = arith.constant 0 : index
    %c0_2 = arith.constant 0 : index
    %1 = vector.load %arg2[%c0_1, %c0_2] : memref<9216x128xbf16, #tpu.memory_space<vmem>>, vector<9216x128xbf16>
    %cst = arith.constant dense<0.000000e+00> : vector<8x128xf32>
    %2 = tpu.matmul %0, %1, %cst {dimension_numbers = #tpu.dot_dimension_numbers<[1], [0], [0], [1], [0, 0, 1, 1], [], []>} : vector<8x9216xbf16>, vector<9216x128xbf16>, vector<8x128xf32> -> vector<8x128xf32>
    %c0_3 = arith.constant 0 : index
    %c0_4 = arith.constant 0 : index
    %3 = vector.load %arg3[%c0_3, %c0_4] : memref<1x128xf32, #tpu.memory_space<vmem>>, vector<1x128xf32>
    %4 = vector.broadcast %3 : vector<1x128xf32> to vector<8x128xf32>
    %5 = arith.addf %2, %4 : vector<8x128xf32>
    %6 = math.tanh %5 : vector<8x128xf32>
    %c0_5 = arith.constant 0 : index
    %c0_6 = arith.constant 0 : index
    %7 = vector.load %arg7[%c0_5, %c0_6] : memref<8x128xf32, #tpu.memory_space<vmem>>, vector<8x128xf32>
    tpu.vector_store %arg7[%c0_5, %c0_6], %6 {strides = array<i32>} : memref<8x128xf32, #tpu.memory_space<vmem>>, vector<8x128xf32>,
    %8 = arith.truncf %6 : vector<8x128xf32> to vector<8x128xbf16>
    %c0_7 = arith.constant 0 : index
    %c0_8 = arith.constant 0 : index
    %9 = vector.load %arg4[%c0_7, %c0_8] : memref<128x128xbf16, #tpu.memory_space<vmem>>, vector<128x128xbf16>
    %cst_9 = arith.constant dense<0.000000e+00> : vector<8x128xf32>
    %10 = tpu.matmul %8, %9, %cst_9 {dimension_numbers = #tpu.dot_dimension_numbers<[1], [0], [0], [1], [0, 0, 1, 1], [], []>} : vector<8x128xbf16>, vector<128x128xbf16>, vector<8x128xf32> -> vector<8x128xf32>
    %c0_10 = arith.constant 0 : index
    %c0_11 = arith.constant 0 : index
    %11 = vector.load %arg5[%c0_10, %c0_11] : memref<1x128xf32, #tpu.memory_space<vmem>>, vector<1x128xf32>
    %12 = vector.broadcast %11 : vector<1x128xf32> to vector<8x128xf32>
    %13 = arith.addf %10, %12 : vector<8x128xf32>
    %cst_12 = arith.constant dense<0xFF800000> : vector<8xf32>
    %14 = vector.multi_reduction <maximumf>, %13, %cst_12 [1] : vector<8x128xf32> to vector<8xf32>
    %15 = vector.shape_cast %14 : vector<8xf32> to vector<8x1xf32>
    %16 = vector.broadcast %15 : vector<8x1xf32> to vector<8x128xf32>
    %17 = arith.subf %13, %16 : vector<8x128xf32>
    %18 = math.exp %17 : vector<8x128xf32>
    %cst_13 = arith.constant dense<0.000000e+00> : vector<8xf32>
    %19 = vector.multi_reduction <add>, %18, %cst_13 [1] : vector<8x128xf32> to vector<8xf32>
    %20 = vector.shape_cast %19 : vector<8xf32> to vector<8x1xf32>
    %21 = vector.broadcast %20 : vector<8x1xf32> to vector<8x128xf32>
    %22 = arith.divf %18, %21 : vector<8x128xf32>
    %c0_14 = arith.constant 0 : index
    %c0_15 = arith.constant 0 : index
    %23 = vector.load %arg6[%c0_14, %c0_15] : memref<8x128xf32, #tpu.memory_space<vmem>>, vector<8x128xf32>
    tpu.vector_store %arg6[%c0_14, %c0_15], %22 {strides = array<i32>} : memref<8x128xf32, #tpu.memory_space<vmem>>, vector<8x128xf32>,
    return
  }
  func.func @transform_0(%arg0: i32) -> (i32, i32) {
    %c0_i32 = arith.constant 0 : i32
    %c0_i32_0 = arith.constant 0 : i32
    return %arg0, %c0_i32 : i32, i32
  }
  func.func @transform_1(%arg0: i32) -> (i32, i32) {
    %c0_i32 = arith.constant 0 : i32
    %c0_i32_0 = arith.constant 0 : i32
    %c0_i32_1 = arith.constant 0 : i32
    return %c0_i32, %c0_i32_0 : i32, i32
  }
  func.func @transform_2(%arg0: i32) -> (i32, i32) {
    %c0_i32 = arith.constant 0 : i32
    %c0_i32_0 = arith.constant 0 : i32
    %c0_i32_1 = arith.constant 0 : i32
    return %c0_i32, %c0_i32_0 : i32, i32
  }
  func.func @transform_3(%arg0: i32) -> (i32, i32) {
    %c0_i32 = arith.constant 0 : i32
    %c0_i32_0 = arith.constant 0 : i32
    %c0_i32_1 = arith.constant 0 : i32
    return %c0_i32, %c0_i32_0 : i32, i32
  }
  func.func @transform_4(%arg0: i32) -> (i32, i32) {
    %c0_i32 = arith.constant 0 : i32
    %c0_i32_0 = arith.constant 0 : i32
    %c0_i32_1 = arith.constant 0 : i32
    return %c0_i32, %c0_i32_0 : i32, i32
  }
  func.func @transform_5(%arg0: i32) -> (i32, i32) {
    %c0_i32 = arith.constant 0 : i32
    %c0_i32_0 = arith.constant 0 : i32
    return %arg0, %c0_i32 : i32, i32
  }
  func.func @transform_6(%arg0: i32) -> (i32, i32) {
    %c0_i32 = arith.constant 0 : i32
    %c0_i32_0 = arith.constant 0 : i32
    return %arg0, %c0_i32 : i32, i32
  }
}

</mosaic_0001>

<llo_original>
// kernel: generator_forward.2
$region0: #{generator_forward.2}
  #allocation0 [shape = 'u32[]', space=smem, size = 0x4, offset = 0x4, fixed_abs, tag = 'smem constant byte address 0x4 - core index']
  #allocation1 [shape = 'u32[72,128]{1,0:T(1,128)}', space=vmem, size = 0x9000, scoped, tag = 'internal scratch']
  %s0 = inlined_call_operand.vmem [shape: f32[2,9,832], index: 0, kind: input, shape index: {}]
  %s1 = inlined_call_operand.vmem [shape: bf16[32,9], index: 1, kind: input, shape index: {}]
  %s2 = inlined_call_operand.vmem [shape: f32[32,1], index: 2, kind: input, shape index: {}]
  %s3 = inlined_call_operand.vmem [shape: bf16[288,64], index: 3, kind: input, shape index: {}]
  %s4 = inlined_call_operand.hbm [shape: f32[1,64], index: 4, kind: input, shape index: {}]
  %s5 = inlined_call_operand.vmem [shape: bf16[2,12,768], index: 5, kind: output, shape index: {}]
  %s6 = sld [smem:[#allocation0]]
  $region57: #{generator_forward.2} parent=0
    _
  %s8 = ssub.s32 1, %s6
  %s9 = scalar_select 0, %s8, %s6
  $region1: #{generator_forward.2} parent=0
    #allocation2 [shape = 'u8[512]{0}', space=vmem, size = 0x400, scoped, tag = 'input window, operand 4, single buffered']
    #allocation3 [shape = 's32[2]{0}', space=sflag, size = 0x8, scoped, tag = 'scoped memory for generator_forward.2']
    %10 = vsyncpa [#allocation3], 0
    loop: start=0, step=1, limit=4
    $region2: #{generator_forward.2} parent=1 // loop_pre_header
      _
    $region3: #{generator_forward.2} parent=1 // loop_header
      %s12 = sphi 0, %s16
      %p13 = scmp.ge.s32.totalorder %s12, 4
      %s22 = sphi 0, %s24
      %s25 = sphi 0, %s22
      %s26 = sphi 0, %s25
      %s42 = sphi 0, %s26
      %s46 = sphi 0, %s46
      %s48 = sphi 0, %s46
      %s49 = sphi 0, %s48
      %s63 = sphi 0, %s49
      %s67 = sphi 0, %s67
      %s69 = sphi 0, %s67
      %s70 = sphi 0, %s69
      %s84 = sphi 0, %s70
      %s88 = sphi 0, %s88
      %s90 = sphi 0, %s88
      %s91 = sphi 0, %s90
      %s105 = sphi 0, %s91
      %s109 = sphi 0, %s109
      %s111 = sphi 0, %s109
      %s112 = sphi 0, %s111
      %s126 = sphi 0, %s112
      %s132 = sphi 0, %s134
      %s135 = sphi 0, %s132
      %s136 = sphi 0, %s135
      %s152 = sphi 0, %s136
    $region4: #{generator_forward.2} parent=1 // loop_header_branch
      %15 = sbr.rel (%p13) target = $region8
    $region5: #{generator_forward.2} parent=1 // loop_body
      %s17 = ssub.s32 %s12, 1
      %s18 = ssub.s32 %s12, 2
      %s19 = sadd.s32 %s12, 1
      %s20 = ssub.s32 %s12, %s19
      %p21 = scmp.eq.s32.totalorder %s20, 0
      %s23 = sadd.s32 %s22, 1
      %s24 = scalar_select %p21, %s22, %s23
      %p27 = pneg %p21
      %p28 = scmp.eq.s32.totalorder %s12, 1
      %p29 = por %p27, %p28
      %p30 = scmp.ne.s32.totalorder %s22, %s25
      %p31 = scmp.eq.s32.totalorder %s12, 0
      %p32 = por %p30, %p31
      %p33 = scmp.ne.s32.totalorder %s22, %s25
      %p34 = scmp.eq.s32.totalorder %s17, 1
      %p35 = por %p33, %p34
      %p36 = scmp.ne.s32.totalorder %s25, %s26
      %p37 = scmp.eq.s32.totalorder %s17, 0
      %p38 = por %p36, %p37
      %p39 = scmp.ne.s32.totalorder %s25, %s26
      %p40 = scmp.eq.s32.totalorder %s18, 1
      %p41 = por %p39, %p40
      %p43 = scmp.ne.s32.totalorder %s26, %s42
      %p44 = scmp.eq.s32.totalorder %s18, 0
      %p45 = por %p43, %p44
      %s47 = sadd.s32 %s46, 1
      %p50 = scmp.eq.s32.totalorder %s12, 1
      %p51 = scmp.ne.s32.totalorder %s46, %s48
      %p52 = scmp.eq.s32.totalorder %s12, 0
      %p53 = por %p51, %p52
      %p54 = scmp.ne.s32.totalorder %s46, %s48
      %p55 = scmp.eq.s32.totalorder %s17, 1
      %p56 = por %p54, %p55
      %p57 = scmp.ne.s32.totalorder %s48, %s49
      %p58 = scmp.eq.s32.totalorder %s17, 0
      %p59 = por %p57, %p58
      %p60 = scmp.ne.s32.totalorder %s48, %s49
      %p61 = scmp.eq.s32.totalorder %s18, 1
      %p62 = por %p60, %p61
      %p64 = scmp.ne.s32.totalorder %s49, %s63
      %p65 = scmp.eq.s32.totalorder %s18, 0
      %p66 = por %p64, %p65
      %s68 = sadd.s32 %s67, 1
      %p71 = scmp.eq.s32.totalorder %s12, 1
      %p72 = scmp.ne.s32.totalorder %s67, %s69
      %p73 = scmp.eq.s32.totalorder %s12, 0
      %p74 = por %p72, %p73
      %p75 = scmp.ne.s32.totalorder %s67, %s69
      %p76 = scmp.eq.s32.totalorder %s17, 1
      %p77 = por %p75, %p76
      %p78 = scmp.ne.s32.totalorder %s69, %s70
      %p79 = scmp.eq.s32.totalorder %s17, 0
      %p80 = por %p78, %p79
      %p81 = scmp.ne.s32.totalorder %s69, %s70
      %p82 = scmp.eq.s32.totalorder %s18, 1
      %p83 = por %p81, %p82
      %p85 = scmp.ne.s32.totalorder %s70, %s84
      %p86 = scmp.eq.s32.totalorder %s18, 0
      %p87 = por %p85, %p86
      %s89 = sadd.s32 %s88, 1
      %p92 = scmp.eq.s32.totalorder %s12, 1
      %p93 = scmp.ne.s32.totalorder %s88, %s90
      %p94 = scmp.eq.s32.totalorder %s12, 0
      %p95 = por %p93, %p94
      %p96 = scmp.ne.s32.totalorder %s88, %s90
      %p97 = scmp.eq.s32.totalorder %s17, 1
      %p98 = por %p96, %p97
      %p99 = scmp.ne.s32.totalorder %s90, %s91
      %p100 = scmp.eq.s32.totalorder %s17, 0
      %p101 = por %p99, %p100
      %p102 = scmp.ne.s32.totalorder %s90, %s91
      %p103 = scmp.eq.s32.totalorder %s18, 1
      %p104 = por %p102, %p103
      %p106 = scmp.ne.s32.totalorder %s91, %s105
      %p107 = scmp.eq.s32.totalorder %s18, 0
      %p108 = por %p106, %p107
      %s110 = sadd.s32 %s109, 1
      %p113 = scmp.eq.s32.totalorder %s12, 1
      %p114 = scmp.ne.s32.totalorder %s109, %s111
      %p115 = scmp.eq.s32.totalorder %s12, 0
      %p116 = por %p114, %p115
      %p117 = scmp.ne.s32.totalorder %s109, %s111
      %p118 = scmp.eq.s32.totalorder %s17, 1
      %p119 = por %p117, %p118
      %p120 = scmp.ne.s32.totalorder %s111, %s112
      %p121 = scmp.eq.s32.totalorder %s17, 0
      %p122 = por %p120, %p121
      %p123 = scmp.ne.s32.totalorder %s111, %s112
      %p124 = scmp.eq.s32.totalorder %s18, 1
      %p125 = por %p123, %p124
      %p127 = scmp.ne.s32.totalorder %s112, %s126
      %p128 = scmp.eq.s32.totalorder %s18, 0
      %p129 = por %p127, %p128
      %s130 = ssub.s32 %s12, %s19
      %p131 = scmp.eq.s32.totalorder %s130, 0
      %s133 = sadd.s32 %s132, 1
      %s134 = scalar_select %p131, %s132, %s133
      %p137 = pneg %p131
      %p138 = scmp.eq.s32.totalorder %s12, 1
      %p139 = por %p137, %p138
      %p140 = scmp.ne.s32.totalorder %s132, %s135
      %p141 = scmp.eq.s32.totalorder %s12, 0
      %p142 = por %p140, %p141
      %p143 = scmp.ne.s32.totalorder %s132, %s135
      %p144 = scmp.eq.s32.totalorder %s17, 1
      %p145 = por %p143, %p144
      %p146 = scmp.ne.s32.totalorder %s135, %s136
      %p147 = scmp.eq.s32.totalorder %s17, 0
      %p148 = por %p146, %p147
      %p149 = scmp.ne.s32.totalorder %s135, %s136
      %p150 = scmp.eq.s32.totalorder %s18, 1
      %p151 = por %p149, %p150
      %p153 = scmp.ne.s32.totalorder %s136, %s152
      %p154 = scmp.eq.s32.totalorder %s18, 0
      %p155 = por %p153, %p154
      %p156 = scmp.le.s32.totalorder 1, %s12
      %p157 = scmp.lt.s32.totalorder %s12, 3
      %p158 = pnand %p156, %p157
      %p159 = pneg %p158
      // Predicated region
      $region9: #{generator_forward.2} parent=5 // pred_check
        _
      $region10: #{generator_forward.2} parent=5 // pred_check_branch
        %161 = sbr.rel (%p158) target = $region12
      $region11: #{generator_forward.2} parent=5 // pred_region
        %s162 = ssub.s32 %s12, 1
        // Predicated region
        $region13: #{generator_forward.2} parent=11 // pred_check
          %p163 = pneg %p59
        $region14: #{generator_forward.2} parent=11 // pred_check_branch
          %165 = sbr.rel (%p163) target = $region16
        $region15: #{generator_forward.2} parent=11 // pred_region
          _
        $region16: #{generator_forward.2} parent=11 // pred_fallthru
          _
        // Predicated region
        $region17: #{generator_forward.2} parent=11 // pred_check
          %p166 = pneg %p80
        $region18: #{generator_forward.2} parent=11 // pred_check_branch
          %168 = sbr.rel (%p166) target = $region20
        $region19: #{generator_forward.2} parent=11 // pred_region
          _
        $region20: #{generator_forward.2} parent=11 // pred_fallthru
          _
        // Predicated region
        $region21: #{generator_forward.2} parent=11 // pred_check
          %p169 = pneg %p101
        $region22: #{generator_forward.2} parent=11 // pred_check_branch
          %171 = sbr.rel (%p169) target = $region24
        $region23: #{generator_forward.2} parent=11 // pred_region
          _
        $region24: #{generator_forward.2} parent=11 // pred_fallthru
          _
        // Predicated region
        $region25: #{generator_forward.2} parent=11 // pred_check
          %p172 = pneg %p122
        $region26: #{generator_forward.2} parent=11 // pred_check_branch
          %174 = sbr.rel (%p172) target = $region28
        $region27: #{generator_forward.2} parent=11 // pred_region
          %176 = vsyncadd [#allocation3], 0
          %s178 = sshll.u32 %s4, 4
          %s179 = int_to_ptr.hbm [resolvable:$true] %s178
          %s180 = sshll.u32 [#allocation2], 4
          %s181 = int_to_ptr.vmem [resolvable:$true] %s180
          %183 = dma.hbm_to_vmem [thread:$0]  %s179, 16, %s181, [#allocation3]
        $region28: #{generator_forward.2} parent=11 // pred_fallthru
          _
      $region12: #{generator_forward.2} parent=5 // pred_fallthru
        _
      %p184 = scmp.lt.s32.totalorder %s12, 2
      // Predicated region
      $region29: #{generator_forward.2} parent=5 // pred_check
        %p185 = pneg %p184
      $region30: #{generator_forward.2} parent=5 // pred_check_branch
        %187 = sbr.rel (%p185) target = $region32
      $region31: #{generator_forward.2} parent=5 // pred_region
        // Predicated region
        $region33: #{generator_forward.2} parent=31 // pred_check
          %p188 = pneg %p32
        $region34: #{generator_forward.2} parent=31 // pred_check_branch
          %190 = sbr.rel (%p188) target = $region36
        $region35: #{generator_forward.2} parent=31 // pred_region
          %p191 = scmp.lt.s32.totalorder %s12, 1
          %s192 = scalar_select %p191, %s12, 1
          %s193 = smul.addr %s192, 14
          %s194 = smul.addr %s193, 8
          %s195 = scalar_lea.vmem %s0, %s194
        $region36: #{generator_forward.2} parent=31 // pred_fallthru
          _
      $region32: #{generator_forward.2} parent=5 // pred_fallthru
        _
      %p196 = scmp.le.s32.totalorder 1, %s12
      %p197 = scmp.lt.s32.totalorder %s12, 3
      %p198 = pnand %p196, %p197
      %p199 = pneg %p198
      // Predicated region
      $region37: #{generator_forward.2} parent=5 // pred_check
        _
      $region38: #{generator_forward.2} parent=5 // pred_check_branch
        %201 = sbr.rel (%p198) target = $region40
      $region39: #{generator_forward.2} parent=5 // pred_region
        %s202 = ssub.s32 %s12, 1
        // Predicated region
        $region41: #{generator_forward.2} parent=39 // pred_check
          %p203 = pneg %p122
        $region42: #{generator_forward.2} parent=39 // pred_check_branch
          %205 = sbr.rel (%p203) target = $region44
        $region43: #{generator_forward.2} parent=39 // pred_region
          %207 = dma.done [#allocation3], 16
        $region44: #{generator_forward.2} parent=39 // pred_fallthru
          _
        %p208 = scmp.lt.s32.totalorder %s17, 1
        %s209 = scalar_select %p208, %s17, 1
        %s210 = smul.addr %s209, 14
        %s211 = smul.addr %s210, 8
        %s212 = scalar_lea.vmem %s0, %s211
        %p213 = pneg %p38
        %p214 = pneg %p35
        %p215 = pneg %p59
        %p216 = pneg %p56
        %p217 = pneg %p80
        %p218 = pneg %p77
        %p219 = pneg %p101
        %p220 = pneg %p98
        %p221 = pneg %p122
        %p222 = pneg %p119
        %p223 = pneg %p148
        %p224 = pneg %p145
        %p225 = scmp.lt.s32.totalorder %s17, 1
        %s226 = scalar_select %p225, %s17, 1
        %s227 = smul.addr %s226, 12
        %s228 = smul.addr %s227, 4
        %s229 = scalar_lea.vmem %s5, %s228
        %p230 = scmp.lt.s32.totalorder %s17, 1
        %s231 = scalar_select %p230, %s17, 1
        %s232 = smul.addr %s231, 14
        %s233 = smul.addr %s232, 8
        %s234 = scalar_lea.vmem %s0, %s233
        %p235 = scmp.lt.s32.totalorder %s17, 1
        %s236 = scalar_select %p235, %s17, 1
        %s237 = smul.addr %s236, 12
        %s238 = smul.addr %s237, 4
        %s239 = scalar_lea.vmem %s5, %s238
        %v241 = vld [vmem:[%s234] sm:$0xff]
        %v242 = vld [vmem:[%s234 + $0x8] sm:$0xff]
        %v243 = vld [vmem:[%s234 + $0x10] sm:$0xff]
        %v244 = vld [vmem:[%s234 + $0x18] sm:$0xff]
        %v245 = vld [vmem:[%s234 + $0x20] sm:$0xff]
        %v246 = vld [vmem:[%s234 + $0x28] sm:$0xff]
        %v247 = vld [vmem:[%s234 + $0x30] sm:$0xff]
        %v248 = vld [vmem:[%s234 + $0x38] sm:$0x1]
        %v249 = vld [vmem:[%s234 + $0x40] sm:$0x1]
        %v250 = vld [vmem:[%s234 + $0x48] sm:$0x1]
        %v251 = vld [vmem:[%s234 + $0x50] sm:$0x1]
        %v252 = vld [vmem:[%s234 + $0x58] sm:$0x1]
        %v253 = vld [vmem:[%s234 + $0x60] sm:$0x1]
        %v254 = vld [vmem:[%s234 + $0x68] sm:$0x1]
        %v255 = vpack.c.bf16 %v242, %v241
        %v256 = vpack.c.bf16 %v244, %v243
        %v257 = vpack.c.bf16 %v246, %v245
        %v258 = vpack.c.bf16 %v247, %v247
        %v259 = vpack.c.bf16 %v249, %v248
        %v260 = vpack.c.bf16 %v251, %v250
        %v261 = vpack.c.bf16 %v253, %v252
        %v262 = vpack.c.bf16 %v254, %v254
        %v263 = vld [vmem:[%s1] sm:$0xf]
        %v264 = vld [vmem:[%s1 + $0x4] sm:$0xf]
        %v265 = vld [vmem:[%s1 + $0x8] sm:$0xf]
        %v266 = vld [vmem:[%s1 + $0xc] sm:$0xf]
        %v267 = vld [vmem:[%s2] sm:$0xff]
        %v268 = vld [vmem:[%s2 + $0x8] sm:$0xff]
        %v269 = vld [vmem:[%s2 + $0x10] sm:$0xff]
        %v270 = vld [vmem:[%s2 + $0x18] sm:$0xff]
        %272 = vset.pattern.permute.xlu0 0
        %273 = vperm.xlu0 %272, %v267
        %v274 = vpop.permute.xlu0 %273
        %277 = vset.pattern.permute.xlu0 0
        %278 = vperm.xlu0 %277, %v268
        %v279 = vpop.permute.xlu0 %278
        %282 = vset.pattern.permute.xlu0 0
        %283 = vperm.xlu0 %282, %v269
        %v284 = vpop.permute.xlu0 %283
        %287 = vset.pattern.permute.xlu0 0
        %288 = vperm.xlu0 %287, %v270
        %v289 = vpop.permute.xlu0 %288
        %v295 = vunpack.c.l.b16 %v263
        %v296 = vunpack.c.l.b16 %v264
        %v297 = vunpack.c.l.b16 %v265
        %v298 = vunpack.c.l.b16 %v266
        %v299 = vpack.c.b16 %v296, %v295
        %v300 = vpack.c.b16 %v298, %v297
        %v309 = vunpack.c.l.b16 %v255
        %v310 = vunpack.c.h.b16 %v255
        %v311 = vunpack.c.l.b16 %v256
        %v312 = vunpack.c.h.b16 %v256
        %v313 = vunpack.c.l.b16 %v257
        %v314 = vunpack.c.h.b16 %v257
        %v315 = vunpack.c.l.b16 %v258
        %v316 = vunpack.c.l.b16 %v259
        %v317 = vunpack.c.h.b16 %v259
        %v318 = vunpack.c.l.b16 %v260
        %v319 = vunpack.c.h.b16 %v260
        %v320 = vunpack.c.l.b16 %v261
        %v321 = vunpack.c.h.b16 %v261
        %v322 = vunpack.c.l.b16 %v262
        %v323 = vpack.c.b16 %v316, %v309
        %v324 = vpack.c.b16 %v317, %v310
        %v325 = vpack.c.b16 %v318, %v311
        %v326 = vpack.c.b16 %v319, %v312
        %v327 = vpack.c.b16 %v320, %v313
        %v328 = vpack.c.b16 %v321, %v314
        %v329 = vpack.c.b16 %v322, %v315
        %vm330 = vcmask 72704
        %v332 = vsel %vm330, %v299, 0
        %v335 = vsel %vm330, %v300, 0
        %vm337 = vcmask 1043456
        %vm338 = vcmask 1044480
        %v339 = vsel %vm337, 4294967295, 65535
        %v340 = vsel %vm338, %v339, 0
        %v342 = vand.u32 %v323, %v340
        %v345 = vand.u32 %v324, %v340
        %v348 = vand.u32 %v325, %v340
        %v351 = vand.u32 %v326, %v340
        %v354 = vand.u32 %v327, %v340
        %v357 = vand.u32 %v328, %v340
        %v360 = vand.u32 %v329, %v340
        %362 = vmatpush.bf16.msra.mxu0 0
        %363 = vmatpush.bf16.msra.mxu0 0
        %364 = vmatpush.bf16.msra.mxu0 0
        %365 = vmatpush.bf16.msra.mxu0 0
        %366 = vmatpush.bf16.msra.mxu0 0
        %367 = vmatpush.bf16.msra.mxu0 0
        %368 = vmatpush.bf16.msra.mxu0 0
        %369 = vmatpush.bf16.msra.mxu0 %v342
        %370 = vmatmul.bf16.gmra.mxu0 %v332
        %v371 = vpop.f32.mrf.mxu0
        %v372 = vadd.f32 %v274, %v371
        %v373 = vpop.f32.mrf.mxu0
        %v374 = vadd.f32 %v279, %v373
        %375 = vmatmul.bf16.gmra.mxu0 %v335
        %v376 = vpop.f32.mrf.mxu0
        %v377 = vadd.f32 %v284, %v376
        %v378 = vpop.f32.mrf.mxu0
        %v379 = vadd.f32 %v289, %v378
        %380 = vdwg.mxu0
        %381 = vmatpush.bf16.msra.mxu0 0
        %382 = vmatpush.bf16.msra.mxu0 0
        %383 = vmatpush.bf16.msra.mxu0 0
        %384 = vmatpush.bf16.msra.mxu0 0
        %385 = vmatpush.bf16.msra.mxu0 0
        %386 = vmatpush.bf16.msra.mxu0 0
        %387 = vmatpush.bf16.msra.mxu0 0
        %388 = vmatpush.bf16.msra.mxu0 %v345
        %389 = vmatmul.bf16.gmra.mxu0 %v332
        %v390 = vpop.f32.mrf.mxu0
        %v391 = vadd.f32 %v274, %v390
        %v392 = vpop.f32.mrf.mxu0
        %v393 = vadd.f32 %v279, %v392
        %394 = vmatmul.bf16.gmra.mxu0 %v335
        %v395 = vpop.f32.mrf.mxu0
        %v396 = vadd.f32 %v284, %v395
        %v397 = vpop.f32.mrf.mxu0
        %v398 = vadd.f32 %v289, %v397
        %399 = vdwg.mxu0
        %400 = vmatpush.bf16.msra.mxu0 0
        %401 = vmatpush.bf16.msra.mxu0 0
        %402 = vmatpush.bf16.msra.mxu0 0
        %403 = vmatpush.bf16.msra.mxu0 0
        %404 = vmatpush.bf16.msra.mxu0 0
        %405 = vmatpush.bf16.msra.mxu0 0
        %406 = vmatpush.bf16.msra.mxu0 0
        %407 = vmatpush.bf16.msra.mxu0 %v348
        %408 = vmatmul.bf16.gmra.mxu0 %v332
        %v409 = vpop.f32.mrf.mxu0
        %v410 = vadd.f32 %v274, %v409
        %v411 = vpop.f32.mrf.mxu0
        %v412 = vadd.f32 %v279, %v411
        %413 = vmatmul.bf16.gmra.mxu0 %v335
        %v414 = vpop.f32.mrf.mxu0
        %v415 = vadd.f32 %v284, %v414
        %v416 = vpop.f32.mrf.mxu0
        %v417 = vadd.f32 %v289, %v416
        %418 = vdwg.mxu0
        %419 = vmatpush.bf16.msra.mxu0 0
        %420 = vmatpush.bf16.msra.mxu0 0
        %421 = vmatpush.bf16.msra.mxu0 0
        %422 = vmatpush.bf16.msra.mxu0 0
        %423 = vmatpush.bf16.msra.mxu0 0
        %424 = vmatpush.bf16.msra.mxu0 0
        %425 = vmatpush.bf16.msra.mxu0 0
        %426 = vmatpush.bf16.msra.mxu0 %v351
        %427 = vmatmul.bf16.gmra.mxu0 %v332
        %v428 = vpop.f32.mrf.mxu0
        %v429 = vadd.f32 %v274, %v428
        %v430 = vpop.f32.mrf.mxu0
        %v431 = vadd.f32 %v279, %v430
        %432 = vmatmul.bf16.gmra.mxu0 %v335
        %v433 = vpop.f32.mrf.mxu0
        %v434 = vadd.f32 %v284, %v433
        %v435 = vpop.f32.mrf.mxu0
        %v436 = vadd.f32 %v289, %v435
        %437 = vdwg.mxu0
        %438 = vmatpush.bf16.msra.mxu0 0
        %439 = vmatpush.bf16.msra.mxu0 0
        %440 = vmatpush.bf16.msra.mxu0 0
        %441 = vmatpush.bf16.msra.mxu0 0
        %442 = vmatpush.bf16.msra.mxu0 0
        %443 = vmatpush.bf16.msra.mxu0 0
        %444 = vmatpush.bf16.msra.mxu0 0
        %445 = vmatpush.bf16.msra.mxu0 %v354
        %446 = vmatmul.bf16.gmra.mxu0 %v332
        %v447 = vpop.f32.mrf.mxu0
        %v448 = vadd.f32 %v274, %v447
        %v449 = vpop.f32.mrf.mxu0
        %v450 = vadd.f32 %v279, %v449
        %451 = vmatmul.bf16.gmra.mxu0 %v335
        %v452 = vpop.f32.mrf.mxu0
        %v453 = vadd.f32 %v284, %v452
        %v454 = vpop.f32.mrf.mxu0
        %v455 = vadd.f32 %v289, %v454
        %456 = vdwg.mxu0
        %457 = vmatpush.bf16.msra.mxu0 0
        %458 = vmatpush.bf16.msra.mxu0 0
        %459 = vmatpush.bf16.msra.mxu0 0
        %460 = vmatpush.bf16.msra.mxu0 0
        %461 = vmatpush.bf16.msra.mxu0 0
        %462 = vmatpush.bf16.msra.mxu0 0
        %463 = vmatpush.bf16.msra.mxu0 0
        %464 = vmatpush.bf16.msra.mxu0 %v357
        %465 = vmatmul.bf16.gmra.mxu0 %v332
        %v466 = vpop.f32.mrf.mxu0
        %v467 = vadd.f32 %v274, %v466
        %v468 = vpop.f32.mrf.mxu0
        %v469 = vadd.f32 %v279, %v468
        %470 = vmatmul.bf16.gmra.mxu0 %v335
        %v471 = vpop.f32.mrf.mxu0
        %v472 = vadd.f32 %v284, %v471
        %v473 = vpop.f32.mrf.mxu0
        %v474 = vadd.f32 %v289, %v473
        %475 = vdwg.mxu0
        %476 = vmatpush.bf16.msra.mxu0 0
        %477 = vmatpush.bf16.msra.mxu0 0
        %478 = vmatpush.bf16.msra.mxu0 0
        %479 = vmatpush.bf16.msra.mxu0 0
        %480 = vmatpush.bf16.msra.mxu0 0
        %481 = vmatpush.bf16.msra.mxu0 0
        %482 = vmatpush.bf16.msra.mxu0 0
        %483 = vmatpush.bf16.msra.mxu0 %v360
        %484 = vmatmul.bf16.gmra.mxu0 %v332
        %v485 = vpop.f32.mrf.mxu0
        %v486 = vadd.f32 %v274, %v485
        %v487 = vpop.f32.mrf.mxu0
        %v488 = vadd.f32 %v279, %v487
        %489 = vmatmul.bf16.gmra.mxu0 %v335
        %v490 = vpop.f32.mrf.mxu0
        %v491 = vadd.f32 %v284, %v490
        %v492 = vpop.f32.mrf.mxu0
        %v493 = vadd.f32 %v289, %v492
        %494 = vdwg.mxu0
        %v495 = vmax.f32 %v372, 0.0
        %v496 = vmax.f32 %v391, 0.0
        %v497 = vmax.f32 %v410, 0.0
        %v498 = vmax.f32 %v429, 0.0
        %v499 = vmax.f32 %v448, 0.0
        %v500 = vmax.f32 %v467, 0.0
        %v501 = vmax.f32 %v486, 0.0
        %v502 = vmax.f32 %v374, 0.0
        %v503 = vmax.f32 %v393, 0.0
        %v504 = vmax.f32 %v412, 0.0
        %v505 = vmax.f32 %v431, 0.0
        %v506 = vmax.f32 %v450, 0.0
        %v507 = vmax.f32 %v469, 0.0
        %v508 = vmax.f32 %v488, 0.0
        %v509 = vmax.f32 %v377, 0.0
        %v510 = vmax.f32 %v396, 0.0
        %v511 = vmax.f32 %v415, 0.0
        %v512 = vmax.f32 %v434, 0.0
        %v513 = vmax.f32 %v453, 0.0
        %v514 = vmax.f32 %v472, 0.0
        %v515 = vmax.f32 %v491, 0.0
        %v516 = vmax.f32 %v379, 0.0
        %v517 = vmax.f32 %v398, 0.0
        %v518 = vmax.f32 %v417, 0.0
        %v519 = vmax.f32 %v436, 0.0
        %v520 = vmax.f32 %v455, 0.0
        %v521 = vmax.f32 %v474, 0.0
        %v522 = vmax.f32 %v493, 0.0
        %523 = vxpose.xlu0.b32.start [1/16] %v495, 128
        %524 = vxpose.xlu0.b32.cont [2/16] %v502, 128
        %525 = vxpose.xlu0.b32.cont [3/16] %v509, 128
        %526 = vxpose.xlu0.b32.cont [4/16] %v516, 128
        %527 = vxpose.xlu0.b32.cont [5/16] 0.0, 128
        %528 = vxpose.xlu0.b32.cont [6/16] 0.0, 128
        %529 = vxpose.xlu0.b32.cont [7/16] 0.0, 128
        %530 = vxpose.xlu0.b32.cont [8/16] 0.0, 128
        %531 = vxpose.xlu0.b32.cont [9/16] 0.0, 128
        %532 = vxpose.xlu0.b32.cont [10/16] 0.0, 128
        %533 = vxpose.xlu0.b32.cont [11/16] 0.0, 128
        %534 = vxpose.xlu0.b32.cont [12/16] 0.0, 128
        %535 = vxpose.xlu0.b32.cont [13/16] 0.0, 128
        %536 = vxpose.xlu0.b32.cont [14/16] 0.0, 128
        %537 = vxpose.xlu0.b32.cont [15/16] 0.0, 128
        %538 = vxpose.xlu0.b32.end [16/16] 0.0, 128
        %v539 = vpop.trf.xlu0
        %v540 = vpop.trf.xlu0
        %v541 = vpop.trf.xlu0
        %v542 = vpop.trf.xlu0
        %v543 = vpop.trf.xlu0
        %v544 = vpop.trf.xlu0
        %v545 = vpop.trf.xlu0
        %v546 = vpop.trf.xlu0
        %v547 = vpop.trf.xlu0
        %v548 = vpop.trf.xlu0
        %v549 = vpop.trf.xlu0
        %v550 = vpop.trf.xlu0
        %v551 = vpop.trf.xlu0
        %v552 = vpop.trf.xlu0
        %v553 = vpop.trf.xlu0
        %v554 = vpop.trf.xlu0
        %555 = vxpose.xlu0.b32.start [1/16] %v496, 128
        %556 = vxpose.xlu0.b32.cont [2/16] %v503, 128
        %557 = vxpose.xlu0.b32.cont [3/16] %v510, 128
        %558 = vxpose.xlu0.b32.cont [4/16] %v517, 128
        %559 = vxpose.xlu0.b32.cont [5/16] 0.0, 128
        %560 = vxpose.xlu0.b32.cont [6/16] 0.0, 128
        %561 = vxpose.xlu0.b32.cont [7/16] 0.0, 128
        %562 = vxpose.xlu0.b32.cont [8/16] 0.0, 128
        %563 = vxpose.xlu0.b32.cont [9/16] 0.0, 128
        %564 = vxpose.xlu0.b32.cont [10/16] 0.0, 128
        %565 = vxpose.xlu0.b32.cont [11/16] 0.0, 128
        %566 = vxpose.xlu0.b32.cont [12/16] 0.0, 128
        %567 = vxpose.xlu0.b32.cont [13/16] 0.0, 128
        %568 = vxpose.xlu0.b32.cont [14/16] 0.0, 128
        %569 = vxpose.xlu0.b32.cont [15/16] 0.0, 128
        %570 = vxpose.xlu0.b32.end [16/16] 0.0, 128
        %v571 = vpop.trf.xlu0
        %v572 = vpop.trf.xlu0
        %v573 = vpop.trf.xlu0
        %v574 = vpop.trf.xlu0
        %v575 = vpop.trf.xlu0
        %v576 = vpop.trf.xlu0
        %v577 = vpop.trf.xlu0
        %v578 = vpop.trf.xlu0
        %v579 = vpop.trf.xlu0
        %v580 = vpop.trf.xlu0
        %v581 = vpop.trf.xlu0
        %v582 = vpop.trf.xlu0
        %v583 = vpop.trf.xlu0
        %v584 = vpop.trf.xlu0
        %v585 = vpop.trf.xlu0
        %v586 = vpop.trf.xlu0
        %587 = vxpose.xlu0.b32.start [1/16] %v497, 128
        %588 = vxpose.xlu0.b32.cont [2/16] %v504, 128
        %589 = vxpose.xlu0.b32.cont [3/16] %v511, 128
        %590 = vxpose.xlu0.b32.cont [4/16] %v518, 128
        %591 = vxpose.xlu0.b32.cont [5/16] 0.0, 128
        %592 = vxpose.xlu0.b32.cont [6/16] 0.0, 128
        %593 = vxpose.xlu0.b32.cont [7/16] 0.0, 128
        %594 = vxpose.xlu0.b32.cont [8/16] 0.0, 128
        %595 = vxpose.xlu0.b32.cont [9/16] 0.0, 128
        %596 = vxpose.xlu0.b32.cont [10/16] 0.0, 128
        %597 = vxpose.xlu0.b32.cont [11/16] 0.0, 128
        %598 = vxpose.xlu0.b32.cont [12/16] 0.0, 128
        %599 = vxpose.xlu0.b32.cont [13/16] 0.0, 128
        %600 = vxpose.xlu0.b32.cont [14/16] 0.0, 128
        %601 = vxpose.xlu0.b32.cont [15/16] 0.0, 128
        %602 = vxpose.xlu0.b32.end [16/16] 0.0, 128
        %v603 = vpop.trf.xlu0
        %v604 = vpop.trf.xlu0
        %v605 = vpop.trf.xlu0
        %v606 = vpop.trf.xlu0
        %v607 = vpop.trf.xlu0
        %v608 = vpop.trf.xlu0
        %v609 = vpop.trf.xlu0
        %v610 = vpop.trf.xlu0
        %v611 = vpop.trf.xlu0
        %v612 = vpop.trf.xlu0
        %v613 = vpop.trf.xlu0
        %v614 = vpop.trf.xlu0
        %v615 = vpop.trf.xlu0
        %v616 = vpop.trf.xlu0
        %v617 = vpop.trf.xlu0
        %v618 = vpop.trf.xlu0
        %619 = vxpose.xlu0.b32.start [1/16] %v498, 128
        %620 = vxpose.xlu0.b32.cont [2/16] %v505, 128
        %621 = vxpose.xlu0.b32.cont [3/16] %v512, 128
        %622 = vxpose.xlu0.b32.cont [4/16] %v519, 128
        %623 = vxpose.xlu0.b32.cont [5/16] 0.0, 128
        %624 = vxpose.xlu0.b32.cont [6/16] 0.0, 128
        %625 = vxpose.xlu0.b32.cont [7/16] 0.0, 128
        %626 = vxpose.xlu0.b32.cont [8/16] 0.0, 128
        %627 = vxpose.xlu0.b32.cont [9/16] 0.0, 128
        %628 = vxpose.xlu0.b32.cont [10/16] 0.0, 128
        %629 = vxpose.xlu0.b32.cont [11/16] 0.0, 128
        %630 = vxpose.xlu0.b32.cont [12/16] 0.0, 128
        %631 = vxpose.xlu0.b32.cont [13/16] 0.0, 128
        %632 = vxpose.xlu0.b32.cont [14/16] 0.0, 128
        %633 = vxpose.xlu0.b32.cont [15/16] 0.0, 128
        %634 = vxpose.xlu0.b32.end [16/16] 0.0, 128
        %v635 = vpop.trf.xlu0
        %v636 = vpop.trf.xlu0
        %v637 = vpop.trf.xlu0
        %v638 = vpop.trf.xlu0
        %v639 = vpop.trf.xlu0
        %v640 = vpop.trf.xlu0
        %v641 = vpop.trf.xlu0
        %v642 = vpop.trf.xlu0
        %v643 = vpop.trf.xlu0
        %v644 = vpop.trf.xlu0
        %v645 = vpop.trf.xlu0
        %v646 = vpop.trf.xlu0
        %v647 = vpop.trf.xlu0
        %v648 = vpop.trf.xlu0
        %v649 = vpop.trf.xlu0
        %v650 = vpop.trf.xlu0
        %651 = vxpose.xlu0.b32.start [1/16] %v499, 128
        %652 = vxpose.xlu0.b32.cont [2/16] %v506, 128
        %653 = vxpose.xlu0.b32.cont [3/16] %v513, 128
        %654 = vxpose.xlu0.b32.cont [4/16] %v520, 128
        %655 = vxpose.xlu0.b32.cont [5/16] 0.0, 128
        %656 = vxpose.xlu0.b32.cont [6/16] 0.0, 128
        %657 = vxpose.xlu0.b32.cont [7/16] 0.0, 128
        %658 = vxpose.xlu0.b32.cont [8/16] 0.0, 128
        %659 = vxpose.xlu0.b32.cont [9/16] 0.0, 128
        %660 = vxpose.xlu0.b32.cont [10/16] 0.0, 128
        %661 = vxpose.xlu0.b32.cont [11/16] 0.0, 128
        %662 = vxpose.xlu0.b32.cont [12/16] 0.0, 128
        %663 = vxpose.xlu0.b32.cont [13/16] 0.0, 128
        %664 = vxpose.xlu0.b32.cont [14/16] 0.0, 128
        %665 = vxpose.xlu0.b32.cont [15/16] 0.0, 128
        %666 = vxpose.xlu0.b32.end [16/16] 0.0, 128
        %v667 = vpop.trf.xlu0
        %v668 = vpop.trf.xlu0
        %v669 = vpop.trf.xlu0
        %v670 = vpop.trf.xlu0
        %v671 = vpop.trf.xlu0
        %v672 = vpop.trf.xlu0
        %v673 = vpop.trf.xlu0
        %v674 = vpop.trf.xlu0
        %v675 = vpop.trf.xlu0
        %v676 = vpop.trf.xlu0
        %v677 = vpop.trf.xlu0
        %v678 = vpop.trf.xlu0
        %v679 = vpop.trf.xlu0
        %v680 = vpop.trf.xlu0
        %v681 = vpop.trf.xlu0
        %v682 = vpop.trf.xlu0
        %683 = vxpose.xlu0.b32.start [1/16] %v500, 128
        %684 = vxpose.xlu0.b32.cont [2/16] %v507, 128
        %685 = vxpose.xlu0.b32.cont [3/16] %v514, 128
        %686 = vxpose.xlu0.b32.cont [4/16] %v521, 128
        %687 = vxpose.xlu0.b32.cont [5/16] 0.0, 128
        %688 = vxpose.xlu0.b32.cont [6/16] 0.0, 128
        %689 = vxpose.xlu0.b32.cont [7/16] 0.0, 128
        %690 = vxpose.xlu0.b32.cont [8/16] 0.0, 128
        %691 = vxpose.xlu0.b32.cont [9/16] 0.0, 128
        %692 = vxpose.xlu0.b32.cont [10/16] 0.0, 128
        %693 = vxpose.xlu0.b32.cont [11/16] 0.0, 128
        %694 = vxpose.xlu0.b32.cont [12/16] 0.0, 128
        %695 = vxpose.xlu0.b32.cont [13/16] 0.0, 128
        %696 = vxpose.xlu0.b32.cont [14/16] 0.0, 128
        %697 = vxpose.xlu0.b32.cont [15/16] 0.0, 128
        %698 = vxpose.xlu0.b32.end [16/16] 0.0, 128
        %v699 = vpop.trf.xlu0
        %v700 = vpop.trf.xlu0
        %v701 = vpop.trf.xlu0
        %v702 = vpop.trf.xlu0
        %v703 = vpop.trf.xlu0
        %v704 = vpop.trf.xlu0
        %v705 = vpop.trf.xlu0
        %v706 = vpop.trf.xlu0
        %v707 = vpop.trf.xlu0
        %v708 = vpop.trf.xlu0
        %v709 = vpop.trf.xlu0
        %v710 = vpop.trf.xlu0
        %v711 = vpop.trf.xlu0
        %v712 = vpop.trf.xlu0
        %v713 = vpop.trf.xlu0
        %v714 = vpop.trf.xlu0
        %715 = vxpose.xlu0.b32.start [1/16] %v501, 128
        %716 = vxpose.xlu0.b32.cont [2/16] %v508, 128
        %717 = vxpose.xlu0.b32.cont [3/16] %v515, 128
        %718 = vxpose.xlu0.b32.cont [4/16] %v522, 128
        %719 = vxpose.xlu0.b32.cont [5/16] 0.0, 128
        %720 = vxpose.xlu0.b32.cont [6/16] 0.0, 128
        %721 = vxpose.xlu0.b32.cont [7/16] 0.0, 128
        %722 = vxpose.xlu0.b32.cont [8/16] 0.0, 128
        %723 = vxpose.xlu0.b32.cont [9/16] 0.0, 128
        %724 = vxpose.xlu0.b32.cont [10/16] 0.0, 128
        %725 = vxpose.xlu0.b32.cont [11/16] 0.0, 128
        %726 = vxpose.xlu0.b32.cont [12/16] 0.0, 128
        %727 = vxpose.xlu0.b32.cont [13/16] 0.0, 128
        %728 = vxpose.xlu0.b32.cont [14/16] 0.0, 128
        %729 = vxpose.xlu0.b32.cont [15/16] 0.0, 128
        %730 = vxpose.xlu0.b32.end [16/16] 0.0, 128
        %v731 = vpop.trf.xlu0
        %v732 = vpop.trf.xlu0
        %v733 = vpop.trf.xlu0
        %v734 = vpop.trf.xlu0
        %v735 = vpop.trf.xlu0
        %v736 = vpop.trf.xlu0
        %v737 = vpop.trf.xlu0
        %v738 = vpop.trf.xlu0
        %v739 = vpop.trf.xlu0
        %v740 = vpop.trf.xlu0
        %v741 = vpop.trf.xlu0
        %v742 = vpop.trf.xlu0
        %v743 = vpop.trf.xlu0
        %v744 = vpop.trf.xlu0
        %v745 = vpop.trf.xlu0
        %v746 = vpop.trf.xlu0
        %v747 = vpack.c.bf16 %v539, %v539
        %v748 = vpack.c.bf16 %v540, %v540
        %v749 = vpack.c.bf16 %v541, %v541
        %v750 = vpack.c.bf16 %v543, %v543
        %v751 = vpack.c.bf16 %v544, %v544
        %v752 = vpack.c.bf16 %v545, %v545
        %v753 = vpack.c.bf16 %v547, %v547
        %v754 = vpack.c.bf16 %v548, %v548
        %v755 = vpack.c.bf16 %v549, %v549
        %v756 = vpack.c.bf16 %v551, %v551
        %v757 = vpack.c.bf16 %v552, %v552
        %v758 = vpack.c.bf16 %v553, %v553
        %v759 = vpack.c.bf16 %v571, %v571
        %v760 = vpack.c.bf16 %v572, %v572
        %v761 = vpack.c.bf16 %v573, %v573
        %v762 = vpack.c.bf16 %v575, %v575
        %v763 = vpack.c.bf16 %v576, %v576
        %v764 = vpack.c.bf16 %v577, %v577
        %v765 = vpack.c.bf16 %v579, %v579
        %v766 = vpack.c.bf16 %v580, %v580
        %v767 = vpack.c.bf16 %v581, %v581
        %v768 = vpack.c.bf16 %v583, %v583
        %v769 = vpack.c.bf16 %v584, %v584
        %v770 = vpack.c.bf16 %v585, %v585
        %v771 = vpack.c.bf16 %v603, %v603
        %v772 = vpack.c.bf16 %v604, %v604
        %v773 = vpack.c.bf16 %v605, %v605
        %v774 = vpack.c.bf16 %v607, %v607
        %v775 = vpack.c.bf16 %v608, %v608
        %v776 = vpack.c.bf16 %v609, %v609
        %v777 = vpack.c.bf16 %v611, %v611
        %v778 = vpack.c.bf16 %v612, %v612
        %v779 = vpack.c.bf16 %v613, %v613
        %v780 = vpack.c.bf16 %v615, %v615
        %v781 = vpack.c.bf16 %v616, %v616
        %v782 = vpack.c.bf16 %v617, %v617
        %v783 = vpack.c.bf16 %v635, %v635
        %v784 = vpack.c.bf16 %v636, %v636
        %v785 = vpack.c.bf16 %v637, %v637
        %v786 = vpack.c.bf16 %v639, %v639
        %v787 = vpack.c.bf16 %v640, %v640
        %v788 = vpack.c.bf16 %v641, %v641
        %v789 = vpack.c.bf16 %v643, %v643
        %v790 = vpack.c.bf16 %v644, %v644
        %v791 = vpack.c.bf16 %v645, %v645
        %v792 = vpack.c.bf16 %v647, %v647
        %v793 = vpack.c.bf16 %v648, %v648
        %v794 = vpack.c.bf16 %v649, %v649
        %v795 = vpack.c.bf16 %v667, %v667
        %v796 = vpack.c.bf16 %v668, %v668
        %v797 = vpack.c.bf16 %v669, %v669
        %v798 = vpack.c.bf16 %v671, %v671
        %v799 = vpack.c.bf16 %v672, %v672
        %v800 = vpack.c.bf16 %v673, %v673
        %v801 = vpack.c.bf16 %v675, %v675
        %v802 = vpack.c.bf16 %v676, %v676
        %v803 = vpack.c.bf16 %v677, %v677
        %v804 = vpack.c.bf16 %v679, %v679
        %v805 = vpack.c.bf16 %v680, %v680
        %v806 = vpack.c.bf16 %v681, %v681
        %v807 = vpack.c.bf16 %v699, %v699
        %v808 = vpack.c.bf16 %v700, %v700
        %v809 = vpack.c.bf16 %v701, %v701
        %v810 = vpack.c.bf16 %v703, %v703
        %v811 = vpack.c.bf16 %v704, %v704
        %v812 = vpack.c.bf16 %v705, %v705
        %v813 = vpack.c.bf16 %v707, %v707
        %v814 = vpack.c.bf16 %v708, %v708
        %v815 = vpack.c.bf16 %v709, %v709
        %v816 = vpack.c.bf16 %v711, %v711
        %v817 = vpack.c.bf16 %v712, %v712
        %v818 = vpack.c.bf16 %v713, %v713
        %v819 = vpack.c.bf16 %v542, %v542
        %v820 = vpack.c.bf16 %v546, %v546
        %v821 = vpack.c.bf16 %v550, %v550
        %v822 = vpack.c.bf16 %v554, %v554
        %v823 = vpack.c.bf16 %v574, %v574
        %v824 = vpack.c.bf16 %v578, %v578
        %v825 = vpack.c.bf16 %v582, %v582
        %v826 = vpack.c.bf16 %v586, %v586
        %v827 = vpack.c.bf16 %v606, %v606
        %v828 = vpack.c.bf16 %v610, %v610
        %v829 = vpack.c.bf16 %v614, %v614
        %v830 = vpack.c.bf16 %v618, %v618
        %v831 = vpack.c.bf16 %v638, %v638
        %v832 = vpack.c.bf16 %v642, %v642
        %v833 = vpack.c.bf16 %v646, %v646
        %v834 = vpack.c.bf16 %v650, %v650
        %v835 = vpack.c.bf16 %v670, %v670
        %v836 = vpack.c.bf16 %v674, %v674
        %v837 = vpack.c.bf16 %v678, %v678
        %v838 = vpack.c.bf16 %v682, %v682
        %v839 = vpack.c.bf16 %v702, %v702
        %v840 = vpack.c.bf16 %v706, %v706
        %v841 = vpack.c.bf16 %v710, %v710
        %v842 = vpack.c.bf16 %v714, %v714
        %v843 = vpack.c.bf16 %v731, %v731
        %v844 = vpack.c.bf16 %v732, %v732
        %v845 = vpack.c.bf16 %v733, %v733
        %v846 = vpack.c.bf16 %v734, %v734
        %v847 = vpack.c.bf16 %v735, %v735
        %v848 = vpack.c.bf16 %v736, %v736
        %v849 = vpack.c.bf16 %v737, %v737
        %v850 = vpack.c.bf16 %v738, %v738
        %v923 = vunpack.c.l.b16 %v747
        %v924 = vunpack.c.l.b16 %v748
        %v925 = vunpack.c.l.b16 %v749
        %v926 = vunpack.c.l.b16 %v750
        %v927 = vunpack.c.l.b16 %v751
        %v928 = vunpack.c.l.b16 %v752
        %v929 = vunpack.c.l.b16 %v753
        %v930 = vunpack.c.l.b16 %v754
        %v931 = vunpack.c.l.b16 %v755
        %v932 = vunpack.c.l.b16 %v756
        %v933 = vunpack.c.l.b16 %v757
        %v934 = vunpack.c.l.b16 %v758
        %v935 = vunpack.c.l.b16 %v759
        %v936 = vunpack.c.l.b16 %v760
        %v937 = vunpack.c.l.b16 %v761
        %v938 = vunpack.c.l.b16 %v762
        %v939 = vunpack.c.l.b16 %v763
        %v940 = vunpack.c.l.b16 %v764
        %v941 = vunpack.c.l.b16 %v765
        %v942 = vunpack.c.l.b16 %v766
        %v943 = vunpack.c.l.b16 %v767
        %v944 = vunpack.c.l.b16 %v768
        %v945 = vunpack.c.l.b16 %v769
        %v946 = vunpack.c.l.b16 %v770
        %v947 = vunpack.c.l.b16 %v771
        %v948 = vunpack.c.l.b16 %v772
        %v949 = vunpack.c.l.b16 %v773
        %v950 = vunpack.c.l.b16 %v774
        %v951 = vunpack.c.l.b16 %v775
        %v952 = vunpack.c.l.b16 %v776
        %v953 = vunpack.c.l.b16 %v777
        %v954 = vunpack.c.l.b16 %v778
        %v955 = vunpack.c.l.b16 %v779
        %v956 = vunpack.c.l.b16 %v780
        %v957 = vunpack.c.l.b16 %v781
        %v958 = vunpack.c.l.b16 %v782
        %v959 = vunpack.c.l.b16 %v783
        %v960 = vunpack.c.l.b16 %v784
        %v961 = vunpack.c.l.b16 %v785
        %v962 = vunpack.c.l.b16 %v786
        %v963 = vunpack.c.l.b16 %v787
        %v964 = vunpack.c.l.b16 %v788
        %v965 = vunpack.c.l.b16 %v789
        %v966 = vunpack.c.l.b16 %v790
        %v967 = vunpack.c.l.b16 %v791
        %v968 = vunpack.c.l.b16 %v792
        %v969 = vunpack.c.l.b16 %v793
        %v970 = vunpack.c.l.b16 %v794
        %v971 = vunpack.c.l.b16 %v795
        %v972 = vunpack.c.l.b16 %v796
        %v973 = vunpack.c.l.b16 %v797
        %v974 = vunpack.c.l.b16 %v798
        %v975 = vunpack.c.l.b16 %v799
        %v976 = vunpack.c.l.b16 %v800
        %v977 = vunpack.c.l.b16 %v801
        %v978 = vunpack.c.l.b16 %v802
        %v979 = vunpack.c.l.b16 %v803
        %v980 = vunpack.c.l.b16 %v804
        %v981 = vunpack.c.l.b16 %v805
        %v982 = vunpack.c.l.b16 %v806
        %v983 = vunpack.c.l.b16 %v807
        %v984 = vunpack.c.l.b16 %v808
        %v985 = vunpack.c.l.b16 %v809
        %v986 = vunpack.c.l.b16 %v810
        %v987 = vunpack.c.l.b16 %v811
        %v988 = vunpack.c.l.b16 %v812
        %v989 = vunpack.c.l.b16 %v813
        %v990 = vunpack.c.l.b16 %v814
        %v991 = vunpack.c.l.b16 %v815
        %v992 = vunpack.c.l.b16 %v816
        %v993 = vunpack.c.l.b16 %v817
        %v994 = vunpack.c.l.b16 %v818
        %v995 = vpack.c.b16 %v924, %v923
        %v996 = vpack.c.b16 %v925, %v925
        %v997 = vpack.c.b16 %v927, %v926
        %v998 = vpack.c.b16 %v928, %v928
        %v999 = vpack.c.b16 %v930, %v929
        %v1000 = vpack.c.b16 %v931, %v931
        %v1001 = vpack.c.b16 %v933, %v932
        %v1002 = vpack.c.b16 %v934, %v934
        %v1003 = vpack.c.b16 %v936, %v935
        %v1004 = vpack.c.b16 %v937, %v937
        %v1005 = vpack.c.b16 %v939, %v938
        %v1006 = vpack.c.b16 %v940, %v940
        %v1007 = vpack.c.b16 %v942, %v941
        %v1008 = vpack.c.b16 %v943, %v943
        %v1009 = vpack.c.b16 %v945, %v944
        %v1010 = vpack.c.b16 %v946, %v946
        %v1011 = vpack.c.b16 %v948, %v947
        %v1012 = vpack.c.b16 %v949, %v949
        %v1013 = vpack.c.b16 %v951, %v950
        %v1014 = vpack.c.b16 %v952, %v952
        %v1015 = vpack.c.b16 %v954, %v953
        %v1016 = vpack.c.b16 %v955, %v955
        %v1017 = vpack.c.b16 %v957, %v956
        %v1018 = vpack.c.b16 %v958, %v958
        %v1019 = vpack.c.b16 %v960, %v959
        %v1020 = vpack.c.b16 %v961, %v961
        %v1021 = vpack.c.b16 %v963, %v962
        %v1022 = vpack.c.b16 %v964, %v964
        %v1023 = vpack.c.b16 %v966, %v965
        %v1024 = vpack.c.b16 %v967, %v967
        %v1025 = vpack.c.b16 %v969, %v968
        %v1026 = vpack.c.b16 %v970, %v970
        %v1027 = vpack.c.b16 %v972, %v971
        %v1028 = vpack.c.b16 %v973, %v973
        %v1029 = vpack.c.b16 %v975, %v974
        %v1030 = vpack.c.b16 %v976, %v976
        %v1031 = vpack.c.b16 %v978, %v977
        %v1032 = vpack.c.b16 %v979, %v979
        %v1033 = vpack.c.b16 %v981, %v980
        %v1034 = vpack.c.b16 %v982, %v982
        %v1035 = vpack.c.b16 %v984, %v983
        %v1036 = vpack.c.b16 %v985, %v985
        %v1037 = vpack.c.b16 %v987, %v986
        %v1038 = vpack.c.b16 %v988, %v988
        %v1039 = vpack.c.b16 %v990, %v989
        %v1040 = vpack.c.b16 %v991, %v991
        %v1041 = vpack.c.b16 %v993, %v992
        %v1042 = vpack.c.b16 %v994, %v994
        %v1067 = vunpack.c.l.b16 %v819
        %v1068 = vunpack.c.l.b16 %v820
        %v1069 = vunpack.c.l.b16 %v821
        %v1070 = vunpack.c.l.b16 %v822
        %v1071 = vunpack.c.l.b16 %v823
        %v1072 = vunpack.c.l.b16 %v824
        %v1073 = vunpack.c.l.b16 %v825
        %v1074 = vunpack.c.l.b16 %v826
        %v1075 = vunpack.c.l.b16 %v827
        %v1076 = vunpack.c.l.b16 %v828
        %v1077 = vunpack.c.l.b16 %v829
        %v1078 = vunpack.c.l.b16 %v830
        %v1079 = vunpack.c.l.b16 %v831
        %v1080 = vunpack.c.l.b16 %v832
        %v1081 = vunpack.c.l.b16 %v833
        %v1082 = vunpack.c.l.b16 %v834
        %v1083 = vunpack.c.l.b16 %v835
        %v1084 = vunpack.c.l.b16 %v836
        %v1085 = vunpack.c.l.b16 %v837
        %v1086 = vunpack.c.l.b16 %v838
        %v1087 = vunpack.c.l.b16 %v839
        %v1088 = vunpack.c.l.b16 %v840
        %v1089 = vunpack.c.l.b16 %v841
        %v1090 = vunpack.c.l.b16 %v842
        %v1091 = vpack.c.b16 %v1067, %v925
        %v1092 = vpack.c.b16 %v1068, %v928
        %v1093 = vpack.c.b16 %v1069, %v931
        %v1094 = vpack.c.b16 %v1070, %v934
        %v1095 = vpack.c.b16 %v1071, %v937
        %v1096 = vpack.c.b16 %v1072, %v940
        %v1097 = vpack.c.b16 %v1073, %v943
        %v1098 = vpack.c.b16 %v1074, %v946
        %v1099 = vpack.c.b16 %v1075, %v949
        %v1100 = vpack.c.b16 %v1076, %v952
        %v1101 = vpack.c.b16 %v1077, %v955
        %v1102 = vpack.c.b16 %v1078, %v958
        %v1103 = vpack.c.b16 %v1079, %v961
        %v1104 = vpack.c.b16 %v1080, %v964
        %v1105 = vpack.c.b16 %v1081, %v967
        %v1106 = vpack.c.b16 %v1082, %v970
        %v1107 = vpack.c.b16 %v1083, %v973
        %v1108 = vpack.c.b16 %v1084, %v976
        %v1109 = vpack.c.b16 %v1085, %v979
        %v1110 = vpack.c.b16 %v1086, %v982
        %v1111 = vpack.c.b16 %v1087, %v985
        %v1112 = vpack.c.b16 %v1088, %v988
        %v1113 = vpack.c.b16 %v1089, %v991
        %v1114 = vpack.c.b16 %v1090, %v994
        %vm1115 = vsmask.f32 7424
        %v1117 = vshrl.u32 %v995, 16
        %v1119 = vshll.u32 %v995, 16
        %v1121 = vrot.slane %v1119, 1
        %v1122 = vor.u32 %v1117, %v1121
        %v1124 = vshll.u32 %v1091, 16
        %v1126 = vrot.slane %v1124, 1
        %v1127 = vsel %vm1115, %v1122, %v1126
        %v1128 = vshrl.u32 %v1091, 16
        %v1130 = vor.u32 %v1128, %v1126
        %v1132 = vshrl.u32 %v997, 16
        %v1134 = vshll.u32 %v997, 16
        %v1136 = vrot.slane %v1134, 1
        %v1137 = vor.u32 %v1132, %v1136
        %v1139 = vshll.u32 %v1092, 16
        %v1141 = vrot.slane %v1139, 1
        %v1142 = vsel %vm1115, %v1137, %v1141
        %v1143 = vshrl.u32 %v1092, 16
        %v1145 = vor.u32 %v1143, %v1141
        %v1147 = vshrl.u32 %v999, 16
        %v1149 = vshll.u32 %v999, 16
        %v1151 = vrot.slane %v1149, 1
        %v1152 = vor.u32 %v1147, %v1151
        %v1154 = vshll.u32 %v1093, 16
        %v1156 = vrot.slane %v1154, 1
        %v1157 = vsel %vm1115, %v1152, %v1156
        %v1158 = vshrl.u32 %v1093, 16
        %v1160 = vor.u32 %v1158, %v1156
        %v1162 = vshrl.u32 %v1001, 16
        %v1164 = vshll.u32 %v1001, 16
        %v1166 = vrot.slane %v1164, 1
        %v1167 = vor.u32 %v1162, %v1166
        %v1169 = vshll.u32 %v1094, 16
        %v1171 = vrot.slane %v1169, 1
        %v1172 = vsel %vm1115, %v1167, %v1171
        %v1173 = vshrl.u32 %v1094, 16
        %v1175 = vor.u32 %v1173, %v1171
        %v1177 = vshrl.u32 %v1003, 16
        %v1179 = vshll.u32 %v1003, 16
        %v1181 = vrot.slane %v1179, 1
        %v1182 = vor.u32 %v1177, %v1181
        %v1184 = vshll.u32 %v1095, 16
        %v1186 = vrot.slane %v1184, 1
        %v1187 = vsel %vm1115, %v1182, %v1186
        %v1188 = vshrl.u32 %v1095, 16
        %v1190 = vor.u32 %v1188, %v1186
        %v1192 = vshrl.u32 %v1005, 16
        %v1194 = vshll.u32 %v1005, 16
        %v1196 = vrot.slane %v1194, 1
        %v1197 = vor.u32 %v1192, %v1196
        %v1199 = vshll.u32 %v1096, 16
        %v1201 = vrot.slane %v1199, 1
        %v1202 = vsel %vm1115, %v1197, %v1201
        %v1203 = vshrl.u32 %v1096, 16
        %v1205 = vor.u32 %v1203, %v1201
        %v1207 = vshrl.u32 %v1007, 16
        %v1209 = vshll.u32 %v1007, 16
        %v1211 = vrot.slane %v1209, 1
        %v1212 = vor.u32 %v1207, %v1211
        %v1214 = vshll.u32 %v1097, 16
        %v1216 = vrot.slane %v1214, 1
        %v1217 = vsel %vm1115, %v1212, %v1216
        %v1218 = vshrl.u32 %v1097, 16
        %v1220 = vor.u32 %v1218, %v1216
        %v1222 = vshrl.u32 %v1009, 16
        %v1224 = vshll.u32 %v1009, 16
        %v1226 = vrot.slane %v1224, 1
        %v1227 = vor.u32 %v1222, %v1226
        %v1229 = vshll.u32 %v1098, 16
        %v1231 = vrot.slane %v1229, 1
        %v1232 = vsel %vm1115, %v1227, %v1231
        %v1233 = vshrl.u32 %v1098, 16
        %v1235 = vor.u32 %v1233, %v1231
        %v1237 = vshrl.u32 %v1011, 16
        %v1239 = vshll.u32 %v1011, 16
        %v1241 = vrot.slane %v1239, 1
        %v1242 = vor.u32 %v1237, %v1241
        %v1244 = vshll.u32 %v1099, 16
        %v1246 = vrot.slane %v1244, 1
        %v1247 = vsel %vm1115, %v1242, %v1246
        %v1248 = vshrl.u32 %v1099, 16
        %v1250 = vor.u32 %v1248, %v1246
        %v1252 = vshrl.u32 %v1013, 16
        %v1254 = vshll.u32 %v1013, 16
        %v1256 = vrot.slane %v1254, 1
        %v1257 = vor.u32 %v1252, %v1256
        %v1259 = vshll.u32 %v1100, 16
        %v1261 = vrot.slane %v1259, 1
        %v1262 = vsel %vm1115, %v1257, %v1261
        %v1263 = vshrl.u32 %v1100, 16
        %v1265 = vor.u32 %v1263, %v1261
        %v1267 = vshrl.u32 %v1015, 16
        %v1269 = vshll.u32 %v1015, 16
        %v1271 = vrot.slane %v1269, 1
        %v1272 = vor.u32 %v1267, %v1271
        %v1274 = vshll.u32 %v1101, 16
        %v1276 = vrot.slane %v1274, 1
        %v1277 = vsel %vm1115, %v1272, %v1276
        %v1278 = vshrl.u32 %v1101, 16
        %v1280 = vor.u32 %v1278, %v1276
        %v1282 = vshrl.u32 %v1017, 16
        %v1284 = vshll.u32 %v1017, 16
        %v1286 = vrot.slane %v1284, 1
        %v1287 = vor.u32 %v1282, %v1286
        %v1289 = vshll.u32 %v1102, 16
        %v1291 = vrot.slane %v1289, 1
        %v1292 = vsel %vm1115, %v1287, %v1291
        %v1293 = vshrl.u32 %v1102, 16
        %v1295 = vor.u32 %v1293, %v1291
        %v1297 = vshrl.u32 %v1019, 16
        %v1299 = vshll.u32 %v1019, 16
        %v1301 = vrot.slane %v1299, 1
        %v1302 = vor.u32 %v1297, %v1301
        %v1304 = vshll.u32 %v1103, 16
        %v1306 = vrot.slane %v1304, 1
        %v1307 = vsel %vm1115, %v1302, %v1306
        %v1308 = vshrl.u32 %v1103, 16
        %v1310 = vor.u32 %v1308, %v1306
        %v1312 = vshrl.u32 %v1021, 16
        %v1314 = vshll.u32 %v1021, 16
        %v1316 = vrot.slane %v1314, 1
        %v1317 = vor.u32 %v1312, %v1316
        %v1319 = vshll.u32 %v1104, 16
        %v1321 = vrot.slane %v1319, 1
        %v1322 = vsel %vm1115, %v1317, %v1321
        %v1323 = vshrl.u32 %v1104, 16
        %v1325 = vor.u32 %v1323, %v1321
        %v1327 = vshrl.u32 %v1023, 16
        %v1329 = vshll.u32 %v1023, 16
        %v1331 = vrot.slane %v1329, 1
        %v1332 = vor.u32 %v1327, %v1331
        %v1334 = vshll.u32 %v1105, 16
        %v1336 = vrot.slane %v1334, 1
        %v1337 = vsel %vm1115, %v1332, %v1336
        %v1338 = vshrl.u32 %v1105, 16
        %v1340 = vor.u32 %v1338, %v1336
        %v1342 = vshrl.u32 %v1025, 16
        %v1344 = vshll.u32 %v1025, 16
        %v1346 = vrot.slane %v1344, 1
        %v1347 = vor.u32 %v1342, %v1346
        %v1349 = vshll.u32 %v1106, 16
        %v1351 = vrot.slane %v1349, 1
        %v1352 = vsel %vm1115, %v1347, %v1351
        %v1353 = vshrl.u32 %v1106, 16
        %v1355 = vor.u32 %v1353, %v1351
        %v1357 = vshrl.u32 %v1027, 16
        %v1359 = vshll.u32 %v1027, 16
        %v1361 = vrot.slane %v1359, 1
        %v1362 = vor.u32 %v1357, %v1361
        %v1364 = vshll.u32 %v1107, 16
        %v1366 = vrot.slane %v1364, 1
        %v1367 = vsel %vm1115, %v1362, %v1366
        %v1368 = vshrl.u32 %v1107, 16
        %v1370 = vor.u32 %v1368, %v1366
        %v1372 = vshrl.u32 %v1029, 16
        %v1374 = vshll.u32 %v1029, 16
        %v1376 = vrot.slane %v1374, 1
        %v1377 = vor.u32 %v1372, %v1376
        %v1379 = vshll.u32 %v1108, 16
        %v1381 = vrot.slane %v1379, 1
        %v1382 = vsel %vm1115, %v1377, %v1381
        %v1383 = vshrl.u32 %v1108, 16
        %v1385 = vor.u32 %v1383, %v1381
        %v1387 = vshrl.u32 %v1031, 16
        %v1389 = vshll.u32 %v1031, 16
        %v1391 = vrot.slane %v1389, 1
        %v1392 = vor.u32 %v1387, %v1391
        %v1394 = vshll.u32 %v1109, 16
        %v1396 = vrot.slane %v1394, 1
        %v1397 = vsel %vm1115, %v1392, %v1396
        %v1398 = vshrl.u32 %v1109, 16
        %v1400 = vor.u32 %v1398, %v1396
        %v1402 = vshrl.u32 %v1033, 16
        %v1404 = vshll.u32 %v1033, 16
        %v1406 = vrot.slane %v1404, 1
        %v1407 = vor.u32 %v1402, %v1406
        %v1409 = vshll.u32 %v1110, 16
        %v1411 = vrot.slane %v1409, 1
        %v1412 = vsel %vm1115, %v1407, %v1411
        %v1413 = vshrl.u32 %v1110, 16
        %v1415 = vor.u32 %v1413, %v1411
        %v1417 = vshrl.u32 %v1035, 16
        %v1419 = vshll.u32 %v1035, 16
        %v1421 = vrot.slane %v1419, 1
        %v1422 = vor.u32 %v1417, %v1421
        %v1424 = vshll.u32 %v1111, 16
        %v1426 = vrot.slane %v1424, 1
        %v1427 = vsel %vm1115, %v1422, %v1426
        %v1428 = vshrl.u32 %v1111, 16
        %v1430 = vor.u32 %v1428, %v1426
        %v1432 = vshrl.u32 %v1037, 16
        %v1434 = vshll.u32 %v1037, 16
        %v1436 = vrot.slane %v1434, 1
        %v1437 = vor.u32 %v1432, %v1436
        %v1439 = vshll.u32 %v1112, 16
        %v1441 = vrot.slane %v1439, 1
        %v1442 = vsel %vm1115, %v1437, %v1441
        %v1443 = vshrl.u32 %v1112, 16
        %v1445 = vor.u32 %v1443, %v1441
        %v1447 = vshrl.u32 %v1039, 16
        %v1449 = vshll.u32 %v1039, 16
        %v1451 = vrot.slane %v1449, 1
        %v1452 = vor.u32 %v1447, %v1451
        %v1454 = vshll.u32 %v1113, 16
        %v1456 = vrot.slane %v1454, 1
        %v1457 = vsel %vm1115, %v1452, %v1456
        %v1458 = vshrl.u32 %v1113, 16
        %v1460 = vor.u32 %v1458, %v1456
        %v1462 = vshrl.u32 %v1041, 16
        %v1464 = vshll.u32 %v1041, 16
        %v1466 = vrot.slane %v1464, 1
        %v1467 = vor.u32 %v1462, %v1466
        %v1469 = vshll.u32 %v1114, 16
        %v1471 = vrot.slane %v1469, 1
        %v1472 = vsel %vm1115, %v1467, %v1471
        %v1473 = vshrl.u32 %v1114, 16
        %v1475 = vor.u32 %v1473, %v1471
        %1476 = vrot.lane.b32.xlu0 %v1127, 32
        %v1477 = vpop.permute.xlu0 %1476
        %1478 = vrot.lane.b32.xlu0 %v1130, 32
        %v1479 = vpop.permute.xlu0 %1478
        %1480 = vrot.lane.b32.xlu0 %v1142, 32
        %v1481 = vpop.permute.xlu0 %1480
        %1482 = vrot.lane.b32.xlu0 %v1145, 32
        %v1483 = vpop.permute.xlu0 %1482
        %1484 = vrot.lane.b32.xlu0 %v1157, 32
        %v1485 = vpop.permute.xlu0 %1484
        %1486 = vrot.lane.b32.xlu0 %v1160, 32
        %v1487 = vpop.permute.xlu0 %1486
        %1488 = vrot.lane.b32.xlu0 %v1172, 32
        %v1489 = vpop.permute.xlu0 %1488
        %1490 = vrot.lane.b32.xlu0 %v1175, 32
        %v1491 = vpop.permute.xlu0 %1490
        %1492 = vrot.lane.b32.xlu0 %v1187, 32
        %v1493 = vpop.permute.xlu0 %1492
        %1494 = vrot.lane.b32.xlu0 %v1190, 32
        %v1495 = vpop.permute.xlu0 %1494
        %1496 = vrot.lane.b32.xlu0 %v1202, 32
        %v1497 = vpop.permute.xlu0 %1496
        %1498 = vrot.lane.b32.xlu0 %v1205, 32
        %v1499 = vpop.permute.xlu0 %1498
        %1500 = vrot.lane.b32.xlu0 %v1217, 32
        %v1501 = vpop.permute.xlu0 %1500
        %1502 = vrot.lane.b32.xlu0 %v1220, 32
        %v1503 = vpop.permute.xlu0 %1502
        %1504 = vrot.lane.b32.xlu0 %v1232, 32
        %v1505 = vpop.permute.xlu0 %1504
        %1506 = vrot.lane.b32.xlu0 %v1235, 32
        %v1507 = vpop.permute.xlu0 %1506
        %1508 = vrot.lane.b32.xlu0 %v1247, 32
        %v1509 = vpop.permute.xlu0 %1508
        %1510 = vrot.lane.b32.xlu0 %v1250, 32
        %v1511 = vpop.permute.xlu0 %1510
        %1512 = vrot.lane.b32.xlu0 %v1262, 32
        %v1513 = vpop.permute.xlu0 %1512
        %1514 = vrot.lane.b32.xlu0 %v1265, 32
        %v1515 = vpop.permute.xlu0 %1514
        %1516 = vrot.lane.b32.xlu0 %v1277, 32
        %v1517 = vpop.permute.xlu0 %1516
        %1518 = vrot.lane.b32.xlu0 %v1280, 32
        %v1519 = vpop.permute.xlu0 %1518
        %1520 = vrot.lane.b32.xlu0 %v1292, 32
        %v1521 = vpop.permute.xlu0 %1520
        %1522 = vrot.lane.b32.xlu0 %v1295, 32
        %v1523 = vpop.permute.xlu0 %1522
        %1524 = vrot.lane.b32.xlu0 %v1307, 32
        %v1525 = vpop.permute.xlu0 %1524
        %1526 = vrot.lane.b32.xlu0 %v1310, 32
        %v1527 = vpop.permute.xlu0 %1526
        %1528 = vrot.lane.b32.xlu0 %v1322, 32
        %v1529 = vpop.permute.xlu0 %1528
        %1530 = vrot.lane.b32.xlu0 %v1325, 32
        %v1531 = vpop.permute.xlu0 %1530
        %1532 = vrot.lane.b32.xlu0 %v1337, 32
        %v1533 = vpop.permute.xlu0 %1532
        %1534 = vrot.lane.b32.xlu0 %v1340, 32
        %v1535 = vpop.permute.xlu0 %1534
        %1536 = vrot.lane.b32.xlu0 %v1352, 32
        %v1537 = vpop.permute.xlu0 %1536
        %1538 = vrot.lane.b32.xlu0 %v1355, 32
        %v1539 = vpop.permute.xlu0 %1538
        %1540 = vrot.lane.b32.xlu0 %v1367, 32
        %v1541 = vpop.permute.xlu0 %1540
        %1542 = vrot.lane.b32.xlu0 %v1370, 32
        %v1543 = vpop.permute.xlu0 %1542
        %1544 = vrot.lane.b32.xlu0 %v1382, 32
        %v1545 = vpop.permute.xlu0 %1544
        %1546 = vrot.lane.b32.xlu0 %v1385, 32
        %v1547 = vpop.permute.xlu0 %1546
        %1548 = vrot.lane.b32.xlu0 %v1397, 32
        %v1549 = vpop.permute.xlu0 %1548
        %1550 = vrot.lane.b32.xlu0 %v1400, 32
        %v1551 = vpop.permute.xlu0 %1550
        %1552 = vrot.lane.b32.xlu0 %v1412, 32
        %v1553 = vpop.permute.xlu0 %1552
        %1554 = vrot.lane.b32.xlu0 %v1415, 32
        %v1555 = vpop.permute.xlu0 %1554
        %1556 = vrot.lane.b32.xlu0 %v1427, 32
        %v1557 = vpop.permute.xlu0 %1556
        %1558 = vrot.lane.b32.xlu0 %v1430, 32
        %v1559 = vpop.permute.xlu0 %1558
        %1560 = vrot.lane.b32.xlu0 %v1442, 32
        %v1561 = vpop.permute.xlu0 %1560
        %1562 = vrot.lane.b32.xlu0 %v1445, 32
        %v1563 = vpop.permute.xlu0 %1562
        %1564 = vrot.lane.b32.xlu0 %v1457, 32
        %v1565 = vpop.permute.xlu0 %1564
        %1566 = vrot.lane.b32.xlu0 %v1460, 32
        %v1567 = vpop.permute.xlu0 %1566
        %1568 = vrot.lane.b32.xlu0 %v1472, 32
        %v1569 = vpop.permute.xlu0 %1568
        %1570 = vrot.lane.b32.xlu0 %v1475, 32
        %v1571 = vpop.permute.xlu0 %1570
        %vm1572 = vcmask 1046528
        %v1573 = vrot.slane %v995, 1
        %v1574 = vrot.slane %v1091, 1
        %v1575 = vsel %vm1572, %v1573, %v1574
        %v1576 = vrot.slane %v997, 1
        %v1577 = vrot.slane %v1092, 1
        %v1578 = vsel %vm1572, %v1576, %v1577
        %v1579 = vrot.slane %v999, 1
        %v1580 = vrot.slane %v1093, 1
        %v1581 = vsel %vm1572, %v1579, %v1580
        %v1582 = vrot.slane %v1001, 1
        %v1583 = vrot.slane %v1094, 1
        %v1584 = vsel %vm1572, %v1582, %v1583
        %v1585 = vrot.slane %v1003, 1
        %v1586 = vrot.slane %v1095, 1
        %v1587 = vsel %vm1572, %v1585, %v1586
        %v1588 = vrot.slane %v1005, 1
        %v1589 = vrot.slane %v1096, 1
        %v1590 = vsel %vm1572, %v1588, %v1589
        %v1591 = vrot.slane %v1007, 1
        %v1592 = vrot.slane %v1097, 1
        %v1593 = vsel %vm1572, %v1591, %v1592
        %v1594 = vrot.slane %v1009, 1
        %v1595 = vrot.slane %v1098, 1
        %v1596 = vsel %vm1572, %v1594, %v1595
        %v1597 = vrot.slane %v1011, 1
        %v1598 = vrot.slane %v1099, 1
        %v1599 = vsel %vm1572, %v1597, %v1598
        %v1600 = vrot.slane %v1013, 1
        %v1601 = vrot.slane %v1100, 1
        %v1602 = vsel %vm1572, %v1600, %v1601
        %v1603 = vrot.slane %v1015, 1
        %v1604 = vrot.slane %v1101, 1
        %v1605 = vsel %vm1572, %v1603, %v1604
        %v1606 = vrot.slane %v1017, 1
        %v1607 = vrot.slane %v1102, 1
        %v1608 = vsel %vm1572, %v1606, %v1607
        %v1609 = vrot.slane %v1019, 1
        %v1610 = vrot.slane %v1103, 1
        %v1611 = vsel %vm1572, %v1609, %v1610
        %v1612 = vrot.slane %v1021, 1
        %v1613 = vrot.slane %v1104, 1
        %v1614 = vsel %vm1572, %v1612, %v1613
        %v1615 = vrot.slane %v1023, 1
        %v1616 = vrot.slane %v1105, 1
        %v1617 = vsel %vm1572, %v1615, %v1616
        %v1618 = vrot.slane %v1025, 1
        %v1619 = vrot.slane %v1106, 1
        %v1620 = vsel %vm1572, %v1618, %v1619
        %v1621 = vrot.slane %v1027, 1
        %v1622 = vrot.slane %v1107, 1
        %v1623 = vsel %vm1572, %v1621, %v1622
        %v1624 = vrot.slane %v1029, 1
        %v1625 = vrot.slane %v1108, 1
        %v1626 = vsel %vm1572, %v1624, %v1625
        %v1627 = vrot.slane %v1031, 1
        %v1628 = vrot.slane %v1109, 1
        %v1629 = vsel %vm1572, %v1627, %v1628
        %v1630 = vrot.slane %v1033, 1
        %v1631 = vrot.slane %v1110, 1
        %v1632 = vsel %vm1572, %v1630, %v1631
        %v1633 = vrot.slane %v1035, 1
        %v1634 = vrot.slane %v1111, 1
        %v1635 = vsel %vm1572, %v1633, %v1634
        %v1636 = vrot.slane %v1037, 1
        %v1637 = vrot.slane %v1112, 1
        %v1638 = vsel %vm1572, %v1636, %v1637
        %v1639 = vrot.slane %v1039, 1
        %v1640 = vrot.slane %v1113, 1
        %v1641 = vsel %vm1572, %v1639, %v1640
        %v1642 = vrot.slane %v1041, 1
        %v1643 = vrot.slane %v1114, 1
        %v1644 = vsel %vm1572, %v1642, %v1643
        %1645 = vrot.lane.b32.xlu0 %v1575, 64
        %v1646 = vpop.permute.xlu0 %1645
        %1647 = vrot.lane.b32.xlu0 %v1574, 64
        %v1648 = vpop.permute.xlu0 %1647
        %1649 = vrot.lane.b32.xlu0 %v1578, 64
        %v1650 = vpop.permute.xlu0 %1649
        %1651 = vrot.lane.b32.xlu0 %v1577, 64
        %v1652 = vpop.permute.xlu0 %1651
        %1653 = vrot.lane.b32.xlu0 %v1581, 64
        %v1654 = vpop.permute.xlu0 %1653
        %1655 = vrot.lane.b32.xlu0 %v1580, 64
        %v1656 = vpop.permute.xlu0 %1655
        %1657 = vrot.lane.b32.xlu0 %v1584, 64
        %v1658 = vpop.permute.xlu0 %1657
        %1659 = vrot.lane.b32.xlu0 %v1583, 64
        %v1660 = vpop.permute.xlu0 %1659
        %1661 = vrot.lane.b32.xlu0 %v1587, 64
        %v1662 = vpop.permute.xlu0 %1661
        %1663 = vrot.lane.b32.xlu0 %v1586, 64
        %v1664 = vpop.permute.xlu0 %1663
        %1665 = vrot.lane.b32.xlu0 %v1590, 64
        %v1666 = vpop.permute.xlu0 %1665
        %1667 = vrot.lane.b32.xlu0 %v1589, 64
        %v1668 = vpop.permute.xlu0 %1667
        %1669 = vrot.lane.b32.xlu0 %v1593, 64
        %v1670 = vpop.permute.xlu0 %1669
        %1671 = vrot.lane.b32.xlu0 %v1592, 64
        %v1672 = vpop.permute.xlu0 %1671
        %1673 = vrot.lane.b32.xlu0 %v1596, 64
        %v1674 = vpop.permute.xlu0 %1673
        %1675 = vrot.lane.b32.xlu0 %v1595, 64
        %v1676 = vpop.permute.xlu0 %1675
        %1677 = vrot.lane.b32.xlu0 %v1599, 64
        %v1678 = vpop.permute.xlu0 %1677
        %1679 = vrot.lane.b32.xlu0 %v1598, 64
        %v1680 = vpop.permute.xlu0 %1679
        %1681 = vrot.lane.b32.xlu0 %v1602, 64
        %v1682 = vpop.permute.xlu0 %1681
        %1683 = vrot.lane.b32.xlu0 %v1601, 64
        %v1684 = vpop.permute.xlu0 %1683
        %1685 = vrot.lane.b32.xlu0 %v1605, 64
        %v1686 = vpop.permute.xlu0 %1685
        %1687 = vrot.lane.b32.xlu0 %v1604, 64
        %v1688 = vpop.permute.xlu0 %1687
        %1689 = vrot.lane.b32.xlu0 %v1608, 64
        %v1690 = vpop.permute.xlu0 %1689
        %1691 = vrot.lane.b32.xlu0 %v1607, 64
        %v1692 = vpop.permute.xlu0 %1691
        %1693 = vrot.lane.b32.xlu0 %v1611, 64
        %v1694 = vpop.permute.xlu0 %1693
        %1695 = vrot.lane.b32.xlu0 %v1610, 64
        %v1696 = vpop.permute.xlu0 %1695
        %1697 = vrot.lane.b32.xlu0 %v1614, 64
        %v1698 = vpop.permute.xlu0 %1697
        %1699 = vrot.lane.b32.xlu0 %v1613, 64
        %v1700 = vpop.permute.xlu0 %1699
        %1701 = vrot.lane.b32.xlu0 %v1617, 64
        %v1702 = vpop.permute.xlu0 %1701
        %1703 = vrot.lane.b32.xlu0 %v1616, 64
        %v1704 = vpop.permute.xlu0 %1703
        %1705 = vrot.lane.b32.xlu0 %v1620, 64
        %v1706 = vpop.permute.xlu0 %1705
        %1707 = vrot.lane.b32.xlu0 %v1619, 64
        %v1708 = vpop.permute.xlu0 %1707
        %1709 = vrot.lane.b32.xlu0 %v1623, 64
        %v1710 = vpop.permute.xlu0 %1709
        %1711 = vrot.lane.b32.xlu0 %v1622, 64
        %v1712 = vpop.permute.xlu0 %1711
        %1713 = vrot.lane.b32.xlu0 %v1626, 64
        %v1714 = vpop.permute.xlu0 %1713
        %1715 = vrot.lane.b32.xlu0 %v1625, 64
        %v1716 = vpop.permute.xlu0 %1715
        %1717 = vrot.lane.b32.xlu0 %v1629, 64
        %v1718 = vpop.permute.xlu0 %1717
        %1719 = vrot.lane.b32.xlu0 %v1628, 64
        %v1720 = vpop.permute.xlu0 %1719
        %1721 = vrot.lane.b32.xlu0 %v1632, 64
        %v1722 = vpop.permute.xlu0 %1721
        %1723 = vrot.lane.b32.xlu0 %v1631, 64
        %v1724 = vpop.permute.xlu0 %1723
        %1725 = vrot.lane.b32.xlu0 %v1635, 64
        %v1726 = vpop.permute.xlu0 %1725
        %1727 = vrot.lane.b32.xlu0 %v1634, 64
        %v1728 = vpop.permute.xlu0 %1727
        %1729 = vrot.lane.b32.xlu0 %v1638, 64
        %v1730 = vpop.permute.xlu0 %1729
        %1731 = vrot.lane.b32.xlu0 %v1637, 64
        %v1732 = vpop.permute.xlu0 %1731
        %1733 = vrot.lane.b32.xlu0 %v1641, 64
        %v1734 = vpop.permute.xlu0 %1733
        %1735 = vrot.lane.b32.xlu0 %v1640, 64
        %v1736 = vpop.permute.xlu0 %1735
        %1737 = vrot.lane.b32.xlu0 %v1644, 64
        %v1738 = vpop.permute.xlu0 %1737
        %1739 = vrot.lane.b32.xlu0 %v1643, 64
        %v1740 = vpop.permute.xlu0 %1739
        %v1744 = vunpack.c.l.b16 %v843
        %v1745 = vunpack.c.l.b16 %v844
        %v1746 = vunpack.c.l.b16 %v845
        %v1747 = vpack.c.b16 %v1745, %v1744
        %v1748 = vpack.c.b16 %v1746, %v1746
        %1749 = vrot.lane.b32.xlu0 %v997, 96
        %v1750 = vpop.permute.xlu0 %1749
        %1751 = vrot.lane.b32.xlu0 %v998, 96
        %v1752 = vpop.permute.xlu0 %1751
        %1753 = vrot.lane.b32.xlu0 %v999, 96
        %v1754 = vpop.permute.xlu0 %1753
        %1755 = vrot.lane.b32.xlu0 %v1000, 96
        %v1756 = vpop.permute.xlu0 %1755
        %1757 = vrot.lane.b32.xlu0 %v1001, 96
        %v1758 = vpop.permute.xlu0 %1757
        %1759 = vrot.lane.b32.xlu0 %v1002, 96
        %v1760 = vpop.permute.xlu0 %1759
        %1761 = vrot.lane.b32.xlu0 %v1003, 96
        %v1762 = vpop.permute.xlu0 %1761
        %1763 = vrot.lane.b32.xlu0 %v1004, 96
        %v1764 = vpop.permute.xlu0 %1763
        %1765 = vrot.lane.b32.xlu0 %v1005, 96
        %v1766 = vpop.permute.xlu0 %1765
        %1767 = vrot.lane.b32.xlu0 %v1006, 96
        %v1768 = vpop.permute.xlu0 %1767
        %1769 = vrot.lane.b32.xlu0 %v1007, 96
        %v1770 = vpop.permute.xlu0 %1769
        %1771 = vrot.lane.b32.xlu0 %v1008, 96
        %v1772 = vpop.permute.xlu0 %1771
        %1773 = vrot.lane.b32.xlu0 %v1009, 96
        %v1774 = vpop.permute.xlu0 %1773
        %1775 = vrot.lane.b32.xlu0 %v1010, 96
        %v1776 = vpop.permute.xlu0 %1775
        %1777 = vrot.lane.b32.xlu0 %v1011, 96
        %v1778 = vpop.permute.xlu0 %1777
        %1779 = vrot.lane.b32.xlu0 %v1012, 96
        %v1780 = vpop.permute.xlu0 %1779
        %1781 = vrot.lane.b32.xlu0 %v1013, 96
        %v1782 = vpop.permute.xlu0 %1781
        %1783 = vrot.lane.b32.xlu0 %v1014, 96
        %v1784 = vpop.permute.xlu0 %1783
        %1785 = vrot.lane.b32.xlu0 %v1015, 96
        %v1786 = vpop.permute.xlu0 %1785
        %1787 = vrot.lane.b32.xlu0 %v1016, 96
        %v1788 = vpop.permute.xlu0 %1787
        %1789 = vrot.lane.b32.xlu0 %v1017, 96
        %v1790 = vpop.permute.xlu0 %1789
        %1791 = vrot.lane.b32.xlu0 %v1018, 96
        %v1792 = vpop.permute.xlu0 %1791
        %1793 = vrot.lane.b32.xlu0 %v1019, 96
        %v1794 = vpop.permute.xlu0 %1793
        %1795 = vrot.lane.b32.xlu0 %v1020, 96
        %v1796 = vpop.permute.xlu0 %1795
        %1797 = vrot.lane.b32.xlu0 %v1021, 96
        %v1798 = vpop.permute.xlu0 %1797
        %1799 = vrot.lane.b32.xlu0 %v1022, 96
        %v1800 = vpop.permute.xlu0 %1799
        %1801 = vrot.lane.b32.xlu0 %v1023, 96
        %v1802 = vpop.permute.xlu0 %1801
        %1803 = vrot.lane.b32.xlu0 %v1024, 96
        %v1804 = vpop.permute.xlu0 %1803
        %1805 = vrot.lane.b32.xlu0 %v1025, 96
        %v1806 = vpop.permute.xlu0 %1805
        %1807 = vrot.lane.b32.xlu0 %v1026, 96
        %v1808 = vpop.permute.xlu0 %1807
        %1809 = vrot.lane.b32.xlu0 %v1027, 96
        %v1810 = vpop.permute.xlu0 %1809
        %1811 = vrot.lane.b32.xlu0 %v1028, 96
        %v1812 = vpop.permute.xlu0 %1811
        %1813 = vrot.lane.b32.xlu0 %v1029, 96
        %v1814 = vpop.permute.xlu0 %1813
        %1815 = vrot.lane.b32.xlu0 %v1030, 96
        %v1816 = vpop.permute.xlu0 %1815
        %1817 = vrot.lane.b32.xlu0 %v1031, 96
        %v1818 = vpop.permute.xlu0 %1817
        %1819 = vrot.lane.b32.xlu0 %v1032, 96
        %v1820 = vpop.permute.xlu0 %1819
        %1821 = vrot.lane.b32.xlu0 %v1033, 96
        %v1822 = vpop.permute.xlu0 %1821
        %1823 = vrot.lane.b32.xlu0 %v1034, 96
        %v1824 = vpop.permute.xlu0 %1823
        %1825 = vrot.lane.b32.xlu0 %v1035, 96
        %v1826 = vpop.permute.xlu0 %1825
        %1827 = vrot.lane.b32.xlu0 %v1036, 96
        %v1828 = vpop.permute.xlu0 %1827
        %1829 = vrot.lane.b32.xlu0 %v1037, 96
        %v1830 = vpop.permute.xlu0 %1829
        %1831 = vrot.lane.b32.xlu0 %v1038, 96
        %v1832 = vpop.permute.xlu0 %1831
        %1833 = vrot.lane.b32.xlu0 %v1039, 96
        %v1834 = vpop.permute.xlu0 %1833
        %1835 = vrot.lane.b32.xlu0 %v1040, 96
        %v1836 = vpop.permute.xlu0 %1835
        %1837 = vrot.lane.b32.xlu0 %v1041, 96
        %v1838 = vpop.permute.xlu0 %1837
        %1839 = vrot.lane.b32.xlu0 %v1042, 96
        %v1840 = vpop.permute.xlu0 %1839
        %1841 = vrot.lane.b32.xlu0 %v1747, 96
        %v1842 = vpop.permute.xlu0 %1841
        %1843 = vrot.lane.b32.xlu0 %v1748, 96
        %v1844 = vpop.permute.xlu0 %1843
        %v1846 = vunpack.c.l.b16 %v846
        %v1847 = vpack.c.b16 %v1846, %v1746
        %v1849 = vshrl.u32 %v1747, 16
        %v1851 = vshll.u32 %v1747, 16
        %v1853 = vrot.slane %v1851, 1
        %v1854 = vor.u32 %v1849, %v1853
        %v1856 = vshll.u32 %v1847, 16
        %v1858 = vrot.slane %v1856, 1
        %v1859 = vsel %vm1115, %v1854, %v1858
        %v1860 = vshrl.u32 %v1847, 16
        %v1862 = vor.u32 %v1860, %v1858
        %v1863 = vrot.slane %v1747, 1
        %v1864 = vrot.slane %v1847, 1
        %v1865 = vsel %vm1572, %v1863, %v1864
        %1866 = vrot.lane.b32.xlu0 %v1578, 32
        %v1867 = vpop.permute.xlu0 %1866
        %1868 = vrot.lane.b32.xlu0 %v1577, 32
        %v1869 = vpop.permute.xlu0 %1868
        %1870 = vrot.lane.b32.xlu0 %v1581, 32
        %v1871 = vpop.permute.xlu0 %1870
        %1872 = vrot.lane.b32.xlu0 %v1580, 32
        %v1873 = vpop.permute.xlu0 %1872
        %1874 = vrot.lane.b32.xlu0 %v1584, 32
        %v1875 = vpop.permute.xlu0 %1874
        %1876 = vrot.lane.b32.xlu0 %v1583, 32
        %v1877 = vpop.permute.xlu0 %1876
        %1878 = vrot.lane.b32.xlu0 %v1587, 32
        %v1879 = vpop.permute.xlu0 %1878
        %1880 = vrot.lane.b32.xlu0 %v1586, 32
        %v1881 = vpop.permute.xlu0 %1880
        %1882 = vrot.lane.b32.xlu0 %v1590, 32
        %v1883 = vpop.permute.xlu0 %1882
        %1884 = vrot.lane.b32.xlu0 %v1589, 32
        %v1885 = vpop.permute.xlu0 %1884
        %1886 = vrot.lane.b32.xlu0 %v1593, 32
        %v1887 = vpop.permute.xlu0 %1886
        %1888 = vrot.lane.b32.xlu0 %v1592, 32
        %v1889 = vpop.permute.xlu0 %1888
        %1890 = vrot.lane.b32.xlu0 %v1596, 32
        %v1891 = vpop.permute.xlu0 %1890
        %1892 = vrot.lane.b32.xlu0 %v1595, 32
        %v1893 = vpop.permute.xlu0 %1892
        %1894 = vrot.lane.b32.xlu0 %v1599, 32
        %v1895 = vpop.permute.xlu0 %1894
        %1896 = vrot.lane.b32.xlu0 %v1598, 32
        %v1897 = vpop.permute.xlu0 %1896
        %1898 = vrot.lane.b32.xlu0 %v1602, 32
        %v1899 = vpop.permute.xlu0 %1898
        %1900 = vrot.lane.b32.xlu0 %v1601, 32
        %v1901 = vpop.permute.xlu0 %1900
        %1902 = vrot.lane.b32.xlu0 %v1605, 32
        %v1903 = vpop.permute.xlu0 %1902
        %1904 = vrot.lane.b32.xlu0 %v1604, 32
        %v1905 = vpop.permute.xlu0 %1904
        %1906 = vrot.lane.b32.xlu0 %v1608, 32
        %v1907 = vpop.permute.xlu0 %1906
        %1908 = vrot.lane.b32.xlu0 %v1607, 32
        %v1909 = vpop.permute.xlu0 %1908
        %1910 = vrot.lane.b32.xlu0 %v1611, 32
        %v1911 = vpop.permute.xlu0 %1910
        %1912 = vrot.lane.b32.xlu0 %v1610, 32
        %v1913 = vpop.permute.xlu0 %1912
        %1914 = vrot.lane.b32.xlu0 %v1614, 32
        %v1915 = vpop.permute.xlu0 %1914
        %1916 = vrot.lane.b32.xlu0 %v1613, 32
        %v1917 = vpop.permute.xlu0 %1916
        %1918 = vrot.lane.b32.xlu0 %v1617, 32
        %v1919 = vpop.permute.xlu0 %1918
        %1920 = vrot.lane.b32.xlu0 %v1616, 32
        %v1921 = vpop.permute.xlu0 %1920
        %1922 = vrot.lane.b32.xlu0 %v1620, 32
        %v1923 = vpop.permute.xlu0 %1922
        %1924 = vrot.lane.b32.xlu0 %v1619, 32
        %v1925 = vpop.permute.xlu0 %1924
        %1926 = vrot.lane.b32.xlu0 %v1623, 32
        %v1927 = vpop.permute.xlu0 %1926
        %1928 = vrot.lane.b32.xlu0 %v1622, 32
        %v1929 = vpop.permute.xlu0 %1928
        %1930 = vrot.lane.b32.xlu0 %v1626, 32
        %v1931 = vpop.permute.xlu0 %1930
        %1932 = vrot.lane.b32.xlu0 %v1625, 32
        %v1933 = vpop.permute.xlu0 %1932
        %1934 = vrot.lane.b32.xlu0 %v1629, 32
        %v1935 = vpop.permute.xlu0 %1934
        %1936 = vrot.lane.b32.xlu0 %v1628, 32
        %v1937 = vpop.permute.xlu0 %1936
        %1938 = vrot.lane.b32.xlu0 %v1632, 32
        %v1939 = vpop.permute.xlu0 %1938
        %1940 = vrot.lane.b32.xlu0 %v1631, 32
        %v1941 = vpop.permute.xlu0 %1940
        %1942 = vrot.lane.b32.xlu0 %v1635, 32
        %v1943 = vpop.permute.xlu0 %1942
        %1944 = vrot.lane.b32.xlu0 %v1634, 32
        %v1945 = vpop.permute.xlu0 %1944
        %1946 = vrot.lane.b32.xlu0 %v1638, 32
        %v1947 = vpop.permute.xlu0 %1946
        %1948 = vrot.lane.b32.xlu0 %v1637, 32
        %v1949 = vpop.permute.xlu0 %1948
        %1950 = vrot.lane.b32.xlu0 %v1641, 32
        %v1951 = vpop.permute.xlu0 %1950
        %1952 = vrot.lane.b32.xlu0 %v1640, 32
        %v1953 = vpop.permute.xlu0 %1952
        %1954 = vrot.lane.b32.xlu0 %v1644, 32
        %v1955 = vpop.permute.xlu0 %1954
        %1956 = vrot.lane.b32.xlu0 %v1643, 32
        %v1957 = vpop.permute.xlu0 %1956
        %1958 = vrot.lane.b32.xlu0 %v1865, 32
        %v1959 = vpop.permute.xlu0 %1958
        %1960 = vrot.lane.b32.xlu0 %v1864, 32
        %v1961 = vpop.permute.xlu0 %1960
        %v1965 = vunpack.c.l.b16 %v847
        %v1966 = vunpack.c.l.b16 %v848
        %v1967 = vunpack.c.l.b16 %v849
        %v1968 = vpack.c.b16 %v1966, %v1965
        %v1969 = vpack.c.b16 %v1967, %v1967
        %1970 = vrot.lane.b32.xlu0 %v999, 64
        %v1971 = vpop.permute.xlu0 %1970
        %1972 = vrot.lane.b32.xlu0 %v1000, 64
        %v1973 = vpop.permute.xlu0 %1972
        %1974 = vrot.lane.b32.xlu0 %v1001, 64
        %v1975 = vpop.permute.xlu0 %1974
        %1976 = vrot.lane.b32.xlu0 %v1002, 64
        %v1977 = vpop.permute.xlu0 %1976
        %1978 = vrot.lane.b32.xlu0 %v1003, 64
        %v1979 = vpop.permute.xlu0 %1978
        %1980 = vrot.lane.b32.xlu0 %v1004, 64
        %v1981 = vpop.permute.xlu0 %1980
        %1982 = vrot.lane.b32.xlu0 %v1005, 64
        %v1983 = vpop.permute.xlu0 %1982
        %1984 = vrot.lane.b32.xlu0 %v1006, 64
        %v1985 = vpop.permute.xlu0 %1984
        %1986 = vrot.lane.b32.xlu0 %v1007, 64
        %v1987 = vpop.permute.xlu0 %1986
        %1988 = vrot.lane.b32.xlu0 %v1008, 64
        %v1989 = vpop.permute.xlu0 %1988
        %1990 = vrot.lane.b32.xlu0 %v1009, 64
        %v1991 = vpop.permute.xlu0 %1990
        %1992 = vrot.lane.b32.xlu0 %v1010, 64
        %v1993 = vpop.permute.xlu0 %1992
        %1994 = vrot.lane.b32.xlu0 %v1011, 64
        %v1995 = vpop.permute.xlu0 %1994
        %1996 = vrot.lane.b32.xlu0 %v1012, 64
        %v1997 = vpop.permute.xlu0 %1996
        %1998 = vrot.lane.b32.xlu0 %v1013, 64
        %v1999 = vpop.permute.xlu0 %1998
        %2000 = vrot.lane.b32.xlu0 %v1014, 64
        %v2001 = vpop.permute.xlu0 %2000
        %2002 = vrot.lane.b32.xlu0 %v1015, 64
        %v2003 = vpop.permute.xlu0 %2002
        %2004 = vrot.lane.b32.xlu0 %v1016, 64
        %v2005 = vpop.permute.xlu0 %2004
        %2006 = vrot.lane.b32.xlu0 %v1017, 64
        %v2007 = vpop.permute.xlu0 %2006
        %2008 = vrot.lane.b32.xlu0 %v1018, 64
        %v2009 = vpop.permute.xlu0 %2008
        %2010 = vrot.lane.b32.xlu0 %v1019, 64
        %v2011 = vpop.permute.xlu0 %2010
        %2012 = vrot.lane.b32.xlu0 %v1020, 64
        %v2013 = vpop.permute.xlu0 %2012
        %2014 = vrot.lane.b32.xlu0 %v1021, 64
        %v2015 = vpop.permute.xlu0 %2014
        %2016 = vrot.lane.b32.xlu0 %v1022, 64
        %v2017 = vpop.permute.xlu0 %2016
        %2018 = vrot.lane.b32.xlu0 %v1023, 64
        %v2019 = vpop.permute.xlu0 %2018
        %2020 = vrot.lane.b32.xlu0 %v1024, 64
        %v2021 = vpop.permute.xlu0 %2020
        %2022 = vrot.lane.b32.xlu0 %v1025, 64
        %v2023 = vpop.permute.xlu0 %2022
        %2024 = vrot.lane.b32.xlu0 %v1026, 64
        %v2025 = vpop.permute.xlu0 %2024
        %2026 = vrot.lane.b32.xlu0 %v1027, 64
        %v2027 = vpop.permute.xlu0 %2026
        %2028 = vrot.lane.b32.xlu0 %v1028, 64
        %v2029 = vpop.permute.xlu0 %2028
        %2030 = vrot.lane.b32.xlu0 %v1029, 64
        %v2031 = vpop.permute.xlu0 %2030
        %2032 = vrot.lane.b32.xlu0 %v1030, 64
        %v2033 = vpop.permute.xlu0 %2032
        %2034 = vrot.lane.b32.xlu0 %v1031, 64
        %v2035 = vpop.permute.xlu0 %2034
        %2036 = vrot.lane.b32.xlu0 %v1032, 64
        %v2037 = vpop.permute.xlu0 %2036
        %2038 = vrot.lane.b32.xlu0 %v1033, 64
        %v2039 = vpop.permute.xlu0 %2038
        %2040 = vrot.lane.b32.xlu0 %v1034, 64
        %v2041 = vpop.permute.xlu0 %2040
        %2042 = vrot.lane.b32.xlu0 %v1035, 64
        %v2043 = vpop.permute.xlu0 %2042
        %2044 = vrot.lane.b32.xlu0 %v1036, 64
        %v2045 = vpop.permute.xlu0 %2044
        %2046 = vrot.lane.b32.xlu0 %v1037, 64
        %v2047 = vpop.permute.xlu0 %2046
        %2048 = vrot.lane.b32.xlu0 %v1038, 64
        %v2049 = vpop.permute.xlu0 %2048
        %2050 = vrot.lane.b32.xlu0 %v1039, 64
        %v2051 = vpop.permute.xlu0 %2050
        %2052 = vrot.lane.b32.xlu0 %v1040, 64
        %v2053 = vpop.permute.xlu0 %2052
        %2054 = vrot.lane.b32.xlu0 %v1041, 64
        %v2055 = vpop.permute.xlu0 %2054
        %2056 = vrot.lane.b32.xlu0 %v1042, 64
        %v2057 = vpop.permute.xlu0 %2056
        %2058 = vrot.lane.b32.xlu0 %v1747, 64
        %v2059 = vpop.permute.xlu0 %2058
        %2060 = vrot.lane.b32.xlu0 %v1748, 64
        %v2061 = vpop.permute.xlu0 %2060
        %2062 = vrot.lane.b32.xlu0 %v1968, 64
        %v2063 = vpop.permute.xlu0 %2062
        %2064 = vrot.lane.b32.xlu0 %v1969, 64
        %v2065 = vpop.permute.xlu0 %2064
        %v2067 = vunpack.c.l.b16 %v850
        %v2068 = vpack.c.b16 %v2067, %v1967
        %v2070 = vshrl.u32 %v1968, 16
        %v2072 = vshll.u32 %v1968, 16
        %v2074 = vrot.slane %v2072, 1
        %v2075 = vor.u32 %v2070, %v2074
        %v2077 = vshll.u32 %v2068, 16
        %v2079 = vrot.slane %v2077, 1
        %v2080 = vsel %vm1115, %v2075, %v2079
        %v2081 = vshrl.u32 %v2068, 16
        %v2083 = vor.u32 %v2081, %v2079
        %2084 = vrot.lane.b32.xlu0 %v1157, 96
        %v2085 = vpop.permute.xlu0 %2084
        %2086 = vrot.lane.b32.xlu0 %v1160, 96
        %v2087 = vpop.permute.xlu0 %2086
        %2088 = vrot.lane.b32.xlu0 %v1172, 96
        %v2089 = vpop.permute.xlu0 %2088
        %2090 = vrot.lane.b32.xlu0 %v1175, 96
        %v2091 = vpop.permute.xlu0 %2090
        %2092 = vrot.lane.b32.xlu0 %v1187, 96
        %v2093 = vpop.permute.xlu0 %2092
        %2094 = vrot.lane.b32.xlu0 %v1190, 96
        %v2095 = vpop.permute.xlu0 %2094
        %2096 = vrot.lane.b32.xlu0 %v1202, 96
        %v2097 = vpop.permute.xlu0 %2096
        %2098 = vrot.lane.b32.xlu0 %v1205, 96
        %v2099 = vpop.permute.xlu0 %2098
        %2100 = vrot.lane.b32.xlu0 %v1217, 96
        %v2101 = vpop.permute.xlu0 %2100
        %2102 = vrot.lane.b32.xlu0 %v1220, 96
        %v2103 = vpop.permute.xlu0 %2102
        %2104 = vrot.lane.b32.xlu0 %v1232, 96
        %v2105 = vpop.permute.xlu0 %2104
        %2106 = vrot.lane.b32.xlu0 %v1235, 96
        %v2107 = vpop.permute.xlu0 %2106
        %2108 = vrot.lane.b32.xlu0 %v1247, 96
        %v2109 = vpop.permute.xlu0 %2108
        %2110 = vrot.lane.b32.xlu0 %v1250, 96
        %v2111 = vpop.permute.xlu0 %2110
        %2112 = vrot.lane.b32.xlu0 %v1262, 96
        %v2113 = vpop.permute.xlu0 %2112
        %2114 = vrot.lane.b32.xlu0 %v1265, 96
        %v2115 = vpop.permute.xlu0 %2114
        %2116 = vrot.lane.b32.xlu0 %v1277, 96
        %v2117 = vpop.permute.xlu0 %2116
        %2118 = vrot.lane.b32.xlu0 %v1280, 96
        %v2119 = vpop.permute.xlu0 %2118
        %2120 = vrot.lane.b32.xlu0 %v1292, 96
        %v2121 = vpop.permute.xlu0 %2120
        %2122 = vrot.lane.b32.xlu0 %v1295, 96
        %v2123 = vpop.permute.xlu0 %2122
        %2124 = vrot.lane.b32.xlu0 %v1307, 96
        %v2125 = vpop.permute.xlu0 %2124
        %2126 = vrot.lane.b32.xlu0 %v1310, 96
        %v2127 = vpop.permute.xlu0 %2126
        %2128 = vrot.lane.b32.xlu0 %v1322, 96
        %v2129 = vpop.permute.xlu0 %2128
        %2130 = vrot.lane.b32.xlu0 %v1325, 96
        %v2131 = vpop.permute.xlu0 %2130
        %2132 = vrot.lane.b32.xlu0 %v1337, 96
        %v2133 = vpop.permute.xlu0 %2132
        %2134 = vrot.lane.b32.xlu0 %v1340, 96
        %v2135 = vpop.permute.xlu0 %2134
        %2136 = vrot.lane.b32.xlu0 %v1352, 96
        %v2137 = vpop.permute.xlu0 %2136
        %2138 = vrot.lane.b32.xlu0 %v1355, 96
        %v2139 = vpop.permute.xlu0 %2138
        %2140 = vrot.lane.b32.xlu0 %v1367, 96
        %v2141 = vpop.permute.xlu0 %2140
        %2142 = vrot.lane.b32.xlu0 %v1370, 96
        %v2143 = vpop.permute.xlu0 %2142
        %2144 = vrot.lane.b32.xlu0 %v1382, 96
        %v2145 = vpop.permute.xlu0 %2144
        %2146 = vrot.lane.b32.xlu0 %v1385, 96
        %v2147 = vpop.permute.xlu0 %2146
        %2148 = vrot.lane.b32.xlu0 %v1397, 96
        %v2149 = vpop.permute.xlu0 %2148
        %2150 = vrot.lane.b32.xlu0 %v1400, 96
        %v2151 = vpop.permute.xlu0 %2150
        %2152 = vrot.lane.b32.xlu0 %v1412, 96
        %v2153 = vpop.permute.xlu0 %2152
        %2154 = vrot.lane.b32.xlu0 %v1415, 96
        %v2155 = vpop.permute.xlu0 %2154
        %2156 = vrot.lane.b32.xlu0 %v1427, 96
        %v2157 = vpop.permute.xlu0 %2156
        %2158 = vrot.lane.b32.xlu0 %v1430, 96
        %v2159 = vpop.permute.xlu0 %2158
        %2160 = vrot.lane.b32.xlu0 %v1442, 96
        %v2161 = vpop.permute.xlu0 %2160
        %2162 = vrot.lane.b32.xlu0 %v1445, 96
        %v2163 = vpop.permute.xlu0 %2162
        %2164 = vrot.lane.b32.xlu0 %v1457, 96
        %v2165 = vpop.permute.xlu0 %2164
        %2166 = vrot.lane.b32.xlu0 %v1460, 96
        %v2167 = vpop.permute.xlu0 %2166
        %2168 = vrot.lane.b32.xlu0 %v1472, 96
        %v2169 = vpop.permute.xlu0 %2168
        %2170 = vrot.lane.b32.xlu0 %v1475, 96
        %v2171 = vpop.permute.xlu0 %2170
        %2172 = vrot.lane.b32.xlu0 %v1859, 96
        %v2173 = vpop.permute.xlu0 %2172
        %2174 = vrot.lane.b32.xlu0 %v1862, 96
        %v2175 = vpop.permute.xlu0 %2174
        %2176 = vrot.lane.b32.xlu0 %v2080, 96
        %v2177 = vpop.permute.xlu0 %2176
        %2178 = vrot.lane.b32.xlu0 %v2083, 96
        %v2179 = vpop.permute.xlu0 %2178
        %v2180 = vrot.slane %v1968, 1
        %v2181 = vrot.slane %v2068, 1
        %v2182 = vsel %vm1572, %v2180, %v2181
        %vm2183 = vcmask 261120
        %v2185 = vsel %vm2183, %v995, %v1477
        %v2188 = vsel %vm2183, %v996, %v1479
        %v2190 = vsel %vm2183, %v997, %v1481
        %v2193 = vsel %vm2183, %v998, %v1483
        %v2195 = vsel %vm2183, %v999, %v1485
        %v2198 = vsel %vm2183, %v1000, %v1487
        %v2200 = vsel %vm2183, %v1001, %v1489
        %v2203 = vsel %vm2183, %v1002, %v1491
        %v2205 = vsel %vm2183, %v1003, %v1493
        %v2208 = vsel %vm2183, %v1004, %v1495
        %v2210 = vsel %vm2183, %v1005, %v1497
        %v2213 = vsel %vm2183, %v1006, %v1499
        %v2215 = vsel %vm2183, %v1007, %v1501
        %v2218 = vsel %vm2183, %v1008, %v1503
        %v2220 = vsel %vm2183, %v1009, %v1505
        %v2223 = vsel %vm2183, %v1010, %v1507
        %v2225 = vsel %vm2183, %v1011, %v1509
        %v2228 = vsel %vm2183, %v1012, %v1511
        %v2230 = vsel %vm2183, %v1013, %v1513
        %v2233 = vsel %vm2183, %v1014, %v1515
        %v2235 = vsel %vm2183, %v1015, %v1517
        %v2238 = vsel %vm2183, %v1016, %v1519
        %v2240 = vsel %vm2183, %v1017, %v1521
        %v2243 = vsel %vm2183, %v1018, %v1523
        %v2245 = vsel %vm2183, %v1019, %v1525
        %v2248 = vsel %vm2183, %v1020, %v1527
        %v2250 = vsel %vm2183, %v1021, %v1529
        %v2253 = vsel %vm2183, %v1022, %v1531
        %v2255 = vsel %vm2183, %v1023, %v1533
        %v2258 = vsel %vm2183, %v1024, %v1535
        %v2260 = vsel %vm2183, %v1025, %v1537
        %v2263 = vsel %vm2183, %v1026, %v1539
        %v2265 = vsel %vm2183, %v1027, %v1541
        %v2268 = vsel %vm2183, %v1028, %v1543
        %v2270 = vsel %vm2183, %v1029, %v1545
        %v2273 = vsel %vm2183, %v1030, %v1547
        %v2275 = vsel %vm2183, %v1031, %v1549
        %v2278 = vsel %vm2183, %v1032, %v1551
        %v2280 = vsel %vm2183, %v1033, %v1553
        %v2283 = vsel %vm2183, %v1034, %v1555
        %v2285 = vsel %vm2183, %v1035, %v1557
        %v2288 = vsel %vm2183, %v1036, %v1559
        %v2290 = vsel %vm2183, %v1037, %v1561
        %v2293 = vsel %vm2183, %v1038, %v1563
        %v2295 = vsel %vm2183, %v1039, %v1565
        %v2298 = vsel %vm2183, %v1040, %v1567
        %v2300 = vsel %vm2183, %v1041, %v1569
        %v2303 = vsel %vm2183, %v1042, %v1571
        %vm2304 = vcmask 523264
        %v2306 = vsel %vm2304, %v2185, %v1646
        %v2308 = vsel %vm2304, %v2188, %v1648
        %v2310 = vsel %vm2304, %v2190, %v1650
        %v2312 = vsel %vm2304, %v2193, %v1652
        %v2314 = vsel %vm2304, %v2195, %v1654
        %v2316 = vsel %vm2304, %v2198, %v1656
        %v2318 = vsel %vm2304, %v2200, %v1658
        %v2320 = vsel %vm2304, %v2203, %v1660
        %v2322 = vsel %vm2304, %v2205, %v1662
        %v2324 = vsel %vm2304, %v2208, %v1664
        %v2326 = vsel %vm2304, %v2210, %v1666
        %v2328 = vsel %vm2304, %v2213, %v1668
        %v2330 = vsel %vm2304, %v2215, %v1670
        %v2332 = vsel %vm2304, %v2218, %v1672
        %v2334 = vsel %vm2304, %v2220, %v1674
        %v2336 = vsel %vm2304, %v2223, %v1676
        %v2338 = vsel %vm2304, %v2225, %v1678
        %v2340 = vsel %vm2304, %v2228, %v1680
        %v2342 = vsel %vm2304, %v2230, %v1682
        %v2344 = vsel %vm2304, %v2233, %v1684
        %v2346 = vsel %vm2304, %v2235, %v1686
        %v2348 = vsel %vm2304, %v2238, %v1688
        %v2350 = vsel %vm2304, %v2240, %v1690
        %v2352 = vsel %vm2304, %v2243, %v1692
        %v2354 = vsel %vm2304, %v2245, %v1694
        %v2356 = vsel %vm2304, %v2248, %v1696
        %v2358 = vsel %vm2304, %v2250, %v1698
        %v2360 = vsel %vm2304, %v2253, %v1700
        %v2362 = vsel %vm2304, %v2255, %v1702
        %v2364 = vsel %vm2304, %v2258, %v1704
        %v2366 = vsel %vm2304, %v2260, %v1706
        %v2368 = vsel %vm2304, %v2263, %v1708
        %v2370 = vsel %vm2304, %v2265, %v1710
        %v2372 = vsel %vm2304, %v2268, %v1712
        %v2374 = vsel %vm2304, %v2270, %v1714
        %v2376 = vsel %vm2304, %v2273, %v1716
        %v2378 = vsel %vm2304, %v2275, %v1718
        %v2380 = vsel %vm2304, %v2278, %v1720
        %v2382 = vsel %vm2304, %v2280, %v1722
        %v2384 = vsel %vm2304, %v2283, %v1724
        %v2386 = vsel %vm2304, %v2285, %v1726
        %v2388 = vsel %vm2304, %v2288, %v1728
        %v2390 = vsel %vm2304, %v2290, %v1730
        %v2392 = vsel %vm2304, %v2293, %v1732
        %v2394 = vsel %vm2304, %v2295, %v1734
        %v2396 = vsel %vm2304, %v2298, %v1736
        %v2398 = vsel %vm2304, %v2300, %v1738
        %v2400 = vsel %vm2304, %v2303, %v1740
        %vm2401 = vcmask 785408
        %v2403 = vsel %vm2401, %v2306, %v1750
        %v2405 = vsel %vm2401, %v2308, %v1752
        %v2407 = vsel %vm2401, %v2310, %v1754
        %v2409 = vsel %vm2401, %v2312, %v1756
        %v2411 = vsel %vm2401, %v2314, %v1758
        %v2413 = vsel %vm2401, %v2316, %v1760
        %v2415 = vsel %vm2401, %v2318, %v1762
        %v2417 = vsel %vm2401, %v2320, %v1764
        %v2419 = vsel %vm2401, %v2322, %v1766
        %v2421 = vsel %vm2401, %v2324, %v1768
        %v2423 = vsel %vm2401, %v2326, %v1770
        %v2425 = vsel %vm2401, %v2328, %v1772
        %v2427 = vsel %vm2401, %v2330, %v1774
        %v2429 = vsel %vm2401, %v2332, %v1776
        %v2431 = vsel %vm2401, %v2334, %v1778
        %v2433 = vsel %vm2401, %v2336, %v1780
        %v2435 = vsel %vm2401, %v2338, %v1782
        %v2437 = vsel %vm2401, %v2340, %v1784
        %v2439 = vsel %vm2401, %v2342, %v1786
        %v2441 = vsel %vm2401, %v2344, %v1788
        %v2443 = vsel %vm2401, %v2346, %v1790
        %v2445 = vsel %vm2401, %v2348, %v1792
        %v2447 = vsel %vm2401, %v2350, %v1794
        %v2449 = vsel %vm2401, %v2352, %v1796
        %v2451 = vsel %vm2401, %v2354, %v1798
        %v2453 = vsel %vm2401, %v2356, %v1800
        %v2455 = vsel %vm2401, %v2358, %v1802
        %v2457 = vsel %vm2401, %v2360, %v1804
        %v2459 = vsel %vm2401, %v2362, %v1806
        %v2461 = vsel %vm2401, %v2364, %v1808
        %v2463 = vsel %vm2401, %v2366, %v1810
        %v2465 = vsel %vm2401, %v2368, %v1812
        %v2467 = vsel %vm2401, %v2370, %v1814
        %v2469 = vsel %vm2401, %v2372, %v1816
        %v2471 = vsel %vm2401, %v2374, %v1818
        %v2473 = vsel %vm2401, %v2376, %v1820
        %v2475 = vsel %vm2401, %v2378, %v1822
        %v2477 = vsel %vm2401, %v2380, %v1824
        %v2479 = vsel %vm2401, %v2382, %v1826
        %v2481 = vsel %vm2401, %v2384, %v1828
        %v2483 = vsel %vm2401, %v2386, %v1830
        %v2485 = vsel %vm2401, %v2388, %v1832
        %v2487 = vsel %vm2401, %v2390, %v1834
        %v2489 = vsel %vm2401, %v2392, %v1836
        %v2491 = vsel %vm2401, %v2394, %v1838
        %v2493 = vsel %vm2401, %v2396, %v1840
        %v2495 = vsel %vm2401, %v2398, %v1842
        %v2497 = vsel %vm2401, %v2400, %v1844
        %v2500 = vsel %vm2183, %v1142, %v1867
        %v2503 = vsel %vm2183, %v1145, %v1869
        %v2506 = vsel %vm2183, %v1157, %v1871
        %v2509 = vsel %vm2183, %v1160, %v1873
        %v2512 = vsel %vm2183, %v1172, %v1875
        %v2515 = vsel %vm2183, %v1175, %v1877
        %v2518 = vsel %vm2183, %v1187, %v1879
        %v2521 = vsel %vm2183, %v1190, %v1881
        %v2524 = vsel %vm2183, %v1202, %v1883
        %v2527 = vsel %vm2183, %v1205, %v1885
        %v2530 = vsel %vm2183, %v1217, %v1887
        %v2533 = vsel %vm2183, %v1220, %v1889
        %v2536 = vsel %vm2183, %v1232, %v1891
        %v2539 = vsel %vm2183, %v1235, %v1893
        %v2542 = vsel %vm2183, %v1247, %v1895
        %v2545 = vsel %vm2183, %v1250, %v1897
        %v2548 = vsel %vm2183, %v1262, %v1899
        %v2551 = vsel %vm2183, %v1265, %v1901
        %v2554 = vsel %vm2183, %v1277, %v1903
        %v2557 = vsel %vm2183, %v1280, %v1905
        %v2560 = vsel %vm2183, %v1292, %v1907
        %v2563 = vsel %vm2183, %v1295, %v1909
        %v2566 = vsel %vm2183, %v1307, %v1911
        %v2569 = vsel %vm2183, %v1310, %v1913
        %v2572 = vsel %vm2183, %v1322, %v1915
        %v2575 = vsel %vm2183, %v1325, %v1917
        %v2578 = vsel %vm2183, %v1337, %v1919
        %v2581 = vsel %vm2183, %v1340, %v1921
        %v2584 = vsel %vm2183, %v1352, %v1923
        %v2587 = vsel %vm2183, %v1355, %v1925
        %v2590 = vsel %vm2183, %v1367, %v1927
        %v2593 = vsel %vm2183, %v1370, %v1929
        %v2596 = vsel %vm2183, %v1382, %v1931
        %v2599 = vsel %vm2183, %v1385, %v1933
        %v2602 = vsel %vm2183, %v1397, %v1935
        %v2605 = vsel %vm2183, %v1400, %v1937
        %v2608 = vsel %vm2183, %v1412, %v1939
        %v2611 = vsel %vm2183, %v1415, %v1941
        %v2614 = vsel %vm2183, %v1427, %v1943
        %v2617 = vsel %vm2183, %v1430, %v1945
        %v2620 = vsel %vm2183, %v1442, %v1947
        %v2623 = vsel %vm2183, %v1445, %v1949
        %v2626 = vsel %vm2183, %v1457, %v1951
        %v2629 = vsel %vm2183, %v1460, %v1953
        %v2632 = vsel %vm2183, %v1472, %v1955
        %v2635 = vsel %vm2183, %v1475, %v1957
        %v2638 = vsel %vm2183, %v1859, %v1959
        %v2641 = vsel %vm2183, %v1862, %v1961
        %v2643 = vsel %vm2304, %v2500, %v1971
        %v2645 = vsel %vm2304, %v2503, %v1973
        %v2647 = vsel %vm2304, %v2506, %v1975
        %v2649 = vsel %vm2304, %v2509, %v1977
        %v2651 = vsel %vm2304, %v2512, %v1979
        %v2653 = vsel %vm2304, %v2515, %v1981
        %v2655 = vsel %vm2304, %v2518, %v1983
        %v2657 = vsel %vm2304, %v2521, %v1985
        %v2659 = vsel %vm2304, %v2524, %v1987
        %v2661 = vsel %vm2304, %v2527, %v1989
        %v2663 = vsel %vm2304, %v2530, %v1991
        %v2665 = vsel %vm2304, %v2533, %v1993
        %v2667 = vsel %vm2304, %v2536, %v1995
        %v2669 = vsel %vm2304, %v2539, %v1997
        %v2671 = vsel %vm2304, %v2542, %v1999
        %v2673 = vsel %vm2304, %v2545, %v2001
        %v2675 = vsel %vm2304, %v2548, %v2003
        %v2677 = vsel %vm2304, %v2551, %v2005
        %v2679 = vsel %vm2304, %v2554, %v2007
        %v2681 = vsel %vm2304, %v2557, %v2009
        %v2683 = vsel %vm2304, %v2560, %v2011
        %v2685 = vsel %vm2304, %v2563, %v2013
        %v2687 = vsel %vm2304, %v2566, %v2015
        %v2689 = vsel %vm2304, %v2569, %v2017
        %v2691 = vsel %vm2304, %v2572, %v2019
        %v2693 = vsel %vm2304, %v2575, %v2021
        %v2695 = vsel %vm2304, %v2578, %v2023
        %v2697 = vsel %vm2304, %v2581, %v2025
        %v2699 = vsel %vm2304, %v2584, %v2027
        %v2701 = vsel %vm2304, %v2587, %v2029
        %v2703 = vsel %vm2304, %v2590, %v2031
        %v2705 = vsel %vm2304, %v2593, %v2033
        %v2707 = vsel %vm2304, %v2596, %v2035
        %v2709 = vsel %vm2304, %v2599, %v2037
        %v2711 = vsel %vm2304, %v2602, %v2039
        %v2713 = vsel %vm2304, %v2605, %v2041
        %v2715 = vsel %vm2304, %v2608, %v2043
        %v2717 = vsel %vm2304, %v2611, %v2045
        %v2719 = vsel %vm2304, %v2614, %v2047
        %v2721 = vsel %vm2304, %v2617, %v2049
        %v2723 = vsel %vm2304, %v2620, %v2051
        %v2725 = vsel %vm2304, %v2623, %v2053
        %v2727 = vsel %vm2304, %v2626, %v2055
        %v2729 = vsel %vm2304, %v2629, %v2057
        %v2731 = vsel %vm2304, %v2632, %v2059
        %v2733 = vsel %vm2304, %v2635, %v2061
        %v2735 = vsel %vm2304, %v2638, %v2063
        %v2737 = vsel %vm2304, %v2641, %v2065
        %v2739 = vsel %vm2401, %v2643, %v2085
        %v2741 = vsel %vm2401, %v2645, %v2087
        %v2743 = vsel %vm2401, %v2647, %v2089
        %v2745 = vsel %vm2401, %v2649, %v2091
        %v2747 = vsel %vm2401, %v2651, %v2093
        %v2749 = vsel %vm2401, %v2653, %v2095
        %v2751 = vsel %vm2401, %v2655, %v2097
        %v2753 = vsel %vm2401, %v2657, %v2099
        %v2755 = vsel %vm2401, %v2659, %v2101
        %v2757 = vsel %vm2401, %v2661, %v2103
        %v2759 = vsel %vm2401, %v2663, %v2105
        %v2761 = vsel %vm2401, %v2665, %v2107
        %v2763 = vsel %vm2401, %v2667, %v2109
        %v2765 = vsel %vm2401, %v2669, %v2111
        %v2767 = vsel %vm2401, %v2671, %v2113
        %v2769 = vsel %vm2401, %v2673, %v2115
        %v2771 = vsel %vm2401, %v2675, %v2117
        %v2773 = vsel %vm2401, %v2677, %v2119
        %v2775 = vsel %vm2401, %v2679, %v2121
        %v2777 = vsel %vm2401, %v2681, %v2123
        %v2779 = vsel %vm2401, %v2683, %v2125
        %v2781 = vsel %vm2401, %v2685, %v2127
        %v2783 = vsel %vm2401, %v2687, %v2129
        %v2785 = vsel %vm2401, %v2689, %v2131
        %v2787 = vsel %vm2401, %v2691, %v2133
        %v2789 = vsel %vm2401, %v2693, %v2135
        %v2791 = vsel %vm2401, %v2695, %v2137
        %v2793 = vsel %vm2401, %v2697, %v2139
        %v2795 = vsel %vm2401, %v2699, %v2141
        %v2797 = vsel %vm2401, %v2701, %v2143
        %v2799 = vsel %vm2401, %v2703, %v2145
        %v2801 = vsel %vm2401, %v2705, %v2147
        %v2803 = vsel %vm2401, %v2707, %v2149
        %v2805 = vsel %vm2401, %v2709, %v2151
        %v2807 = vsel %vm2401, %v2711, %v2153
        %v2809 = vsel %vm2401, %v2713, %v2155
        %v2811 = vsel %vm2401, %v2715, %v2157
        %v2813 = vsel %vm2401, %v2717, %v2159
        %v2815 = vsel %vm2401, %v2719, %v2161
        %v2817 = vsel %vm2401, %v2721, %v2163
        %v2819 = vsel %vm2401, %v2723, %v2165
        %v2821 = vsel %vm2401, %v2725, %v2167
        %v2823 = vsel %vm2401, %v2727, %v2169
        %v2825 = vsel %vm2401, %v2729, %v2171
        %v2827 = vsel %vm2401, %v2731, %v2173
        %v2829 = vsel %vm2401, %v2733, %v2175
        %v2831 = vsel %vm2401, %v2735, %v2177
        %v2833 = vsel %vm2401, %v2737, %v2179
        %v2930 = vunpack.c.l.b16 %v2403
        %v2931 = vunpack.c.l.b16 %v2739
        %v2932 = vunpack.c.l.b16 %v1581
        %v2933 = vunpack.c.h.b16 %v2403
        %v2934 = vunpack.c.h.b16 %v2739
        %v2935 = vunpack.c.h.b16 %v1581
        %v2936 = vunpack.c.l.b16 %v2405
        %v2937 = vunpack.c.l.b16 %v2741
        %v2938 = vunpack.c.l.b16 %v1580
        %v2939 = vunpack.c.l.b16 %v2407
        %v2940 = vunpack.c.l.b16 %v2743
        %v2941 = vunpack.c.l.b16 %v1584
        %v2942 = vunpack.c.h.b16 %v2407
        %v2943 = vunpack.c.h.b16 %v2743
        %v2944 = vunpack.c.h.b16 %v1584
        %v2945 = vunpack.c.l.b16 %v2409
        %v2946 = vunpack.c.l.b16 %v2745
        %v2947 = vunpack.c.l.b16 %v1583
        %v2948 = vunpack.c.l.b16 %v2411
        %v2949 = vunpack.c.l.b16 %v2747
        %v2950 = vunpack.c.l.b16 %v1587
        %v2951 = vunpack.c.h.b16 %v2411
        %v2952 = vunpack.c.h.b16 %v2747
        %v2953 = vunpack.c.h.b16 %v1587
        %v2954 = vunpack.c.l.b16 %v2413
        %v2955 = vunpack.c.l.b16 %v2749
        %v2956 = vunpack.c.l.b16 %v1586
        %v2957 = vunpack.c.l.b16 %v2415
        %v2958 = vunpack.c.l.b16 %v2751
        %v2959 = vunpack.c.l.b16 %v1590
        %v2960 = vunpack.c.h.b16 %v2415
        %v2961 = vunpack.c.h.b16 %v2751
        %v2962 = vunpack.c.h.b16 %v1590
        %v2963 = vunpack.c.l.b16 %v2417
        %v2964 = vunpack.c.l.b16 %v2753
        %v2965 = vunpack.c.l.b16 %v1589
        %v2966 = vunpack.c.l.b16 %v2419
        %v2967 = vunpack.c.l.b16 %v2755
        %v2968 = vunpack.c.l.b16 %v1593
        %v2969 = vunpack.c.h.b16 %v2419
        %v2970 = vunpack.c.h.b16 %v2755
        %v2971 = vunpack.c.h.b16 %v1593
        %v2972 = vunpack.c.l.b16 %v2421
        %v2973 = vunpack.c.l.b16 %v2757
        %v2974 = vunpack.c.l.b16 %v1592
        %v2975 = vunpack.c.l.b16 %v2423
        %v2976 = vunpack.c.l.b16 %v2759
        %v2977 = vunpack.c.l.b16 %v1596
        %v2978 = vunpack.c.h.b16 %v2423
        %v2979 = vunpack.c.h.b16 %v2759
        %v2980 = vunpack.c.h.b16 %v1596
        %v2981 = vunpack.c.l.b16 %v2425
        %v2982 = vunpack.c.l.b16 %v2761
        %v2983 = vunpack.c.l.b16 %v1595
        %v2984 = vunpack.c.l.b16 %v2427
        %v2985 = vunpack.c.l.b16 %v2763
        %v2986 = vunpack.c.l.b16 %v1599
        %v2987 = vunpack.c.h.b16 %v2427
        %v2988 = vunpack.c.h.b16 %v2763
        %v2989 = vunpack.c.h.b16 %v1599
        %v2990 = vunpack.c.l.b16 %v2429
        %v2991 = vunpack.c.l.b16 %v2765
        %v2992 = vunpack.c.l.b16 %v1598
        %v2993 = vunpack.c.l.b16 %v2431
        %v2994 = vunpack.c.l.b16 %v2767
        %v2995 = vunpack.c.l.b16 %v1602
        %v2996 = vunpack.c.h.b16 %v2431
        %v2997 = vunpack.c.h.b16 %v2767
        %v2998 = vunpack.c.h.b16 %v1602
        %v2999 = vunpack.c.l.b16 %v2433
        %v3000 = vunpack.c.l.b16 %v2769
        %v3001 = vunpack.c.l.b16 %v1601
        %v3002 = vunpack.c.l.b16 %v2435
        %v3003 = vunpack.c.l.b16 %v2771
        %v3004 = vunpack.c.l.b16 %v1605
        %v3005 = vunpack.c.h.b16 %v2435
        %v3006 = vunpack.c.h.b16 %v2771
        %v3007 = vunpack.c.h.b16 %v1605
        %v3008 = vunpack.c.l.b16 %v2437
        %v3009 = vunpack.c.l.b16 %v2773
        %v3010 = vunpack.c.l.b16 %v1604
        %v3011 = vunpack.c.l.b16 %v2439
        %v3012 = vunpack.c.l.b16 %v2775
        %v3013 = vunpack.c.l.b16 %v1608
        %v3014 = vunpack.c.h.b16 %v2439
        %v3015 = vunpack.c.h.b16 %v2775
        %v3016 = vunpack.c.h.b16 %v1608
        %v3017 = vunpack.c.l.b16 %v2441
        %v3018 = vunpack.c.l.b16 %v2777
        %v3019 = vunpack.c.l.b16 %v1607
        %v3020 = vunpack.c.l.b16 %v2443
        %v3021 = vunpack.c.l.b16 %v2779
        %v3022 = vunpack.c.l.b16 %v1611
        %v3023 = vunpack.c.h.b16 %v2443
        %v3024 = vunpack.c.h.b16 %v2779
        %v3025 = vunpack.c.h.b16 %v1611
        %v3026 = vunpack.c.l.b16 %v2445
        %v3027 = vunpack.c.l.b16 %v2781
        %v3028 = vunpack.c.l.b16 %v1610
        %v3029 = vunpack.c.l.b16 %v2447
        %v3030 = vunpack.c.l.b16 %v2783
        %v3031 = vunpack.c.l.b16 %v1614
        %v3032 = vunpack.c.h.b16 %v2447
        %v3033 = vunpack.c.h.b16 %v2783
        %v3034 = vunpack.c.h.b16 %v1614
        %v3035 = vunpack.c.l.b16 %v2449
        %v3036 = vunpack.c.l.b16 %v2785
        %v3037 = vunpack.c.l.b16 %v1613
        %v3038 = vunpack.c.l.b16 %v2451
        %v3039 = vunpack.c.l.b16 %v2787
        %v3040 = vunpack.c.l.b16 %v1617
        %v3041 = vunpack.c.h.b16 %v2451
        %v3042 = vunpack.c.h.b16 %v2787
        %v3043 = vunpack.c.h.b16 %v1617
        %v3044 = vunpack.c.l.b16 %v2453
        %v3045 = vunpack.c.l.b16 %v2789
        %v3046 = vunpack.c.l.b16 %v1616
        %v3047 = vunpack.c.l.b16 %v2455
        %v3048 = vunpack.c.l.b16 %v2791
        %v3049 = vunpack.c.l.b16 %v1620
        %v3050 = vunpack.c.h.b16 %v2455
        %v3051 = vunpack.c.h.b16 %v2791
        %v3052 = vunpack.c.h.b16 %v1620
        %v3053 = vunpack.c.l.b16 %v2457
        %v3054 = vunpack.c.l.b16 %v2793
        %v3055 = vunpack.c.l.b16 %v1619
        %v3056 = vunpack.c.l.b16 %v2459
        %v3057 = vunpack.c.l.b16 %v2795
        %v3058 = vunpack.c.l.b16 %v1623
        %v3059 = vunpack.c.h.b16 %v2459
        %v3060 = vunpack.c.h.b16 %v2795
        %v3061 = vunpack.c.h.b16 %v1623
        %v3062 = vunpack.c.l.b16 %v2461
        %v3063 = vunpack.c.l.b16 %v2797
        %v3064 = vunpack.c.l.b16 %v1622
        %v3065 = vunpack.c.l.b16 %v2463
        %v3066 = vunpack.c.l.b16 %v2799
        %v3067 = vunpack.c.l.b16 %v1626
        %v3068 = vunpack.c.h.b16 %v2463
        %v3069 = vunpack.c.h.b16 %v2799
        %v3070 = vunpack.c.h.b16 %v1626
        %v3071 = vunpack.c.l.b16 %v2465
        %v3072 = vunpack.c.l.b16 %v2801
        %v3073 = vunpack.c.l.b16 %v1625
        %v3074 = vunpack.c.l.b16 %v2467
        %v3075 = vunpack.c.l.b16 %v2803
        %v3076 = vunpack.c.l.b16 %v1629
        %v3077 = vunpack.c.h.b16 %v2467
        %v3078 = vunpack.c.h.b16 %v2803
        %v3079 = vunpack.c.h.b16 %v1629
        %v3080 = vunpack.c.l.b16 %v2469
        %v3081 = vunpack.c.l.b16 %v2805
        %v3082 = vunpack.c.l.b16 %v1628
        %v3083 = vunpack.c.l.b16 %v2471
        %v3084 = vunpack.c.l.b16 %v2807
        %v3085 = vunpack.c.l.b16 %v1632
        %v3086 = vunpack.c.h.b16 %v2471
        %v3087 = vunpack.c.h.b16 %v2807
        %v3088 = vunpack.c.h.b16 %v1632
        %v3089 = vunpack.c.l.b16 %v2473
        %v3090 = vunpack.c.l.b16 %v2809
        %v3091 = vunpack.c.l.b16 %v1631
        %v3092 = vunpack.c.l.b16 %v2475
        %v3093 = vunpack.c.l.b16 %v2811
        %v3094 = vunpack.c.l.b16 %v1635
        %v3095 = vunpack.c.h.b16 %v2475
        %v3096 = vunpack.c.h.b16 %v2811
        %v3097 = vunpack.c.h.b16 %v1635
        %v3098 = vunpack.c.l.b16 %v2477
        %v3099 = vunpack.c.l.b16 %v2813
        %v3100 = vunpack.c.l.b16 %v1634
        %v3101 = vunpack.c.l.b16 %v2479
        %v3102 = vunpack.c.l.b16 %v2815
        %v3103 = vunpack.c.l.b16 %v1638
        %v3104 = vunpack.c.h.b16 %v2479
        %v3105 = vunpack.c.h.b16 %v2815
        %v3106 = vunpack.c.h.b16 %v1638
        %v3107 = vunpack.c.l.b16 %v2481
        %v3108 = vunpack.c.l.b16 %v2817
        %v3109 = vunpack.c.l.b16 %v1637
        %v3110 = vunpack.c.l.b16 %v2483
        %v3111 = vunpack.c.l.b16 %v2819
        %v3112 = vunpack.c.l.b16 %v1641
        %v3113 = vunpack.c.h.b16 %v2483
        %v3114 = vunpack.c.h.b16 %v2819
        %v3115 = vunpack.c.h.b16 %v1641
        %v3116 = vunpack.c.l.b16 %v2485
        %v3117 = vunpack.c.l.b16 %v2821
        %v3118 = vunpack.c.l.b16 %v1640
        %v3119 = vunpack.c.l.b16 %v2487
        %v3120 = vunpack.c.l.b16 %v2823
        %v3121 = vunpack.c.l.b16 %v1644
        %v3122 = vunpack.c.h.b16 %v2487
        %v3123 = vunpack.c.h.b16 %v2823
        %v3124 = vunpack.c.h.b16 %v1644
        %v3125 = vunpack.c.l.b16 %v2489
        %v3126 = vunpack.c.l.b16 %v2825
        %v3127 = vunpack.c.l.b16 %v1643
        %v3128 = vunpack.c.l.b16 %v2491
        %v3129 = vunpack.c.l.b16 %v2827
        %v3130 = vunpack.c.l.b16 %v1865
        %v3131 = vunpack.c.h.b16 %v2491
        %v3132 = vunpack.c.h.b16 %v2827
        %v3133 = vunpack.c.h.b16 %v1865
        %v3134 = vunpack.c.l.b16 %v2493
        %v3135 = vunpack.c.l.b16 %v2829
        %v3136 = vunpack.c.l.b16 %v1864
        %v3137 = vunpack.c.l.b16 %v2495
        %v3138 = vunpack.c.l.b16 %v2831
        %v3139 = vunpack.c.l.b16 %v2182
        %v3140 = vunpack.c.h.b16 %v2495
        %v3141 = vunpack.c.h.b16 %v2831
        %v3142 = vunpack.c.h.b16 %v2182
        %v3143 = vunpack.c.l.b16 %v2497
        %v3144 = vunpack.c.l.b16 %v2833
        %v3145 = vunpack.c.l.b16 %v2181
        %v3146 = vld [vmem:[%s3] sm:$0xf]
        %v3147 = vld [vmem:[%s3 + $0x4] sm:$0xf]
        %v3148 = vld [vmem:[%s3 + $0x8] sm:$0xf]
        %v3149 = vld [vmem:[%s3 + $0xc] sm:$0xf]
        %v3150 = vld [vmem:[%s3 + $0x10] sm:$0xf]
        %v3151 = vld [vmem:[%s3 + $0x14] sm:$0xf]
        %v3152 = vld [vmem:[%s3 + $0x18] sm:$0xf]
        %v3153 = vld [vmem:[%s3 + $0x1c] sm:$0xf]
        %v3154 = vld [vmem:[%s3 + $0x20] sm:$0xf]
        %v3155 = vld [vmem:[%s3 + $0x24] sm:$0xf]
        %v3156 = vld [vmem:[%s3 + $0x28] sm:$0xf]
        %v3157 = vld [vmem:[%s3 + $0x2c] sm:$0xf]
        %v3158 = vld [vmem:[%s3 + $0x30] sm:$0xf]
        %v3159 = vld [vmem:[%s3 + $0x34] sm:$0xf]
        %v3160 = vld [vmem:[%s3 + $0x38] sm:$0xf]
        %v3161 = vld [vmem:[%s3 + $0x3c] sm:$0xf]
        %v3162 = vld [vmem:[%s3 + $0x40] sm:$0xf]
        %v3163 = vld [vmem:[%s3 + $0x44] sm:$0xf]
        %v3164 = vld [vmem:[%s3 + $0x48] sm:$0xf]
        %v3165 = vld [vmem:[%s3 + $0x4c] sm:$0xf]
        %v3166 = vld [vmem:[%s3 + $0x50] sm:$0xf]
        %v3167 = vld [vmem:[%s3 + $0x54] sm:$0xf]
        %v3168 = vld [vmem:[%s3 + $0x58] sm:$0xf]
        %v3169 = vld [vmem:[%s3 + $0x5c] sm:$0xf]
        %v3170 = vld [vmem:[%s3 + $0x60] sm:$0xf]
        %v3171 = vld [vmem:[%s3 + $0x64] sm:$0xf]
        %v3172 = vld [vmem:[%s3 + $0x68] sm:$0xf]
        %v3173 = vld [vmem:[%s3 + $0x6c] sm:$0xf]
        %v3174 = vld [vmem:[%s3 + $0x70] sm:$0xf]
        %v3175 = vld [vmem:[%s3 + $0x74] sm:$0xf]
        %v3176 = vld [vmem:[%s3 + $0x78] sm:$0xf]
        %v3177 = vld [vmem:[%s3 + $0x7c] sm:$0xf]
        %v3178 = vld [vmem:[%s3 + $0x80] sm:$0xf]
        %v3179 = vld [vmem:[%s3 + $0x84] sm:$0xf]
        %v3180 = vld [vmem:[%s3 + $0x88] sm:$0xf]
        %v3181 = vld [vmem:[%s3 + $0x8c] sm:$0xf]
        %v3182 = vld [vmem:[#allocation2] sm:$0x1]
        %v3184 = vperm.slane %v3182, 0
        %v3186 = vpack.c.b16 %v2933, %v2930
        %v3187 = vpack.c.b16 %v2934, %v2931
        %v3188 = vpack.c.b16 %v2935, %v2932
        %v3189 = vpack.c.b16 %v2939, %v2936
        %v3190 = vpack.c.b16 %v2940, %v2937
        %v3191 = vpack.c.b16 %v2941, %v2938
        %v3192 = vpack.c.b16 %v2945, %v2942
        %v3193 = vpack.c.b16 %v2946, %v2943
        %v3194 = vpack.c.b16 %v2947, %v2944
        %v3195 = vpack.c.b16 %v2951, %v2948
        %v3196 = vpack.c.b16 %v2952, %v2949
        %v3197 = vpack.c.b16 %v2953, %v2950
        %v3198 = vpack.c.b16 %v2957, %v2954
        %v3199 = vpack.c.b16 %v2958, %v2955
        %v3200 = vpack.c.b16 %v2959, %v2956
        %v3201 = vpack.c.b16 %v2963, %v2960
        %v3202 = vpack.c.b16 %v2964, %v2961
        %v3203 = vpack.c.b16 %v2965, %v2962
        %v3204 = vpack.c.b16 %v2969, %v2966
        %v3205 = vpack.c.b16 %v2970, %v2967
        %v3206 = vpack.c.b16 %v2971, %v2968
        %v3207 = vpack.c.b16 %v2975, %v2972
        %v3208 = vpack.c.b16 %v2976, %v2973
        %v3209 = vpack.c.b16 %v2977, %v2974
        %v3210 = vpack.c.b16 %v2981, %v2978
        %v3211 = vpack.c.b16 %v2982, %v2979
        %v3212 = vpack.c.b16 %v2983, %v2980
        %v3213 = vpack.c.b16 %v2987, %v2984
        %v3214 = vpack.c.b16 %v2988, %v2985
        %v3215 = vpack.c.b16 %v2989, %v2986
        %v3216 = vpack.c.b16 %v2993, %v2990
        %v3217 = vpack.c.b16 %v2994, %v2991
        %v3218 = vpack.c.b16 %v2995, %v2992
        %v3219 = vpack.c.b16 %v2999, %v2996
        %v3220 = vpack.c.b16 %v3000, %v2997
        %v3221 = vpack.c.b16 %v3001, %v2998
        %v3222 = vpack.c.b16 %v3005, %v3002
        %v3223 = vpack.c.b16 %v3006, %v3003
        %v3224 = vpack.c.b16 %v3007, %v3004
        %v3225 = vpack.c.b16 %v3011, %v3008
        %v3226 = vpack.c.b16 %v3012, %v3009
        %v3227 = vpack.c.b16 %v3013, %v3010
        %v3228 = vpack.c.b16 %v3017, %v3014
        %v3229 = vpack.c.b16 %v3018, %v3015
        %v3230 = vpack.c.b16 %v3019, %v3016
        %v3231 = vpack.c.b16 %v3023, %v3020
        %v3232 = vpack.c.b16 %v3024, %v3021
        %v3233 = vpack.c.b16 %v3025, %v3022
        %v3234 = vpack.c.b16 %v3029, %v3026
        %v3235 = vpack.c.b16 %v3030, %v3027
        %v3236 = vpack.c.b16 %v3031, %v3028
        %v3237 = vpack.c.b16 %v3035, %v3032
        %v3238 = vpack.c.b16 %v3036, %v3033
        %v3239 = vpack.c.b16 %v3037, %v3034
        %v3240 = vpack.c.b16 %v3041, %v3038
        %v3241 = vpack.c.b16 %v3042, %v3039
        %v3242 = vpack.c.b16 %v3043, %v3040
        %v3243 = vpack.c.b16 %v3047, %v3044
        %v3244 = vpack.c.b16 %v3048, %v3045
        %v3245 = vpack.c.b16 %v3049, %v3046
        %v3246 = vpack.c.b16 %v3053, %v3050
        %v3247 = vpack.c.b16 %v3054, %v3051
        %v3248 = vpack.c.b16 %v3055, %v3052
        %v3249 = vpack.c.b16 %v3059, %v3056
        %v3250 = vpack.c.b16 %v3060, %v3057
        %v3251 = vpack.c.b16 %v3061, %v3058
        %v3252 = vpack.c.b16 %v3065, %v3062
        %v3253 = vpack.c.b16 %v3066, %v3063
        %v3254 = vpack.c.b16 %v3067, %v3064
        %v3255 = vpack.c.b16 %v3071, %v3068
        %v3256 = vpack.c.b16 %v3072, %v3069
        %v3257 = vpack.c.b16 %v3073, %v3070
        %v3258 = vpack.c.b16 %v3077, %v3074
        %v3259 = vpack.c.b16 %v3078, %v3075
        %v3260 = vpack.c.b16 %v3079, %v3076
        %v3261 = vpack.c.b16 %v3083, %v3080
        %v3262 = vpack.c.b16 %v3084, %v3081
        %v3263 = vpack.c.b16 %v3085, %v3082
        %v3264 = vpack.c.b16 %v3089, %v3086
        %v3265 = vpack.c.b16 %v3090, %v3087
        %v3266 = vpack.c.b16 %v3091, %v3088
        %v3267 = vpack.c.b16 %v3095, %v3092
        %v3268 = vpack.c.b16 %v3096, %v3093
        %v3269 = vpack.c.b16 %v3097, %v3094
        %v3270 = vpack.c.b16 %v3101, %v3098
        %v3271 = vpack.c.b16 %v3102, %v3099
        %v3272 = vpack.c.b16 %v3103, %v3100
        %v3273 = vpack.c.b16 %v3107, %v3104
        %v3274 = vpack.c.b16 %v3108, %v3105
        %v3275 = vpack.c.b16 %v3109, %v3106
        %v3276 = vpack.c.b16 %v3113, %v3110
        %v3277 = vpack.c.b16 %v3114, %v3111
        %v3278 = vpack.c.b16 %v3115, %v3112
        %v3279 = vpack.c.b16 %v3119, %v3116
        %v3280 = vpack.c.b16 %v3120, %v3117
        %v3281 = vpack.c.b16 %v3121, %v3118
        %v3282 = vpack.c.b16 %v3125, %v3122
        %v3283 = vpack.c.b16 %v3126, %v3123
        %v3284 = vpack.c.b16 %v3127, %v3124
        %v3285 = vpack.c.b16 %v3131, %v3128
        %v3286 = vpack.c.b16 %v3132, %v3129
        %v3287 = vpack.c.b16 %v3133, %v3130
        %v3288 = vpack.c.b16 %v3137, %v3134
        %v3289 = vpack.c.b16 %v3138, %v3135
        %v3290 = vpack.c.b16 %v3139, %v3136
        %v3291 = vpack.c.b16 %v3143, %v3140
        %v3292 = vpack.c.b16 %v3144, %v3141
        %v3293 = vpack.c.b16 %v3145, %v3142
        %v3402 = vunpack.c.l.b16 %v3146
        %v3403 = vunpack.c.l.b16 %v3147
        %v3404 = vunpack.c.l.b16 %v3148
        %v3405 = vunpack.c.l.b16 %v3149
        %v3406 = vunpack.c.l.b16 %v3150
        %v3407 = vunpack.c.l.b16 %v3151
        %v3408 = vunpack.c.l.b16 %v3152
        %v3409 = vunpack.c.l.b16 %v3153
        %v3410 = vunpack.c.l.b16 %v3154
        %v3411 = vunpack.c.l.b16 %v3155
        %v3412 = vunpack.c.l.b16 %v3156
        %v3413 = vunpack.c.l.b16 %v3157
        %v3414 = vunpack.c.l.b16 %v3158
        %v3415 = vunpack.c.l.b16 %v3159
        %v3416 = vunpack.c.l.b16 %v3160
        %v3417 = vunpack.c.l.b16 %v3161
        %v3418 = vunpack.c.l.b16 %v3162
        %v3419 = vunpack.c.l.b16 %v3163
        %v3420 = vunpack.c.l.b16 %v3164
        %v3421 = vunpack.c.l.b16 %v3165
        %v3422 = vunpack.c.l.b16 %v3166
        %v3423 = vunpack.c.l.b16 %v3167
        %v3424 = vunpack.c.l.b16 %v3168
        %v3425 = vunpack.c.l.b16 %v3169
        %v3426 = vunpack.c.l.b16 %v3170
        %v3427 = vunpack.c.l.b16 %v3171
        %v3428 = vunpack.c.l.b16 %v3172
        %v3429 = vunpack.c.l.b16 %v3173
        %v3430 = vunpack.c.l.b16 %v3174
        %v3431 = vunpack.c.l.b16 %v3175
        %v3432 = vunpack.c.l.b16 %v3176
        %v3433 = vunpack.c.l.b16 %v3177
        %v3434 = vunpack.c.l.b16 %v3178
        %v3435 = vunpack.c.l.b16 %v3179
        %v3436 = vunpack.c.l.b16 %v3180
        %v3437 = vunpack.c.l.b16 %v3181
        %v3438 = vpack.c.b16 %v3403, %v3402
        %v3439 = vpack.c.b16 %v3405, %v3404
        %v3440 = vpack.c.b16 %v3407, %v3406
        %v3441 = vpack.c.b16 %v3409, %v3408
        %v3442 = vpack.c.b16 %v3411, %v3410
        %v3443 = vpack.c.b16 %v3413, %v3412
        %v3444 = vpack.c.b16 %v3415, %v3414
        %v3445 = vpack.c.b16 %v3417, %v3416
        %v3446 = vpack.c.b16 %v3419, %v3418
        %v3447 = vpack.c.b16 %v3421, %v3420
        %v3448 = vpack.c.b16 %v3423, %v3422
        %v3449 = vpack.c.b16 %v3425, %v3424
        %v3450 = vpack.c.b16 %v3427, %v3426
        %v3451 = vpack.c.b16 %v3429, %v3428
        %v3452 = vpack.c.b16 %v3431, %v3430
        %v3453 = vpack.c.b16 %v3433, %v3432
        %v3454 = vpack.c.b16 %v3435, %v3434
        %v3455 = vpack.c.b16 %v3437, %v3436
        %v3475 = vsel %vm2183, %v3188, 0
        %v3478 = vsel %vm2183, %v3191, 0
        %v3481 = vsel %vm2183, %v3194, 0
        %v3484 = vsel %vm2183, %v3197, 0
        %v3487 = vsel %vm2183, %v3200, 0
        %v3490 = vsel %vm2183, %v3203, 0
        %v3493 = vsel %vm2183, %v3206, 0
        %v3496 = vsel %vm2183, %v3209, 0
        %v3499 = vsel %vm2183, %v3212, 0
        %v3502 = vsel %vm2183, %v3215, 0
        %v3505 = vsel %vm2183, %v3218, 0
        %v3508 = vsel %vm2183, %v3221, 0
        %v3511 = vsel %vm2183, %v3224, 0
        %v3514 = vsel %vm2183, %v3227, 0
        %v3517 = vsel %vm2183, %v3230, 0
        %v3520 = vsel %vm2183, %v3233, 0
        %v3523 = vsel %vm2183, %v3236, 0
        %v3526 = vsel %vm2183, %v3239, 0
        %v3529 = vsel %vm2183, %v3242, 0
        %v3532 = vsel %vm2183, %v3245, 0
        %v3535 = vsel %vm2183, %v3248, 0
        %v3538 = vsel %vm2183, %v3251, 0
        %v3541 = vsel %vm2183, %v3254, 0
        %v3544 = vsel %vm2183, %v3257, 0
        %v3547 = vsel %vm2183, %v3260, 0
        %v3550 = vsel %vm2183, %v3263, 0
        %v3553 = vsel %vm2183, %v3266, 0
        %v3556 = vsel %vm2183, %v3269, 0
        %v3559 = vsel %vm2183, %v3272, 0
        %v3562 = vsel %vm2183, %v3275, 0
        %v3565 = vsel %vm2183, %v3278, 0
        %v3568 = vsel %vm2183, %v3281, 0
        %v3571 = vsel %vm2183, %v3284, 0
        %v3574 = vsel %vm2183, %v3287, 0
        %v3577 = vsel %vm2183, %v3290, 0
        %v3580 = vsel %vm2183, %v3293, 0
        %3582 = vmatpush.bf16.msra.mxu0 %v3445
        %3583 = vmatpush.bf16.msra.mxu0 %v3444
        %3584 = vmatpush.bf16.msra.mxu0 %v3443
        %3585 = vmatpush.bf16.msra.mxu0 %v3442
        %3586 = vmatpush.bf16.msra.mxu0 %v3441
        %3587 = vmatpush.bf16.msra.mxu0 %v3440
        %3588 = vmatpush.bf16.msra.mxu0 %v3439
        %3589 = vmatpush.bf16.msra.mxu0 %v3438
        %3590 = vmatmul.bf16.gmra.mxu0 %v3186
        %v3591 = vpop.f32.mrf.mxu0
        %v3592 = vadd.f32 %v3184, %v3591
        %v3593 = vpop.f32.mrf.mxu0
        %v3594 = vadd.f32 %v3184, %v3593
        %3595 = vmatmul.bf16.gmra.mxu0 %v3189
        %v3596 = vpop.f32.mrf.mxu0
        %v3597 = vadd.f32 %v3184, %v3596
        %v3598 = vpop.f32.mrf.mxu0
        %v3599 = vadd.f32 %v3184, %v3598
        %3600 = vmatmul.bf16.gmra.mxu0 %v3192
        %v3601 = vpop.f32.mrf.mxu0
        %v3602 = vadd.f32 %v3184, %v3601
        %v3603 = vpop.f32.mrf.mxu0
        %v3604 = vadd.f32 %v3184, %v3603
        %3605 = vmatmul.bf16.gmra.mxu0 %v3195
        %v3606 = vpop.f32.mrf.mxu0
        %v3607 = vadd.f32 %v3184, %v3606
        %v3608 = vpop.f32.mrf.mxu0
        %v3609 = vadd.f32 %v3184, %v3608
        %3610 = vmatmul.bf16.gmra.mxu0 %v3198
        %v3611 = vpop.f32.mrf.mxu0
        %v3612 = vadd.f32 %v3184, %v3611
        %v3613 = vpop.f32.mrf.mxu0
        %v3614 = vadd.f32 %v3184, %v3613
        %3615 = vmatmul.bf16.gmra.mxu0 %v3201
        %v3616 = vpop.f32.mrf.mxu0
        %v3617 = vadd.f32 %v3184, %v3616
        %v3618 = vpop.f32.mrf.mxu0
        %v3619 = vadd.f32 %v3184, %v3618
        %3620 = vmatmul.bf16.gmra.mxu0 %v3204
        %v3621 = vpop.f32.mrf.mxu0
        %v3622 = vadd.f32 %v3184, %v3621
        %v3623 = vpop.f32.mrf.mxu0
        %v3624 = vadd.f32 %v3184, %v3623
        %3625 = vmatmul.bf16.gmra.mxu0 %v3207
        %v3626 = vpop.f32.mrf.mxu0
        %v3627 = vadd.f32 %v3184, %v3626
        %v3628 = vpop.f32.mrf.mxu0
        %v3629 = vadd.f32 %v3184, %v3628
        %3630 = vmatmul.bf16.gmra.mxu0 %v3210
        %v3631 = vpop.f32.mrf.mxu0
        %v3632 = vadd.f32 %v3184, %v3631
        %v3633 = vpop.f32.mrf.mxu0
        %v3634 = vadd.f32 %v3184, %v3633
        %3635 = vmatmul.bf16.gmra.mxu0 %v3213
        %v3636 = vpop.f32.mrf.mxu0
        %v3637 = vadd.f32 %v3184, %v3636
        %v3638 = vpop.f32.mrf.mxu0
        %v3639 = vadd.f32 %v3184, %v3638
        %3640 = vmatmul.bf16.gmra.mxu0 %v3216
        %v3641 = vpop.f32.mrf.mxu0
        %v3642 = vadd.f32 %v3184, %v3641
        %v3643 = vpop.f32.mrf.mxu0
        %v3644 = vadd.f32 %v3184, %v3643
        %3645 = vmatmul.bf16.gmra.mxu0 %v3219
        %v3646 = vpop.f32.mrf.mxu0
        %v3647 = vadd.f32 %v3184, %v3646
        %v3648 = vpop.f32.mrf.mxu0
        %v3649 = vadd.f32 %v3184, %v3648
        %3650 = vmatmul.bf16.gmra.mxu0 %v3222
        %v3651 = vpop.f32.mrf.mxu0
        %v3652 = vadd.f32 %v3184, %v3651
        %v3653 = vpop.f32.mrf.mxu0
        %v3654 = vadd.f32 %v3184, %v3653
        %3655 = vmatmul.bf16.gmra.mxu0 %v3225
        %v3656 = vpop.f32.mrf.mxu0
        %v3657 = vadd.f32 %v3184, %v3656
        %v3658 = vpop.f32.mrf.mxu0
        %v3659 = vadd.f32 %v3184, %v3658
        %3660 = vmatmul.bf16.gmra.mxu0 %v3228
        %v3661 = vpop.f32.mrf.mxu0
        %v3662 = vadd.f32 %v3184, %v3661
        %v3663 = vpop.f32.mrf.mxu0
        %v3664 = vadd.f32 %v3184, %v3663
        %3665 = vmatmul.bf16.gmra.mxu0 %v3231
        %v3666 = vpop.f32.mrf.mxu0
        %v3667 = vadd.f32 %v3184, %v3666
        %v3668 = vpop.f32.mrf.mxu0
        %v3669 = vadd.f32 %v3184, %v3668
        %3670 = vmatmul.bf16.gmra.mxu0 %v3234
        %v3671 = vpop.f32.mrf.mxu0
        %v3672 = vadd.f32 %v3184, %v3671
        %v3673 = vpop.f32.mrf.mxu0
        %v3674 = vadd.f32 %v3184, %v3673
        %3675 = vmatmul.bf16.gmra.mxu0 %v3237
        %v3676 = vpop.f32.mrf.mxu0
        %v3677 = vadd.f32 %v3184, %v3676
        %v3678 = vpop.f32.mrf.mxu0
        %v3679 = vadd.f32 %v3184, %v3678
        %3680 = vmatmul.bf16.gmra.mxu0 %v3240
        %v3681 = vpop.f32.mrf.mxu0
        %v3682 = vadd.f32 %v3184, %v3681
        %v3683 = vpop.f32.mrf.mxu0
        %v3684 = vadd.f32 %v3184, %v3683
        %3685 = vmatmul.bf16.gmra.mxu0 %v3243
        %v3686 = vpop.f32.mrf.mxu0
        %v3687 = vadd.f32 %v3184, %v3686
        %v3688 = vpop.f32.mrf.mxu0
        %v3689 = vadd.f32 %v3184, %v3688
        %3690 = vmatmul.bf16.gmra.mxu0 %v3246
        %v3691 = vpop.f32.mrf.mxu0
        %v3692 = vadd.f32 %v3184, %v3691
        %v3693 = vpop.f32.mrf.mxu0
        %v3694 = vadd.f32 %v3184, %v3693
        %3695 = vmatmul.bf16.gmra.mxu0 %v3249
        %v3696 = vpop.f32.mrf.mxu0
        %v3697 = vadd.f32 %v3184, %v3696
        %v3698 = vpop.f32.mrf.mxu0
        %v3699 = vadd.f32 %v3184, %v3698
        %3700 = vmatmul.bf16.gmra.mxu0 %v3252
        %v3701 = vpop.f32.mrf.mxu0
        %v3702 = vadd.f32 %v3184, %v3701
        %v3703 = vpop.f32.mrf.mxu0
        %v3704 = vadd.f32 %v3184, %v3703
        %3705 = vmatmul.bf16.gmra.mxu0 %v3255
        %v3706 = vpop.f32.mrf.mxu0
        %v3707 = vadd.f32 %v3184, %v3706
        %v3708 = vpop.f32.mrf.mxu0
        %v3709 = vadd.f32 %v3184, %v3708
        %3710 = vmatmul.bf16.gmra.mxu0 %v3258
        %v3711 = vpop.f32.mrf.mxu0
        %v3712 = vadd.f32 %v3184, %v3711
        %v3713 = vpop.f32.mrf.mxu0
        %v3714 = vadd.f32 %v3184, %v3713
        %3715 = vmatmul.bf16.gmra.mxu0 %v3261
        %v3716 = vpop.f32.mrf.mxu0
        %v3717 = vadd.f32 %v3184, %v3716
        %v3718 = vpop.f32.mrf.mxu0
        %v3719 = vadd.f32 %v3184, %v3718
        %3720 = vmatmul.bf16.gmra.mxu0 %v3264
        %v3721 = vpop.f32.mrf.mxu0
        %v3722 = vadd.f32 %v3184, %v3721
        %v3723 = vpop.f32.mrf.mxu0
        %v3724 = vadd.f32 %v3184, %v3723
        %3725 = vmatmul.bf16.gmra.mxu0 %v3267
        %v3726 = vpop.f32.mrf.mxu0
        %v3727 = vadd.f32 %v3184, %v3726
        %v3728 = vpop.f32.mrf.mxu0
        %v3729 = vadd.f32 %v3184, %v3728
        %3730 = vmatmul.bf16.gmra.mxu0 %v3270
        %v3731 = vpop.f32.mrf.mxu0
        %v3732 = vadd.f32 %v3184, %v3731
        %v3733 = vpop.f32.mrf.mxu0
        %v3734 = vadd.f32 %v3184, %v3733
        %3735 = vmatmul.bf16.gmra.mxu0 %v3273
        %v3736 = vpop.f32.mrf.mxu0
        %v3737 = vadd.f32 %v3184, %v3736
        %v3738 = vpop.f32.mrf.mxu0
        %v3739 = vadd.f32 %v3184, %v3738
        %3740 = vmatmul.bf16.gmra.mxu0 %v3276
        %v3741 = vpop.f32.mrf.mxu0
        %v3742 = vadd.f32 %v3184, %v3741
        %v3743 = vpop.f32.mrf.mxu0
        %v3744 = vadd.f32 %v3184, %v3743
        %3745 = vmatmul.bf16.gmra.mxu0 %v3279
        %v3746 = vpop.f32.mrf.mxu0
        %v3747 = vadd.f32 %v3184, %v3746
        %v3748 = vpop.f32.mrf.mxu0
        %v3749 = vadd.f32 %v3184, %v3748
        %3750 = vmatmul.bf16.gmra.mxu0 %v3282
        %v3751 = vpop.f32.mrf.mxu0
        %v3752 = vadd.f32 %v3184, %v3751
        %v3753 = vpop.f32.mrf.mxu0
        %v3754 = vadd.f32 %v3184, %v3753
        %3755 = vmatmul.bf16.gmra.mxu0 %v3285
        %v3756 = vpop.f32.mrf.mxu0
        %v3757 = vadd.f32 %v3184, %v3756
        %v3758 = vpop.f32.mrf.mxu0
        %v3759 = vadd.f32 %v3184, %v3758
        %3760 = vmatmul.bf16.gmra.mxu0 %v3288
        %v3761 = vpop.f32.mrf.mxu0
        %v3762 = vadd.f32 %v3184, %v3761
        %v3763 = vpop.f32.mrf.mxu0
        %v3764 = vadd.f32 %v3184, %v3763
        %3765 = vmatmul.bf16.gmra.mxu0 %v3291
        %v3766 = vpop.f32.mrf.mxu0
        %v3767 = vadd.f32 %v3184, %v3766
        %v3768 = vpop.f32.mrf.mxu0
        %v3769 = vadd.f32 %v3184, %v3768
        %3770 = vdwg.mxu0
        %3771 = vmatpush.bf16.msra.mxu0 %v3453
        %3772 = vmatpush.bf16.msra.mxu0 %v3452
        %3773 = vmatpush.bf16.msra.mxu0 %v3451
        %3774 = vmatpush.bf16.msra.mxu0 %v3450
        %3775 = vmatpush.bf16.msra.mxu0 %v3449
        %3776 = vmatpush.bf16.msra.mxu0 %v3448
        %3777 = vmatpush.bf16.msra.mxu0 %v3447
        %3778 = vmatpush.bf16.msra.mxu0 %v3446
        %3779 = vmatmul.bf16.gmra.mxu0 %v3187
        %v3780 = vpop.f32.mrf.mxu0
        %v3781 = vadd.f32 %v3592, %v3780
        %v3782 = vpop.f32.mrf.mxu0
        %v3783 = vadd.f32 %v3594, %v3782
        %3784 = vmatmul.bf16.gmra.mxu0 %v3190
        %v3785 = vpop.f32.mrf.mxu0
        %v3786 = vadd.f32 %v3597, %v3785
        %v3787 = vpop.f32.mrf.mxu0
        %v3788 = vadd.f32 %v3599, %v3787
        %3789 = vmatmul.bf16.gmra.mxu0 %v3193
        %v3790 = vpop.f32.mrf.mxu0
        %v3791 = vadd.f32 %v3602, %v3790
        %v3792 = vpop.f32.mrf.mxu0
        %v3793 = vadd.f32 %v3604, %v3792
        %3794 = vmatmul.bf16.gmra.mxu0 %v3196
        %v3795 = vpop.f32.mrf.mxu0
        %v3796 = vadd.f32 %v3607, %v3795
        %v3797 = vpop.f32.mrf.mxu0
        %v3798 = vadd.f32 %v3609, %v3797
        %3799 = vmatmul.bf16.gmra.mxu0 %v3199
        %v3800 = vpop.f32.mrf.mxu0
        %v3801 = vadd.f32 %v3612, %v3800
        %v3802 = vpop.f32.mrf.mxu0
        %v3803 = vadd.f32 %v3614, %v3802
        %3804 = vmatmul.bf16.gmra.mxu0 %v3202
        %v3805 = vpop.f32.mrf.mxu0
        %v3806 = vadd.f32 %v3617, %v3805
        %v3807 = vpop.f32.mrf.mxu0
        %v3808 = vadd.f32 %v3619, %v3807
        %3809 = vmatmul.bf16.gmra.mxu0 %v3205
        %v3810 = vpop.f32.mrf.mxu0
        %v3811 = vadd.f32 %v3622, %v3810
        %v3812 = vpop.f32.mrf.mxu0
        %v3813 = vadd.f32 %v3624, %v3812
        %3814 = vmatmul.bf16.gmra.mxu0 %v3208
        %v3815 = vpop.f32.mrf.mxu0
        %v3816 = vadd.f32 %v3627, %v3815
        %v3817 = vpop.f32.mrf.mxu0
        %v3818 = vadd.f32 %v3629, %v3817
        %3819 = vmatmul.bf16.gmra.mxu0 %v3211
        %v3820 = vpop.f32.mrf.mxu0
        %v3821 = vadd.f32 %v3632, %v3820
        %v3822 = vpop.f32.mrf.mxu0
        %v3823 = vadd.f32 %v3634, %v3822
        %3824 = vmatmul.bf16.gmra.mxu0 %v3214
        %v3825 = vpop.f32.mrf.mxu0
        %v3826 = vadd.f32 %v3637, %v3825
        %v3827 = vpop.f32.mrf.mxu0
        %v3828 = vadd.f32 %v3639, %v3827
        %3829 = vmatmul.bf16.gmra.mxu0 %v3217
        %v3830 = vpop.f32.mrf.mxu0
        %v3831 = vadd.f32 %v3642, %v3830
        %v3832 = vpop.f32.mrf.mxu0
        %v3833 = vadd.f32 %v3644, %v3832
        %3834 = vmatmul.bf16.gmra.mxu0 %v3220
        %v3835 = vpop.f32.mrf.mxu0
        %v3836 = vadd.f32 %v3647, %v3835
        %v3837 = vpop.f32.mrf.mxu0
        %v3838 = vadd.f32 %v3649, %v3837
        %3839 = vmatmul.bf16.gmra.mxu0 %v3223
        %v3840 = vpop.f32.mrf.mxu0
        %v3841 = vadd.f32 %v3652, %v3840
        %v3842 = vpop.f32.mrf.mxu0
        %v3843 = vadd.f32 %v3654, %v3842
        %3844 = vmatmul.bf16.gmra.mxu0 %v3226
        %v3845 = vpop.f32.mrf.mxu0
        %v3846 = vadd.f32 %v3657, %v3845
        %v3847 = vpop.f32.mrf.mxu0
        %v3848 = vadd.f32 %v3659, %v3847
        %3849 = vmatmul.bf16.gmra.mxu0 %v3229
        %v3850 = vpop.f32.mrf.mxu0
        %v3851 = vadd.f32 %v3662, %v3850
        %v3852 = vpop.f32.mrf.mxu0
        %v3853 = vadd.f32 %v3664, %v3852
        %3854 = vmatmul.bf16.gmra.mxu0 %v3232
        %v3855 = vpop.f32.mrf.mxu0
        %v3856 = vadd.f32 %v3667, %v3855
        %v3857 = vpop.f32.mrf.mxu0
        %v3858 = vadd.f32 %v3669, %v3857
        %3859 = vmatmul.bf16.gmra.mxu0 %v3235
        %v3860 = vpop.f32.mrf.mxu0
        %v3861 = vadd.f32 %v3672, %v3860
        %v3862 = vpop.f32.mrf.mxu0
        %v3863 = vadd.f32 %v3674, %v3862
        %3864 = vmatmul.bf16.gmra.mxu0 %v3238
        %v3865 = vpop.f32.mrf.mxu0
        %v3866 = vadd.f32 %v3677, %v3865
        %v3867 = vpop.f32.mrf.mxu0
        %v3868 = vadd.f32 %v3679, %v3867
        %3869 = vmatmul.bf16.gmra.mxu0 %v3241
        %v3870 = vpop.f32.mrf.mxu0
        %v3871 = vadd.f32 %v3682, %v3870
        %v3872 = vpop.f32.mrf.mxu0
        %v3873 = vadd.f32 %v3684, %v3872
        %3874 = vmatmul.bf16.gmra.mxu0 %v3244
        %v3875 = vpop.f32.mrf.mxu0
        %v3876 = vadd.f32 %v3687, %v3875
        %v3877 = vpop.f32.mrf.mxu0
        %v3878 = vadd.f32 %v3689, %v3877
        %3879 = vmatmul.bf16.gmra.mxu0 %v3247
        %v3880 = vpop.f32.mrf.mxu0
        %v3881 = vadd.f32 %v3692, %v3880
        %v3882 = vpop.f32.mrf.mxu0
        %v3883 = vadd.f32 %v3694, %v3882
        %3884 = vmatmul.bf16.gmra.mxu0 %v3250
        %v3885 = vpop.f32.mrf.mxu0
        %v3886 = vadd.f32 %v3697, %v3885
        %v3887 = vpop.f32.mrf.mxu0
        %v3888 = vadd.f32 %v3699, %v3887
        %3889 = vmatmul.bf16.gmra.mxu0 %v3253
        %v3890 = vpop.f32.mrf.mxu0
        %v3891 = vadd.f32 %v3702, %v3890
        %v3892 = vpop.f32.mrf.mxu0
        %v3893 = vadd.f32 %v3704, %v3892
        %3894 = vmatmul.bf16.gmra.mxu0 %v3256
        %v3895 = vpop.f32.mrf.mxu0
        %v3896 = vadd.f32 %v3707, %v3895
        %v3897 = vpop.f32.mrf.mxu0
        %v3898 = vadd.f32 %v3709, %v3897
        %3899 = vmatmul.bf16.gmra.mxu0 %v3259
        %v3900 = vpop.f32.mrf.mxu0
        %v3901 = vadd.f32 %v3712, %v3900
        %v3902 = vpop.f32.mrf.mxu0
        %v3903 = vadd.f32 %v3714, %v3902
        %3904 = vmatmul.bf16.gmra.mxu0 %v3262
        %v3905 = vpop.f32.mrf.mxu0
        %v3906 = vadd.f32 %v3717, %v3905
        %v3907 = vpop.f32.mrf.mxu0
        %v3908 = vadd.f32 %v3719, %v3907
        %3909 = vmatmul.bf16.gmra.mxu0 %v3265
        %v3910 = vpop.f32.mrf.mxu0
        %v3911 = vadd.f32 %v3722, %v3910
        %v3912 = vpop.f32.mrf.mxu0
        %v3913 = vadd.f32 %v3724, %v3912
        %3914 = vmatmul.bf16.gmra.mxu0 %v3268
        %v3915 = vpop.f32.mrf.mxu0
        %v3916 = vadd.f32 %v3727, %v3915
        %v3917 = vpop.f32.mrf.mxu0
        %v3918 = vadd.f32 %v3729, %v3917
        %3919 = vmatmul.bf16.gmra.mxu0 %v3271
        %v3920 = vpop.f32.mrf.mxu0
        %v3921 = vadd.f32 %v3732, %v3920
        %v3922 = vpop.f32.mrf.mxu0
        %v3923 = vadd.f32 %v3734, %v3922
        %3924 = vmatmul.bf16.gmra.mxu0 %v3274
        %v3925 = vpop.f32.mrf.mxu0
        %v3926 = vadd.f32 %v3737, %v3925
        %v3927 = vpop.f32.mrf.mxu0
        %v3928 = vadd.f32 %v3739, %v3927
        %3929 = vmatmul.bf16.gmra.mxu0 %v3277
        %v3930 = vpop.f32.mrf.mxu0
        %v3931 = vadd.f32 %v3742, %v3930
        %v3932 = vpop.f32.mrf.mxu0
        %v3933 = vadd.f32 %v3744, %v3932
        %3934 = vmatmul.bf16.gmra.mxu0 %v3280
        %v3935 = vpop.f32.mrf.mxu0
        %v3936 = vadd.f32 %v3747, %v3935
        %v3937 = vpop.f32.mrf.mxu0
        %v3938 = vadd.f32 %v3749, %v3937
        %3939 = vmatmul.bf16.gmra.mxu0 %v3283
        %v3940 = vpop.f32.mrf.mxu0
        %v3941 = vadd.f32 %v3752, %v3940
        %v3942 = vpop.f32.mrf.mxu0
        %v3943 = vadd.f32 %v3754, %v3942
        %3944 = vmatmul.bf16.gmra.mxu0 %v3286
        %v3945 = vpop.f32.mrf.mxu0
        %v3946 = vadd.f32 %v3757, %v3945
        %v3947 = vpop.f32.mrf.mxu0
        %v3948 = vadd.f32 %v3759, %v3947
        %3949 = vmatmul.bf16.gmra.mxu0 %v3289
        %v3950 = vpop.f32.mrf.mxu0
        %v3951 = vadd.f32 %v3762, %v3950
        %v3952 = vpop.f32.mrf.mxu0
        %v3953 = vadd.f32 %v3764, %v3952
        %3954 = vmatmul.bf16.gmra.mxu0 %v3292
        %v3955 = vpop.f32.mrf.mxu0
        %v3956 = vadd.f32 %v3767, %v3955
        %v3957 = vpop.f32.mrf.mxu0
        %v3958 = vadd.f32 %v3769, %v3957
        %3959 = vdwg.mxu0
        %3960 = vmatpush.bf16.msra.mxu0 0
        %3961 = vmatpush.bf16.msra.mxu0 0
        %3962 = vmatpush.bf16.msra.mxu0 0
        %3963 = vmatpush.bf16.msra.mxu0 0
        %3964 = vmatpush.bf16.msra.mxu0 0
        %3965 = vmatpush.bf16.msra.mxu0 0
        %3966 = vmatpush.bf16.msra.mxu0 %v3455
        %3967 = vmatpush.bf16.msra.mxu0 %v3454
        %3968 = vmatmul.bf16.gmra.mxu0 %v3475
        %v3969 = vpop.f32.mrf.mxu0
        %v3970 = vadd.f32 %v3781, %v3969
        %v3971 = vpop.f32.mrf.mxu0
        %v3972 = vadd.f32 %v3783, %v3971
        %3973 = vmatmul.bf16.gmra.mxu0 %v3478
        %v3974 = vpop.f32.mrf.mxu0
        %v3975 = vadd.f32 %v3786, %v3974
        %v3976 = vpop.f32.mrf.mxu0
        %v3977 = vadd.f32 %v3788, %v3976
        %3978 = vmatmul.bf16.gmra.mxu0 %v3481
        %v3979 = vpop.f32.mrf.mxu0
        %v3980 = vadd.f32 %v3791, %v3979
        %v3981 = vpop.f32.mrf.mxu0
        %v3982 = vadd.f32 %v3793, %v3981
        %3983 = vmatmul.bf16.gmra.mxu0 %v3484
        %v3984 = vpop.f32.mrf.mxu0
        %v3985 = vadd.f32 %v3796, %v3984
        %v3986 = vpop.f32.mrf.mxu0
        %v3987 = vadd.f32 %v3798, %v3986
        %3988 = vmatmul.bf16.gmra.mxu0 %v3487
        %v3989 = vpop.f32.mrf.mxu0
        %v3990 = vadd.f32 %v3801, %v3989
        %v3991 = vpop.f32.mrf.mxu0
        %v3992 = vadd.f32 %v3803, %v3991
        %3993 = vmatmul.bf16.gmra.mxu0 %v3490
        %v3994 = vpop.f32.mrf.mxu0
        %v3995 = vadd.f32 %v3806, %v3994
        %v3996 = vpop.f32.mrf.mxu0
        %v3997 = vadd.f32 %v3808, %v3996
        %3998 = vmatmul.bf16.gmra.mxu0 %v3493
        %v3999 = vpop.f32.mrf.mxu0
        %v4000 = vadd.f32 %v3811, %v3999
        %v4001 = vpop.f32.mrf.mxu0
        %v4002 = vadd.f32 %v3813, %v4001
        %4003 = vmatmul.bf16.gmra.mxu0 %v3496
        %v4004 = vpop.f32.mrf.mxu0
        %v4005 = vadd.f32 %v3816, %v4004
        %v4006 = vpop.f32.mrf.mxu0
        %v4007 = vadd.f32 %v3818, %v4006
        %4008 = vmatmul.bf16.gmra.mxu0 %v3499
        %v4009 = vpop.f32.mrf.mxu0
        %v4010 = vadd.f32 %v3821, %v4009
        %v4011 = vpop.f32.mrf.mxu0
        %v4012 = vadd.f32 %v3823, %v4011
        %4013 = vmatmul.bf16.gmra.mxu0 %v3502
        %v4014 = vpop.f32.mrf.mxu0
        %v4015 = vadd.f32 %v3826, %v4014
        %v4016 = vpop.f32.mrf.mxu0
        %v4017 = vadd.f32 %v3828, %v4016
        %4018 = vmatmul.bf16.gmra.mxu0 %v3505
        %v4019 = vpop.f32.mrf.mxu0
        %v4020 = vadd.f32 %v3831, %v4019
        %v4021 = vpop.f32.mrf.mxu0
        %v4022 = vadd.f32 %v3833, %v4021
        %4023 = vmatmul.bf16.gmra.mxu0 %v3508
        %v4024 = vpop.f32.mrf.mxu0
        %v4025 = vadd.f32 %v3836, %v4024
        %v4026 = vpop.f32.mrf.mxu0
        %v4027 = vadd.f32 %v3838, %v4026
        %4028 = vmatmul.bf16.gmra.mxu0 %v3511
        %v4029 = vpop.f32.mrf.mxu0
        %v4030 = vadd.f32 %v3841, %v4029
        %v4031 = vpop.f32.mrf.mxu0
        %v4032 = vadd.f32 %v3843, %v4031
        %4033 = vmatmul.bf16.gmra.mxu0 %v3514
        %v4034 = vpop.f32.mrf.mxu0
        %v4035 = vadd.f32 %v3846, %v4034
        %v4036 = vpop.f32.mrf.mxu0
        %v4037 = vadd.f32 %v3848, %v4036
        %4038 = vmatmul.bf16.gmra.mxu0 %v3517
        %v4039 = vpop.f32.mrf.mxu0
        %v4040 = vadd.f32 %v3851, %v4039
        %v4041 = vpop.f32.mrf.mxu0
        %v4042 = vadd.f32 %v3853, %v4041
        %4043 = vmatmul.bf16.gmra.mxu0 %v3520
        %v4044 = vpop.f32.mrf.mxu0
        %v4045 = vadd.f32 %v3856, %v4044
        %v4046 = vpop.f32.mrf.mxu0
        %v4047 = vadd.f32 %v3858, %v4046
        %4048 = vmatmul.bf16.gmra.mxu0 %v3523
        %v4049 = vpop.f32.mrf.mxu0
        %v4050 = vadd.f32 %v3861, %v4049
        %v4051 = vpop.f32.mrf.mxu0
        %v4052 = vadd.f32 %v3863, %v4051
        %4053 = vmatmul.bf16.gmra.mxu0 %v3526
        %v4054 = vpop.f32.mrf.mxu0
        %v4055 = vadd.f32 %v3866, %v4054
        %v4056 = vpop.f32.mrf.mxu0
        %v4057 = vadd.f32 %v3868, %v4056
        %4058 = vmatmul.bf16.gmra.mxu0 %v3529
        %v4059 = vpop.f32.mrf.mxu0
        %v4060 = vadd.f32 %v3871, %v4059
        %v4061 = vpop.f32.mrf.mxu0
        %v4062 = vadd.f32 %v3873, %v4061
        %4063 = vmatmul.bf16.gmra.mxu0 %v3532
        %v4064 = vpop.f32.mrf.mxu0
        %v4065 = vadd.f32 %v3876, %v4064
        %v4066 = vpop.f32.mrf.mxu0
        %v4067 = vadd.f32 %v3878, %v4066
        %4068 = vmatmul.bf16.gmra.mxu0 %v3535
        %v4069 = vpop.f32.mrf.mxu0
        %v4070 = vadd.f32 %v3881, %v4069
        %v4071 = vpop.f32.mrf.mxu0
        %v4072 = vadd.f32 %v3883, %v4071
        %4073 = vmatmul.bf16.gmra.mxu0 %v3538
        %v4074 = vpop.f32.mrf.mxu0
        %v4075 = vadd.f32 %v3886, %v4074
        %v4076 = vpop.f32.mrf.mxu0
        %v4077 = vadd.f32 %v3888, %v4076
        %4078 = vmatmul.bf16.gmra.mxu0 %v3541
        %v4079 = vpop.f32.mrf.mxu0
        %v4080 = vadd.f32 %v3891, %v4079
        %v4081 = vpop.f32.mrf.mxu0
        %v4082 = vadd.f32 %v3893, %v4081
        %4083 = vmatmul.bf16.gmra.mxu0 %v3544
        %v4084 = vpop.f32.mrf.mxu0
        %v4085 = vadd.f32 %v3896, %v4084
        %v4086 = vpop.f32.mrf.mxu0
        %v4087 = vadd.f32 %v3898, %v4086
        %4088 = vmatmul.bf16.gmra.mxu0 %v3547
        %v4089 = vpop.f32.mrf.mxu0
        %v4090 = vadd.f32 %v3901, %v4089
        %v4091 = vpop.f32.mrf.mxu0
        %v4092 = vadd.f32 %v3903, %v4091
        %4093 = vmatmul.bf16.gmra.mxu0 %v3550
        %v4094 = vpop.f32.mrf.mxu0
        %v4095 = vadd.f32 %v3906, %v4094
        %v4096 = vpop.f32.mrf.mxu0
        %v4097 = vadd.f32 %v3908, %v4096
        %4098 = vmatmul.bf16.gmra.mxu0 %v3553
        %v4099 = vpop.f32.mrf.mxu0
        %v4100 = vadd.f32 %v3911, %v4099
        %v4101 = vpop.f32.mrf.mxu0
        %v4102 = vadd.f32 %v3913, %v4101
        %4103 = vmatmul.bf16.gmra.mxu0 %v3556
        %v4104 = vpop.f32.mrf.mxu0
        %v4105 = vadd.f32 %v3916, %v4104
        %v4106 = vpop.f32.mrf.mxu0
        %v4107 = vadd.f32 %v3918, %v4106
        %4108 = vmatmul.bf16.gmra.mxu0 %v3559
        %v4109 = vpop.f32.mrf.mxu0
        %v4110 = vadd.f32 %v3921, %v4109
        %v4111 = vpop.f32.mrf.mxu0
        %v4112 = vadd.f32 %v3923, %v4111
        %4113 = vmatmul.bf16.gmra.mxu0 %v3562
        %v4114 = vpop.f32.mrf.mxu0
        %v4115 = vadd.f32 %v3926, %v4114
        %v4116 = vpop.f32.mrf.mxu0
        %v4117 = vadd.f32 %v3928, %v4116
        %4118 = vmatmul.bf16.gmra.mxu0 %v3565
        %v4119 = vpop.f32.mrf.mxu0
        %v4120 = vadd.f32 %v3931, %v4119
        %v4121 = vpop.f32.mrf.mxu0
        %v4122 = vadd.f32 %v3933, %v4121
        %4123 = vmatmul.bf16.gmra.mxu0 %v3568
        %v4124 = vpop.f32.mrf.mxu0
        %v4125 = vadd.f32 %v3936, %v4124
        %v4126 = vpop.f32.mrf.mxu0
        %v4127 = vadd.f32 %v3938, %v4126
        %4128 = vmatmul.bf16.gmra.mxu0 %v3571
        %v4129 = vpop.f32.mrf.mxu0
        %v4130 = vadd.f32 %v3941, %v4129
        %v4131 = vpop.f32.mrf.mxu0
        %v4132 = vadd.f32 %v3943, %v4131
        %4133 = vmatmul.bf16.gmra.mxu0 %v3574
        %v4134 = vpop.f32.mrf.mxu0
        %v4135 = vadd.f32 %v3946, %v4134
        %v4136 = vpop.f32.mrf.mxu0
        %v4137 = vadd.f32 %v3948, %v4136
        %4138 = vmatmul.bf16.gmra.mxu0 %v3577
        %v4139 = vpop.f32.mrf.mxu0
        %v4140 = vadd.f32 %v3951, %v4139
        %v4141 = vpop.f32.mrf.mxu0
        %v4142 = vadd.f32 %v3953, %v4141
        %4143 = vmatmul.bf16.gmra.mxu0 %v3580
        %v4144 = vpop.f32.mrf.mxu0
        %v4145 = vadd.f32 %v3956, %v4144
        %v4146 = vpop.f32.mrf.mxu0
        %v4147 = vadd.f32 %v3958, %v4146
        %4148 = vdwg.mxu0
        %v4149 = vmax.f32 %v3970, 0.0
        %v4150 = vmax.f32 %v3972, 0.0
        %v4151 = vmax.f32 %v3975, 0.0
        %v4152 = vmax.f32 %v3977, 0.0
        %v4153 = vmax.f32 %v3980, 0.0
        %v4154 = vmax.f32 %v3982, 0.0
        %v4155 = vmax.f32 %v3985, 0.0
        %v4156 = vmax.f32 %v3987, 0.0
        %v4157 = vmax.f32 %v3990, 0.0
        %v4158 = vmax.f32 %v3992, 0.0
        %v4159 = vmax.f32 %v3995, 0.0
        %v4160 = vmax.f32 %v3997, 0.0
        %v4161 = vmax.f32 %v4000, 0.0
        %v4162 = vmax.f32 %v4002, 0.0
        %v4163 = vmax.f32 %v4005, 0.0
        %v4164 = vmax.f32 %v4007, 0.0
        %v4165 = vmax.f32 %v4010, 0.0
        %v4166 = vmax.f32 %v4012, 0.0
        %v4167 = vmax.f32 %v4015, 0.0
        %v4168 = vmax.f32 %v4017, 0.0
        %v4169 = vmax.f32 %v4020, 0.0
        %v4170 = vmax.f32 %v4022, 0.0
        %v4171 = vmax.f32 %v4025, 0.0
        %v4172 = vmax.f32 %v4027, 0.0
        %v4173 = vmax.f32 %v4030, 0.0
        %v4174 = vmax.f32 %v4032, 0.0
        %v4175 = vmax.f32 %v4035, 0.0
        %v4176 = vmax.f32 %v4037, 0.0
        %v4177 = vmax.f32 %v4040, 0.0
        %v4178 = vmax.f32 %v4042, 0.0
        %v4179 = vmax.f32 %v4045, 0.0
        %v4180 = vmax.f32 %v4047, 0.0
        %v4181 = vmax.f32 %v4050, 0.0
        %v4182 = vmax.f32 %v4052, 0.0
        %v4183 = vmax.f32 %v4055, 0.0
        %v4184 = vmax.f32 %v4057, 0.0
        %v4185 = vmax.f32 %v4060, 0.0
        %v4186 = vmax.f32 %v4062, 0.0
        %v4187 = vmax.f32 %v4065, 0.0
        %v4188 = vmax.f32 %v4067, 0.0
        %v4189 = vmax.f32 %v4070, 0.0
        %v4190 = vmax.f32 %v4072, 0.0
        %v4191 = vmax.f32 %v4075, 0.0
        %v4192 = vmax.f32 %v4077, 0.0
        %v4193 = vmax.f32 %v4080, 0.0
        %v4194 = vmax.f32 %v4082, 0.0
        %v4195 = vmax.f32 %v4085, 0.0
        %v4196 = vmax.f32 %v4087, 0.0
        %v4197 = vmax.f32 %v4090, 0.0
        %v4198 = vmax.f32 %v4092, 0.0
        %v4199 = vmax.f32 %v4095, 0.0
        %v4200 = vmax.f32 %v4097, 0.0
        %v4201 = vmax.f32 %v4100, 0.0
        %v4202 = vmax.f32 %v4102, 0.0
        %v4203 = vmax.f32 %v4105, 0.0
        %v4204 = vmax.f32 %v4107, 0.0
        %v4205 = vmax.f32 %v4110, 0.0
        %v4206 = vmax.f32 %v4112, 0.0
        %v4207 = vmax.f32 %v4115, 0.0
        %v4208 = vmax.f32 %v4117, 0.0
        %v4209 = vmax.f32 %v4120, 0.0
        %v4210 = vmax.f32 %v4122, 0.0
        %v4211 = vmax.f32 %v4125, 0.0
        %v4212 = vmax.f32 %v4127, 0.0
        %v4213 = vmax.f32 %v4130, 0.0
        %v4214 = vmax.f32 %v4132, 0.0
        %v4215 = vmax.f32 %v4135, 0.0
        %v4216 = vmax.f32 %v4137, 0.0
        %v4217 = vmax.f32 %v4140, 0.0
        %v4218 = vmax.f32 %v4142, 0.0
        %v4219 = vmax.f32 %v4145, 0.0
        %v4220 = vmax.f32 %v4147, 0.0
        %v4221 = vmax.f32 %v4149, %v4152
        %v4222 = vmax.f32 %v4150, %v4153
        %v4223 = vmax.f32 %v4151, %v4154
        %v4224 = vmax.f32 %v4155, %v4158
        %v4225 = vmax.f32 %v4156, %v4159
        %v4226 = vmax.f32 %v4157, %v4160
        %v4227 = vmax.f32 %v4161, %v4164
        %v4228 = vmax.f32 %v4162, %v4165
        %v4229 = vmax.f32 %v4163, %v4166
        %v4230 = vmax.f32 %v4167, %v4170
        %v4231 = vmax.f32 %v4168, %v4171
        %v4232 = vmax.f32 %v4169, %v4172
        %v4233 = vmax.f32 %v4173, %v4176
        %v4234 = vmax.f32 %v4174, %v4177
        %v4235 = vmax.f32 %v4175, %v4178
        %v4236 = vmax.f32 %v4179, %v4182
        %v4237 = vmax.f32 %v4180, %v4183
        %v4238 = vmax.f32 %v4181, %v4184
        %v4239 = vmax.f32 %v4185, %v4188
        %v4240 = vmax.f32 %v4186, %v4189
        %v4241 = vmax.f32 %v4187, %v4190
        %v4242 = vmax.f32 %v4191, %v4194
        %v4243 = vmax.f32 %v4192, %v4195
        %v4244 = vmax.f32 %v4193, %v4196
        %v4245 = vmax.f32 %v4197, %v4200
        %v4246 = vmax.f32 %v4198, %v4201
        %v4247 = vmax.f32 %v4199, %v4202
        %v4248 = vmax.f32 %v4203, %v4206
        %v4249 = vmax.f32 %v4204, %v4207
        %v4250 = vmax.f32 %v4205, %v4208
        %v4251 = vmax.f32 %v4209, %v4212
        %v4252 = vmax.f32 %v4210, %v4213
        %v4253 = vmax.f32 %v4211, %v4214
        %v4254 = vmax.f32 %v4215, %v4218
        %v4255 = vmax.f32 %v4216, %v4219
        %v4256 = vmax.f32 %v4217, %v4220
        %v4269 = vrot.slane %v4221, 1
        %v4270 = vrot.slane %v4224, 1
        %v4271 = vrot.slane %v4227, 1
        %v4272 = vrot.slane %v4230, 1
        %v4273 = vrot.slane %v4233, 1
        %v4274 = vrot.slane %v4236, 1
        %v4275 = vrot.slane %v4239, 1
        %v4276 = vrot.slane %v4242, 1
        %v4277 = vrot.slane %v4245, 1
        %v4278 = vrot.slane %v4248, 1
        %v4279 = vrot.slane %v4251, 1
        %v4280 = vrot.slane %v4254, 1
        %v4293 = vmax.f32 %v4221, %v4269
        %v4294 = vmax.f32 %v4224, %v4270
        %v4295 = vmax.f32 %v4227, %v4271
        %v4296 = vmax.f32 %v4230, %v4272
        %v4297 = vmax.f32 %v4233, %v4273
        %v4298 = vmax.f32 %v4236, %v4274
        %v4299 = vmax.f32 %v4239, %v4275
        %v4300 = vmax.f32 %v4242, %v4276
        %v4301 = vmax.f32 %v4245, %v4277
        %v4302 = vmax.f32 %v4248, %v4278
        %v4303 = vmax.f32 %v4251, %v4279
        %v4304 = vmax.f32 %v4254, %v4280
        %v4317 = vrot.slane %v4222, 1
        %v4318 = vrot.slane %v4225, 1
        %v4319 = vrot.slane %v4228, 1
        %v4320 = vrot.slane %v4231, 1
        %v4321 = vrot.slane %v4234, 1
        %v4322 = vrot.slane %v4237, 1
        %v4323 = vrot.slane %v4240, 1
        %v4324 = vrot.slane %v4243, 1
        %v4325 = vrot.slane %v4246, 1
        %v4326 = vrot.slane %v4249, 1
        %v4327 = vrot.slane %v4252, 1
        %v4328 = vrot.slane %v4255, 1
        %v4341 = vmax.f32 %v4222, %v4317
        %v4342 = vmax.f32 %v4225, %v4318
        %v4343 = vmax.f32 %v4228, %v4319
        %v4344 = vmax.f32 %v4231, %v4320
        %v4345 = vmax.f32 %v4234, %v4321
        %v4346 = vmax.f32 %v4237, %v4322
        %v4347 = vmax.f32 %v4240, %v4323
        %v4348 = vmax.f32 %v4243, %v4324
        %v4349 = vmax.f32 %v4246, %v4325
        %v4350 = vmax.f32 %v4249, %v4326
        %v4351 = vmax.f32 %v4252, %v4327
        %v4352 = vmax.f32 %v4255, %v4328
        %v4365 = vrot.slane %v4223, 1
        %v4366 = vrot.slane %v4226, 1
        %v4367 = vrot.slane %v4229, 1
        %v4368 = vrot.slane %v4232, 1
        %v4369 = vrot.slane %v4235, 1
        %v4370 = vrot.slane %v4238, 1
        %v4371 = vrot.slane %v4241, 1
        %v4372 = vrot.slane %v4244, 1
        %v4373 = vrot.slane %v4247, 1
        %v4374 = vrot.slane %v4250, 1
        %v4375 = vrot.slane %v4253, 1
        %v4376 = vrot.slane %v4256, 1
        %v4389 = vmax.f32 %v4223, %v4365
        %v4390 = vmax.f32 %v4226, %v4366
        %v4391 = vmax.f32 %v4229, %v4367
        %v4392 = vmax.f32 %v4232, %v4368
        %v4393 = vmax.f32 %v4235, %v4369
        %v4394 = vmax.f32 %v4238, %v4370
        %v4395 = vmax.f32 %v4241, %v4371
        %v4396 = vmax.f32 %v4244, %v4372
        %v4397 = vmax.f32 %v4247, %v4373
        %v4398 = vmax.f32 %v4250, %v4374
        %v4399 = vmax.f32 %v4253, %v4375
        %v4400 = vmax.f32 %v4256, %v4376
        %v4413 = vrot.slane %v4294, 7
        %vm4414 = vcmask 1041409
        %v4415 = vsel %vm4414, %v4413, %v4293
        %v4416 = vrot.slane %v4295, 6
        %vm4417 = vcmask 1042434
        %v4418 = vsel %vm4417, %v4416, %v4415
        %v4419 = vrot.slane %v4296, 5
        %vm4420 = vcmask 1043459
        %v4421 = vsel %vm4420, %v4419, %v4418
        %v4422 = vrot.slane %v4297, 4
        %vm4423 = vcmask 1044484
        %v4424 = vsel %vm4423, %v4422, %v4421
        %v4425 = vrot.slane %v4298, 3
        %vm4426 = vcmask 1045509
        %v4427 = vsel %vm4426, %v4425, %v4424
        %v4428 = vrot.slane %v4299, 2
        %vm4429 = vcmask 1046534
        %v4430 = vsel %vm4429, %v4428, %v4427
        %v4431 = vrot.slane %v4300, 1
        %vm4432 = vcmask 1047559
        %v4433 = vsel %vm4432, %v4431, %v4430
        %v4434 = vrot.slane %v4302, 7
        %v4435 = vsel %vm4414, %v4434, %v4301
        %v4436 = vrot.slane %v4303, 6
        %v4437 = vsel %vm4417, %v4436, %v4435
        %v4438 = vrot.slane %v4304, 5
        %v4439 = vsel %vm4420, %v4438, %v4437
        %v4442 = vrot.slane %v4293, 2
        %v4443 = vrot.slane %v4294, 1
        %v4444 = vsel %vm4414, %v4443, %v4442
        %v4445 = vsel %vm4417, %v4295, %v4444
        %v4446 = vrot.slane %v4296, 7
        %v4447 = vsel %vm4420, %v4446, %v4445
        %v4448 = vrot.slane %v4297, 6
        %v4449 = vsel %vm4423, %v4448, %v4447
        %v4450 = vrot.slane %v4298, 5
        %v4451 = vsel %vm4426, %v4450, %v4449
        %v4452 = vrot.slane %v4299, 4
        %v4453 = vsel %vm4429, %v4452, %v4451
        %v4454 = vrot.slane %v4300, 3
        %v4455 = vsel %vm4432, %v4454, %v4453
        %v4456 = vrot.slane %v4301, 2
        %v4457 = vrot.slane %v4302, 1
        %v4458 = vsel %vm4414, %v4457, %v4456
        %v4459 = vsel %vm4417, %v4303, %v4458
        %v4460 = vrot.slane %v4304, 7
        %v4461 = vsel %vm4420, %v4460, %v4459
        %4462 = vrot.lane.b32.xlu0 %v4455, 64
        %v4463 = vpop.permute.xlu0 %4462
        %4464 = vrot.lane.b32.xlu0 %v4461, 64
        %v4465 = vpop.permute.xlu0 %4464
        %v4468 = vrot.slane %v4293, 4
        %v4469 = vrot.slane %v4294, 3
        %v4470 = vsel %vm4414, %v4469, %v4468
        %v4471 = vrot.slane %v4295, 2
        %v4472 = vsel %vm4417, %v4471, %v4470
        %v4473 = vrot.slane %v4296, 1
        %v4474 = vsel %vm4420, %v4473, %v4472
        %v4475 = vsel %vm4423, %v4297, %v4474
        %v4476 = vrot.slane %v4298, 7
        %v4477 = vsel %vm4426, %v4476, %v4475
        %v4478 = vrot.slane %v4299, 6
        %v4479 = vsel %vm4429, %v4478, %v4477
        %v4480 = vrot.slane %v4300, 5
        %v4481 = vsel %vm4432, %v4480, %v4479
        %v4482 = vrot.slane %v4301, 4
        %v4483 = vrot.slane %v4302, 3
        %v4484 = vsel %vm4414, %v4483, %v4482
        %v4485 = vrot.slane %v4303, 2
        %v4486 = vsel %vm4417, %v4485, %v4484
        %v4487 = vrot.slane %v4304, 1
        %v4488 = vsel %vm4420, %v4487, %v4486
        %v4491 = vrot.slane %v4293, 6
        %v4492 = vrot.slane %v4294, 5
        %v4493 = vsel %vm4414, %v4492, %v4491
        %v4494 = vrot.slane %v4295, 4
        %v4495 = vsel %vm4417, %v4494, %v4493
        %v4496 = vrot.slane %v4296, 3
        %v4497 = vsel %vm4420, %v4496, %v4495
        %v4498 = vrot.slane %v4297, 2
        %v4499 = vsel %vm4423, %v4498, %v4497
        %v4500 = vrot.slane %v4298, 1
        %v4501 = vsel %vm4426, %v4500, %v4499
        %v4502 = vsel %vm4429, %v4299, %v4501
        %v4503 = vrot.slane %v4300, 7
        %v4504 = vsel %vm4432, %v4503, %v4502
        %v4505 = vrot.slane %v4301, 6
        %v4506 = vrot.slane %v4302, 5
        %v4507 = vsel %vm4414, %v4506, %v4505
        %v4508 = vrot.slane %v4303, 4
        %v4509 = vsel %vm4417, %v4508, %v4507
        %v4510 = vrot.slane %v4304, 3
        %v4511 = vsel %vm4420, %v4510, %v4509
        %4512 = vrot.lane.b32.xlu0 %v4504, 64
        %v4513 = vpop.permute.xlu0 %4512
        %4514 = vrot.lane.b32.xlu0 %v4511, 64
        %v4515 = vpop.permute.xlu0 %4514
        %v4530 = vrot.slane %v4342, 7
        %v4531 = vsel %vm4414, %v4530, %v4341
        %v4532 = vrot.slane %v4343, 6
        %v4533 = vsel %vm4417, %v4532, %v4531
        %v4534 = vrot.slane %v4344, 5
        %v4535 = vsel %vm4420, %v4534, %v4533
        %v4536 = vrot.slane %v4345, 4
        %v4537 = vsel %vm4423, %v4536, %v4535
        %v4538 = vrot.slane %v4346, 3
        %v4539 = vsel %vm4426, %v4538, %v4537
        %v4540 = vrot.slane %v4347, 2
        %v4541 = vsel %vm4429, %v4540, %v4539
        %v4542 = vrot.slane %v4348, 1
        %v4543 = vsel %vm4432, %v4542, %v4541
        %v4544 = vrot.slane %v4350, 7
        %v4545 = vsel %vm4414, %v4544, %v4349
        %v4546 = vrot.slane %v4351, 6
        %v4547 = vsel %vm4417, %v4546, %v4545
        %v4548 = vrot.slane %v4352, 5
        %v4549 = vsel %vm4420, %v4548, %v4547
        %v4552 = vrot.slane %v4341, 2
        %v4553 = vrot.slane %v4342, 1
        %v4554 = vsel %vm4414, %v4553, %v4552
        %v4555 = vsel %vm4417, %v4343, %v4554
        %v4556 = vrot.slane %v4344, 7
        %v4557 = vsel %vm4420, %v4556, %v4555
        %v4558 = vrot.slane %v4345, 6
        %v4559 = vsel %vm4423, %v4558, %v4557
        %v4560 = vrot.slane %v4346, 5
        %v4561 = vsel %vm4426, %v4560, %v4559
        %v4562 = vrot.slane %v4347, 4
        %v4563 = vsel %vm4429, %v4562, %v4561
        %v4564 = vrot.slane %v4348, 3
        %v4565 = vsel %vm4432, %v4564, %v4563
        %v4566 = vrot.slane %v4349, 2
        %v4567 = vrot.slane %v4350, 1
        %v4568 = vsel %vm4414, %v4567, %v4566
        %v4569 = vsel %vm4417, %v4351, %v4568
        %v4570 = vrot.slane %v4352, 7
        %v4571 = vsel %vm4420, %v4570, %v4569
        %4572 = vrot.lane.b32.xlu0 %v4565, 64
        %v4573 = vpop.permute.xlu0 %4572
        %4574 = vrot.lane.b32.xlu0 %v4571, 64
        %v4575 = vpop.permute.xlu0 %4574
        %v4578 = vrot.slane %v4341, 4
        %v4579 = vrot.slane %v4342, 3
        %v4580 = vsel %vm4414, %v4579, %v4578
        %v4581 = vrot.slane %v4343, 2
        %v4582 = vsel %vm4417, %v4581, %v4580
        %v4583 = vrot.slane %v4344, 1
        %v4584 = vsel %vm4420, %v4583, %v4582
        %v4585 = vsel %vm4423, %v4345, %v4584
        %v4586 = vrot.slane %v4346, 7
        %v4587 = vsel %vm4426, %v4586, %v4585
        %v4588 = vrot.slane %v4347, 6
        %v4589 = vsel %vm4429, %v4588, %v4587
        %v4590 = vrot.slane %v4348, 5
        %v4591 = vsel %vm4432, %v4590, %v4589
        %v4592 = vrot.slane %v4349, 4
        %v4593 = vrot.slane %v4350, 3
        %v4594 = vsel %vm4414, %v4593, %v4592
        %v4595 = vrot.slane %v4351, 2
        %v4596 = vsel %vm4417, %v4595, %v4594
        %v4597 = vrot.slane %v4352, 1
        %v4598 = vsel %vm4420, %v4597, %v4596
        %v4601 = vrot.slane %v4341, 6
        %v4602 = vrot.slane %v4342, 5
        %v4603 = vsel %vm4414, %v4602, %v4601
        %v4604 = vrot.slane %v4343, 4
        %v4605 = vsel %vm4417, %v4604, %v4603
        %v4606 = vrot.slane %v4344, 3
        %v4607 = vsel %vm4420, %v4606, %v4605
        %v4608 = vrot.slane %v4345, 2
        %v4609 = vsel %vm4423, %v4608, %v4607
        %v4610 = vrot.slane %v4346, 1
        %v4611 = vsel %vm4426, %v4610, %v4609
        %v4612 = vsel %vm4429, %v4347, %v4611
        %v4613 = vrot.slane %v4348, 7
        %v4614 = vsel %vm4432, %v4613, %v4612
        %v4615 = vrot.slane %v4349, 6
        %v4616 = vrot.slane %v4350, 5
        %v4617 = vsel %vm4414, %v4616, %v4615
        %v4618 = vrot.slane %v4351, 4
        %v4619 = vsel %vm4417, %v4618, %v4617
        %v4620 = vrot.slane %v4352, 3
        %v4621 = vsel %vm4420, %v4620, %v4619
        %4622 = vrot.lane.b32.xlu0 %v4614, 64
        %v4623 = vpop.permute.xlu0 %4622
        %4624 = vrot.lane.b32.xlu0 %v4621, 64
        %v4625 = vpop.permute.xlu0 %4624
        %v4640 = vrot.slane %v4390, 7
        %v4641 = vsel %vm4414, %v4640, %v4389
        %v4642 = vrot.slane %v4391, 6
        %v4643 = vsel %vm4417, %v4642, %v4641
        %v4644 = vrot.slane %v4392, 5
        %v4645 = vsel %vm4420, %v4644, %v4643
        %v4646 = vrot.slane %v4393, 4
        %v4647 = vsel %vm4423, %v4646, %v4645
        %v4648 = vrot.slane %v4394, 3
        %v4649 = vsel %vm4426, %v4648, %v4647
        %v4650 = vrot.slane %v4395, 2
        %v4651 = vsel %vm4429, %v4650, %v4649
        %v4652 = vrot.slane %v4396, 1
        %v4653 = vsel %vm4432, %v4652, %v4651
        %v4654 = vrot.slane %v4398, 7
        %v4655 = vsel %vm4414, %v4654, %v4397
        %v4656 = vrot.slane %v4399, 6
        %v4657 = vsel %vm4417, %v4656, %v4655
        %v4658 = vrot.slane %v4400, 5
        %v4659 = vsel %vm4420, %v4658, %v4657
        %v4662 = vrot.slane %v4389, 2
        %v4663 = vrot.slane %v4390, 1
        %v4664 = vsel %vm4414, %v4663, %v4662
        %v4665 = vsel %vm4417, %v4391, %v4664
        %v4666 = vrot.slane %v4392, 7
        %v4667 = vsel %vm4420, %v4666, %v4665
        %v4668 = vrot.slane %v4393, 6
        %v4669 = vsel %vm4423, %v4668, %v4667
        %v4670 = vrot.slane %v4394, 5
        %v4671 = vsel %vm4426, %v4670, %v4669
        %v4672 = vrot.slane %v4395, 4
        %v4673 = vsel %vm4429, %v4672, %v4671
        %v4674 = vrot.slane %v4396, 3
        %v4675 = vsel %vm4432, %v4674, %v4673
        %v4676 = vrot.slane %v4397, 2
        %v4677 = vrot.slane %v4398, 1
        %v4678 = vsel %vm4414, %v4677, %v4676
        %v4679 = vsel %vm4417, %v4399, %v4678
        %v4680 = vrot.slane %v4400, 7
        %v4681 = vsel %vm4420, %v4680, %v4679
        %4682 = vrot.lane.b32.xlu0 %v4675, 64
        %v4683 = vpop.permute.xlu0 %4682
        %4684 = vrot.lane.b32.xlu0 %v4681, 64
        %v4685 = vpop.permute.xlu0 %4684
        %v4688 = vrot.slane %v4389, 4
        %v4689 = vrot.slane %v4390, 3
        %v4690 = vsel %vm4414, %v4689, %v4688
        %v4691 = vrot.slane %v4391, 2
        %v4692 = vsel %vm4417, %v4691, %v4690
        %v4693 = vrot.slane %v4392, 1
        %v4694 = vsel %vm4420, %v4693, %v4692
        %v4695 = vsel %vm4423, %v4393, %v4694
        %v4696 = vrot.slane %v4394, 7
        %v4697 = vsel %vm4426, %v4696, %v4695
        %v4698 = vrot.slane %v4395, 6
        %v4699 = vsel %vm4429, %v4698, %v4697
        %v4700 = vrot.slane %v4396, 5
        %v4701 = vsel %vm4432, %v4700, %v4699
        %v4702 = vrot.slane %v4397, 4
        %v4703 = vrot.slane %v4398, 3
        %v4704 = vsel %vm4414, %v4703, %v4702
        %v4705 = vrot.slane %v4399, 2
        %v4706 = vsel %vm4417, %v4705, %v4704
        %v4707 = vrot.slane %v4400, 1
        %v4708 = vsel %vm4420, %v4707, %v4706
        %v4711 = vrot.slane %v4389, 6
        %v4712 = vrot.slane %v4390, 5
        %v4713 = vsel %vm4414, %v4712, %v4711
        %v4714 = vrot.slane %v4391, 4
        %v4715 = vsel %vm4417, %v4714, %v4713
        %v4716 = vrot.slane %v4392, 3
        %v4717 = vsel %vm4420, %v4716, %v4715
        %v4718 = vrot.slane %v4393, 2
        %v4719 = vsel %vm4423, %v4718, %v4717
        %v4720 = vrot.slane %v4394, 1
        %v4721 = vsel %vm4426, %v4720, %v4719
        %v4722 = vsel %vm4429, %v4395, %v4721
        %v4723 = vrot.slane %v4396, 7
        %v4724 = vsel %vm4432, %v4723, %v4722
        %v4725 = vrot.slane %v4397, 6
        %v4726 = vrot.slane %v4398, 5
        %v4727 = vsel %vm4414, %v4726, %v4725
        %v4728 = vrot.slane %v4399, 4
        %v4729 = vsel %vm4417, %v4728, %v4727
        %v4730 = vrot.slane %v4400, 3
        %v4731 = vsel %vm4420, %v4730, %v4729
        %4732 = vrot.lane.b32.xlu0 %v4724, 64
        %v4733 = vpop.permute.xlu0 %4732
        %4734 = vrot.lane.b32.xlu0 %v4731, 64
        %v4735 = vpop.permute.xlu0 %4734
        %v4738 = vsel %vm2304, %v4433, %v4463
        %v4739 = vsel %vm2304, %v4439, %v4465
        %v4740 = vsel %vm2304, %v4481, %v4513
        %v4741 = vsel %vm2304, %v4488, %v4515
        %v4742 = vsel %vm2304, %v4543, %v4573
        %v4743 = vsel %vm2304, %v4549, %v4575
        %v4744 = vsel %vm2304, %v4591, %v4623
        %v4745 = vsel %vm2304, %v4598, %v4625
        %v4746 = vsel %vm2304, %v4653, %v4683
        %v4747 = vsel %vm2304, %v4659, %v4685
        %v4748 = vsel %vm2304, %v4701, %v4733
        %v4749 = vsel %vm2304, %v4708, %v4735
        %v4750 = vpack.c.bf16 %v4740, %v4738
        %v4751 = vpack.c.bf16 %v4744, %v4742
        %v4752 = vpack.c.bf16 %v4748, %v4746
        %v4753 = vpack.c.bf16 %v4741, %v4739
        %v4754 = vpack.c.bf16 %v4745, %v4743
        %v4755 = vpack.c.bf16 %v4749, %v4747
        %4756 = vst [vmem:[%s239] sm:$0xff] %v4750
        %4757 = vst [vmem:[%s239 + $0x8] sm:$0xff] %v4751
        %4758 = vst [vmem:[%s239 + $0x10] sm:$0xff] %v4752
        %4759 = vst [vmem:[%s239 + $0x18] sm:$0x33] %v4753
        %4760 = vst [vmem:[%s239 + $0x20] sm:$0x33] %v4754
        %4761 = vst [vmem:[%s239 + $0x28] sm:$0x33] %v4755
        %p4762 = scmp.lt.s32.totalorder %s17, 1
        %s4763 = scalar_select %p4762, %s17, 1
        %s4764 = smul.addr %s4763, 12
        %s4765 = smul.addr %s4764, 4
        %s4766 = scalar_lea.vmem %s5, %s4765
        // Predicated region
        $region45: #{generator_forward.2} parent=39 // pred_check
          %p4767 = pneg %p145
        $region46: #{generator_forward.2} parent=39 // pred_check_branch
          %4769 = sbr.rel (%p4767) target = $region48
        $region47: #{generator_forward.2} parent=39 // pred_region
          _
        $region48: #{generator_forward.2} parent=39 // pred_fallthru
          _
      $region40: #{generator_forward.2} parent=5 // pred_fallthru
        _
      %p4770 = scmp.le.s32.totalorder 2, %s12
      // Predicated region
      $region49: #{generator_forward.2} parent=5 // pred_check
        %p4771 = pneg %p4770
      $region50: #{generator_forward.2} parent=5 // pred_check_branch
        %4773 = sbr.rel (%p4771) target = $region52
      $region51: #{generator_forward.2} parent=5 // pred_region
        %s4774 = ssub.s32 %s12, 2
        // Predicated region
        $region53: #{generator_forward.2} parent=51 // pred_check
          %p4775 = pneg %p151
        $region54: #{generator_forward.2} parent=51 // pred_check_branch
          %4777 = sbr.rel (%p4775) target = $region56
        $region55: #{generator_forward.2} parent=51 // pred_region
          %p4778 = scmp.lt.s32.totalorder %s18, 1
          %s4779 = scalar_select %p4778, %s18, 1
          %s4780 = smul.addr %s4779, 12
          %s4781 = smul.addr %s4780, 4
          %s4782 = scalar_lea.vmem %s5, %s4781
        $region56: #{generator_forward.2} parent=51 // pred_fallthru
          _
      $region52: #{generator_forward.2} parent=5 // pred_fallthru
        _
    $region6: #{generator_forward.2} parent=1 // loop_footer
      %s16 = sadd.s32 1, %s12
    $region7: #{generator_forward.2} parent=1 // loop_footer_branch
      %11 = sbr.rel target = $region3
    $region8: #{generator_forward.2} parent=1 // loop_exit
      _
    %4783 = vsyncpa [#allocation3], 1
    %s4784 = scalar_lea.sflag [#allocation3], 1
    %4785 = vsyncpa %s4784, 1

// kernel: generator_forward.3
$region0: #{generator_forward.3}
  #allocation0 [shape = 'u32[]', space=smem, size = 0x4, offset = 0x4, fixed_abs, tag = 'smem constant byte address 0x4 - core index']
  #allocation1 [shape = 'u32[72,128]{1,0:T(1,128)}', space=vmem, size = 0x9000, scoped, tag = 'internal scratch']
  %s0 = inlined_call_operand.vmem [shape: bf16[8,9216], index: 0, kind: input, shape index: {}]
  %s1 = inlined_call_operand.vmem [shape: bf16[9216,128], index: 1, kind: input, shape index: {}]
  %s2 = inlined_call_operand.vmem [shape: f32[1,128], index: 2, kind: input, shape index: {}]
  %s3 = inlined_call_operand.vmem [shape: bf16[128,128], index: 3, kind: input, shape index: {}]
  %s4 = inlined_call_operand.vmem [shape: f32[1,128], index: 4, kind: input, shape index: {}]
  %s5 = inlined_call_operand.vmem [shape: f32[8,128], index: 5, kind: output, shape index: {0}]
  %s6 = inlined_call_operand.vmem [shape: f32[8,128], index: 6, kind: output, shape index: {1}]
  %7 = xla_tuple %s5, %s6
  %s8 = sld [smem:[#allocation0]]
  $region38: #{generator_forward.3} parent=0
    _
  %s10 = ssub.s32 1, %s8
  %s11 = scalar_select 0, %s10, %s8
  // Predicated region
  $region2: #{generator_forward.3} parent=0 // pred_check
    _
  $region3: #{generator_forward.3} parent=0 // pred_check_branch
    %13 = sbr.rel (0) target = $region5
  $region4: #{generator_forward.3} parent=0 // pred_region
    _
  $region5: #{generator_forward.3} parent=0 // pred_fallthru
    _
  // Predicated region
  $region6: #{generator_forward.3} parent=0 // pred_check
    _
  $region7: #{generator_forward.3} parent=0 // pred_check_branch
    %15 = sbr.rel (0) target = $region9
  $region8: #{generator_forward.3} parent=0 // pred_region
    _
  $region9: #{generator_forward.3} parent=0 // pred_fallthru
    _
  // Predicated region
  $region10: #{generator_forward.3} parent=0 // pred_check
    _
  $region11: #{generator_forward.3} parent=0 // pred_check_branch
    %17 = sbr.rel (0) target = $region13
  $region12: #{generator_forward.3} parent=0 // pred_region
    _
  $region13: #{generator_forward.3} parent=0 // pred_fallthru
    _
  // Predicated region
  $region14: #{generator_forward.3} parent=0 // pred_check
    _
  $region15: #{generator_forward.3} parent=0 // pred_check_branch
    %19 = sbr.rel (0) target = $region17
  $region16: #{generator_forward.3} parent=0 // pred_region
    _
  $region17: #{generator_forward.3} parent=0 // pred_fallthru
    _
  // Predicated region
  $region18: #{generator_forward.3} parent=0 // pred_check
    _
  $region19: #{generator_forward.3} parent=0 // pred_check_branch
    %21 = sbr.rel (0) target = $region21
  $region20: #{generator_forward.3} parent=0 // pred_region
    _
  $region21: #{generator_forward.3} parent=0 // pred_fallthru
    _
  %v22 = vld [vmem:[%s0] sm:$0xff]
  %v23 = vld [vmem:[%s0 + $0x8] sm:$0xff]
  %v24 = vld [vmem:[%s0 + $0x10] sm:$0xff]
  %v25 = vld [vmem:[%s0 + $0x18] sm:$0xff]
  %v26 = vld [vmem:[%s0 + $0x20] sm:$0xff]
  %v27 = vld [vmem:[%s0 + $0x28] sm:$0xff]
  %v28 = vld [vmem:[%s0 + $0x30] sm:$0xff]
  %v29 = vld [vmem:[%s0 + $0x38] sm:$0xff]
  %v30 = vld [vmem:[%s0 + $0x40] sm:$0xff]
  %v31 = vld [vmem:[%s0 + $0x48] sm:$0xff]
  %v32 = vld [vmem:[%s0 + $0x50] sm:$0xff]
  %v33 = vld [vmem:[%s0 + $0x58] sm:$0xff]
  %v34 = vld [vmem:[%s0 + $0x60] sm:$0xff]
  %v35 = vld [vmem:[%s0 + $0x68] sm:$0xff]
  %v36 = vld [vmem:[%s0 + $0x70] sm:$0xff]
  %v37 = vld [vmem:[%s0 + $0x78] sm:$0xff]
  %v38 = vld [vmem:[%s0 + $0x80] sm:$0xff]
  %v39 = vld [vmem:[%s0 + $0x88] sm:$0xff]
  %v40 = vld [vmem:[%s0 + $0x90] sm:$0xff]
  %v41 = vld [vmem:[%s0 + $0x98] sm:$0xff]
  %v42 = vld [vmem:[%s0 + $0xa0] sm:$0xff]
  %v43 = vld [vmem:[%s0 + $0xa8] sm:$0xff]
  %v44 = vld [vmem:[%s0 + $0xb0] sm:$0xff]
  %v45 = vld [vmem:[%s0 + $0xb8] sm:$0xff]
  %v46 = vld [vmem:[%s0 + $0xc0] sm:$0xff]
  %v47 = vld [vmem:[%s0 + $0xc8] sm:$0xff]
  %v48 = vld [vmem:[%s0 + $0xd0] sm:$0xff]
  %v49 = vld [vmem:[%s0 + $0xd8] sm:$0xff]
  %v50 = vld [vmem:[%s0 + $0xe0] sm:$0xff]
  %v51 = vld [vmem:[%s0 + $0xe8] sm:$0xff]
  %v52 = vld [vmem:[%s0 + $0xf0] sm:$0xff]
  %v53 = vld [vmem:[%s0 + $0xf8] sm:$0xff]
  %v54 = vld [vmem:[%s0 + $0x100] sm:$0xff]
  %v55 = vld [vmem:[%s0 + $0x108] sm:$0xff]
  %v56 = vld [vmem:[%s0 + $0x110] sm:$0xff]
  %v57 = vld [vmem:[%s0 + $0x118] sm:$0xff]
  %v58 = vld [vmem:[%s1] sm:$0xf]
  %v59 = vld [vmem:[%s1 + $0x4] sm:$0xf]
  %v60 = vld [vmem:[%s1 + $0x8] sm:$0xf]
  %v61 = vld [vmem:[%s1 + $0xc] sm:$0xf]
  %v62 = vld [vmem:[%s1 + $0x10] sm:$0xf]
  %v63 = vld [vmem:[%s1 + $0x14] sm:$0xf]
  %v64 = vld [vmem:[%s1 + $0x18] sm:$0xf]
  %v65 = vld [vmem:[%s1 + $0x1c] sm:$0xf]
  %v66 = vld [vmem:[%s1 + $0x20] sm:$0xf]
  %v67 = vld [vmem:[%s1 + $0x24] sm:$0xf]
  %v68 = vld [vmem:[%s1 + $0x28] sm:$0xf]
  %v69 = vld [vmem:[%s1 + $0x2c] sm:$0xf]
  %v70 = vld [vmem:[%s1 + $0x30] sm:$0xf]
  %v71 = vld [vmem:[%s1 + $0x34] sm:$0xf]
  %v72 = vld [vmem:[%s1 + $0x38] sm:$0xf]
  %v73 = vld [vmem:[%s1 + $0x3c] sm:$0xf]
  %v74 = vld [vmem:[%s1 + $0x40] sm:$0xf]
  %v75 = vld [vmem:[%s1 + $0x44] sm:$0xf]
  %v76 = vld [vmem:[%s1 + $0x48] sm:$0xf]
  %v77 = vld [vmem:[%s1 + $0x4c] sm:$0xf]
  %v78 = vld [vmem:[%s1 + $0x50] sm:$0xf]
  %v79 = vld [vmem:[%s1 + $0x54] sm:$0xf]
  %v80 = vld [vmem:[%s1 + $0x58] sm:$0xf]
  %v81 = vld [vmem:[%s1 + $0x5c] sm:$0xf]
  %v82 = vld [vmem:[%s1 + $0x60] sm:$0xf]
  %v83 = vld [vmem:[%s1 + $0x64] sm:$0xf]
  %v84 = vld [vmem:[%s1 + $0x68] sm:$0xf]
  %v85 = vld [vmem:[%s1 + $0x6c] sm:$0xf]
  %v86 = vld [vmem:[%s1 + $0x70] sm:$0xf]
  %v87 = vld [vmem:[%s1 + $0x74] sm:$0xf]
  %v88 = vld [vmem:[%s1 + $0x78] sm:$0xf]
  %v89 = vld [vmem:[%s1 + $0x7c] sm:$0xf]
  %v90 = vld [vmem:[%s1 + $0x80] sm:$0xf]
  %v91 = vld [vmem:[%s1 + $0x84] sm:$0xf]
  %v92 = vld [vmem:[%s1 + $0x88] sm:$0xf]
  %v93 = vld [vmem:[%s1 + $0x8c] sm:$0xf]
  %v94 = vld [vmem:[%s1 + $0x90] sm:$0xf]
  %v95 = vld [vmem:[%s1 + $0x94] sm:$0xf]
  %v96 = vld [vmem:[%s1 + $0x98] sm:$0xf]
  %v97 = vld [vmem:[%s1 + $0x9c] sm:$0xf]
  %v98 = vld [vmem:[%s1 + $0xa0] sm:$0xf]
  %v99 = vld [vmem:[%s1 + $0xa4] sm:$0xf]
  %v100 = vld [vmem:[%s1 + $0xa8] sm:$0xf]
  %v101 = vld [vmem:[%s1 + $0xac] sm:$0xf]
  %v102 = vld [vmem:[%s1 + $0xb0] sm:$0xf]
  %v103 = vld [vmem:[%s1 + $0xb4] sm:$0xf]
  %v104 = vld [vmem:[%s1 + $0xb8] sm:$0xf]
  %v105 = vld [vmem:[%s1 + $0xbc] sm:$0xf]
  %v106 = vld [vmem:[%s1 + $0xc0] sm:$0xf]
  %v107 = vld [vmem:[%s1 + $0xc4] sm:$0xf]
  %v108 = vld [vmem:[%s1 + $0xc8] sm:$0xf]
  %v109 = vld [vmem:[%s1 + $0xcc] sm:$0xf]
  %v110 = vld [vmem:[%s1 + $0xd0] sm:$0xf]
  %v111 = vld [vmem:[%s1 + $0xd4] sm:$0xf]
  %v112 = vld [vmem:[%s1 + $0xd8] sm:$0xf]
  %v113 = vld [vmem:[%s1 + $0xdc] sm:$0xf]
  %v114 = vld [vmem:[%s1 + $0xe0] sm:$0xf]
  %v115 = vld [vmem:[%s1 + $0xe4] sm:$0xf]
  %v116 = vld [vmem:[%s1 + $0xe8] sm:$0xf]
  %v117 = vld [vmem:[%s1 + $0xec] sm:$0xf]
  %v118 = vld [vmem:[%s1 + $0xf0] sm:$0xf]
  %v119 = vld [vmem:[%s1 + $0xf4] sm:$0xf]
  %v120 = vld [vmem:[%s1 + $0xf8] sm:$0xf]
  %v121 = vld [vmem:[%s1 + $0xfc] sm:$0xf]
  %v122 = vld [vmem:[%s1 + $0x100] sm:$0xf]
  %v123 = vld [vmem:[%s1 + $0x104] sm:$0xf]
  %v124 = vld [vmem:[%s1 + $0x108] sm:$0xf]
  %v125 = vld [vmem:[%s1 + $0x10c] sm:$0xf]
  %v126 = vld [vmem:[%s1 + $0x110] sm:$0xf]
  %v127 = vld [vmem:[%s1 + $0x114] sm:$0xf]
  %v128 = vld [vmem:[%s1 + $0x118] sm:$0xf]
  %v129 = vld [vmem:[%s1 + $0x11c] sm:$0xf]
  %v130 = vld [vmem:[%s1 + $0x120] sm:$0xf]
  %v131 = vld [vmem:[%s1 + $0x124] sm:$0xf]
  %v132 = vld [vmem:[%s1 + $0x128] sm:$0xf]
  %v133 = vld [vmem:[%s1 + $0x12c] sm:$0xf]
  %v134 = vld [vmem:[%s1 + $0x130] sm:$0xf]
  %v135 = vld [vmem:[%s1 + $0x134] sm:$0xf]
  %v136 = vld [vmem:[%s1 + $0x138] sm:$0xf]
  %v137 = vld [vmem:[%s1 + $0x13c] sm:$0xf]
  %v138 = vld [vmem:[%s1 + $0x140] sm:$0xf]
  %v139 = vld [vmem:[%s1 + $0x144] sm:$0xf]
  %v140 = vld [vmem:[%s1 + $0x148] sm:$0xf]
  %v141 = vld [vmem:[%s1 + $0x14c] sm:$0xf]
  %v142 = vld [vmem:[%s1 + $0x150] sm:$0xf]
  %v143 = vld [vmem:[%s1 + $0x154] sm:$0xf]
  %v144 = vld [vmem:[%s1 + $0x158] sm:$0xf]
  %v145 = vld [vmem:[%s1 + $0x15c] sm:$0xf]
  %v146 = vld [vmem:[%s1 + $0x160] sm:$0xf]
  %v147 = vld [vmem:[%s1 + $0x164] sm:$0xf]
  %v148 = vld [vmem:[%s1 + $0x168] sm:$0xf]
  %v149 = vld [vmem:[%s1 + $0x16c] sm:$0xf]
  %v150 = vld [vmem:[%s1 + $0x170] sm:$0xf]
  %v151 = vld [vmem:[%s1 + $0x174] sm:$0xf]
  %v152 = vld [vmem:[%s1 + $0x178] sm:$0xf]
  %v153 = vld [vmem:[%s1 + $0x17c] sm:$0xf]
  %v154 = vld [vmem:[%s1 + $0x180] sm:$0xf]
  %v155 = vld [vmem:[%s1 + $0x184] sm:$0xf]
  %v156 = vld [vmem:[%s1 + $0x188] sm:$0xf]
  %v157 = vld [vmem:[%s1 + $0x18c] sm:$0xf]
  %v158 = vld [vmem:[%s1 + $0x190] sm:$0xf]
  %v159 = vld [vmem:[%s1 + $0x194] sm:$0xf]
  %v160 = vld [vmem:[%s1 + $0x198] sm:$0xf]
  %v161 = vld [vmem:[%s1 + $0x19c] sm:$0xf]
  %v162 = vld [vmem:[%s1 + $0x1a0] sm:$0xf]
  %v163 = vld [vmem:[%s1 + $0x1a4] sm:$0xf]
  %v164 = vld [vmem:[%s1 + $0x1a8] sm:$0xf]
  %v165 = vld [vmem:[%s1 + $0x1ac] sm:$0xf]
  %v166 = vld [vmem:[%s1 + $0x1b0] sm:$0xf]
  %v167 = vld [vmem:[%s1 + $0x1b4] sm:$0xf]
  %v168 = vld [vmem:[%s1 + $0x1b8] sm:$0xf]
  %v169 = vld [vmem:[%s1 + $0x1bc] sm:$0xf]
  %v170 = vld [vmem:[%s1 + $0x1c0] sm:$0xf]
  %v171 = vld [vmem:[%s1 + $0x1c4] sm:$0xf]
  %v172 = vld [vmem:[%s1 + $0x1c8] sm:$0xf]
  %v173 = vld [vmem:[%s1 + $0x1cc] sm:$0xf]
  %v174 = vld [vmem:[%s1 + $0x1d0] sm:$0xf]
  %v175 = vld [vmem:[%s1 + $0x1d4] sm:$0xf]
  %v176 = vld [vmem:[%s1 + $0x1d8] sm:$0xf]
  %v177 = vld [vmem:[%s1 + $0x1dc] sm:$0xf]
  %v178 = vld [vmem:[%s1 + $0x1e0] sm:$0xf]
  %v179 = vld [vmem:[%s1 + $0x1e4] sm:$0xf]
  %v180 = vld [vmem:[%s1 + $0x1e8] sm:$0xf]
  %v181 = vld [vmem:[%s1 + $0x1ec] sm:$0xf]
  %v182 = vld [vmem:[%s1 + $0x1f0] sm:$0xf]
  %v183 = vld [vmem:[%s1 + $0x1f4] sm:$0xf]
  %v184 = vld [vmem:[%s1 + $0x1f8] sm:$0xf]
  %v185 = vld [vmem:[%s1 + $0x1fc] sm:$0xf]
  %v186 = vld [vmem:[%s1 + $0x200] sm:$0xf]
  %v187 = vld [vmem:[%s1 + $0x204] sm:$0xf]
  %v188 = vld [vmem:[%s1 + $0x208] sm:$0xf]
  %v189 = vld [vmem:[%s1 + $0x20c] sm:$0xf]
  %v190 = vld [vmem:[%s1 + $0x210] sm:$0xf]
  %v191 = vld [vmem:[%s1 + $0x214] sm:$0xf]
  %v192 = vld [vmem:[%s1 + $0x218] sm:$0xf]
  %v193 = vld [vmem:[%s1 + $0x21c] sm:$0xf]
  %v194 = vld [vmem:[%s1 + $0x220] sm:$0xf]
  %v195 = vld [vmem:[%s1 + $0x224] sm:$0xf]
  %v196 = vld [vmem:[%s1 + $0x228] sm:$0xf]
  %v197 = vld [vmem:[%s1 + $0x22c] sm:$0xf]
  %v198 = vld [vmem:[%s1 + $0x230] sm:$0xf]
  %v199 = vld [vmem:[%s1 + $0x234] sm:$0xf]
  %v200 = vld [vmem:[%s1 + $0x238] sm:$0xf]
  %v201 = vld [vmem:[%s1 + $0x23c] sm:$0xf]
  %v202 = vld [vmem:[%s1 + $0x240] sm:$0xf]
  %v203 = vld [vmem:[%s1 + $0x244] sm:$0xf]
  %v204 = vld [vmem:[%s1 + $0x248] sm:$0xf]
  %v205 = vld [vmem:[%s1 + $0x24c] sm:$0xf]
  %v206 = vld [vmem:[%s1 + $0x250] sm:$0xf]
  %v207 = vld [vmem:[%s1 + $0x254] sm:$0xf]
  %v208 = vld [vmem:[%s1 + $0x258] sm:$0xf]
  %v209 = vld [vmem:[%s1 + $0x25c] sm:$0xf]
  %v210 = vld [vmem:[%s1 + $0x260] sm:$0xf]
  %v211 = vld [vmem:[%s1 + $0x264] sm:$0xf]
  %v212 = vld [vmem:[%s1 + $0x268] sm:$0xf]
  %v213 = vld [vmem:[%s1 + $0x26c] sm:$0xf]
  %v214 = vld [vmem:[%s1 + $0x270] sm:$0xf]
  %v215 = vld [vmem:[%s1 + $0x274] sm:$0xf]
  %v216 = vld [vmem:[%s1 + $0x278] sm:$0xf]
  %v217 = vld [vmem:[%s1 + $0x27c] sm:$0xf]
  %v218 = vld [vmem:[%s1 + $0x280] sm:$0xf]
  %v219 = vld [vmem:[%s1 + $0x284] sm:$0xf]
  %v220 = vld [vmem:[%s1 + $0x288] sm:$0xf]
  %v221 = vld [vmem:[%s1 + $0x28c] sm:$0xf]
  %v222 = vld [vmem:[%s1 + $0x290] sm:$0xf]
  %v223 = vld [vmem:[%s1 + $0x294] sm:$0xf]
  %v224 = vld [vmem:[%s1 + $0x298] sm:$0xf]
  %v225 = vld [vmem:[%s1 + $0x29c] sm:$0xf]
  %v226 = vld [vmem:[%s1 + $0x2a0] sm:$0xf]
  %v227 = vld [vmem:[%s1 + $0x2a4] sm:$0xf]
  %v228 = vld [vmem:[%s1 + $0x2a8] sm:$0xf]
  %v229 = vld [vmem:[%s1 + $0x2ac] sm:$0xf]
  %v230 = vld [vmem:[%s1 + $0x2b0] sm:$0xf]
  %v231 = vld [vmem:[%s1 + $0x2b4] sm:$0xf]
  %v232 = vld [vmem:[%s1 + $0x2b8] sm:$0xf]
  %v233 = vld [vmem:[%s1 + $0x2bc] sm:$0xf]
  %v234 = vld [vmem:[%s1 + $0x2c0] sm:$0xf]
  %v235 = vld [vmem:[%s1 + $0x2c4] sm:$0xf]
  %v236 = vld [vmem:[%s1 + $0x2c8] sm:$0xf]
  %v237 = vld [vmem:[%s1 + $0x2cc] sm:$0xf]
  %v238 = vld [vmem:[%s1 + $0x2d0] sm:$0xf]
  %v239 = vld [vmem:[%s1 + $0x2d4] sm:$0xf]
  %v240 = vld [vmem:[%s1 + $0x2d8] sm:$0xf]
  %v241 = vld [vmem:[%s1 + $0x2dc] sm:$0xf]
  %v242 = vld [vmem:[%s1 + $0x2e0] sm:$0xf]
  %v243 = vld [vmem:[%s1 + $0x2e4] sm:$0xf]
  %v244 = vld [vmem:[%s1 + $0x2e8] sm:$0xf]
  %v245 = vld [vmem:[%s1 + $0x2ec] sm:$0xf]
  %v246 = vld [vmem:[%s1 + $0x2f0] sm:$0xf]
  %v247 = vld [vmem:[%s1 + $0x2f4] sm:$0xf]
  %v248 = vld [vmem:[%s1 + $0x2f8] sm:$0xf]
  %v249 = vld [vmem:[%s1 + $0x2fc] sm:$0xf]
  %v250 = vld [vmem:[%s1 + $0x300] sm:$0xf]
  %v251 = vld [vmem:[%s1 + $0x304] sm:$0xf]
  %v252 = vld [vmem:[%s1 + $0x308] sm:$0xf]
  %v253 = vld [vmem:[%s1 + $0x30c] sm:$0xf]
  %v254 = vld [vmem:[%s1 + $0x310] sm:$0xf]
  %v255 = vld [vmem:[%s1 + $0x314] sm:$0xf]
  %v256 = vld [vmem:[%s1 + $0x318] sm:$0xf]
  %v257 = vld [vmem:[%s1 + $0x31c] sm:$0xf]
  %v258 = vld [vmem:[%s1 + $0x320] sm:$0xf]
  %v259 = vld [vmem:[%s1 + $0x324] sm:$0xf]
  %v260 = vld [vmem:[%s1 + $0x328] sm:$0xf]
  %v261 = vld [vmem:[%s1 + $0x32c] sm:$0xf]
  %v262 = vld [vmem:[%s1 + $0x330] sm:$0xf]
  %v263 = vld [vmem:[%s1 + $0x334] sm:$0xf]
  %v264 = vld [vmem:[%s1 + $0x338] sm:$0xf]
  %v265 = vld [vmem:[%s1 + $0x33c] sm:$0xf]
  %v266 = vld [vmem:[%s1 + $0x340] sm:$0xf]
  %v267 = vld [vmem:[%s1 + $0x344] sm:$0xf]
  %v268 = vld [vmem:[%s1 + $0x348] sm:$0xf]
  %v269 = vld [vmem:[%s1 + $0x34c] sm:$0xf]
  %v270 = vld [vmem:[%s1 + $0x350] sm:$0xf]
  %v271 = vld [vmem:[%s1 + $0x354] sm:$0xf]
  %v272 = vld [vmem:[%s1 + $0x358] sm:$0xf]
  %v273 = vld [vmem:[%s1 + $0x35c] sm:$0xf]
  %v274 = vld [vmem:[%s1 + $0x360] sm:$0xf]
  %v275 = vld [vmem:[%s1 + $0x364] sm:$0xf]
  %v276 = vld [vmem:[%s1 + $0x368] sm:$0xf]
  %v277 = vld [vmem:[%s1 + $0x36c] sm:$0xf]
  %v278 = vld [vmem:[%s1 + $0x370] sm:$0xf]
  %v279 = vld [vmem:[%s1 + $0x374] sm:$0xf]
  %v280 = vld [vmem:[%s1 + $0x378] sm:$0xf]
  %v281 = vld [vmem:[%s1 + $0x37c] sm:$0xf]
  %v282 = vld [vmem:[%s1 + $0x380] sm:$0xf]
  %v283 = vld [vmem:[%s1 + $0x384] sm:$0xf]
  %v284 = vld [vmem:[%s1 + $0x388] sm:$0xf]
  %v285 = vld [vmem:[%s1 + $0x38c] sm:$0xf]
  %v286 = vld [vmem:[%s1 + $0x390] sm:$0xf]
  %v287 = vld [vmem:[%s1 + $0x394] sm:$0xf]
  %v288 = vld [vmem:[%s1 + $0x398] sm:$0xf]
  %v289 = vld [vmem:[%s1 + $0x39c] sm:$0xf]
  %v290 = vld [vmem:[%s1 + $0x3a0] sm:$0xf]
  %v291 = vld [vmem:[%s1 + $0x3a4] sm:$0xf]
  %v292 = vld [vmem:[%s1 + $0x3a8] sm:$0xf]
  %v293 = vld [vmem:[%s1 + $0x3ac] sm:$0xf]
  %v294 = vld [vmem:[%s1 + $0x3b0] sm:$0xf]
  %v295 = vld [vmem:[%s1 + $0x3b4] sm:$0xf]
  %v296 = vld [vmem:[%s1 + $0x3b8] sm:$0xf]
  %v297 = vld [vmem:[%s1 + $0x3bc] sm:$0xf]
  %v298 = vld [vmem:[%s1 + $0x3c0] sm:$0xf]
  %v299 = vld [vmem:[%s1 + $0x3c4] sm:$0xf]
  %v300 = vld [vmem:[%s1 + $0x3c8] sm:$0xf]
  %v301 = vld [vmem:[%s1 + $0x3cc] sm:$0xf]
  %v302 = vld [vmem:[%s1 + $0x3d0] sm:$0xf]
  %v303 = vld [vmem:[%s1 + $0x3d4] sm:$0xf]
  %v304 = vld [vmem:[%s1 + $0x3d8] sm:$0xf]
  %v305 = vld [vmem:[%s1 + $0x3dc] sm:$0xf]
  %v306 = vld [vmem:[%s1 + $0x3e0] sm:$0xf]
  %v307 = vld [vmem:[%s1 + $0x3e4] sm:$0xf]
  %v308 = vld [vmem:[%s1 + $0x3e8] sm:$0xf]
  %v309 = vld [vmem:[%s1 + $0x3ec] sm:$0xf]
  %v310 = vld [vmem:[%s1 + $0x3f0] sm:$0xf]
  %v311 = vld [vmem:[%s1 + $0x3f4] sm:$0xf]
  %v312 = vld [vmem:[%s1 + $0x3f8] sm:$0xf]
  %v313 = vld [vmem:[%s1 + $0x3fc] sm:$0xf]
  %v314 = vld [vmem:[%s1 + $0x400] sm:$0xf]
  %v315 = vld [vmem:[%s1 + $0x404] sm:$0xf]
  %v316 = vld [vmem:[%s1 + $0x408] sm:$0xf]
  %v317 = vld [vmem:[%s1 + $0x40c] sm:$0xf]
  %v318 = vld [vmem:[%s1 + $0x410] sm:$0xf]
  %v319 = vld [vmem:[%s1 + $0x414] sm:$0xf]
  %v320 = vld [vmem:[%s1 + $0x418] sm:$0xf]
  %v321 = vld [vmem:[%s1 + $0x41c] sm:$0xf]
  %v322 = vld [vmem:[%s1 + $0x420] sm:$0xf]
  %v323 = vld [vmem:[%s1 + $0x424] sm:$0xf]
  %v324 = vld [vmem:[%s1 + $0x428] sm:$0xf]
  %v325 = vld [vmem:[%s1 + $0x42c] sm:$0xf]
  %v326 = vld [vmem:[%s1 + $0x430] sm:$0xf]
  %v327 = vld [vmem:[%s1 + $0x434] sm:$0xf]
  %v328 = vld [vmem:[%s1 + $0x438] sm:$0xf]
  %v329 = vld [vmem:[%s1 + $0x43c] sm:$0xf]
  %v330 = vld [vmem:[%s1 + $0x440] sm:$0xf]
  %v331 = vld [vmem:[%s1 + $0x444] sm:$0xf]
  %v332 = vld [vmem:[%s1 + $0x448] sm:$0xf]
  %v333 = vld [vmem:[%s1 + $0x44c] sm:$0xf]
  %v334 = vld [vmem:[%s1 + $0x450] sm:$0xf]
  %v335 = vld [vmem:[%s1 + $0x454] sm:$0xf]
  %v336 = vld [vmem:[%s1 + $0x458] sm:$0xf]
  %v337 = vld [vmem:[%s1 + $0x45c] sm:$0xf]
  %v338 = vld [vmem:[%s1 + $0x460] sm:$0xf]
  %v339 = vld [vmem:[%s1 + $0x464] sm:$0xf]
  %v340 = vld [vmem:[%s1 + $0x468] sm:$0xf]
  %v341 = vld [vmem:[%s1 + $0x46c] sm:$0xf]
  %v342 = vld [vmem:[%s1 + $0x470] sm:$0xf]
  %v343 = vld [vmem:[%s1 + $0x474] sm:$0xf]
  %v344 = vld [vmem:[%s1 + $0x478] sm:$0xf]
  %v345 = vld [vmem:[%s1 + $0x47c] sm:$0xf]
  %v346 = vld [vmem:[%s1 + $0x480] sm:$0xf]
  %v347 = vld [vmem:[%s1 + $0x484] sm:$0xf]
  %v348 = vld [vmem:[%s1 + $0x488] sm:$0xf]
  %v349 = vld [vmem:[%s1 + $0x48c] sm:$0xf]
  %v350 = vld [vmem:[%s1 + $0x490] sm:$0xf]
  %v351 = vld [vmem:[%s1 + $0x494] sm:$0xf]
  %v352 = vld [vmem:[%s1 + $0x498] sm:$0xf]
  %v353 = vld [vmem:[%s1 + $0x49c] sm:$0xf]
  %v354 = vld [vmem:[%s1 + $0x4a0] sm:$0xf]
  %v355 = vld [vmem:[%s1 + $0x4a4] sm:$0xf]
  %v356 = vld [vmem:[%s1 + $0x4a8] sm:$0xf]
  %v357 = vld [vmem:[%s1 + $0x4ac] sm:$0xf]
  %v358 = vld [vmem:[%s1 + $0x4b0] sm:$0xf]
  %v359 = vld [vmem:[%s1 + $0x4b4] sm:$0xf]
  %v360 = vld [vmem:[%s1 + $0x4b8] sm:$0xf]
  %v361 = vld [vmem:[%s1 + $0x4bc] sm:$0xf]
  %v362 = vld [vmem:[%s1 + $0x4c0] sm:$0xf]
  %v363 = vld [vmem:[%s1 + $0x4c4] sm:$0xf]
  %v364 = vld [vmem:[%s1 + $0x4c8] sm:$0xf]
  %v365 = vld [vmem:[%s1 + $0x4cc] sm:$0xf]
  %v366 = vld [vmem:[%s1 + $0x4d0] sm:$0xf]
  %v367 = vld [vmem:[%s1 + $0x4d4] sm:$0xf]
  %v368 = vld [vmem:[%s1 + $0x4d8] sm:$0xf]
  %v369 = vld [vmem:[%s1 + $0x4dc] sm:$0xf]
  %v370 = vld [vmem:[%s1 + $0x4e0] sm:$0xf]
  %v371 = vld [vmem:[%s1 + $0x4e4] sm:$0xf]
  %v372 = vld [vmem:[%s1 + $0x4e8] sm:$0xf]
  %v373 = vld [vmem:[%s1 + $0x4ec] sm:$0xf]
  %v374 = vld [vmem:[%s1 + $0x4f0] sm:$0xf]
  %v375 = vld [vmem:[%s1 + $0x4f4] sm:$0xf]
  %v376 = vld [vmem:[%s1 + $0x4f8] sm:$0xf]
  %v377 = vld [vmem:[%s1 + $0x4fc] sm:$0xf]
  %v378 = vld [vmem:[%s1 + $0x500] sm:$0xf]
  %v379 = vld [vmem:[%s1 + $0x504] sm:$0xf]
  %v380 = vld [vmem:[%s1 + $0x508] sm:$0xf]
  %v381 = vld [vmem:[%s1 + $0x50c] sm:$0xf]
  %v382 = vld [vmem:[%s1 + $0x510] sm:$0xf]
  %v383 = vld [vmem:[%s1 + $0x514] sm:$0xf]
  %v384 = vld [vmem:[%s1 + $0x518] sm:$0xf]
  %v385 = vld [vmem:[%s1 + $0x51c] sm:$0xf]
  %v386 = vld [vmem:[%s1 + $0x520] sm:$0xf]
  %v387 = vld [vmem:[%s1 + $0x524] sm:$0xf]
  %v388 = vld [vmem:[%s1 + $0x528] sm:$0xf]
  %v389 = vld [vmem:[%s1 + $0x52c] sm:$0xf]
  %v390 = vld [vmem:[%s1 + $0x530] sm:$0xf]
  %v391 = vld [vmem:[%s1 + $0x534] sm:$0xf]
  %v392 = vld [vmem:[%s1 + $0x538] sm:$0xf]
  %v393 = vld [vmem:[%s1 + $0x53c] sm:$0xf]
  %v394 = vld [vmem:[%s1 + $0x540] sm:$0xf]
  %v395 = vld [vmem:[%s1 + $0x544] sm:$0xf]
  %v396 = vld [vmem:[%s1 + $0x548] sm:$0xf]
  %v397 = vld [vmem:[%s1 + $0x54c] sm:$0xf]
  %v398 = vld [vmem:[%s1 + $0x550] sm:$0xf]
  %v399 = vld [vmem:[%s1 + $0x554] sm:$0xf]
  %v400 = vld [vmem:[%s1 + $0x558] sm:$0xf]
  %v401 = vld [vmem:[%s1 + $0x55c] sm:$0xf]
  %v402 = vld [vmem:[%s1 + $0x560] sm:$0xf]
  %v403 = vld [vmem:[%s1 + $0x564] sm:$0xf]
  %v404 = vld [vmem:[%s1 + $0x568] sm:$0xf]
  %v405 = vld [vmem:[%s1 + $0x56c] sm:$0xf]
  %v406 = vld [vmem:[%s1 + $0x570] sm:$0xf]
  %v407 = vld [vmem:[%s1 + $0x574] sm:$0xf]
  %v408 = vld [vmem:[%s1 + $0x578] sm:$0xf]
  %v409 = vld [vmem:[%s1 + $0x57c] sm:$0xf]
  %v410 = vld [vmem:[%s1 + $0x580] sm:$0xf]
  %v411 = vld [vmem:[%s1 + $0x584] sm:$0xf]
  %v412 = vld [vmem:[%s1 + $0x588] sm:$0xf]
  %v413 = vld [vmem:[%s1 + $0x58c] sm:$0xf]
  %v414 = vld [vmem:[%s1 + $0x590] sm:$0xf]
  %v415 = vld [vmem:[%s1 + $0x594] sm:$0xf]
  %v416 = vld [vmem:[%s1 + $0x598] sm:$0xf]
  %v417 = vld [vmem:[%s1 + $0x59c] sm:$0xf]
  %v418 = vld [vmem:[%s1 + $0x5a0] sm:$0xf]
  %v419 = vld [vmem:[%s1 + $0x5a4] sm:$0xf]
  %v420 = vld [vmem:[%s1 + $0x5a8] sm:$0xf]
  %v421 = vld [vmem:[%s1 + $0x5ac] sm:$0xf]
  %v422 = vld [vmem:[%s1 + $0x5b0] sm:$0xf]
  %v423 = vld [vmem:[%s1 + $0x5b4] sm:$0xf]
  %v424 = vld [vmem:[%s1 + $0x5b8] sm:$0xf]
  %v425 = vld [vmem:[%s1 + $0x5bc] sm:$0xf]
  %v426 = vld [vmem:[%s1 + $0x5c0] sm:$0xf]
  %v427 = vld [vmem:[%s1 + $0x5c4] sm:$0xf]
  %v428 = vld [vmem:[%s1 + $0x5c8] sm:$0xf]
  %v429 = vld [vmem:[%s1 + $0x5cc] sm:$0xf]
  %v430 = vld [vmem:[%s1 + $0x5d0] sm:$0xf]
  %v431 = vld [vmem:[%s1 + $0x5d4] sm:$0xf]
  %v432 = vld [vmem:[%s1 + $0x5d8] sm:$0xf]
  %v433 = vld [vmem:[%s1 + $0x5dc] sm:$0xf]
  %v434 = vld [vmem:[%s1 + $0x5e0] sm:$0xf]
  %v435 = vld [vmem:[%s1 + $0x5e4] sm:$0xf]
  %v436 = vld [vmem:[%s1 + $0x5e8] sm:$0xf]
  %v437 = vld [vmem:[%s1 + $0x5ec] sm:$0xf]
  %v438 = vld [vmem:[%s1 + $0x5f0] sm:$0xf]
  %v439 = vld [vmem:[%s1 + $0x5f4] sm:$0xf]
  %v440 = vld [vmem:[%s1 + $0x5f8] sm:$0xf]
  %v441 = vld [vmem:[%s1 + $0x5fc] sm:$0xf]
  %v442 = vld [vmem:[%s1 + $0x600] sm:$0xf]
  %v443 = vld [vmem:[%s1 + $0x604] sm:$0xf]
  %v444 = vld [vmem:[%s1 + $0x608] sm:$0xf]
  %v445 = vld [vmem:[%s1 + $0x60c] sm:$0xf]
  %v446 = vld [vmem:[%s1 + $0x610] sm:$0xf]
  %v447 = vld [vmem:[%s1 + $0x614] sm:$0xf]
  %v448 = vld [vmem:[%s1 + $0x618] sm:$0xf]
  %v449 = vld [vmem:[%s1 + $0x61c] sm:$0xf]
  %v450 = vld [vmem:[%s1 + $0x620] sm:$0xf]
  %v451 = vld [vmem:[%s1 + $0x624] sm:$0xf]
  %v452 = vld [vmem:[%s1 + $0x628] sm:$0xf]
  %v453 = vld [vmem:[%s1 + $0x62c] sm:$0xf]
  %v454 = vld [vmem:[%s1 + $0x630] sm:$0xf]
  %v455 = vld [vmem:[%s1 + $0x634] sm:$0xf]
  %v456 = vld [vmem:[%s1 + $0x638] sm:$0xf]
  %v457 = vld [vmem:[%s1 + $0x63c] sm:$0xf]
  %v458 = vld [vmem:[%s1 + $0x640] sm:$0xf]
  %v459 = vld [vmem:[%s1 + $0x644] sm:$0xf]
  %v460 = vld [vmem:[%s1 + $0x648] sm:$0xf]
  %v461 = vld [vmem:[%s1 + $0x64c] sm:$0xf]
  %v462 = vld [vmem:[%s1 + $0x650] sm:$0xf]
  %v463 = vld [vmem:[%s1 + $0x654] sm:$0xf]
  %v464 = vld [vmem:[%s1 + $0x658] sm:$0xf]
  %v465 = vld [vmem:[%s1 + $0x65c] sm:$0xf]
  %v466 = vld [vmem:[%s1 + $0x660] sm:$0xf]
  %v467 = vld [vmem:[%s1 + $0x664] sm:$0xf]
  %v468 = vld [vmem:[%s1 + $0x668] sm:$0xf]
  %v469 = vld [vmem:[%s1 + $0x66c] sm:$0xf]
  %v470 = vld [vmem:[%s1 + $0x670] sm:$0xf]
  %v471 = vld [vmem:[%s1 + $0x674] sm:$0xf]
  %v472 = vld [vmem:[%s1 + $0x678] sm:$0xf]
  %v473 = vld [vmem:[%s1 + $0x67c] sm:$0xf]
  %v474 = vld [vmem:[%s1 + $0x680] sm:$0xf]
  %v475 = vld [vmem:[%s1 + $0x684] sm:$0xf]
  %v476 = vld [vmem:[%s1 + $0x688] sm:$0xf]
  %v477 = vld [vmem:[%s1 + $0x68c] sm:$0xf]
  %v478 = vld [vmem:[%s1 + $0x690] sm:$0xf]
  %v479 = vld [vmem:[%s1 + $0x694] sm:$0xf]
  %v480 = vld [vmem:[%s1 + $0x698] sm:$0xf]
  %v481 = vld [vmem:[%s1 + $0x69c] sm:$0xf]
  %v482 = vld [vmem:[%s1 + $0x6a0] sm:$0xf]
  %v483 = vld [vmem:[%s1 + $0x6a4] sm:$0xf]
  %v484 = vld [vmem:[%s1 + $0x6a8] sm:$0xf]
  %v485 = vld [vmem:[%s1 + $0x6ac] sm:$0xf]
  %v486 = vld [vmem:[%s1 + $0x6b0] sm:$0xf]
  %v487 = vld [vmem:[%s1 + $0x6b4] sm:$0xf]
  %v488 = vld [vmem:[%s1 + $0x6b8] sm:$0xf]
  %v489 = vld [vmem:[%s1 + $0x6bc] sm:$0xf]
  %v490 = vld [vmem:[%s1 + $0x6c0] sm:$0xf]
  %v491 = vld [vmem:[%s1 + $0x6c4] sm:$0xf]
  %v492 = vld [vmem:[%s1 + $0x6c8] sm:$0xf]
  %v493 = vld [vmem:[%s1 + $0x6cc] sm:$0xf]
  %v494 = vld [vmem:[%s1 + $0x6d0] sm:$0xf]
  %v495 = vld [vmem:[%s1 + $0x6d4] sm:$0xf]
  %v496 = vld [vmem:[%s1 + $0x6d8] sm:$0xf]
  %v497 = vld [vmem:[%s1 + $0x6dc] sm:$0xf]
  %v498 = vld [vmem:[%s1 + $0x6e0] sm:$0xf]
  %v499 = vld [vmem:[%s1 + $0x6e4] sm:$0xf]
  %v500 = vld [vmem:[%s1 + $0x6e8] sm:$0xf]
  %v501 = vld [vmem:[%s1 + $0x6ec] sm:$0xf]
  %v502 = vld [vmem:[%s1 + $0x6f0] sm:$0xf]
  %v503 = vld [vmem:[%s1 + $0x6f4] sm:$0xf]
  %v504 = vld [vmem:[%s1 + $0x6f8] sm:$0xf]
  %v505 = vld [vmem:[%s1 + $0x6fc] sm:$0xf]
  %v506 = vld [vmem:[%s1 + $0x700] sm:$0xf]
  %v507 = vld [vmem:[%s1 + $0x704] sm:$0xf]
  %v508 = vld [vmem:[%s1 + $0x708] sm:$0xf]
  %v509 = vld [vmem:[%s1 + $0x70c] sm:$0xf]
  %v510 = vld [vmem:[%s1 + $0x710] sm:$0xf]
  %v511 = vld [vmem:[%s1 + $0x714] sm:$0xf]
  %v512 = vld [vmem:[%s1 + $0x718] sm:$0xf]
  %v513 = vld [vmem:[%s1 + $0x71c] sm:$0xf]
  %v514 = vld [vmem:[%s1 + $0x720] sm:$0xf]
  %v515 = vld [vmem:[%s1 + $0x724] sm:$0xf]
  %v516 = vld [vmem:[%s1 + $0x728] sm:$0xf]
  %v517 = vld [vmem:[%s1 + $0x72c] sm:$0xf]
  %v518 = vld [vmem:[%s1 + $0x730] sm:$0xf]
  %v519 = vld [vmem:[%s1 + $0x734] sm:$0xf]
  %v520 = vld [vmem:[%s1 + $0x738] sm:$0xf]
  %v521 = vld [vmem:[%s1 + $0x73c] sm:$0xf]
  %v522 = vld [vmem:[%s1 + $0x740] sm:$0xf]
  %v523 = vld [vmem:[%s1 + $0x744] sm:$0xf]
  %v524 = vld [vmem:[%s1 + $0x748] sm:$0xf]
  %v525 = vld [vmem:[%s1 + $0x74c] sm:$0xf]
  %v526 = vld [vmem:[%s1 + $0x750] sm:$0xf]
  %v527 = vld [vmem:[%s1 + $0x754] sm:$0xf]
  %v528 = vld [vmem:[%s1 + $0x758] sm:$0xf]
  %v529 = vld [vmem:[%s1 + $0x75c] sm:$0xf]
  %v530 = vld [vmem:[%s1 + $0x760] sm:$0xf]
  %v531 = vld [vmem:[%s1 + $0x764] sm:$0xf]
  %v532 = vld [vmem:[%s1 + $0x768] sm:$0xf]
  %v533 = vld [vmem:[%s1 + $0x76c] sm:$0xf]
  %v534 = vld [vmem:[%s1 + $0x770] sm:$0xf]
  %v535 = vld [vmem:[%s1 + $0x774] sm:$0xf]
  %v536 = vld [vmem:[%s1 + $0x778] sm:$0xf]
  %v537 = vld [vmem:[%s1 + $0x77c] sm:$0xf]
  %v538 = vld [vmem:[%s1 + $0x780] sm:$0xf]
  %v539 = vld [vmem:[%s1 + $0x784] sm:$0xf]
  %v540 = vld [vmem:[%s1 + $0x788] sm:$0xf]
  %v541 = vld [vmem:[%s1 + $0x78c] sm:$0xf]
  %v542 = vld [vmem:[%s1 + $0x790] sm:$0xf]
  %v543 = vld [vmem:[%s1 + $0x794] sm:$0xf]
  %v544 = vld [vmem:[%s1 + $0x798] sm:$0xf]
  %v545 = vld [vmem:[%s1 + $0x79c] sm:$0xf]
  %v546 = vld [vmem:[%s1 + $0x7a0] sm:$0xf]
  %v547 = vld [vmem:[%s1 + $0x7a4] sm:$0xf]
  %v548 = vld [vmem:[%s1 + $0x7a8] sm:$0xf]
  %v549 = vld [vmem:[%s1 + $0x7ac] sm:$0xf]
  %v550 = vld [vmem:[%s1 + $0x7b0] sm:$0xf]
  %v551 = vld [vmem:[%s1 + $0x7b4] sm:$0xf]
  %v552 = vld [vmem:[%s1 + $0x7b8] sm:$0xf]
  %v553 = vld [vmem:[%s1 + $0x7bc] sm:$0xf]
  %v554 = vld [vmem:[%s1 + $0x7c0] sm:$0xf]
  %v555 = vld [vmem:[%s1 + $0x7c4] sm:$0xf]
  %v556 = vld [vmem:[%s1 + $0x7c8] sm:$0xf]
  %v557 = vld [vmem:[%s1 + $0x7cc] sm:$0xf]
  %v558 = vld [vmem:[%s1 + $0x7d0] sm:$0xf]
  %v559 = vld [vmem:[%s1 + $0x7d4] sm:$0xf]
  %v560 = vld [vmem:[%s1 + $0x7d8] sm:$0xf]
  %v561 = vld [vmem:[%s1 + $0x7dc] sm:$0xf]
  %v562 = vld [vmem:[%s1 + $0x7e0] sm:$0xf]
  %v563 = vld [vmem:[%s1 + $0x7e4] sm:$0xf]
  %v564 = vld [vmem:[%s1 + $0x7e8] sm:$0xf]
  %v565 = vld [vmem:[%s1 + $0x7ec] sm:$0xf]
  %v566 = vld [vmem:[%s1 + $0x7f0] sm:$0xf]
  %v567 = vld [vmem:[%s1 + $0x7f4] sm:$0xf]
  %v568 = vld [vmem:[%s1 + $0x7f8] sm:$0xf]
  %v569 = vld [vmem:[%s1 + $0x7fc] sm:$0xf]
  %v570 = vld [vmem:[%s1 + $0x800] sm:$0xf]
  %v571 = vld [vmem:[%s1 + $0x804] sm:$0xf]
  %v572 = vld [vmem:[%s1 + $0x808] sm:$0xf]
  %v573 = vld [vmem:[%s1 + $0x80c] sm:$0xf]
  %v574 = vld [vmem:[%s1 + $0x810] sm:$0xf]
  %v575 = vld [vmem:[%s1 + $0x814] sm:$0xf]
  %v576 = vld [vmem:[%s1 + $0x818] sm:$0xf]
  %v577 = vld [vmem:[%s1 + $0x81c] sm:$0xf]
  %v578 = vld [vmem:[%s1 + $0x820] sm:$0xf]
  %v579 = vld [vmem:[%s1 + $0x824] sm:$0xf]
  %v580 = vld [vmem:[%s1 + $0x828] sm:$0xf]
  %v581 = vld [vmem:[%s1 + $0x82c] sm:$0xf]
  %v582 = vld [vmem:[%s1 + $0x830] sm:$0xf]
  %v583 = vld [vmem:[%s1 + $0x834] sm:$0xf]
  %v584 = vld [vmem:[%s1 + $0x838] sm:$0xf]
  %v585 = vld [vmem:[%s1 + $0x83c] sm:$0xf]
  %v586 = vld [vmem:[%s1 + $0x840] sm:$0xf]
  %v587 = vld [vmem:[%s1 + $0x844] sm:$0xf]
  %v588 = vld [vmem:[%s1 + $0x848] sm:$0xf]
  %v589 = vld [vmem:[%s1 + $0x84c] sm:$0xf]
  %v590 = vld [vmem:[%s1 + $0x850] sm:$0xf]
  %v591 = vld [vmem:[%s1 + $0x854] sm:$0xf]
  %v592 = vld [vmem:[%s1 + $0x858] sm:$0xf]
  %v593 = vld [vmem:[%s1 + $0x85c] sm:$0xf]
  %v594 = vld [vmem:[%s1 + $0x860] sm:$0xf]
  %v595 = vld [vmem:[%s1 + $0x864] sm:$0xf]
  %v596 = vld [vmem:[%s1 + $0x868] sm:$0xf]
  %v597 = vld [vmem:[%s1 + $0x86c] sm:$0xf]
  %v598 = vld [vmem:[%s1 + $0x870] sm:$0xf]
  %v599 = vld [vmem:[%s1 + $0x874] sm:$0xf]
  %v600 = vld [vmem:[%s1 + $0x878] sm:$0xf]
  %v601 = vld [vmem:[%s1 + $0x87c] sm:$0xf]
  %v602 = vld [vmem:[%s1 + $0x880] sm:$0xf]
  %v603 = vld [vmem:[%s1 + $0x884] sm:$0xf]
  %v604 = vld [vmem:[%s1 + $0x888] sm:$0xf]
  %v605 = vld [vmem:[%s1 + $0x88c] sm:$0xf]
  %v606 = vld [vmem:[%s1 + $0x890] sm:$0xf]
  %v607 = vld [vmem:[%s1 + $0x894] sm:$0xf]
  %v608 = vld [vmem:[%s1 + $0x898] sm:$0xf]
  %v609 = vld [vmem:[%s1 + $0x89c] sm:$0xf]
  %v610 = vld [vmem:[%s1 + $0x8a0] sm:$0xf]
  %v611 = vld [vmem:[%s1 + $0x8a4] sm:$0xf]
  %v612 = vld [vmem:[%s1 + $0x8a8] sm:$0xf]
  %v613 = vld [vmem:[%s1 + $0x8ac] sm:$0xf]
  %v614 = vld [vmem:[%s1 + $0x8b0] sm:$0xf]
  %v615 = vld [vmem:[%s1 + $0x8b4] sm:$0xf]
  %v616 = vld [vmem:[%s1 + $0x8b8] sm:$0xf]
  %v617 = vld [vmem:[%s1 + $0x8bc] sm:$0xf]
  %v618 = vld [vmem:[%s1 + $0x8c0] sm:$0xf]
  %v619 = vld [vmem:[%s1 + $0x8c4] sm:$0xf]
  %v620 = vld [vmem:[%s1 + $0x8c8] sm:$0xf]
  %v621 = vld [vmem:[%s1 + $0x8cc] sm:$0xf]
  %v622 = vld [vmem:[%s1 + $0x8d0] sm:$0xf]
  %v623 = vld [vmem:[%s1 + $0x8d4] sm:$0xf]
  %v624 = vld [vmem:[%s1 + $0x8d8] sm:$0xf]
  %v625 = vld [vmem:[%s1 + $0x8dc] sm:$0xf]
  %v626 = vld [vmem:[%s1 + $0x8e0] sm:$0xf]
  %v627 = vld [vmem:[%s1 + $0x8e4] sm:$0xf]
  %v628 = vld [vmem:[%s1 + $0x8e8] sm:$0xf]
  %v629 = vld [vmem:[%s1 + $0x8ec] sm:$0xf]
  %v630 = vld [vmem:[%s1 + $0x8f0] sm:$0xf]
  %v631 = vld [vmem:[%s1 + $0x8f4] sm:$0xf]
  %v632 = vld [vmem:[%s1 + $0x8f8] sm:$0xf]
  %v633 = vld [vmem:[%s1 + $0x8fc] sm:$0xf]
  %v634 = vld [vmem:[%s1 + $0x900] sm:$0xf]
  %v635 = vld [vmem:[%s1 + $0x904] sm:$0xf]
  %v636 = vld [vmem:[%s1 + $0x908] sm:$0xf]
  %v637 = vld [vmem:[%s1 + $0x90c] sm:$0xf]
  %v638 = vld [vmem:[%s1 + $0x910] sm:$0xf]
  %v639 = vld [vmem:[%s1 + $0x914] sm:$0xf]
  %v640 = vld [vmem:[%s1 + $0x918] sm:$0xf]
  %v641 = vld [vmem:[%s1 + $0x91c] sm:$0xf]
  %v642 = vld [vmem:[%s1 + $0x920] sm:$0xf]
  %v643 = vld [vmem:[%s1 + $0x924] sm:$0xf]
  %v644 = vld [vmem:[%s1 + $0x928] sm:$0xf]
  %v645 = vld [vmem:[%s1 + $0x92c] sm:$0xf]
  %v646 = vld [vmem:[%s1 + $0x930] sm:$0xf]
  %v647 = vld [vmem:[%s1 + $0x934] sm:$0xf]
  %v648 = vld [vmem:[%s1 + $0x938] sm:$0xf]
  %v649 = vld [vmem:[%s1 + $0x93c] sm:$0xf]
  %v650 = vld [vmem:[%s1 + $0x940] sm:$0xf]
  %v651 = vld [vmem:[%s1 + $0x944] sm:$0xf]
  %v652 = vld [vmem:[%s1 + $0x948] sm:$0xf]
  %v653 = vld [vmem:[%s1 + $0x94c] sm:$0xf]
  %v654 = vld [vmem:[%s1 + $0x950] sm:$0xf]
  %v655 = vld [vmem:[%s1 + $0x954] sm:$0xf]
  %v656 = vld [vmem:[%s1 + $0x958] sm:$0xf]
  %v657 = vld [vmem:[%s1 + $0x95c] sm:$0xf]
  %v658 = vld [vmem:[%s1 + $0x960] sm:$0xf]
  %v659 = vld [vmem:[%s1 + $0x964] sm:$0xf]
  %v660 = vld [vmem:[%s1 + $0x968] sm:$0xf]
  %v661 = vld [vmem:[%s1 + $0x96c] sm:$0xf]
  %v662 = vld [vmem:[%s1 + $0x970] sm:$0xf]
  %v663 = vld [vmem:[%s1 + $0x974] sm:$0xf]
  %v664 = vld [vmem:[%s1 + $0x978] sm:$0xf]
  %v665 = vld [vmem:[%s1 + $0x97c] sm:$0xf]
  %v666 = vld [vmem:[%s1 + $0x980] sm:$0xf]
  %v667 = vld [vmem:[%s1 + $0x984] sm:$0xf]
  %v668 = vld [vmem:[%s1 + $0x988] sm:$0xf]
  %v669 = vld [vmem:[%s1 + $0x98c] sm:$0xf]
  %v670 = vld [vmem:[%s1 + $0x990] sm:$0xf]
  %v671 = vld [vmem:[%s1 + $0x994] sm:$0xf]
  %v672 = vld [vmem:[%s1 + $0x998] sm:$0xf]
  %v673 = vld [vmem:[%s1 + $0x99c] sm:$0xf]
  %v674 = vld [vmem:[%s1 + $0x9a0] sm:$0xf]
  %v675 = vld [vmem:[%s1 + $0x9a4] sm:$0xf]
  %v676 = vld [vmem:[%s1 + $0x9a8] sm:$0xf]
  %v677 = vld [vmem:[%s1 + $0x9ac] sm:$0xf]
  %v678 = vld [vmem:[%s1 + $0x9b0] sm:$0xf]
  %v679 = vld [vmem:[%s1 + $0x9b4] sm:$0xf]
  %v680 = vld [vmem:[%s1 + $0x9b8] sm:$0xf]
  %v681 = vld [vmem:[%s1 + $0x9bc] sm:$0xf]
  %v682 = vld [vmem:[%s1 + $0x9c0] sm:$0xf]
  %v683 = vld [vmem:[%s1 + $0x9c4] sm:$0xf]
  %v684 = vld [vmem:[%s1 + $0x9c8] sm:$0xf]
  %v685 = vld [vmem:[%s1 + $0x9cc] sm:$0xf]
  %v686 = vld [vmem:[%s1 + $0x9d0] sm:$0xf]
  %v687 = vld [vmem:[%s1 + $0x9d4] sm:$0xf]
  %v688 = vld [vmem:[%s1 + $0x9d8] sm:$0xf]
  %v689 = vld [vmem:[%s1 + $0x9dc] sm:$0xf]
  %v690 = vld [vmem:[%s1 + $0x9e0] sm:$0xf]
  %v691 = vld [vmem:[%s1 + $0x9e4] sm:$0xf]
  %v692 = vld [vmem:[%s1 + $0x9e8] sm:$0xf]
  %v693 = vld [vmem:[%s1 + $0x9ec] sm:$0xf]
  %v694 = vld [vmem:[%s1 + $0x9f0] sm:$0xf]
  %v695 = vld [vmem:[%s1 + $0x9f4] sm:$0xf]
  %v696 = vld [vmem:[%s1 + $0x9f8] sm:$0xf]
  %v697 = vld [vmem:[%s1 + $0x9fc] sm:$0xf]
  %v698 = vld [vmem:[%s1 + $0xa00] sm:$0xf]
  %v699 = vld [vmem:[%s1 + $0xa04] sm:$0xf]
  %v700 = vld [vmem:[%s1 + $0xa08] sm:$0xf]
  %v701 = vld [vmem:[%s1 + $0xa0c] sm:$0xf]
  %v702 = vld [vmem:[%s1 + $0xa10] sm:$0xf]
  %v703 = vld [vmem:[%s1 + $0xa14] sm:$0xf]
  %v704 = vld [vmem:[%s1 + $0xa18] sm:$0xf]
  %v705 = vld [vmem:[%s1 + $0xa1c] sm:$0xf]
  %v706 = vld [vmem:[%s1 + $0xa20] sm:$0xf]
  %v707 = vld [vmem:[%s1 + $0xa24] sm:$0xf]
  %v708 = vld [vmem:[%s1 + $0xa28] sm:$0xf]
  %v709 = vld [vmem:[%s1 + $0xa2c] sm:$0xf]
  %v710 = vld [vmem:[%s1 + $0xa30] sm:$0xf]
  %v711 = vld [vmem:[%s1 + $0xa34] sm:$0xf]
  %v712 = vld [vmem:[%s1 + $0xa38] sm:$0xf]
  %v713 = vld [vmem:[%s1 + $0xa3c] sm:$0xf]
  %v714 = vld [vmem:[%s1 + $0xa40] sm:$0xf]
  %v715 = vld [vmem:[%s1 + $0xa44] sm:$0xf]
  %v716 = vld [vmem:[%s1 + $0xa48] sm:$0xf]
  %v717 = vld [vmem:[%s1 + $0xa4c] sm:$0xf]
  %v718 = vld [vmem:[%s1 + $0xa50] sm:$0xf]
  %v719 = vld [vmem:[%s1 + $0xa54] sm:$0xf]
  %v720 = vld [vmem:[%s1 + $0xa58] sm:$0xf]
  %v721 = vld [vmem:[%s1 + $0xa5c] sm:$0xf]
  %v722 = vld [vmem:[%s1 + $0xa60] sm:$0xf]
  %v723 = vld [vmem:[%s1 + $0xa64] sm:$0xf]
  %v724 = vld [vmem:[%s1 + $0xa68] sm:$0xf]
  %v725 = vld [vmem:[%s1 + $0xa6c] sm:$0xf]
  %v726 = vld [vmem:[%s1 + $0xa70] sm:$0xf]
  %v727 = vld [vmem:[%s1 + $0xa74] sm:$0xf]
  %v728 = vld [vmem:[%s1 + $0xa78] sm:$0xf]
  %v729 = vld [vmem:[%s1 + $0xa7c] sm:$0xf]
  %v730 = vld [vmem:[%s1 + $0xa80] sm:$0xf]
  %v731 = vld [vmem:[%s1 + $0xa84] sm:$0xf]
  %v732 = vld [vmem:[%s1 + $0xa88] sm:$0xf]
  %v733 = vld [vmem:[%s1 + $0xa8c] sm:$0xf]
  %v734 = vld [vmem:[%s1 + $0xa90] sm:$0xf]
  %v735 = vld [vmem:[%s1 + $0xa94] sm:$0xf]
  %v736 = vld [vmem:[%s1 + $0xa98] sm:$0xf]
  %v737 = vld [vmem:[%s1 + $0xa9c] sm:$0xf]
  %v738 = vld [vmem:[%s1 + $0xaa0] sm:$0xf]
  %v739 = vld [vmem:[%s1 + $0xaa4] sm:$0xf]
  %v740 = vld [vmem:[%s1 + $0xaa8] sm:$0xf]
  %v741 = vld [vmem:[%s1 + $0xaac] sm:$0xf]
  %v742 = vld [vmem:[%s1 + $0xab0] sm:$0xf]
  %v743 = vld [vmem:[%s1 + $0xab4] sm:$0xf]
  %v744 = vld [vmem:[%s1 + $0xab8] sm:$0xf]
  %v745 = vld [vmem:[%s1 + $0xabc] sm:$0xf]
  %v746 = vld [vmem:[%s1 + $0xac0] sm:$0xf]
  %v747 = vld [vmem:[%s1 + $0xac4] sm:$0xf]
  %v748 = vld [vmem:[%s1 + $0xac8] sm:$0xf]
  %v749 = vld [vmem:[%s1 + $0xacc] sm:$0xf]
  %v750 = vld [vmem:[%s1 + $0xad0] sm:$0xf]
  %v751 = vld [vmem:[%s1 + $0xad4] sm:$0xf]
  %v752 = vld [vmem:[%s1 + $0xad8] sm:$0xf]
  %v753 = vld [vmem:[%s1 + $0xadc] sm:$0xf]
  %v754 = vld [vmem:[%s1 + $0xae0] sm:$0xf]
  %v755 = vld [vmem:[%s1 + $0xae4] sm:$0xf]
  %v756 = vld [vmem:[%s1 + $0xae8] sm:$0xf]
  %v757 = vld [vmem:[%s1 + $0xaec] sm:$0xf]
  %v758 = vld [vmem:[%s1 + $0xaf0] sm:$0xf]
  %v759 = vld [vmem:[%s1 + $0xaf4] sm:$0xf]
  %v760 = vld [vmem:[%s1 + $0xaf8] sm:$0xf]
  %v761 = vld [vmem:[%s1 + $0xafc] sm:$0xf]
  %v762 = vld [vmem:[%s1 + $0xb00] sm:$0xf]
  %v763 = vld [vmem:[%s1 + $0xb04] sm:$0xf]
  %v764 = vld [vmem:[%s1 + $0xb08] sm:$0xf]
  %v765 = vld [vmem:[%s1 + $0xb0c] sm:$0xf]
  %v766 = vld [vmem:[%s1 + $0xb10] sm:$0xf]
  %v767 = vld [vmem:[%s1 + $0xb14] sm:$0xf]
  %v768 = vld [vmem:[%s1 + $0xb18] sm:$0xf]
  %v769 = vld [vmem:[%s1 + $0xb1c] sm:$0xf]
  %v770 = vld [vmem:[%s1 + $0xb20] sm:$0xf]
  %v771 = vld [vmem:[%s1 + $0xb24] sm:$0xf]
  %v772 = vld [vmem:[%s1 + $0xb28] sm:$0xf]
  %v773 = vld [vmem:[%s1 + $0xb2c] sm:$0xf]
  %v774 = vld [vmem:[%s1 + $0xb30] sm:$0xf]
  %v775 = vld [vmem:[%s1 + $0xb34] sm:$0xf]
  %v776 = vld [vmem:[%s1 + $0xb38] sm:$0xf]
  %v777 = vld [vmem:[%s1 + $0xb3c] sm:$0xf]
  %v778 = vld [vmem:[%s1 + $0xb40] sm:$0xf]
  %v779 = vld [vmem:[%s1 + $0xb44] sm:$0xf]
  %v780 = vld [vmem:[%s1 + $0xb48] sm:$0xf]
  %v781 = vld [vmem:[%s1 + $0xb4c] sm:$0xf]
  %v782 = vld [vmem:[%s1 + $0xb50] sm:$0xf]
  %v783 = vld [vmem:[%s1 + $0xb54] sm:$0xf]
  %v784 = vld [vmem:[%s1 + $0xb58] sm:$0xf]
  %v785 = vld [vmem:[%s1 + $0xb5c] sm:$0xf]
  %v786 = vld [vmem:[%s1 + $0xb60] sm:$0xf]
  %v787 = vld [vmem:[%s1 + $0xb64] sm:$0xf]
  %v788 = vld [vmem:[%s1 + $0xb68] sm:$0xf]
  %v789 = vld [vmem:[%s1 + $0xb6c] sm:$0xf]
  %v790 = vld [vmem:[%s1 + $0xb70] sm:$0xf]
  %v791 = vld [vmem:[%s1 + $0xb74] sm:$0xf]
  %v792 = vld [vmem:[%s1 + $0xb78] sm:$0xf]
  %v793 = vld [vmem:[%s1 + $0xb7c] sm:$0xf]
  %v794 = vld [vmem:[%s1 + $0xb80] sm:$0xf]
  %v795 = vld [vmem:[%s1 + $0xb84] sm:$0xf]
  %v796 = vld [vmem:[%s1 + $0xb88] sm:$0xf]
  %v797 = vld [vmem:[%s1 + $0xb8c] sm:$0xf]
  %v798 = vld [vmem:[%s1 + $0xb90] sm:$0xf]
  %v799 = vld [vmem:[%s1 + $0xb94] sm:$0xf]
  %v800 = vld [vmem:[%s1 + $0xb98] sm:$0xf]
  %v801 = vld [vmem:[%s1 + $0xb9c] sm:$0xf]
  %v802 = vld [vmem:[%s1 + $0xba0] sm:$0xf]
  %v803 = vld [vmem:[%s1 + $0xba4] sm:$0xf]
  %v804 = vld [vmem:[%s1 + $0xba8] sm:$0xf]
  %v805 = vld [vmem:[%s1 + $0xbac] sm:$0xf]
  %v806 = vld [vmem:[%s1 + $0xbb0] sm:$0xf]
  %v807 = vld [vmem:[%s1 + $0xbb4] sm:$0xf]
  %v808 = vld [vmem:[%s1 + $0xbb8] sm:$0xf]
  %v809 = vld [vmem:[%s1 + $0xbbc] sm:$0xf]
  %v810 = vld [vmem:[%s1 + $0xbc0] sm:$0xf]
  %v811 = vld [vmem:[%s1 + $0xbc4] sm:$0xf]
  %v812 = vld [vmem:[%s1 + $0xbc8] sm:$0xf]
  %v813 = vld [vmem:[%s1 + $0xbcc] sm:$0xf]
  %v814 = vld [vmem:[%s1 + $0xbd0] sm:$0xf]
  %v815 = vld [vmem:[%s1 + $0xbd4] sm:$0xf]
  %v816 = vld [vmem:[%s1 + $0xbd8] sm:$0xf]
  %v817 = vld [vmem:[%s1 + $0xbdc] sm:$0xf]
  %v818 = vld [vmem:[%s1 + $0xbe0] sm:$0xf]
  %v819 = vld [vmem:[%s1 + $0xbe4] sm:$0xf]
  %v820 = vld [vmem:[%s1 + $0xbe8] sm:$0xf]
  %v821 = vld [vmem:[%s1 + $0xbec] sm:$0xf]
  %v822 = vld [vmem:[%s1 + $0xbf0] sm:$0xf]
  %v823 = vld [vmem:[%s1 + $0xbf4] sm:$0xf]
  %v824 = vld [vmem:[%s1 + $0xbf8] sm:$0xf]
  %v825 = vld [vmem:[%s1 + $0xbfc] sm:$0xf]
  %v826 = vld [vmem:[%s1 + $0xc00] sm:$0xf]
  %v827 = vld [vmem:[%s1 + $0xc04] sm:$0xf]
  %v828 = vld [vmem:[%s1 + $0xc08] sm:$0xf]
  %v829 = vld [vmem:[%s1 + $0xc0c] sm:$0xf]
  %v830 = vld [vmem:[%s1 + $0xc10] sm:$0xf]
  %v831 = vld [vmem:[%s1 + $0xc14] sm:$0xf]
  %v832 = vld [vmem:[%s1 + $0xc18] sm:$0xf]
  %v833 = vld [vmem:[%s1 + $0xc1c] sm:$0xf]
  %v834 = vld [vmem:[%s1 + $0xc20] sm:$0xf]
  %v835 = vld [vmem:[%s1 + $0xc24] sm:$0xf]
  %v836 = vld [vmem:[%s1 + $0xc28] sm:$0xf]
  %v837 = vld [vmem:[%s1 + $0xc2c] sm:$0xf]
  %v838 = vld [vmem:[%s1 + $0xc30] sm:$0xf]
  %v839 = vld [vmem:[%s1 + $0xc34] sm:$0xf]
  %v840 = vld [vmem:[%s1 + $0xc38] sm:$0xf]
  %v841 = vld [vmem:[%s1 + $0xc3c] sm:$0xf]
  %v842 = vld [vmem:[%s1 + $0xc40] sm:$0xf]
  %v843 = vld [vmem:[%s1 + $0xc44] sm:$0xf]
  %v844 = vld [vmem:[%s1 + $0xc48] sm:$0xf]
  %v845 = vld [vmem:[%s1 + $0xc4c] sm:$0xf]
  %v846 = vld [vmem:[%s1 + $0xc50] sm:$0xf]
  %v847 = vld [vmem:[%s1 + $0xc54] sm:$0xf]
  %v848 = vld [vmem:[%s1 + $0xc58] sm:$0xf]
  %v849 = vld [vmem:[%s1 + $0xc5c] sm:$0xf]
  %v850 = vld [vmem:[%s1 + $0xc60] sm:$0xf]
  %v851 = vld [vmem:[%s1 + $0xc64] sm:$0xf]
  %v852 = vld [vmem:[%s1 + $0xc68] sm:$0xf]
  %v853 = vld [vmem:[%s1 + $0xc6c] sm:$0xf]
  %v854 = vld [vmem:[%s1 + $0xc70] sm:$0xf]
  %v855 = vld [vmem:[%s1 + $0xc74] sm:$0xf]
  %v856 = vld [vmem:[%s1 + $0xc78] sm:$0xf]
  %v857 = vld [vmem:[%s1 + $0xc7c] sm:$0xf]
  %v858 = vld [vmem:[%s1 + $0xc80] sm:$0xf]
  %v859 = vld [vmem:[%s1 + $0xc84] sm:$0xf]
  %v860 = vld [vmem:[%s1 + $0xc88] sm:$0xf]
  %v861 = vld [vmem:[%s1 + $0xc8c] sm:$0xf]
  %v862 = vld [vmem:[%s1 + $0xc90] sm:$0xf]
  %v863 = vld [vmem:[%s1 + $0xc94] sm:$0xf]
  %v864 = vld [vmem:[%s1 + $0xc98] sm:$0xf]
  %v865 = vld [vmem:[%s1 + $0xc9c] sm:$0xf]
  %v866 = vld [vmem:[%s1 + $0xca0] sm:$0xf]
  %v867 = vld [vmem:[%s1 + $0xca4] sm:$0xf]
  %v868 = vld [vmem:[%s1 + $0xca8] sm:$0xf]
  %v869 = vld [vmem:[%s1 + $0xcac] sm:$0xf]
  %v870 = vld [vmem:[%s1 + $0xcb0] sm:$0xf]
  %v871 = vld [vmem:[%s1 + $0xcb4] sm:$0xf]
  %v872 = vld [vmem:[%s1 + $0xcb8] sm:$0xf]
  %v873 = vld [vmem:[%s1 + $0xcbc] sm:$0xf]
  %v874 = vld [vmem:[%s1 + $0xcc0] sm:$0xf]
  %v875 = vld [vmem:[%s1 + $0xcc4] sm:$0xf]
  %v876 = vld [vmem:[%s1 + $0xcc8] sm:$0xf]
  %v877 = vld [vmem:[%s1 + $0xccc] sm:$0xf]
  %v878 = vld [vmem:[%s1 + $0xcd0] sm:$0xf]
  %v879 = vld [vmem:[%s1 + $0xcd4] sm:$0xf]
  %v880 = vld [vmem:[%s1 + $0xcd8] sm:$0xf]
  %v881 = vld [vmem:[%s1 + $0xcdc] sm:$0xf]
  %v882 = vld [vmem:[%s1 + $0xce0] sm:$0xf]
  %v883 = vld [vmem:[%s1 + $0xce4] sm:$0xf]
  %v884 = vld [vmem:[%s1 + $0xce8] sm:$0xf]
  %v885 = vld [vmem:[%s1 + $0xcec] sm:$0xf]
  %v886 = vld [vmem:[%s1 + $0xcf0] sm:$0xf]
  %v887 = vld [vmem:[%s1 + $0xcf4] sm:$0xf]
  %v888 = vld [vmem:[%s1 + $0xcf8] sm:$0xf]
  %v889 = vld [vmem:[%s1 + $0xcfc] sm:$0xf]
  %v890 = vld [vmem:[%s1 + $0xd00] sm:$0xf]
  %v891 = vld [vmem:[%s1 + $0xd04] sm:$0xf]
  %v892 = vld [vmem:[%s1 + $0xd08] sm:$0xf]
  %v893 = vld [vmem:[%s1 + $0xd0c] sm:$0xf]
  %v894 = vld [vmem:[%s1 + $0xd10] sm:$0xf]
  %v895 = vld [vmem:[%s1 + $0xd14] sm:$0xf]
  %v896 = vld [vmem:[%s1 + $0xd18] sm:$0xf]
  %v897 = vld [vmem:[%s1 + $0xd1c] sm:$0xf]
  %v898 = vld [vmem:[%s1 + $0xd20] sm:$0xf]
  %v899 = vld [vmem:[%s1 + $0xd24] sm:$0xf]
  %v900 = vld [vmem:[%s1 + $0xd28] sm:$0xf]
  %v901 = vld [vmem:[%s1 + $0xd2c] sm:$0xf]
  %v902 = vld [vmem:[%s1 + $0xd30] sm:$0xf]
  %v903 = vld [vmem:[%s1 + $0xd34] sm:$0xf]
  %v904 = vld [vmem:[%s1 + $0xd38] sm:$0xf]
  %v905 = vld [vmem:[%s1 + $0xd3c] sm:$0xf]
  %v906 = vld [vmem:[%s1 + $0xd40] sm:$0xf]
  %v907 = vld [vmem:[%s1 + $0xd44] sm:$0xf]
  %v908 = vld [vmem:[%s1 + $0xd48] sm:$0xf]
  %v909 = vld [vmem:[%s1 + $0xd4c] sm:$0xf]
  %v910 = vld [vmem:[%s1 + $0xd50] sm:$0xf]
  %v911 = vld [vmem:[%s1 + $0xd54] sm:$0xf]
  %v912 = vld [vmem:[%s1 + $0xd58] sm:$0xf]
  %v913 = vld [vmem:[%s1 + $0xd5c] sm:$0xf]
  %v914 = vld [vmem:[%s1 + $0xd60] sm:$0xf]
  %v915 = vld [vmem:[%s1 + $0xd64] sm:$0xf]
  %v916 = vld [vmem:[%s1 + $0xd68] sm:$0xf]
  %v917 = vld [vmem:[%s1 + $0xd6c] sm:$0xf]
  %v918 = vld [vmem:[%s1 + $0xd70] sm:$0xf]
  %v919 = vld [vmem:[%s1 + $0xd74] sm:$0xf]
  %v920 = vld [vmem:[%s1 + $0xd78] sm:$0xf]
  %v921 = vld [vmem:[%s1 + $0xd7c] sm:$0xf]
  %v922 = vld [vmem:[%s1 + $0xd80] sm:$0xf]
  %v923 = vld [vmem:[%s1 + $0xd84] sm:$0xf]
  %v924 = vld [vmem:[%s1 + $0xd88] sm:$0xf]
  %v925 = vld [vmem:[%s1 + $0xd8c] sm:$0xf]
  %v926 = vld [vmem:[%s1 + $0xd90] sm:$0xf]
  %v927 = vld [vmem:[%s1 + $0xd94] sm:$0xf]
  %v928 = vld [vmem:[%s1 + $0xd98] sm:$0xf]
  %v929 = vld [vmem:[%s1 + $0xd9c] sm:$0xf]
  %v930 = vld [vmem:[%s1 + $0xda0] sm:$0xf]
  %v931 = vld [vmem:[%s1 + $0xda4] sm:$0xf]
  %v932 = vld [vmem:[%s1 + $0xda8] sm:$0xf]
  %v933 = vld [vmem:[%s1 + $0xdac] sm:$0xf]
  %v934 = vld [vmem:[%s1 + $0xdb0] sm:$0xf]
  %v935 = vld [vmem:[%s1 + $0xdb4] sm:$0xf]
  %v936 = vld [vmem:[%s1 + $0xdb8] sm:$0xf]
  %v937 = vld [vmem:[%s1 + $0xdbc] sm:$0xf]
  %v938 = vld [vmem:[%s1 + $0xdc0] sm:$0xf]
  %v939 = vld [vmem:[%s1 + $0xdc4] sm:$0xf]
  %v940 = vld [vmem:[%s1 + $0xdc8] sm:$0xf]
  %v941 = vld [vmem:[%s1 + $0xdcc] sm:$0xf]
  %v942 = vld [vmem:[%s1 + $0xdd0] sm:$0xf]
  %v943 = vld [vmem:[%s1 + $0xdd4] sm:$0xf]
  %v944 = vld [vmem:[%s1 + $0xdd8] sm:$0xf]
  %v945 = vld [vmem:[%s1 + $0xddc] sm:$0xf]
  %v946 = vld [vmem:[%s1 + $0xde0] sm:$0xf]
  %v947 = vld [vmem:[%s1 + $0xde4] sm:$0xf]
  %v948 = vld [vmem:[%s1 + $0xde8] sm:$0xf]
  %v949 = vld [vmem:[%s1 + $0xdec] sm:$0xf]
  %v950 = vld [vmem:[%s1 + $0xdf0] sm:$0xf]
  %v951 = vld [vmem:[%s1 + $0xdf4] sm:$0xf]
  %v952 = vld [vmem:[%s1 + $0xdf8] sm:$0xf]
  %v953 = vld [vmem:[%s1 + $0xdfc] sm:$0xf]
  %v954 = vld [vmem:[%s1 + $0xe00] sm:$0xf]
  %v955 = vld [vmem:[%s1 + $0xe04] sm:$0xf]
  %v956 = vld [vmem:[%s1 + $0xe08] sm:$0xf]
  %v957 = vld [vmem:[%s1 + $0xe0c] sm:$0xf]
  %v958 = vld [vmem:[%s1 + $0xe10] sm:$0xf]
  %v959 = vld [vmem:[%s1 + $0xe14] sm:$0xf]
  %v960 = vld [vmem:[%s1 + $0xe18] sm:$0xf]
  %v961 = vld [vmem:[%s1 + $0xe1c] sm:$0xf]
  %v962 = vld [vmem:[%s1 + $0xe20] sm:$0xf]
  %v963 = vld [vmem:[%s1 + $0xe24] sm:$0xf]
  %v964 = vld [vmem:[%s1 + $0xe28] sm:$0xf]
  %v965 = vld [vmem:[%s1 + $0xe2c] sm:$0xf]
  %v966 = vld [vmem:[%s1 + $0xe30] sm:$0xf]
  %v967 = vld [vmem:[%s1 + $0xe34] sm:$0xf]
  %v968 = vld [vmem:[%s1 + $0xe38] sm:$0xf]
  %v969 = vld [vmem:[%s1 + $0xe3c] sm:$0xf]
  %v970 = vld [vmem:[%s1 + $0xe40] sm:$0xf]
  %v971 = vld [vmem:[%s1 + $0xe44] sm:$0xf]
  %v972 = vld [vmem:[%s1 + $0xe48] sm:$0xf]
  %v973 = vld [vmem:[%s1 + $0xe4c] sm:$0xf]
  %v974 = vld [vmem:[%s1 + $0xe50] sm:$0xf]
  %v975 = vld [vmem:[%s1 + $0xe54] sm:$0xf]
  %v976 = vld [vmem:[%s1 + $0xe58] sm:$0xf]
  %v977 = vld [vmem:[%s1 + $0xe5c] sm:$0xf]
  %v978 = vld [vmem:[%s1 + $0xe60] sm:$0xf]
  %v979 = vld [vmem:[%s1 + $0xe64] sm:$0xf]
  %v980 = vld [vmem:[%s1 + $0xe68] sm:$0xf]
  %v981 = vld [vmem:[%s1 + $0xe6c] sm:$0xf]
  %v982 = vld [vmem:[%s1 + $0xe70] sm:$0xf]
  %v983 = vld [vmem:[%s1 + $0xe74] sm:$0xf]
  %v984 = vld [vmem:[%s1 + $0xe78] sm:$0xf]
  %v985 = vld [vmem:[%s1 + $0xe7c] sm:$0xf]
  %v986 = vld [vmem:[%s1 + $0xe80] sm:$0xf]
  %v987 = vld [vmem:[%s1 + $0xe84] sm:$0xf]
  %v988 = vld [vmem:[%s1 + $0xe88] sm:$0xf]
  %v989 = vld [vmem:[%s1 + $0xe8c] sm:$0xf]
  %v990 = vld [vmem:[%s1 + $0xe90] sm:$0xf]
  %v991 = vld [vmem:[%s1 + $0xe94] sm:$0xf]
  %v992 = vld [vmem:[%s1 + $0xe98] sm:$0xf]
  %v993 = vld [vmem:[%s1 + $0xe9c] sm:$0xf]
  %v994 = vld [vmem:[%s1 + $0xea0] sm:$0xf]
  %v995 = vld [vmem:[%s1 + $0xea4] sm:$0xf]
  %v996 = vld [vmem:[%s1 + $0xea8] sm:$0xf]
  %v997 = vld [vmem:[%s1 + $0xeac] sm:$0xf]
  %v998 = vld [vmem:[%s1 + $0xeb0] sm:$0xf]
  %v999 = vld [vmem:[%s1 + $0xeb4] sm:$0xf]
  %v1000 = vld [vmem:[%s1 + $0xeb8] sm:$0xf]
  %v1001 = vld [vmem:[%s1 + $0xebc] sm:$0xf]
  %v1002 = vld [vmem:[%s1 + $0xec0] sm:$0xf]
  %v1003 = vld [vmem:[%s1 + $0xec4] sm:$0xf]
  %v1004 = vld [vmem:[%s1 + $0xec8] sm:$0xf]
  %v1005 = vld [vmem:[%s1 + $0xecc] sm:$0xf]
  %v1006 = vld [vmem:[%s1 + $0xed0] sm:$0xf]
  %v1007 = vld [vmem:[%s1 + $0xed4] sm:$0xf]
  %v1008 = vld [vmem:[%s1 + $0xed8] sm:$0xf]
  %v1009 = vld [vmem:[%s1 + $0xedc] sm:$0xf]
  %v1010 = vld [vmem:[%s1 + $0xee0] sm:$0xf]
  %v1011 = vld [vmem:[%s1 + $0xee4] sm:$0xf]
  %v1012 = vld [vmem:[%s1 + $0xee8] sm:$0xf]
  %v1013 = vld [vmem:[%s1 + $0xeec] sm:$0xf]
  %v1014 = vld [vmem:[%s1 + $0xef0] sm:$0xf]
  %v1015 = vld [vmem:[%s1 + $0xef4] sm:$0xf]
  %v1016 = vld [vmem:[%s1 + $0xef8] sm:$0xf]
  %v1017 = vld [vmem:[%s1 + $0xefc] sm:$0xf]
  %v1018 = vld [vmem:[%s1 + $0xf00] sm:$0xf]
  %v1019 = vld [vmem:[%s1 + $0xf04] sm:$0xf]
  %v1020 = vld [vmem:[%s1 + $0xf08] sm:$0xf]
  %v1021 = vld [vmem:[%s1 + $0xf0c] sm:$0xf]
  %v1022 = vld [vmem:[%s1 + $0xf10] sm:$0xf]
  %v1023 = vld [vmem:[%s1 + $0xf14] sm:$0xf]
  %v1024 = vld [vmem:[%s1 + $0xf18] sm:$0xf]
  %v1025 = vld [vmem:[%s1 + $0xf1c] sm:$0xf]
  %v1026 = vld [vmem:[%s1 + $0xf20] sm:$0xf]
  %v1027 = vld [vmem:[%s1 + $0xf24] sm:$0xf]
  %v1028 = vld [vmem:[%s1 + $0xf28] sm:$0xf]
  %v1029 = vld [vmem:[%s1 + $0xf2c] sm:$0xf]
  %v1030 = vld [vmem:[%s1 + $0xf30] sm:$0xf]
  %v1031 = vld [vmem:[%s1 + $0xf34] sm:$0xf]
  %v1032 = vld [vmem:[%s1 + $0xf38] sm:$0xf]
  %v1033 = vld [vmem:[%s1 + $0xf3c] sm:$0xf]
  %v1034 = vld [vmem:[%s1 + $0xf40] sm:$0xf]
  %v1035 = vld [vmem:[%s1 + $0xf44] sm:$0xf]
  %v1036 = vld [vmem:[%s1 + $0xf48] sm:$0xf]
  %v1037 = vld [vmem:[%s1 + $0xf4c] sm:$0xf]
  %v1038 = vld [vmem:[%s1 + $0xf50] sm:$0xf]
  %v1039 = vld [vmem:[%s1 + $0xf54] sm:$0xf]
  %v1040 = vld [vmem:[%s1 + $0xf58] sm:$0xf]
  %v1041 = vld [vmem:[%s1 + $0xf5c] sm:$0xf]
  %v1042 = vld [vmem:[%s1 + $0xf60] sm:$0xf]
  %v1043 = vld [vmem:[%s1 + $0xf64] sm:$0xf]
  %v1044 = vld [vmem:[%s1 + $0xf68] sm:$0xf]
  %v1045 = vld [vmem:[%s1 + $0xf6c] sm:$0xf]
  %v1046 = vld [vmem:[%s1 + $0xf70] sm:$0xf]
  %v1047 = vld [vmem:[%s1 + $0xf74] sm:$0xf]
  %v1048 = vld [vmem:[%s1 + $0xf78] sm:$0xf]
  %v1049 = vld [vmem:[%s1 + $0xf7c] sm:$0xf]
  %v1050 = vld [vmem:[%s1 + $0xf80] sm:$0xf]
  %v1051 = vld [vmem:[%s1 + $0xf84] sm:$0xf]
  %v1052 = vld [vmem:[%s1 + $0xf88] sm:$0xf]
  %v1053 = vld [vmem:[%s1 + $0xf8c] sm:$0xf]
  %v1054 = vld [vmem:[%s1 + $0xf90] sm:$0xf]
  %v1055 = vld [vmem:[%s1 + $0xf94] sm:$0xf]
  %v1056 = vld [vmem:[%s1 + $0xf98] sm:$0xf]
  %v1057 = vld [vmem:[%s1 + $0xf9c] sm:$0xf]
  %v1058 = vld [vmem:[%s1 + $0xfa0] sm:$0xf]
  %v1059 = vld [vmem:[%s1 + $0xfa4] sm:$0xf]
  %v1060 = vld [vmem:[%s1 + $0xfa8] sm:$0xf]
  %v1061 = vld [vmem:[%s1 + $0xfac] sm:$0xf]
  %v1062 = vld [vmem:[%s1 + $0xfb0] sm:$0xf]
  %v1063 = vld [vmem:[%s1 + $0xfb4] sm:$0xf]
  %v1064 = vld [vmem:[%s1 + $0xfb8] sm:$0xf]
  %v1065 = vld [vmem:[%s1 + $0xfbc] sm:$0xf]
  %v1066 = vld [vmem:[%s1 + $0xfc0] sm:$0xf]
  %v1067 = vld [vmem:[%s1 + $0xfc4] sm:$0xf]
  %v1068 = vld [vmem:[%s1 + $0xfc8] sm:$0xf]
  %v1069 = vld [vmem:[%s1 + $0xfcc] sm:$0xf]
  %v1070 = vld [vmem:[%s1 + $0xfd0] sm:$0xf]
  %v1071 = vld [vmem:[%s1 + $0xfd4] sm:$0xf]
  %v1072 = vld [vmem:[%s1 + $0xfd8] sm:$0xf]
  %v1073 = vld [vmem:[%s1 + $0xfdc] sm:$0xf]
  %v1074 = vld [vmem:[%s1 + $0xfe0] sm:$0xf]
  %v1075 = vld [vmem:[%s1 + $0xfe4] sm:$0xf]
  %v1076 = vld [vmem:[%s1 + $0xfe8] sm:$0xf]
  %v1077 = vld [vmem:[%s1 + $0xfec] sm:$0xf]
  %v1078 = vld [vmem:[%s1 + $0xff0] sm:$0xf]
  %v1079 = vld [vmem:[%s1 + $0xff4] sm:$0xf]
  %v1080 = vld [vmem:[%s1 + $0xff8] sm:$0xf]
  %v1081 = vld [vmem:[%s1 + $0xffc] sm:$0xf]
  %v1082 = vld [vmem:[%s1 + $0x1000] sm:$0xf]
  %v1083 = vld [vmem:[%s1 + $0x1004] sm:$0xf]
  %v1084 = vld [vmem:[%s1 + $0x1008] sm:$0xf]
  %v1085 = vld [vmem:[%s1 + $0x100c] sm:$0xf]
  %v1086 = vld [vmem:[%s1 + $0x1010] sm:$0xf]
  %v1087 = vld [vmem:[%s1 + $0x1014] sm:$0xf]
  %v1088 = vld [vmem:[%s1 + $0x1018] sm:$0xf]
  %v1089 = vld [vmem:[%s1 + $0x101c] sm:$0xf]
  %v1090 = vld [vmem:[%s1 + $0x1020] sm:$0xf]
  %v1091 = vld [vmem:[%s1 + $0x1024] sm:$0xf]
  %v1092 = vld [vmem:[%s1 + $0x1028] sm:$0xf]
  %v1093 = vld [vmem:[%s1 + $0x102c] sm:$0xf]
  %v1094 = vld [vmem:[%s1 + $0x1030] sm:$0xf]
  %v1095 = vld [vmem:[%s1 + $0x1034] sm:$0xf]
  %v1096 = vld [vmem:[%s1 + $0x1038] sm:$0xf]
  %v1097 = vld [vmem:[%s1 + $0x103c] sm:$0xf]
  %v1098 = vld [vmem:[%s1 + $0x1040] sm:$0xf]
  %v1099 = vld [vmem:[%s1 + $0x1044] sm:$0xf]
  %v1100 = vld [vmem:[%s1 + $0x1048] sm:$0xf]
  %v1101 = vld [vmem:[%s1 + $0x104c] sm:$0xf]
  %v1102 = vld [vmem:[%s1 + $0x1050] sm:$0xf]
  %v1103 = vld [vmem:[%s1 + $0x1054] sm:$0xf]
  %v1104 = vld [vmem:[%s1 + $0x1058] sm:$0xf]
  %v1105 = vld [vmem:[%s1 + $0x105c] sm:$0xf]
  %v1106 = vld [vmem:[%s1 + $0x1060] sm:$0xf]
  %v1107 = vld [vmem:[%s1 + $0x1064] sm:$0xf]
  %v1108 = vld [vmem:[%s1 + $0x1068] sm:$0xf]
  %v1109 = vld [vmem:[%s1 + $0x106c] sm:$0xf]
  %v1110 = vld [vmem:[%s1 + $0x1070] sm:$0xf]
  %v1111 = vld [vmem:[%s1 + $0x1074] sm:$0xf]
  %v1112 = vld [vmem:[%s1 + $0x1078] sm:$0xf]
  %v1113 = vld [vmem:[%s1 + $0x107c] sm:$0xf]
  %v1114 = vld [vmem:[%s1 + $0x1080] sm:$0xf]
  %v1115 = vld [vmem:[%s1 + $0x1084] sm:$0xf]
  %v1116 = vld [vmem:[%s1 + $0x1088] sm:$0xf]
  %v1117 = vld [vmem:[%s1 + $0x108c] sm:$0xf]
  %v1118 = vld [vmem:[%s1 + $0x1090] sm:$0xf]
  %v1119 = vld [vmem:[%s1 + $0x1094] sm:$0xf]
  %v1120 = vld [vmem:[%s1 + $0x1098] sm:$0xf]
  %v1121 = vld [vmem:[%s1 + $0x109c] sm:$0xf]
  %v1122 = vld [vmem:[%s1 + $0x10a0] sm:$0xf]
  %v1123 = vld [vmem:[%s1 + $0x10a4] sm:$0xf]
  %v1124 = vld [vmem:[%s1 + $0x10a8] sm:$0xf]
  %v1125 = vld [vmem:[%s1 + $0x10ac] sm:$0xf]
  %v1126 = vld [vmem:[%s1 + $0x10b0] sm:$0xf]
  %v1127 = vld [vmem:[%s1 + $0x10b4] sm:$0xf]
  %v1128 = vld [vmem:[%s1 + $0x10b8] sm:$0xf]
  %v1129 = vld [vmem:[%s1 + $0x10bc] sm:$0xf]
  %v1130 = vld [vmem:[%s1 + $0x10c0] sm:$0xf]
  %v1131 = vld [vmem:[%s1 + $0x10c4] sm:$0xf]
  %v1132 = vld [vmem:[%s1 + $0x10c8] sm:$0xf]
  %v1133 = vld [vmem:[%s1 + $0x10cc] sm:$0xf]
  %v1134 = vld [vmem:[%s1 + $0x10d0] sm:$0xf]
  %v1135 = vld [vmem:[%s1 + $0x10d4] sm:$0xf]
  %v1136 = vld [vmem:[%s1 + $0x10d8] sm:$0xf]
  %v1137 = vld [vmem:[%s1 + $0x10dc] sm:$0xf]
  %v1138 = vld [vmem:[%s1 + $0x10e0] sm:$0xf]
  %v1139 = vld [vmem:[%s1 + $0x10e4] sm:$0xf]
  %v1140 = vld [vmem:[%s1 + $0x10e8] sm:$0xf]
  %v1141 = vld [vmem:[%s1 + $0x10ec] sm:$0xf]
  %v1142 = vld [vmem:[%s1 + $0x10f0] sm:$0xf]
  %v1143 = vld [vmem:[%s1 + $0x10f4] sm:$0xf]
  %v1144 = vld [vmem:[%s1 + $0x10f8] sm:$0xf]
  %v1145 = vld [vmem:[%s1 + $0x10fc] sm:$0xf]
  %v1146 = vld [vmem:[%s1 + $0x1100] sm:$0xf]
  %v1147 = vld [vmem:[%s1 + $0x1104] sm:$0xf]
  %v1148 = vld [vmem:[%s1 + $0x1108] sm:$0xf]
  %v1149 = vld [vmem:[%s1 + $0x110c] sm:$0xf]
  %v1150 = vld [vmem:[%s1 + $0x1110] sm:$0xf]
  %v1151 = vld [vmem:[%s1 + $0x1114] sm:$0xf]
  %v1152 = vld [vmem:[%s1 + $0x1118] sm:$0xf]
  %v1153 = vld [vmem:[%s1 + $0x111c] sm:$0xf]
  %v1154 = vld [vmem:[%s1 + $0x1120] sm:$0xf]
  %v1155 = vld [vmem:[%s1 + $0x1124] sm:$0xf]
  %v1156 = vld [vmem:[%s1 + $0x1128] sm:$0xf]
  %v1157 = vld [vmem:[%s1 + $0x112c] sm:$0xf]
  %v1158 = vld [vmem:[%s1 + $0x1130] sm:$0xf]
  %v1159 = vld [vmem:[%s1 + $0x1134] sm:$0xf]
  %v1160 = vld [vmem:[%s1 + $0x1138] sm:$0xf]
  %v1161 = vld [vmem:[%s1 + $0x113c] sm:$0xf]
  %v1162 = vld [vmem:[%s1 + $0x1140] sm:$0xf]
  %v1163 = vld [vmem:[%s1 + $0x1144] sm:$0xf]
  %v1164 = vld [vmem:[%s1 + $0x1148] sm:$0xf]
  %v1165 = vld [vmem:[%s1 + $0x114c] sm:$0xf]
  %v1166 = vld [vmem:[%s1 + $0x1150] sm:$0xf]
  %v1167 = vld [vmem:[%s1 + $0x1154] sm:$0xf]
  %v1168 = vld [vmem:[%s1 + $0x1158] sm:$0xf]
  %v1169 = vld [vmem:[%s1 + $0x115c] sm:$0xf]
  %v1170 = vld [vmem:[%s1 + $0x1160] sm:$0xf]
  %v1171 = vld [vmem:[%s1 + $0x1164] sm:$0xf]
  %v1172 = vld [vmem:[%s1 + $0x1168] sm:$0xf]
  %v1173 = vld [vmem:[%s1 + $0x116c] sm:$0xf]
  %v1174 = vld [vmem:[%s1 + $0x1170] sm:$0xf]
  %v1175 = vld [vmem:[%s1 + $0x1174] sm:$0xf]
  %v1176 = vld [vmem:[%s1 + $0x1178] sm:$0xf]
  %v1177 = vld [vmem:[%s1 + $0x117c] sm:$0xf]
  %v1178 = vld [vmem:[%s1 + $0x1180] sm:$0xf]
  %v1179 = vld [vmem:[%s1 + $0x1184] sm:$0xf]
  %v1180 = vld [vmem:[%s1 + $0x1188] sm:$0xf]
  %v1181 = vld [vmem:[%s1 + $0x118c] sm:$0xf]
  %v1182 = vld [vmem:[%s1 + $0x1190] sm:$0xf]
  %v1183 = vld [vmem:[%s1 + $0x1194] sm:$0xf]
  %v1184 = vld [vmem:[%s1 + $0x1198] sm:$0xf]
  %v1185 = vld [vmem:[%s1 + $0x119c] sm:$0xf]
  %v1186 = vld [vmem:[%s1 + $0x11a0] sm:$0xf]
  %v1187 = vld [vmem:[%s1 + $0x11a4] sm:$0xf]
  %v1188 = vld [vmem:[%s1 + $0x11a8] sm:$0xf]
  %v1189 = vld [vmem:[%s1 + $0x11ac] sm:$0xf]
  %v1190 = vld [vmem:[%s1 + $0x11b0] sm:$0xf]
  %v1191 = vld [vmem:[%s1 + $0x11b4] sm:$0xf]
  %v1192 = vld [vmem:[%s1 + $0x11b8] sm:$0xf]
  %v1193 = vld [vmem:[%s1 + $0x11bc] sm:$0xf]
  %v1194 = vld [vmem:[%s1 + $0x11c0] sm:$0xf]
  %v1195 = vld [vmem:[%s1 + $0x11c4] sm:$0xf]
  %v1196 = vld [vmem:[%s1 + $0x11c8] sm:$0xf]
  %v1197 = vld [vmem:[%s1 + $0x11cc] sm:$0xf]
  %v1198 = vld [vmem:[%s1 + $0x11d0] sm:$0xf]
  %v1199 = vld [vmem:[%s1 + $0x11d4] sm:$0xf]
  %v1200 = vld [vmem:[%s1 + $0x11d8] sm:$0xf]
  %v1201 = vld [vmem:[%s1 + $0x11dc] sm:$0xf]
  %v1202 = vld [vmem:[%s1 + $0x11e0] sm:$0xf]
  %v1203 = vld [vmem:[%s1 + $0x11e4] sm:$0xf]
  %v1204 = vld [vmem:[%s1 + $0x11e8] sm:$0xf]
  %v1205 = vld [vmem:[%s1 + $0x11ec] sm:$0xf]
  %v1206 = vld [vmem:[%s1 + $0x11f0] sm:$0xf]
  %v1207 = vld [vmem:[%s1 + $0x11f4] sm:$0xf]
  %v1208 = vld [vmem:[%s1 + $0x11f8] sm:$0xf]
  %v1209 = vld [vmem:[%s1 + $0x11fc] sm:$0xf]
  %v1210 = vld [vmem:[%s2] sm:$0x1]
  %v1212 = vperm.slane %v1210, 0
  %v1250 = vunpack.c.l.b16 %v22
  %v1251 = vunpack.c.h.b16 %v22
  %v1252 = vunpack.c.l.b16 %v23
  %v1253 = vunpack.c.h.b16 %v23
  %v1254 = vunpack.c.l.b16 %v24
  %v1255 = vunpack.c.h.b16 %v24
  %v1256 = vunpack.c.l.b16 %v25
  %v1257 = vunpack.c.h.b16 %v25
  %v1258 = vunpack.c.l.b16 %v26
  %v1259 = vunpack.c.h.b16 %v26
  %v1260 = vunpack.c.l.b16 %v27
  %v1261 = vunpack.c.h.b16 %v27
  %v1262 = vunpack.c.l.b16 %v28
  %v1263 = vunpack.c.h.b16 %v28
  %v1264 = vunpack.c.l.b16 %v29
  %v1265 = vunpack.c.h.b16 %v29
  %v1266 = vunpack.c.l.b16 %v30
  %v1267 = vunpack.c.h.b16 %v30
  %v1268 = vunpack.c.l.b16 %v31
  %v1269 = vunpack.c.h.b16 %v31
  %v1270 = vunpack.c.l.b16 %v32
  %v1271 = vunpack.c.h.b16 %v32
  %v1272 = vunpack.c.l.b16 %v33
  %v1273 = vunpack.c.h.b16 %v33
  %v1274 = vunpack.c.l.b16 %v34
  %v1275 = vunpack.c.h.b16 %v34
  %v1276 = vunpack.c.l.b16 %v35
  %v1277 = vunpack.c.h.b16 %v35
  %v1278 = vunpack.c.l.b16 %v36
  %v1279 = vunpack.c.h.b16 %v36
  %v1280 = vunpack.c.l.b16 %v37
  %v1281 = vunpack.c.h.b16 %v37
  %v1282 = vunpack.c.l.b16 %v38
  %v1283 = vunpack.c.h.b16 %v38
  %v1284 = vunpack.c.l.b16 %v39
  %v1285 = vunpack.c.h.b16 %v39
  %v1286 = vunpack.c.l.b16 %v40
  %v1287 = vunpack.c.h.b16 %v40
  %v1288 = vunpack.c.l.b16 %v41
  %v1289 = vunpack.c.h.b16 %v41
  %v1290 = vunpack.c.l.b16 %v42
  %v1291 = vunpack.c.h.b16 %v42
  %v1292 = vunpack.c.l.b16 %v43
  %v1293 = vunpack.c.h.b16 %v43
  %v1294 = vunpack.c.l.b16 %v44
  %v1295 = vunpack.c.h.b16 %v44
  %v1296 = vunpack.c.l.b16 %v45
  %v1297 = vunpack.c.h.b16 %v45
  %v1298 = vunpack.c.l.b16 %v46
  %v1299 = vunpack.c.h.b16 %v46
  %v1300 = vunpack.c.l.b16 %v47
  %v1301 = vunpack.c.h.b16 %v47
  %v1302 = vunpack.c.l.b16 %v48
  %v1303 = vunpack.c.h.b16 %v48
  %v1304 = vunpack.c.l.b16 %v49
  %v1305 = vunpack.c.h.b16 %v49
  %v1306 = vunpack.c.l.b16 %v50
  %v1307 = vunpack.c.h.b16 %v50
  %v1308 = vunpack.c.l.b16 %v51
  %v1309 = vunpack.c.h.b16 %v51
  %v1310 = vunpack.c.l.b16 %v52
  %v1311 = vunpack.c.h.b16 %v52
  %v1312 = vunpack.c.l.b16 %v53
  %v1313 = vunpack.c.h.b16 %v53
  %v1314 = vunpack.c.l.b16 %v54
  %v1315 = vunpack.c.h.b16 %v54
  %v1316 = vunpack.c.l.b16 %v55
  %v1317 = vunpack.c.h.b16 %v55
  %v1318 = vunpack.c.l.b16 %v56
  %v1319 = vunpack.c.h.b16 %v56
  %v1320 = vunpack.c.l.b16 %v57
  %v1321 = vunpack.c.h.b16 %v57
  %v1322 = vpack.c.b16 %v1250, %v1250
  %v1323 = vpack.c.b16 %v1251, %v1251
  %v1324 = vpack.c.b16 %v1252, %v1252
  %v1325 = vpack.c.b16 %v1253, %v1253
  %v1326 = vpack.c.b16 %v1254, %v1254
  %v1327 = vpack.c.b16 %v1255, %v1255
  %v1328 = vpack.c.b16 %v1256, %v1256
  %v1329 = vpack.c.b16 %v1257, %v1257
  %v1330 = vpack.c.b16 %v1258, %v1258
  %v1331 = vpack.c.b16 %v1259, %v1259
  %v1332 = vpack.c.b16 %v1260, %v1260
  %v1333 = vpack.c.b16 %v1261, %v1261
  %v1334 = vpack.c.b16 %v1262, %v1262
  %v1335 = vpack.c.b16 %v1263, %v1263
  %v1336 = vpack.c.b16 %v1264, %v1264
  %v1337 = vpack.c.b16 %v1265, %v1265
  %v1338 = vpack.c.b16 %v1266, %v1266
  %v1339 = vpack.c.b16 %v1267, %v1267
  %v1340 = vpack.c.b16 %v1268, %v1268
  %v1341 = vpack.c.b16 %v1269, %v1269
  %v1342 = vpack.c.b16 %v1270, %v1270
  %v1343 = vpack.c.b16 %v1271, %v1271
  %v1344 = vpack.c.b16 %v1272, %v1272
  %v1345 = vpack.c.b16 %v1273, %v1273
  %v1346 = vpack.c.b16 %v1274, %v1274
  %v1347 = vpack.c.b16 %v1275, %v1275
  %v1348 = vpack.c.b16 %v1276, %v1276
  %v1349 = vpack.c.b16 %v1277, %v1277
  %v1350 = vpack.c.b16 %v1278, %v1278
  %v1351 = vpack.c.b16 %v1279, %v1279
  %v1352 = vpack.c.b16 %v1280, %v1280
  %v1353 = vpack.c.b16 %v1281, %v1281
  %v1354 = vpack.c.b16 %v1282, %v1282
  %v1355 = vpack.c.b16 %v1283, %v1283
  %v1356 = vpack.c.b16 %v1284, %v1284
  %v1357 = vpack.c.b16 %v1285, %v1285
  %v1358 = vpack.c.b16 %v1286, %v1286
  %v1359 = vpack.c.b16 %v1287, %v1287
  %v1360 = vpack.c.b16 %v1288, %v1288
  %v1361 = vpack.c.b16 %v1289, %v1289
  %v1362 = vpack.c.b16 %v1290, %v1290
  %v1363 = vpack.c.b16 %v1291, %v1291
  %v1364 = vpack.c.b16 %v1292, %v1292
  %v1365 = vpack.c.b16 %v1293, %v1293
  %v1366 = vpack.c.b16 %v1294, %v1294
  %v1367 = vpack.c.b16 %v1295, %v1295
  %v1368 = vpack.c.b16 %v1296, %v1296
  %v1369 = vpack.c.b16 %v1297, %v1297
  %v1370 = vpack.c.b16 %v1298, %v1298
  %v1371 = vpack.c.b16 %v1299, %v1299
  %v1372 = vpack.c.b16 %v1300, %v1300
  %v1373 = vpack.c.b16 %v1301, %v1301
  %v1374 = vpack.c.b16 %v1302, %v1302
  %v1375 = vpack.c.b16 %v1303, %v1303
  %v1376 = vpack.c.b16 %v1304, %v1304
  %v1377 = vpack.c.b16 %v1305, %v1305
  %v1378 = vpack.c.b16 %v1306, %v1306
  %v1379 = vpack.c.b16 %v1307, %v1307
  %v1380 = vpack.c.b16 %v1308, %v1308
  %v1381 = vpack.c.b16 %v1309, %v1309
  %v1382 = vpack.c.b16 %v1310, %v1310
  %v1383 = vpack.c.b16 %v1311, %v1311
  %v1384 = vpack.c.b16 %v1312, %v1312
  %v1385 = vpack.c.b16 %v1313, %v1313
  %v1386 = vpack.c.b16 %v1314, %v1314
  %v1387 = vpack.c.b16 %v1315, %v1315
  %v1388 = vpack.c.b16 %v1316, %v1316
  %v1389 = vpack.c.b16 %v1317, %v1317
  %v1390 = vpack.c.b16 %v1318, %v1318
  %v1391 = vpack.c.b16 %v1319, %v1319
  %v1392 = vpack.c.b16 %v1320, %v1320
  %v1393 = vpack.c.b16 %v1321, %v1321
  %v2618 = vunpack.c.l.b16 %v58
  %v2619 = vunpack.c.l.b16 %v59
  %v2620 = vunpack.c.l.b16 %v60
  %v2621 = vunpack.c.l.b16 %v61
  %v2622 = vunpack.c.l.b16 %v62
  %v2623 = vunpack.c.l.b16 %v63
  %v2624 = vunpack.c.l.b16 %v64
  %v2625 = vunpack.c.l.b16 %v65
  %v2626 = vunpack.c.l.b16 %v66
  %v2627 = vunpack.c.l.b16 %v67
  %v2628 = vunpack.c.l.b16 %v68
  %v2629 = vunpack.c.l.b16 %v69
  %v2630 = vunpack.c.l.b16 %v70
  %v2631 = vunpack.c.l.b16 %v71
  %v2632 = vunpack.c.l.b16 %v72
  %v2633 = vunpack.c.l.b16 %v73
  %v2634 = vunpack.c.l.b16 %v74
  %v2635 = vunpack.c.l.b16 %v75
  %v2636 = vunpack.c.l.b16 %v76
  %v2637 = vunpack.c.l.b16 %v77
  %v2638 = vunpack.c.l.b16 %v78
  %v2639 = vunpack.c.l.b16 %v79
  %v2640 = vunpack.c.l.b16 %v80
  %v2641 = vunpack.c.l.b16 %v81
  %v2642 = vunpack.c.l.b16 %v82
  %v2643 = vunpack.c.l.b16 %v83
  %v2644 = vunpack.c.l.b16 %v84
  %v2645 = vunpack.c.l.b16 %v85
  %v2646 = vunpack.c.l.b16 %v86
  %v2647 = vunpack.c.l.b16 %v87
  %v2648 = vunpack.c.l.b16 %v88
  %v2649 = vunpack.c.l.b16 %v89
  %v2650 = vunpack.c.l.b16 %v90
  %v2651 = vunpack.c.l.b16 %v91
  %v2652 = vunpack.c.l.b16 %v92
  %v2653 = vunpack.c.l.b16 %v93
  %v2654 = vunpack.c.l.b16 %v94
  %v2655 = vunpack.c.l.b16 %v95
  %v2656 = vunpack.c.l.b16 %v96
  %v2657 = vunpack.c.l.b16 %v97
  %v2658 = vunpack.c.l.b16 %v98
  %v2659 = vunpack.c.l.b16 %v99
  %v2660 = vunpack.c.l.b16 %v100
  %v2661 = vunpack.c.l.b16 %v101
  %v2662 = vunpack.c.l.b16 %v102
  %v2663 = vunpack.c.l.b16 %v103
  %v2664 = vunpack.c.l.b16 %v104
  %v2665 = vunpack.c.l.b16 %v105
  %v2666 = vunpack.c.l.b16 %v106
  %v2667 = vunpack.c.l.b16 %v107
  %v2668 = vunpack.c.l.b16 %v108
  %v2669 = vunpack.c.l.b16 %v109
  %v2670 = vunpack.c.l.b16 %v110
  %v2671 = vunpack.c.l.b16 %v111
  %v2672 = vunpack.c.l.b16 %v112
  %v2673 = vunpack.c.l.b16 %v113
  %v2674 = vunpack.c.l.b16 %v114
  %v2675 = vunpack.c.l.b16 %v115
  %v2676 = vunpack.c.l.b16 %v116
  %v2677 = vunpack.c.l.b16 %v117
  %v2678 = vunpack.c.l.b16 %v118
  %v2679 = vunpack.c.l.b16 %v119
  %v2680 = vunpack.c.l.b16 %v120
  %v2681 = vunpack.c.l.b16 %v121
  %v2682 = vunpack.c.l.b16 %v122
  %v2683 = vunpack.c.l.b16 %v123
  %v2684 = vunpack.c.l.b16 %v124
  %v2685 = vunpack.c.l.b16 %v125
  %v2686 = vunpack.c.l.b16 %v126
  %v2687 = vunpack.c.l.b16 %v127
  %v2688 = vunpack.c.l.b16 %v128
  %v2689 = vunpack.c.l.b16 %v129
  %v2690 = vunpack.c.l.b16 %v130
  %v2691 = vunpack.c.l.b16 %v131
  %v2692 = vunpack.c.l.b16 %v132
  %v2693 = vunpack.c.l.b16 %v133
  %v2694 = vunpack.c.l.b16 %v134
  %v2695 = vunpack.c.l.b16 %v135
  %v2696 = vunpack.c.l.b16 %v136
  %v2697 = vunpack.c.l.b16 %v137
  %v2698 = vunpack.c.l.b16 %v138
  %v2699 = vunpack.c.l.b16 %v139
  %v2700 = vunpack.c.l.b16 %v140
  %v2701 = vunpack.c.l.b16 %v141
  %v2702 = vunpack.c.l.b16 %v142
  %v2703 = vunpack.c.l.b16 %v143
  %v2704 = vunpack.c.l.b16 %v144
  %v2705 = vunpack.c.l.b16 %v145
  %v2706 = vunpack.c.l.b16 %v146
  %v2707 = vunpack.c.l.b16 %v147
  %v2708 = vunpack.c.l.b16 %v148
  %v2709 = vunpack.c.l.b16 %v149
  %v2710 = vunpack.c.l.b16 %v150
  %v2711 = vunpack.c.l.b16 %v151
  %v2712 = vunpack.c.l.b16 %v152
  %v2713 = vunpack.c.l.b16 %v153
  %v2714 = vunpack.c.l.b16 %v154
  %v2715 = vunpack.c.l.b16 %v155
  %v2716 = vunpack.c.l.b16 %v156
  %v2717 = vunpack.c.l.b16 %v157
  %v2718 = vunpack.c.l.b16 %v158
  %v2719 = vunpack.c.l.b16 %v159
  %v2720 = vunpack.c.l.b16 %v160
  %v2721 = vunpack.c.l.b16 %v161
  %v2722 = vunpack.c.l.b16 %v162
  %v2723 = vunpack.c.l.b16 %v163
  %v2724 = vunpack.c.l.b16 %v164
  %v2725 = vunpack.c.l.b16 %v165
  %v2726 = vunpack.c.l.b16 %v166
  %v2727 = vunpack.c.l.b16 %v167
  %v2728 = vunpack.c.l.b16 %v168
  %v2729 = vunpack.c.l.b16 %v169
  %v2730 = vunpack.c.l.b16 %v170
  %v2731 = vunpack.c.l.b16 %v171
  %v2732 = vunpack.c.l.b16 %v172
  %v2733 = vunpack.c.l.b16 %v173
  %v2734 = vunpack.c.l.b16 %v174
  %v2735 = vunpack.c.l.b16 %v175
  %v2736 = vunpack.c.l.b16 %v176
  %v2737 = vunpack.c.l.b16 %v177
  %v2738 = vunpack.c.l.b16 %v178
  %v2739 = vunpack.c.l.b16 %v179
  %v2740 = vunpack.c.l.b16 %v180
  %v2741 = vunpack.c.l.b16 %v181
  %v2742 = vunpack.c.l.b16 %v182
  %v2743 = vunpack.c.l.b16 %v183
  %v2744 = vunpack.c.l.b16 %v184
  %v2745 = vunpack.c.l.b16 %v185
  %v2746 = vunpack.c.l.b16 %v186
  %v2747 = vunpack.c.l.b16 %v187
  %v2748 = vunpack.c.l.b16 %v188
  %v2749 = vunpack.c.l.b16 %v189
  %v2750 = vunpack.c.l.b16 %v190
  %v2751 = vunpack.c.l.b16 %v191
  %v2752 = vunpack.c.l.b16 %v192
  %v2753 = vunpack.c.l.b16 %v193
  %v2754 = vunpack.c.l.b16 %v194
  %v2755 = vunpack.c.l.b16 %v195
  %v2756 = vunpack.c.l.b16 %v196
  %v2757 = vunpack.c.l.b16 %v197
  %v2758 = vunpack.c.l.b16 %v198
  %v2759 = vunpack.c.l.b16 %v199
  %v2760 = vunpack.c.l.b16 %v200
  %v2761 = vunpack.c.l.b16 %v201
  %v2762 = vunpack.c.l.b16 %v202
  %v2763 = vunpack.c.l.b16 %v203
  %v2764 = vunpack.c.l.b16 %v204
  %v2765 = vunpack.c.l.b16 %v205
  %v2766 = vunpack.c.l.b16 %v206
  %v2767 = vunpack.c.l.b16 %v207
  %v2768 = vunpack.c.l.b16 %v208
  %v2769 = vunpack.c.l.b16 %v209
  %v2770 = vunpack.c.l.b16 %v210
  %v2771 = vunpack.c.l.b16 %v211
  %v2772 = vunpack.c.l.b16 %v212
  %v2773 = vunpack.c.l.b16 %v213
  %v2774 = vunpack.c.l.b16 %v214
  %v2775 = vunpack.c.l.b16 %v215
  %v2776 = vunpack.c.l.b16 %v216
  %v2777 = vunpack.c.l.b16 %v217
  %v2778 = vunpack.c.l.b16 %v218
  %v2779 = vunpack.c.l.b16 %v219
  %v2780 = vunpack.c.l.b16 %v220
  %v2781 = vunpack.c.l.b16 %v221
  %v2782 = vunpack.c.l.b16 %v222
  %v2783 = vunpack.c.l.b16 %v223
  %v2784 = vunpack.c.l.b16 %v224
  %v2785 = vunpack.c.l.b16 %v225
  %v2786 = vunpack.c.l.b16 %v226
  %v2787 = vunpack.c.l.b16 %v227
  %v2788 = vunpack.c.l.b16 %v228
  %v2789 = vunpack.c.l.b16 %v229
  %v2790 = vunpack.c.l.b16 %v230
  %v2791 = vunpack.c.l.b16 %v231
  %v2792 = vunpack.c.l.b16 %v232
  %v2793 = vunpack.c.l.b16 %v233
  %v2794 = vunpack.c.l.b16 %v234
  %v2795 = vunpack.c.l.b16 %v235
  %v2796 = vunpack.c.l.b16 %v236
  %v2797 = vunpack.c.l.b16 %v237
  %v2798 = vunpack.c.l.b16 %v238
  %v2799 = vunpack.c.l.b16 %v239
  %v2800 = vunpack.c.l.b16 %v240
  %v2801 = vunpack.c.l.b16 %v241
  %v2802 = vunpack.c.l.b16 %v242
  %v2803 = vunpack.c.l.b16 %v243
  %v2804 = vunpack.c.l.b16 %v244
  %v2805 = vunpack.c.l.b16 %v245
  %v2806 = vunpack.c.l.b16 %v246
  %v2807 = vunpack.c.l.b16 %v247
  %v2808 = vunpack.c.l.b16 %v248
  %v2809 = vunpack.c.l.b16 %v249
  %v2810 = vunpack.c.l.b16 %v250
  %v2811 = vunpack.c.l.b16 %v251
  %v2812 = vunpack.c.l.b16 %v252
  %v2813 = vunpack.c.l.b16 %v253
  %v2814 = vunpack.c.l.b16 %v254
  %v2815 = vunpack.c.l.b16 %v255
  %v2816 = vunpack.c.l.b16 %v256
  %v2817 = vunpack.c.l.b16 %v257
  %v2818 = vunpack.c.l.b16 %v258
  %v2819 = vunpack.c.l.b16 %v259
  %v2820 = vunpack.c.l.b16 %v260
  %v2821 = vunpack.c.l.b16 %v261
  %v2822 = vunpack.c.l.b16 %v262
  %v2823 = vunpack.c.l.b16 %v263
  %v2824 = vunpack.c.l.b16 %v264
  %v2825 = vunpack.c.l.b16 %v265
  %v2826 = vunpack.c.l.b16 %v266
  %v2827 = vunpack.c.l.b16 %v267
  %v2828 = vunpack.c.l.b16 %v268
  %v2829 = vunpack.c.l.b16 %v269
  %v2830 = vunpack.c.l.b16 %v270
  %v2831 = vunpack.c.l.b16 %v271
  %v2832 = vunpack.c.l.b16 %v272
  %v2833 = vunpack.c.l.b16 %v273
  %v2834 = vunpack.c.l.b16 %v274
  %v2835 = vunpack.c.l.b16 %v275
  %v2836 = vunpack.c.l.b16 %v276
  %v2837 = vunpack.c.l.b16 %v277
  %v2838 = vunpack.c.l.b16 %v278
  %v2839 = vunpack.c.l.b16 %v279
  %v2840 = vunpack.c.l.b16 %v280
  %v2841 = vunpack.c.l.b16 %v281
  %v2842 = vunpack.c.l.b16 %v282
  %v2843 = vunpack.c.l.b16 %v283
  %v2844 = vunpack.c.l.b16 %v284
  %v2845 = vunpack.c.l.b16 %v285
  %v2846 = vunpack.c.l.b16 %v286
  %v2847 = vunpack.c.l.b16 %v287
  %v2848 = vunpack.c.l.b16 %v288
  %v2849 = vunpack.c.l.b16 %v289
  %v2850 = vunpack.c.l.b16 %v290
  %v2851 = vunpack.c.l.b16 %v291
  %v2852 = vunpack.c.l.b16 %v292
  %v2853 = vunpack.c.l.b16 %v293
  %v2854 = vunpack.c.l.b16 %v294
  %v2855 = vunpack.c.l.b16 %v295
  %v2856 = vunpack.c.l.b16 %v296
  %v2857 = vunpack.c.l.b16 %v297
  %v2858 = vunpack.c.l.b16 %v298
  %v2859 = vunpack.c.l.b16 %v299
  %v2860 = vunpack.c.l.b16 %v300
  %v2861 = vunpack.c.l.b16 %v301
  %v2862 = vunpack.c.l.b16 %v302
  %v2863 = vunpack.c.l.b16 %v303
  %v2864 = vunpack.c.l.b16 %v304
  %v2865 = vunpack.c.l.b16 %v305
  %v2866 = vunpack.c.l.b16 %v306
  %v2867 = vunpack.c.l.b16 %v307
  %v2868 = vunpack.c.l.b16 %v308
  %v2869 = vunpack.c.l.b16 %v309
  %v2870 = vunpack.c.l.b16 %v310
  %v2871 = vunpack.c.l.b16 %v311
  %v2872 = vunpack.c.l.b16 %v312
  %v2873 = vunpack.c.l.b16 %v313
  %v2874 = vunpack.c.l.b16 %v314
  %v2875 = vunpack.c.l.b16 %v315
  %v2876 = vunpack.c.l.b16 %v316
  %v2877 = vunpack.c.l.b16 %v317
  %v2878 = vunpack.c.l.b16 %v318
  %v2879 = vunpack.c.l.b16 %v319
  %v2880 = vunpack.c.l.b16 %v320
  %v2881 = vunpack.c.l.b16 %v321
  %v2882 = vunpack.c.l.b16 %v322
  %v2883 = vunpack.c.l.b16 %v323
  %v2884 = vunpack.c.l.b16 %v324
  %v2885 = vunpack.c.l.b16 %v325
  %v2886 = vunpack.c.l.b16 %v326
  %v2887 = vunpack.c.l.b16 %v327
  %v2888 = vunpack.c.l.b16 %v328
  %v2889 = vunpack.c.l.b16 %v329
  %v2890 = vunpack.c.l.b16 %v330
  %v2891 = vunpack.c.l.b16 %v331
  %v2892 = vunpack.c.l.b16 %v332
  %v2893 = vunpack.c.l.b16 %v333
  %v2894 = vunpack.c.l.b16 %v334
  %v2895 = vunpack.c.l.b16 %v335
  %v2896 = vunpack.c.l.b16 %v336
  %v2897 = vunpack.c.l.b16 %v337
  %v2898 = vunpack.c.l.b16 %v338
  %v2899 = vunpack.c.l.b16 %v339
  %v2900 = vunpack.c.l.b16 %v340
  %v2901 = vunpack.c.l.b16 %v341
  %v2902 = vunpack.c.l.b16 %v342
  %v2903 = vunpack.c.l.b16 %v343
  %v2904 = vunpack.c.l.b16 %v344
  %v2905 = vunpack.c.l.b16 %v345
  %v2906 = vunpack.c.l.b16 %v346
  %v2907 = vunpack.c.l.b16 %v347
  %v2908 = vunpack.c.l.b16 %v348
  %v2909 = vunpack.c.l.b16 %v349
  %v2910 = vunpack.c.l.b16 %v350
  %v2911 = vunpack.c.l.b16 %v351
  %v2912 = vunpack.c.l.b16 %v352
  %v2913 = vunpack.c.l.b16 %v353
  %v2914 = vunpack.c.l.b16 %v354
  %v2915 = vunpack.c.l.b16 %v355
  %v2916 = vunpack.c.l.b16 %v356
  %v2917 = vunpack.c.l.b16 %v357
  %v2918 = vunpack.c.l.b16 %v358
  %v2919 = vunpack.c.l.b16 %v359
  %v2920 = vunpack.c.l.b16 %v360
  %v2921 = vunpack.c.l.b16 %v361
  %v2922 = vunpack.c.l.b16 %v362
  %v2923 = vunpack.c.l.b16 %v363
  %v2924 = vunpack.c.l.b16 %v364
  %v2925 = vunpack.c.l.b16 %v365
  %v2926 = vunpack.c.l.b16 %v366
  %v2927 = vunpack.c.l.b16 %v367
  %v2928 = vunpack.c.l.b16 %v368
  %v2929 = vunpack.c.l.b16 %v369
  %v2930 = vunpack.c.l.b16 %v370
  %v2931 = vunpack.c.l.b16 %v371
  %v2932 = vunpack.c.l.b16 %v372
  %v2933 = vunpack.c.l.b16 %v373
  %v2934 = vunpack.c.l.b16 %v374
  %v2935 = vunpack.c.l.b16 %v375
  %v2936 = vunpack.c.l.b16 %v376
  %v2937 = vunpack.c.l.b16 %v377
  %v2938 = vunpack.c.l.b16 %v378
  %v2939 = vunpack.c.l.b16 %v379
  %v2940 = vunpack.c.l.b16 %v380
  %v2941 = vunpack.c.l.b16 %v381
  %v2942 = vunpack.c.l.b16 %v382
  %v2943 = vunpack.c.l.b16 %v383
  %v2944 = vunpack.c.l.b16 %v384
  %v2945 = vunpack.c.l.b16 %v385
  %v2946 = vunpack.c.l.b16 %v386
  %v2947 = vunpack.c.l.b16 %v387
  %v2948 = vunpack.c.l.b16 %v388
  %v2949 = vunpack.c.l.b16 %v389
  %v2950 = vunpack.c.l.b16 %v390
  %v2951 = vunpack.c.l.b16 %v391
  %v2952 = vunpack.c.l.b16 %v392
  %v2953 = vunpack.c.l.b16 %v393
  %v2954 = vunpack.c.l.b16 %v394
  %v2955 = vunpack.c.l.b16 %v395
  %v2956 = vunpack.c.l.b16 %v396
  %v2957 = vunpack.c.l.b16 %v397
  %v2958 = vunpack.c.l.b16 %v398
  %v2959 = vunpack.c.l.b16 %v399
  %v2960 = vunpack.c.l.b16 %v400
  %v2961 = vunpack.c.l.b16 %v401
  %v2962 = vunpack.c.l.b16 %v402
  %v2963 = vunpack.c.l.b16 %v403
  %v2964 = vunpack.c.l.b16 %v404
  %v2965 = vunpack.c.l.b16 %v405
  %v2966 = vunpack.c.l.b16 %v406
  %v2967 = vunpack.c.l.b16 %v407
  %v2968 = vunpack.c.l.b16 %v408
  %v2969 = vunpack.c.l.b16 %v409
  %v2970 = vunpack.c.l.b16 %v410
  %v2971 = vunpack.c.l.b16 %v411
  %v2972 = vunpack.c.l.b16 %v412
  %v2973 = vunpack.c.l.b16 %v413
  %v2974 = vunpack.c.l.b16 %v414
  %v2975 = vunpack.c.l.b16 %v415
  %v2976 = vunpack.c.l.b16 %v416
  %v2977 = vunpack.c.l.b16 %v417
  %v2978 = vunpack.c.l.b16 %v418
  %v2979 = vunpack.c.l.b16 %v419
  %v2980 = vunpack.c.l.b16 %v420
  %v2981 = vunpack.c.l.b16 %v421
  %v2982 = vunpack.c.l.b16 %v422
  %v2983 = vunpack.c.l.b16 %v423
  %v2984 = vunpack.c.l.b16 %v424
  %v2985 = vunpack.c.l.b16 %v425
  %v2986 = vunpack.c.l.b16 %v426
  %v2987 = vunpack.c.l.b16 %v427
  %v2988 = vunpack.c.l.b16 %v428
  %v2989 = vunpack.c.l.b16 %v429
  %v2990 = vunpack.c.l.b16 %v430
  %v2991 = vunpack.c.l.b16 %v431
  %v2992 = vunpack.c.l.b16 %v432
  %v2993 = vunpack.c.l.b16 %v433
  %v2994 = vunpack.c.l.b16 %v434
  %v2995 = vunpack.c.l.b16 %v435
  %v2996 = vunpack.c.l.b16 %v436
  %v2997 = vunpack.c.l.b16 %v437
  %v2998 = vunpack.c.l.b16 %v438
  %v2999 = vunpack.c.l.b16 %v439
  %v3000 = vunpack.c.l.b16 %v440
  %v3001 = vunpack.c.l.b16 %v441
  %v3002 = vunpack.c.l.b16 %v442
  %v3003 = vunpack.c.l.b16 %v443
  %v3004 = vunpack.c.l.b16 %v444
  %v3005 = vunpack.c.l.b16 %v445
  %v3006 = vunpack.c.l.b16 %v446
  %v3007 = vunpack.c.l.b16 %v447
  %v3008 = vunpack.c.l.b16 %v448
  %v3009 = vunpack.c.l.b16 %v449
  %v3010 = vunpack.c.l.b16 %v450
  %v3011 = vunpack.c.l.b16 %v451
  %v3012 = vunpack.c.l.b16 %v452
  %v3013 = vunpack.c.l.b16 %v453
  %v3014 = vunpack.c.l.b16 %v454
  %v3015 = vunpack.c.l.b16 %v455
  %v3016 = vunpack.c.l.b16 %v456
  %v3017 = vunpack.c.l.b16 %v457
  %v3018 = vunpack.c.l.b16 %v458
  %v3019 = vunpack.c.l.b16 %v459
  %v3020 = vunpack.c.l.b16 %v460
  %v3021 = vunpack.c.l.b16 %v461
  %v3022 = vunpack.c.l.b16 %v462
  %v3023 = vunpack.c.l.b16 %v463
  %v3024 = vunpack.c.l.b16 %v464
  %v3025 = vunpack.c.l.b16 %v465
  %v3026 = vunpack.c.l.b16 %v466
  %v3027 = vunpack.c.l.b16 %v467
  %v3028 = vunpack.c.l.b16 %v468
  %v3029 = vunpack.c.l.b16 %v469
  %v3030 = vunpack.c.l.b16 %v470
  %v3031 = vunpack.c.l.b16 %v471
  %v3032 = vunpack.c.l.b16 %v472
  %v3033 = vunpack.c.l.b16 %v473
  %v3034 = vunpack.c.l.b16 %v474
  %v3035 = vunpack.c.l.b16 %v475
  %v3036 = vunpack.c.l.b16 %v476
  %v3037 = vunpack.c.l.b16 %v477
  %v3038 = vunpack.c.l.b16 %v478
  %v3039 = vunpack.c.l.b16 %v479
  %v3040 = vunpack.c.l.b16 %v480
  %v3041 = vunpack.c.l.b16 %v481
  %v3042 = vunpack.c.l.b16 %v482
  %v3043 = vunpack.c.l.b16 %v483
  %v3044 = vunpack.c.l.b16 %v484
  %v3045 = vunpack.c.l.b16 %v485
  %v3046 = vunpack.c.l.b16 %v486
  %v3047 = vunpack.c.l.b16 %v487
  %v3048 = vunpack.c.l.b16 %v488
  %v3049 = vunpack.c.l.b16 %v489
  %v3050 = vunpack.c.l.b16 %v490
  %v3051 = vunpack.c.l.b16 %v491
  %v3052 = vunpack.c.l.b16 %v492
  %v3053 = vunpack.c.l.b16 %v493
  %v3054 = vunpack.c.l.b16 %v494
  %v3055 = vunpack.c.l.b16 %v495
  %v3056 = vunpack.c.l.b16 %v496
  %v3057 = vunpack.c.l.b16 %v497
  %v3058 = vunpack.c.l.b16 %v498
  %v3059 = vunpack.c.l.b16 %v499
  %v3060 = vunpack.c.l.b16 %v500
  %v3061 = vunpack.c.l.b16 %v501
  %v3062 = vunpack.c.l.b16 %v502
  %v3063 = vunpack.c.l.b16 %v503
  %v3064 = vunpack.c.l.b16 %v504
  %v3065 = vunpack.c.l.b16 %v505
  %v3066 = vunpack.c.l.b16 %v506
  %v3067 = vunpack.c.l.b16 %v507
  %v3068 = vunpack.c.l.b16 %v508
  %v3069 = vunpack.c.l.b16 %v509
  %v3070 = vunpack.c.l.b16 %v510
  %v3071 = vunpack.c.l.b16 %v511
  %v3072 = vunpack.c.l.b16 %v512
  %v3073 = vunpack.c.l.b16 %v513
  %v3074 = vunpack.c.l.b16 %v514
  %v3075 = vunpack.c.l.b16 %v515
  %v3076 = vunpack.c.l.b16 %v516
  %v3077 = vunpack.c.l.b16 %v517
  %v3078 = vunpack.c.l.b16 %v518
  %v3079 = vunpack.c.l.b16 %v519
  %v3080 = vunpack.c.l.b16 %v520
  %v3081 = vunpack.c.l.b16 %v521
  %v3082 = vunpack.c.l.b16 %v522
  %v3083 = vunpack.c.l.b16 %v523
  %v3084 = vunpack.c.l.b16 %v524
  %v3085 = vunpack.c.l.b16 %v525
  %v3086 = vunpack.c.l.b16 %v526
  %v3087 = vunpack.c.l.b16 %v527
  %v3088 = vunpack.c.l.b16 %v528
  %v3089 = vunpack.c.l.b16 %v529
  %v3090 = vunpack.c.l.b16 %v530
  %v3091 = vunpack.c.l.b16 %v531
  %v3092 = vunpack.c.l.b16 %v532
  %v3093 = vunpack.c.l.b16 %v533
  %v3094 = vunpack.c.l.b16 %v534
  %v3095 = vunpack.c.l.b16 %v535
  %v3096 = vunpack.c.l.b16 %v536
  %v3097 = vunpack.c.l.b16 %v537
  %v3098 = vunpack.c.l.b16 %v538
  %v3099 = vunpack.c.l.b16 %v539
  %v3100 = vunpack.c.l.b16 %v540
  %v3101 = vunpack.c.l.b16 %v541
  %v3102 = vunpack.c.l.b16 %v542
  %v3103 = vunpack.c.l.b16 %v543
  %v3104 = vunpack.c.l.b16 %v544
  %v3105 = vunpack.c.l.b16 %v545
  %v3106 = vunpack.c.l.b16 %v546
  %v3107 = vunpack.c.l.b16 %v547
  %v3108 = vunpack.c.l.b16 %v548
  %v3109 = vunpack.c.l.b16 %v549
  %v3110 = vunpack.c.l.b16 %v550
  %v3111 = vunpack.c.l.b16 %v551
  %v3112 = vunpack.c.l.b16 %v552
  %v3113 = vunpack.c.l.b16 %v553
  %v3114 = vunpack.c.l.b16 %v554
  %v3115 = vunpack.c.l.b16 %v555
  %v3116 = vunpack.c.l.b16 %v556
  %v3117 = vunpack.c.l.b16 %v557
  %v3118 = vunpack.c.l.b16 %v558
  %v3119 = vunpack.c.l.b16 %v559
  %v3120 = vunpack.c.l.b16 %v560
  %v3121 = vunpack.c.l.b16 %v561
  %v3122 = vunpack.c.l.b16 %v562
  %v3123 = vunpack.c.l.b16 %v563
  %v3124 = vunpack.c.l.b16 %v564
  %v3125 = vunpack.c.l.b16 %v565
  %v3126 = vunpack.c.l.b16 %v566
  %v3127 = vunpack.c.l.b16 %v567
  %v3128 = vunpack.c.l.b16 %v568
  %v3129 = vunpack.c.l.b16 %v569
  %v3130 = vunpack.c.l.b16 %v570
  %v3131 = vunpack.c.l.b16 %v571
  %v3132 = vunpack.c.l.b16 %v572
  %v3133 = vunpack.c.l.b16 %v573
  %v3134 = vunpack.c.l.b16 %v574
  %v3135 = vunpack.c.l.b16 %v575
  %v3136 = vunpack.c.l.b16 %v576
  %v3137 = vunpack.c.l.b16 %v577
  %v3138 = vunpack.c.l.b16 %v578
  %v3139 = vunpack.c.l.b16 %v579
  %v3140 = vunpack.c.l.b16 %v580
  %v3141 = vunpack.c.l.b16 %v581
  %v3142 = vunpack.c.l.b16 %v582
  %v3143 = vunpack.c.l.b16 %v583
  %v3144 = vunpack.c.l.b16 %v584
  %v3145 = vunpack.c.l.b16 %v585
  %v3146 = vunpack.c.l.b16 %v586
  %v3147 = vunpack.c.l.b16 %v587
  %v3148 = vunpack.c.l.b16 %v588
  %v3149 = vunpack.c.l.b16 %v589
  %v3150 = vunpack.c.l.b16 %v590
  %v3151 = vunpack.c.l.b16 %v591
  %v3152 = vunpack.c.l.b16 %v592
  %v3153 = vunpack.c.l.b16 %v593
  %v3154 = vunpack.c.l.b16 %v594
  %v3155 = vunpack.c.l.b16 %v595
  %v3156 = vunpack.c.l.b16 %v596
  %v3157 = vunpack.c.l.b16 %v597
  %v3158 = vunpack.c.l.b16 %v598
  %v3159 = vunpack.c.l.b16 %v599
  %v3160 = vunpack.c.l.b16 %v600
  %v3161 = vunpack.c.l.b16 %v601
  %v3162 = vunpack.c.l.b16 %v602
  %v3163 = vunpack.c.l.b16 %v603
  %v3164 = vunpack.c.l.b16 %v604
  %v3165 = vunpack.c.l.b16 %v605
  %v3166 = vunpack.c.l.b16 %v606
  %v3167 = vunpack.c.l.b16 %v607
  %v3168 = vunpack.c.l.b16 %v608
  %v3169 = vunpack.c.l.b16 %v609
  %v3170 = vunpack.c.l.b16 %v610
  %v3171 = vunpack.c.l.b16 %v611
  %v3172 = vunpack.c.l.b16 %v612
  %v3173 = vunpack.c.l.b16 %v613
  %v3174 = vunpack.c.l.b16 %v614
  %v3175 = vunpack.c.l.b16 %v615
  %v3176 = vunpack.c.l.b16 %v616
  %v3177 = vunpack.c.l.b16 %v617
  %v3178 = vunpack.c.l.b16 %v618
  %v3179 = vunpack.c.l.b16 %v619
  %v3180 = vunpack.c.l.b16 %v620
  %v3181 = vunpack.c.l.b16 %v621
  %v3182 = vunpack.c.l.b16 %v622
  %v3183 = vunpack.c.l.b16 %v623
  %v3184 = vunpack.c.l.b16 %v624
  %v3185 = vunpack.c.l.b16 %v625
  %v3186 = vunpack.c.l.b16 %v626
  %v3187 = vunpack.c.l.b16 %v627
  %v3188 = vunpack.c.l.b16 %v628
  %v3189 = vunpack.c.l.b16 %v629
  %v3190 = vunpack.c.l.b16 %v630
  %v3191 = vunpack.c.l.b16 %v631
  %v3192 = vunpack.c.l.b16 %v632
  %v3193 = vunpack.c.l.b16 %v633
  %v3194 = vunpack.c.l.b16 %v634
  %v3195 = vunpack.c.l.b16 %v635
  %v3196 = vunpack.c.l.b16 %v636
  %v3197 = vunpack.c.l.b16 %v637
  %v3198 = vunpack.c.l.b16 %v638
  %v3199 = vunpack.c.l.b16 %v639
  %v3200 = vunpack.c.l.b16 %v640
  %v3201 = vunpack.c.l.b16 %v641
  %v3202 = vunpack.c.l.b16 %v642
  %v3203 = vunpack.c.l.b16 %v643
  %v3204 = vunpack.c.l.b16 %v644
  %v3205 = vunpack.c.l.b16 %v645
  %v3206 = vunpack.c.l.b16 %v646
  %v3207 = vunpack.c.l.b16 %v647
  %v3208 = vunpack.c.l.b16 %v648
  %v3209 = vunpack.c.l.b16 %v649
  %v3210 = vunpack.c.l.b16 %v650
  %v3211 = vunpack.c.l.b16 %v651
  %v3212 = vunpack.c.l.b16 %v652
  %v3213 = vunpack.c.l.b16 %v653
  %v3214 = vunpack.c.l.b16 %v654
  %v3215 = vunpack.c.l.b16 %v655
  %v3216 = vunpack.c.l.b16 %v656
  %v3217 = vunpack.c.l.b16 %v657
  %v3218 = vunpack.c.l.b16 %v658
  %v3219 = vunpack.c.l.b16 %v659
  %v3220 = vunpack.c.l.b16 %v660
  %v3221 = vunpack.c.l.b16 %v661
  %v3222 = vunpack.c.l.b16 %v662
  %v3223 = vunpack.c.l.b16 %v663
  %v3224 = vunpack.c.l.b16 %v664
  %v3225 = vunpack.c.l.b16 %v665
  %v3226 = vunpack.c.l.b16 %v666
  %v3227 = vunpack.c.l.b16 %v667
  %v3228 = vunpack.c.l.b16 %v668
  %v3229 = vunpack.c.l.b16 %v669
  %v3230 = vunpack.c.l.b16 %v670
  %v3231 = vunpack.c.l.b16 %v671
  %v3232 = vunpack.c.l.b16 %v672
  %v3233 = vunpack.c.l.b16 %v673
  %v3234 = vunpack.c.l.b16 %v674
  %v3235 = vunpack.c.l.b16 %v675
  %v3236 = vunpack.c.l.b16 %v676
  %v3237 = vunpack.c.l.b16 %v677
  %v3238 = vunpack.c.l.b16 %v678
  %v3239 = vunpack.c.l.b16 %v679
  %v3240 = vunpack.c.l.b16 %v680
  %v3241 = vunpack.c.l.b16 %v681
  %v3242 = vunpack.c.l.b16 %v682
  %v3243 = vunpack.c.l.b16 %v683
  %v3244 = vunpack.c.l.b16 %v684
  %v3245 = vunpack.c.l.b16 %v685
  %v3246 = vunpack.c.l.b16 %v686
  %v3247 = vunpack.c.l.b16 %v687
  %v3248 = vunpack.c.l.b16 %v688
  %v3249 = vunpack.c.l.b16 %v689
  %v3250 = vunpack.c.l.b16 %v690
  %v3251 = vunpack.c.l.b16 %v691
  %v3252 = vunpack.c.l.b16 %v692
  %v3253 = vunpack.c.l.b16 %v693
  %v3254 = vunpack.c.l.b16 %v694
  %v3255 = vunpack.c.l.b16 %v695
  %v3256 = vunpack.c.l.b16 %v696
  %v3257 = vunpack.c.l.b16 %v697
  %v3258 = vunpack.c.l.b16 %v698
  %v3259 = vunpack.c.l.b16 %v699
  %v3260 = vunpack.c.l.b16 %v700
  %v3261 = vunpack.c.l.b16 %v701
  %v3262 = vunpack.c.l.b16 %v702
  %v3263 = vunpack.c.l.b16 %v703
  %v3264 = vunpack.c.l.b16 %v704
  %v3265 = vunpack.c.l.b16 %v705
  %v3266 = vunpack.c.l.b16 %v706
  %v3267 = vunpack.c.l.b16 %v707
  %v3268 = vunpack.c.l.b16 %v708
  %v3269 = vunpack.c.l.b16 %v709
  %v3270 = vunpack.c.l.b16 %v710
  %v3271 = vunpack.c.l.b16 %v711
  %v3272 = vunpack.c.l.b16 %v712
  %v3273 = vunpack.c.l.b16 %v713
  %v3274 = vunpack.c.l.b16 %v714
  %v3275 = vunpack.c.l.b16 %v715
  %v3276 = vunpack.c.l.b16 %v716
  %v3277 = vunpack.c.l.b16 %v717
  %v3278 = vunpack.c.l.b16 %v718
  %v3279 = vunpack.c.l.b16 %v719
  %v3280 = vunpack.c.l.b16 %v720
  %v3281 = vunpack.c.l.b16 %v721
  %v3282 = vunpack.c.l.b16 %v722
  %v3283 = vunpack.c.l.b16 %v723
  %v3284 = vunpack.c.l.b16 %v724
  %v3285 = vunpack.c.l.b16 %v725
  %v3286 = vunpack.c.l.b16 %v726
  %v3287 = vunpack.c.l.b16 %v727
  %v3288 = vunpack.c.l.b16 %v728
  %v3289 = vunpack.c.l.b16 %v729
  %v3290 = vunpack.c.l.b16 %v730
  %v3291 = vunpack.c.l.b16 %v731
  %v3292 = vunpack.c.l.b16 %v732
  %v3293 = vunpack.c.l.b16 %v733
  %v3294 = vunpack.c.l.b16 %v734
  %v3295 = vunpack.c.l.b16 %v735
  %v3296 = vunpack.c.l.b16 %v736
  %v3297 = vunpack.c.l.b16 %v737
  %v3298 = vunpack.c.l.b16 %v738
  %v3299 = vunpack.c.l.b16 %v739
  %v3300 = vunpack.c.l.b16 %v740
  %v3301 = vunpack.c.l.b16 %v741
  %v3302 = vunpack.c.l.b16 %v742
  %v3303 = vunpack.c.l.b16 %v743
  %v3304 = vunpack.c.l.b16 %v744
  %v3305 = vunpack.c.l.b16 %v745
  %v3306 = vunpack.c.l.b16 %v746
  %v3307 = vunpack.c.l.b16 %v747
  %v3308 = vunpack.c.l.b16 %v748
  %v3309 = vunpack.c.l.b16 %v749
  %v3310 = vunpack.c.l.b16 %v750
  %v3311 = vunpack.c.l.b16 %v751
  %v3312 = vunpack.c.l.b16 %v752
  %v3313 = vunpack.c.l.b16 %v753
  %v3314 = vunpack.c.l.b16 %v754
  %v3315 = vunpack.c.l.b16 %v755
  %v3316 = vunpack.c.l.b16 %v756
  %v3317 = vunpack.c.l.b16 %v757
  %v3318 = vunpack.c.l.b16 %v758
  %v3319 = vunpack.c.l.b16 %v759
  %v3320 = vunpack.c.l.b16 %v760
  %v3321 = vunpack.c.l.b16 %v761
  %v3322 = vunpack.c.l.b16 %v762
  %v3323 = vunpack.c.l.b16 %v763
  %v3324 = vunpack.c.l.b16 %v764
  %v3325 = vunpack.c.l.b16 %v765
  %v3326 = vunpack.c.l.b16 %v766
  %v3327 = vunpack.c.l.b16 %v767
  %v3328 = vunpack.c.l.b16 %v768
  %v3329 = vunpack.c.l.b16 %v769
  %v3330 = vunpack.c.l.b16 %v770
  %v3331 = vunpack.c.l.b16 %v771
  %v3332 = vunpack.c.l.b16 %v772
  %v3333 = vunpack.c.l.b16 %v773
  %v3334 = vunpack.c.l.b16 %v774
  %v3335 = vunpack.c.l.b16 %v775
  %v3336 = vunpack.c.l.b16 %v776
  %v3337 = vunpack.c.l.b16 %v777
  %v3338 = vunpack.c.l.b16 %v778
  %v3339 = vunpack.c.l.b16 %v779
  %v3340 = vunpack.c.l.b16 %v780
  %v3341 = vunpack.c.l.b16 %v781
  %v3342 = vunpack.c.l.b16 %v782
  %v3343 = vunpack.c.l.b16 %v783
  %v3344 = vunpack.c.l.b16 %v784
  %v3345 = vunpack.c.l.b16 %v785
  %v3346 = vunpack.c.l.b16 %v786
  %v3347 = vunpack.c.l.b16 %v787
  %v3348 = vunpack.c.l.b16 %v788
  %v3349 = vunpack.c.l.b16 %v789
  %v3350 = vunpack.c.l.b16 %v790
  %v3351 = vunpack.c.l.b16 %v791
  %v3352 = vunpack.c.l.b16 %v792
  %v3353 = vunpack.c.l.b16 %v793
  %v3354 = vunpack.c.l.b16 %v794
  %v3355 = vunpack.c.l.b16 %v795
  %v3356 = vunpack.c.l.b16 %v796
  %v3357 = vunpack.c.l.b16 %v797
  %v3358 = vunpack.c.l.b16 %v798
  %v3359 = vunpack.c.l.b16 %v799
  %v3360 = vunpack.c.l.b16 %v800
  %v3361 = vunpack.c.l.b16 %v801
  %v3362 = vunpack.c.l.b16 %v802
  %v3363 = vunpack.c.l.b16 %v803
  %v3364 = vunpack.c.l.b16 %v804
  %v3365 = vunpack.c.l.b16 %v805
  %v3366 = vunpack.c.l.b16 %v806
  %v3367 = vunpack.c.l.b16 %v807
  %v3368 = vunpack.c.l.b16 %v808
  %v3369 = vunpack.c.l.b16 %v809
  %v3370 = vunpack.c.l.b16 %v810
  %v3371 = vunpack.c.l.b16 %v811
  %v3372 = vunpack.c.l.b16 %v812
  %v3373 = vunpack.c.l.b16 %v813
  %v3374 = vunpack.c.l.b16 %v814
  %v3375 = vunpack.c.l.b16 %v815
  %v3376 = vunpack.c.l.b16 %v816
  %v3377 = vunpack.c.l.b16 %v817
  %v3378 = vunpack.c.l.b16 %v818
  %v3379 = vunpack.c.l.b16 %v819
  %v3380 = vunpack.c.l.b16 %v820
  %v3381 = vunpack.c.l.b16 %v821
  %v3382 = vunpack.c.l.b16 %v822
  %v3383 = vunpack.c.l.b16 %v823
  %v3384 = vunpack.c.l.b16 %v824
  %v3385 = vunpack.c.l.b16 %v825
  %v3386 = vunpack.c.l.b16 %v826
  %v3387 = vunpack.c.l.b16 %v827
  %v3388 = vunpack.c.l.b16 %v828
  %v3389 = vunpack.c.l.b16 %v829
  %v3390 = vunpack.c.l.b16 %v830
  %v3391 = vunpack.c.l.b16 %v831
  %v3392 = vunpack.c.l.b16 %v832
  %v3393 = vunpack.c.l.b16 %v833
  %v3394 = vunpack.c.l.b16 %v834
  %v3395 = vunpack.c.l.b16 %v835
  %v3396 = vunpack.c.l.b16 %v836
  %v3397 = vunpack.c.l.b16 %v837
  %v3398 = vunpack.c.l.b16 %v838
  %v3399 = vunpack.c.l.b16 %v839
  %v3400 = vunpack.c.l.b16 %v840
  %v3401 = vunpack.c.l.b16 %v841
  %v3402 = vunpack.c.l.b16 %v842
  %v3403 = vunpack.c.l.b16 %v843
  %v3404 = vunpack.c.l.b16 %v844
  %v3405 = vunpack.c.l.b16 %v845
  %v3406 = vunpack.c.l.b16 %v846
  %v3407 = vunpack.c.l.b16 %v847
  %v3408 = vunpack.c.l.b16 %v848
  %v3409 = vunpack.c.l.b16 %v849
  %v3410 = vunpack.c.l.b16 %v850
  %v3411 = vunpack.c.l.b16 %v851
  %v3412 = vunpack.c.l.b16 %v852
  %v3413 = vunpack.c.l.b16 %v853
  %v3414 = vunpack.c.l.b16 %v854
  %v3415 = vunpack.c.l.b16 %v855
  %v3416 = vunpack.c.l.b16 %v856
  %v3417 = vunpack.c.l.b16 %v857
  %v3418 = vunpack.c.l.b16 %v858
  %v3419 = vunpack.c.l.b16 %v859
  %v3420 = vunpack.c.l.b16 %v860
  %v3421 = vunpack.c.l.b16 %v861
  %v3422 = vunpack.c.l.b16 %v862
  %v3423 = vunpack.c.l.b16 %v863
  %v3424 = vunpack.c.l.b16 %v864
  %v3425 = vunpack.c.l.b16 %v865
  %v3426 = vunpack.c.l.b16 %v866
  %v3427 = vunpack.c.l.b16 %v867
  %v3428 = vunpack.c.l.b16 %v868
  %v3429 = vunpack.c.l.b16 %v869
  %v3430 = vunpack.c.l.b16 %v870
  %v3431 = vunpack.c.l.b16 %v871
  %v3432 = vunpack.c.l.b16 %v872
  %v3433 = vunpack.c.l.b16 %v873
  %v3434 = vunpack.c.l.b16 %v874
  %v3435 = vunpack.c.l.b16 %v875
  %v3436 = vunpack.c.l.b16 %v876
  %v3437 = vunpack.c.l.b16 %v877
  %v3438 = vunpack.c.l.b16 %v878
  %v3439 = vunpack.c.l.b16 %v879
  %v3440 = vunpack.c.l.b16 %v880
  %v3441 = vunpack.c.l.b16 %v881
  %v3442 = vunpack.c.l.b16 %v882
  %v3443 = vunpack.c.l.b16 %v883
  %v3444 = vunpack.c.l.b16 %v884
  %v3445 = vunpack.c.l.b16 %v885
  %v3446 = vunpack.c.l.b16 %v886
  %v3447 = vunpack.c.l.b16 %v887
  %v3448 = vunpack.c.l.b16 %v888
  %v3449 = vunpack.c.l.b16 %v889
  %v3450 = vunpack.c.l.b16 %v890
  %v3451 = vunpack.c.l.b16 %v891
  %v3452 = vunpack.c.l.b16 %v892
  %v3453 = vunpack.c.l.b16 %v893
  %v3454 = vunpack.c.l.b16 %v894
  %v3455 = vunpack.c.l.b16 %v895
  %v3456 = vunpack.c.l.b16 %v896
  %v3457 = vunpack.c.l.b16 %v897
  %v3458 = vunpack.c.l.b16 %v898
  %v3459 = vunpack.c.l.b16 %v899
  %v3460 = vunpack.c.l.b16 %v900
  %v3461 = vunpack.c.l.b16 %v901
  %v3462 = vunpack.c.l.b16 %v902
  %v3463 = vunpack.c.l.b16 %v903
  %v3464 = vunpack.c.l.b16 %v904
  %v3465 = vunpack.c.l.b16 %v905
  %v3466 = vunpack.c.l.b16 %v906
  %v3467 = vunpack.c.l.b16 %v907
  %v3468 = vunpack.c.l.b16 %v908
  %v3469 = vunpack.c.l.b16 %v909
  %v3470 = vunpack.c.l.b16 %v910
  %v3471 = vunpack.c.l.b16 %v911
  %v3472 = vunpack.c.l.b16 %v912
  %v3473 = vunpack.c.l.b16 %v913
  %v3474 = vunpack.c.l.b16 %v914
  %v3475 = vunpack.c.l.b16 %v915
  %v3476 = vunpack.c.l.b16 %v916
  %v3477 = vunpack.c.l.b16 %v917
  %v3478 = vunpack.c.l.b16 %v918
  %v3479 = vunpack.c.l.b16 %v919
  %v3480 = vunpack.c.l.b16 %v920
  %v3481 = vunpack.c.l.b16 %v921
  %v3482 = vunpack.c.l.b16 %v922
  %v3483 = vunpack.c.l.b16 %v923
  %v3484 = vunpack.c.l.b16 %v924
  %v3485 = vunpack.c.l.b16 %v925
  %v3486 = vunpack.c.l.b16 %v926
  %v3487 = vunpack.c.l.b16 %v927
  %v3488 = vunpack.c.l.b16 %v928
  %v3489 = vunpack.c.l.b16 %v929
  %v3490 = vunpack.c.l.b16 %v930
  %v3491 = vunpack.c.l.b16 %v931
  %v3492 = vunpack.c.l.b16 %v932
  %v3493 = vunpack.c.l.b16 %v933
  %v3494 = vunpack.c.l.b16 %v934
  %v3495 = vunpack.c.l.b16 %v935
  %v3496 = vunpack.c.l.b16 %v936
  %v3497 = vunpack.c.l.b16 %v937
  %v3498 = vunpack.c.l.b16 %v938
  %v3499 = vunpack.c.l.b16 %v939
  %v3500 = vunpack.c.l.b16 %v940
  %v3501 = vunpack.c.l.b16 %v941
  %v3502 = vunpack.c.l.b16 %v942
  %v3503 = vunpack.c.l.b16 %v943
  %v3504 = vunpack.c.l.b16 %v944
  %v3505 = vunpack.c.l.b16 %v945
  %v3506 = vunpack.c.l.b16 %v946
  %v3507 = vunpack.c.l.b16 %v947
  %v3508 = vunpack.c.l.b16 %v948
  %v3509 = vunpack.c.l.b16 %v949
  %v3510 = vunpack.c.l.b16 %v950
  %v3511 = vunpack.c.l.b16 %v951
  %v3512 = vunpack.c.l.b16 %v952
  %v3513 = vunpack.c.l.b16 %v953
  %v3514 = vunpack.c.l.b16 %v954
  %v3515 = vunpack.c.l.b16 %v955
  %v3516 = vunpack.c.l.b16 %v956
  %v3517 = vunpack.c.l.b16 %v957
  %v3518 = vunpack.c.l.b16 %v958
  %v3519 = vunpack.c.l.b16 %v959
  %v3520 = vunpack.c.l.b16 %v960
  %v3521 = vunpack.c.l.b16 %v961
  %v3522 = vunpack.c.l.b16 %v962
  %v3523 = vunpack.c.l.b16 %v963
  %v3524 = vunpack.c.l.b16 %v964
  %v3525 = vunpack.c.l.b16 %v965
  %v3526 = vunpack.c.l.b16 %v966
  %v3527 = vunpack.c.l.b16 %v967
  %v3528 = vunpack.c.l.b16 %v968
  %v3529 = vunpack.c.l.b16 %v969
  %v3530 = vunpack.c.l.b16 %v970
  %v3531 = vunpack.c.l.b16 %v971
  %v3532 = vunpack.c.l.b16 %v972
  %v3533 = vunpack.c.l.b16 %v973
  %v3534 = vunpack.c.l.b16 %v974
  %v3535 = vunpack.c.l.b16 %v975
  %v3536 = vunpack.c.l.b16 %v976
  %v3537 = vunpack.c.l.b16 %v977
  %v3538 = vunpack.c.l.b16 %v978
  %v3539 = vunpack.c.l.b16 %v979
  %v3540 = vunpack.c.l.b16 %v980
  %v3541 = vunpack.c.l.b16 %v981
  %v3542 = vunpack.c.l.b16 %v982
  %v3543 = vunpack.c.l.b16 %v983
  %v3544 = vunpack.c.l.b16 %v984
  %v3545 = vunpack.c.l.b16 %v985
  %v3546 = vunpack.c.l.b16 %v986
  %v3547 = vunpack.c.l.b16 %v987
  %v3548 = vunpack.c.l.b16 %v988
  %v3549 = vunpack.c.l.b16 %v989
  %v3550 = vunpack.c.l.b16 %v990
  %v3551 = vunpack.c.l.b16 %v991
  %v3552 = vunpack.c.l.b16 %v992
  %v3553 = vunpack.c.l.b16 %v993
  %v3554 = vunpack.c.l.b16 %v994
  %v3555 = vunpack.c.l.b16 %v995
  %v3556 = vunpack.c.l.b16 %v996
  %v3557 = vunpack.c.l.b16 %v997
  %v3558 = vunpack.c.l.b16 %v998
  %v3559 = vunpack.c.l.b16 %v999
  %v3560 = vunpack.c.l.b16 %v1000
  %v3561 = vunpack.c.l.b16 %v1001
  %v3562 = vunpack.c.l.b16 %v1002
  %v3563 = vunpack.c.l.b16 %v1003
  %v3564 = vunpack.c.l.b16 %v1004
  %v3565 = vunpack.c.l.b16 %v1005
  %v3566 = vunpack.c.l.b16 %v1006
  %v3567 = vunpack.c.l.b16 %v1007
  %v3568 = vunpack.c.l.b16 %v1008
  %v3569 = vunpack.c.l.b16 %v1009
  %v3570 = vunpack.c.l.b16 %v1010
  %v3571 = vunpack.c.l.b16 %v1011
  %v3572 = vunpack.c.l.b16 %v1012
  %v3573 = vunpack.c.l.b16 %v1013
  %v3574 = vunpack.c.l.b16 %v1014
  %v3575 = vunpack.c.l.b16 %v1015
  %v3576 = vunpack.c.l.b16 %v1016
  %v3577 = vunpack.c.l.b16 %v1017
  %v3578 = vunpack.c.l.b16 %v1018
  %v3579 = vunpack.c.l.b16 %v1019
  %v3580 = vunpack.c.l.b16 %v1020
  %v3581 = vunpack.c.l.b16 %v1021
  %v3582 = vunpack.c.l.b16 %v1022
  %v3583 = vunpack.c.l.b16 %v1023
  %v3584 = vunpack.c.l.b16 %v1024
  %v3585 = vunpack.c.l.b16 %v1025
  %v3586 = vunpack.c.l.b16 %v1026
  %v3587 = vunpack.c.l.b16 %v1027
  %v3588 = vunpack.c.l.b16 %v1028
  %v3589 = vunpack.c.l.b16 %v1029
  %v3590 = vunpack.c.l.b16 %v1030
  %v3591 = vunpack.c.l.b16 %v1031
  %v3592 = vunpack.c.l.b16 %v1032
  %v3593 = vunpack.c.l.b16 %v1033
  %v3594 = vunpack.c.l.b16 %v1034
  %v3595 = vunpack.c.l.b16 %v1035
  %v3596 = vunpack.c.l.b16 %v1036
  %v3597 = vunpack.c.l.b16 %v1037
  %v3598 = vunpack.c.l.b16 %v1038
  %v3599 = vunpack.c.l.b16 %v1039
  %v3600 = vunpack.c.l.b16 %v1040
  %v3601 = vunpack.c.l.b16 %v1041
  %v3602 = vunpack.c.l.b16 %v1042
  %v3603 = vunpack.c.l.b16 %v1043
  %v3604 = vunpack.c.l.b16 %v1044
  %v3605 = vunpack.c.l.b16 %v1045
  %v3606 = vunpack.c.l.b16 %v1046
  %v3607 = vunpack.c.l.b16 %v1047
  %v3608 = vunpack.c.l.b16 %v1048
  %v3609 = vunpack.c.l.b16 %v1049
  %v3610 = vunpack.c.l.b16 %v1050
  %v3611 = vunpack.c.l.b16 %v1051
  %v3612 = vunpack.c.l.b16 %v1052
  %v3613 = vunpack.c.l.b16 %v1053
  %v3614 = vunpack.c.l.b16 %v1054
  %v3615 = vunpack.c.l.b16 %v1055
  %v3616 = vunpack.c.l.b16 %v1056
  %v3617 = vunpack.c.l.b16 %v1057
  %v3618 = vunpack.c.l.b16 %v1058
  %v3619 = vunpack.c.l.b16 %v1059
  %v3620 = vunpack.c.l.b16 %v1060
  %v3621 = vunpack.c.l.b16 %v1061
  %v3622 = vunpack.c.l.b16 %v1062
  %v3623 = vunpack.c.l.b16 %v1063
  %v3624 = vunpack.c.l.b16 %v1064
  %v3625 = vunpack.c.l.b16 %v1065
  %v3626 = vunpack.c.l.b16 %v1066
  %v3627 = vunpack.c.l.b16 %v1067
  %v3628 = vunpack.c.l.b16 %v1068
  %v3629 = vunpack.c.l.b16 %v1069
  %v3630 = vunpack.c.l.b16 %v1070
  %v3631 = vunpack.c.l.b16 %v1071
  %v3632 = vunpack.c.l.b16 %v1072
  %v3633 = vunpack.c.l.b16 %v1073
  %v3634 = vunpack.c.l.b16 %v1074
  %v3635 = vunpack.c.l.b16 %v1075
  %v3636 = vunpack.c.l.b16 %v1076
  %v3637 = vunpack.c.l.b16 %v1077
  %v3638 = vunpack.c.l.b16 %v1078
  %v3639 = vunpack.c.l.b16 %v1079
  %v3640 = vunpack.c.l.b16 %v1080
  %v3641 = vunpack.c.l.b16 %v1081
  %v3642 = vunpack.c.l.b16 %v1082
  %v3643 = vunpack.c.l.b16 %v1083
  %v3644 = vunpack.c.l.b16 %v1084
  %v3645 = vunpack.c.l.b16 %v1085
  %v3646 = vunpack.c.l.b16 %v1086
  %v3647 = vunpack.c.l.b16 %v1087
  %v3648 = vunpack.c.l.b16 %v1088
  %v3649 = vunpack.c.l.b16 %v1089
  %v3650 = vunpack.c.l.b16 %v1090
  %v3651 = vunpack.c.l.b16 %v1091
  %v3652 = vunpack.c.l.b16 %v1092
  %v3653 = vunpack.c.l.b16 %v1093
  %v3654 = vunpack.c.l.b16 %v1094
  %v3655 = vunpack.c.l.b16 %v1095
  %v3656 = vunpack.c.l.b16 %v1096
  %v3657 = vunpack.c.l.b16 %v1097
  %v3658 = vunpack.c.l.b16 %v1098
  %v3659 = vunpack.c.l.b16 %v1099
  %v3660 = vunpack.c.l.b16 %v1100
  %v3661 = vunpack.c.l.b16 %v1101
  %v3662 = vunpack.c.l.b16 %v1102
  %v3663 = vunpack.c.l.b16 %v1103
  %v3664 = vunpack.c.l.b16 %v1104
  %v3665 = vunpack.c.l.b16 %v1105
  %v3666 = vunpack.c.l.b16 %v1106
  %v3667 = vunpack.c.l.b16 %v1107
  %v3668 = vunpack.c.l.b16 %v1108
  %v3669 = vunpack.c.l.b16 %v1109
  %v3670 = vunpack.c.l.b16 %v1110
  %v3671 = vunpack.c.l.b16 %v1111
  %v3672 = vunpack.c.l.b16 %v1112
  %v3673 = vunpack.c.l.b16 %v1113
  %v3674 = vunpack.c.l.b16 %v1114
  %v3675 = vunpack.c.l.b16 %v1115
  %v3676 = vunpack.c.l.b16 %v1116
  %v3677 = vunpack.c.l.b16 %v1117
  %v3678 = vunpack.c.l.b16 %v1118
  %v3679 = vunpack.c.l.b16 %v1119
  %v3680 = vunpack.c.l.b16 %v1120
  %v3681 = vunpack.c.l.b16 %v1121
  %v3682 = vunpack.c.l.b16 %v1122
  %v3683 = vunpack.c.l.b16 %v1123
  %v3684 = vunpack.c.l.b16 %v1124
  %v3685 = vunpack.c.l.b16 %v1125
  %v3686 = vunpack.c.l.b16 %v1126
  %v3687 = vunpack.c.l.b16 %v1127
  %v3688 = vunpack.c.l.b16 %v1128
  %v3689 = vunpack.c.l.b16 %v1129
  %v3690 = vunpack.c.l.b16 %v1130
  %v3691 = vunpack.c.l.b16 %v1131
  %v3692 = vunpack.c.l.b16 %v1132
  %v3693 = vunpack.c.l.b16 %v1133
  %v3694 = vunpack.c.l.b16 %v1134
  %v3695 = vunpack.c.l.b16 %v1135
  %v3696 = vunpack.c.l.b16 %v1136
  %v3697 = vunpack.c.l.b16 %v1137
  %v3698 = vunpack.c.l.b16 %v1138
  %v3699 = vunpack.c.l.b16 %v1139
  %v3700 = vunpack.c.l.b16 %v1140
  %v3701 = vunpack.c.l.b16 %v1141
  %v3702 = vunpack.c.l.b16 %v1142
  %v3703 = vunpack.c.l.b16 %v1143
  %v3704 = vunpack.c.l.b16 %v1144
  %v3705 = vunpack.c.l.b16 %v1145
  %v3706 = vunpack.c.l.b16 %v1146
  %v3707 = vunpack.c.l.b16 %v1147
  %v3708 = vunpack.c.l.b16 %v1148
  %v3709 = vunpack.c.l.b16 %v1149
  %v3710 = vunpack.c.l.b16 %v1150
  %v3711 = vunpack.c.l.b16 %v1151
  %v3712 = vunpack.c.l.b16 %v1152
  %v3713 = vunpack.c.l.b16 %v1153
  %v3714 = vunpack.c.l.b16 %v1154
  %v3715 = vunpack.c.l.b16 %v1155
  %v3716 = vunpack.c.l.b16 %v1156
  %v3717 = vunpack.c.l.b16 %v1157
  %v3718 = vunpack.c.l.b16 %v1158
  %v3719 = vunpack.c.l.b16 %v1159
  %v3720 = vunpack.c.l.b16 %v1160
  %v3721 = vunpack.c.l.b16 %v1161
  %v3722 = vunpack.c.l.b16 %v1162
  %v3723 = vunpack.c.l.b16 %v1163
  %v3724 = vunpack.c.l.b16 %v1164
  %v3725 = vunpack.c.l.b16 %v1165
  %v3726 = vunpack.c.l.b16 %v1166
  %v3727 = vunpack.c.l.b16 %v1167
  %v3728 = vunpack.c.l.b16 %v1168
  %v3729 = vunpack.c.l.b16 %v1169
  %v3730 = vunpack.c.l.b16 %v1170
  %v3731 = vunpack.c.l.b16 %v1171
  %v3732 = vunpack.c.l.b16 %v1172
  %v3733 = vunpack.c.l.b16 %v1173
  %v3734 = vunpack.c.l.b16 %v1174
  %v3735 = vunpack.c.l.b16 %v1175
  %v3736 = vunpack.c.l.b16 %v1176
  %v3737 = vunpack.c.l.b16 %v1177
  %v3738 = vunpack.c.l.b16 %v1178
  %v3739 = vunpack.c.l.b16 %v1179
  %v3740 = vunpack.c.l.b16 %v1180
  %v3741 = vunpack.c.l.b16 %v1181
  %v3742 = vunpack.c.l.b16 %v1182
  %v3743 = vunpack.c.l.b16 %v1183
  %v3744 = vunpack.c.l.b16 %v1184
  %v3745 = vunpack.c.l.b16 %v1185
  %v3746 = vunpack.c.l.b16 %v1186
  %v3747 = vunpack.c.l.b16 %v1187
  %v3748 = vunpack.c.l.b16 %v1188
  %v3749 = vunpack.c.l.b16 %v1189
  %v3750 = vunpack.c.l.b16 %v1190
  %v3751 = vunpack.c.l.b16 %v1191
  %v3752 = vunpack.c.l.b16 %v1192
  %v3753 = vunpack.c.l.b16 %v1193
  %v3754 = vunpack.c.l.b16 %v1194
  %v3755 = vunpack.c.l.b16 %v1195
  %v3756 = vunpack.c.l.b16 %v1196
  %v3757 = vunpack.c.l.b16 %v1197
  %v3758 = vunpack.c.l.b16 %v1198
  %v3759 = vunpack.c.l.b16 %v1199
  %v3760 = vunpack.c.l.b16 %v1200
  %v3761 = vunpack.c.l.b16 %v1201
  %v3762 = vunpack.c.l.b16 %v1202
  %v3763 = vunpack.c.l.b16 %v1203
  %v3764 = vunpack.c.l.b16 %v1204
  %v3765 = vunpack.c.l.b16 %v1205
  %v3766 = vunpack.c.l.b16 %v1206
  %v3767 = vunpack.c.l.b16 %v1207
  %v3768 = vunpack.c.l.b16 %v1208
  %v3769 = vunpack.c.l.b16 %v1209
  %v3770 = vpack.c.b16 %v2619, %v2618
  %v3771 = vpack.c.b16 %v2621, %v2620
  %v3772 = vpack.c.b16 %v2623, %v2622
  %v3773 = vpack.c.b16 %v2625, %v2624
  %v3774 = vpack.c.b16 %v2627, %v2626
  %v3775 = vpack.c.b16 %v2629, %v2628
  %v3776 = vpack.c.b16 %v2631, %v2630
  %v3777 = vpack.c.b16 %v2633, %v2632
  %v3778 = vpack.c.b16 %v2635, %v2634
  %v3779 = vpack.c.b16 %v2637, %v2636
  %v3780 = vpack.c.b16 %v2639, %v2638
  %v3781 = vpack.c.b16 %v2641, %v2640
  %v3782 = vpack.c.b16 %v2643, %v2642
  %v3783 = vpack.c.b16 %v2645, %v2644
  %v3784 = vpack.c.b16 %v2647, %v2646
  %v3785 = vpack.c.b16 %v2649, %v2648
  %v3786 = vpack.c.b16 %v2651, %v2650
  %v3787 = vpack.c.b16 %v2653, %v2652
  %v3788 = vpack.c.b16 %v2655, %v2654
  %v3789 = vpack.c.b16 %v2657, %v2656
  %v3790 = vpack.c.b16 %v2659, %v2658
  %v3791 = vpack.c.b16 %v2661, %v2660
  %v3792 = vpack.c.b16 %v2663, %v2662
  %v3793 = vpack.c.b16 %v2665, %v2664
  %v3794 = vpack.c.b16 %v2667, %v2666
  %v3795 = vpack.c.b16 %v2669, %v2668
  %v3796 = vpack.c.b16 %v2671, %v2670
  %v3797 = vpack.c.b16 %v2673, %v2672
  %v3798 = vpack.c.b16 %v2675, %v2674
  %v3799 = vpack.c.b16 %v2677, %v2676
  %v3800 = vpack.c.b16 %v2679, %v2678
  %v3801 = vpack.c.b16 %v2681, %v2680
  %v3802 = vpack.c.b16 %v2683, %v2682
  %v3803 = vpack.c.b16 %v2685, %v2684
  %v3804 = vpack.c.b16 %v2687, %v2686
  %v3805 = vpack.c.b16 %v2689, %v2688
  %v3806 = vpack.c.b16 %v2691, %v2690
  %v3807 = vpack.c.b16 %v2693, %v2692
  %v3808 = vpack.c.b16 %v2695, %v2694
  %v3809 = vpack.c.b16 %v2697, %v2696
  %v3810 = vpack.c.b16 %v2699, %v2698
  %v3811 = vpack.c.b16 %v2701, %v2700
  %v3812 = vpack.c.b16 %v2703, %v2702
  %v3813 = vpack.c.b16 %v2705, %v2704
  %v3814 = vpack.c.b16 %v2707, %v2706
  %v3815 = vpack.c.b16 %v2709, %v2708
  %v3816 = vpack.c.b16 %v2711, %v2710
  %v3817 = vpack.c.b16 %v2713, %v2712
  %v3818 = vpack.c.b16 %v2715, %v2714
  %v3819 = vpack.c.b16 %v2717, %v2716
  %v3820 = vpack.c.b16 %v2719, %v2718
  %v3821 = vpack.c.b16 %v2721, %v2720
  %v3822 = vpack.c.b16 %v2723, %v2722
  %v3823 = vpack.c.b16 %v2725, %v2724
  %v3824 = vpack.c.b16 %v2727, %v2726
  %v3825 = vpack.c.b16 %v2729, %v2728
  %v3826 = vpack.c.b16 %v2731, %v2730
  %v3827 = vpack.c.b16 %v2733, %v2732
  %v3828 = vpack.c.b16 %v2735, %v2734
  %v3829 = vpack.c.b16 %v2737, %v2736
  %v3830 = vpack.c.b16 %v2739, %v2738
  %v3831 = vpack.c.b16 %v2741, %v2740
  %v3832 = vpack.c.b16 %v2743, %v2742
  %v3833 = vpack.c.b16 %v2745, %v2744
  %v3834 = vpack.c.b16 %v2747, %v2746
  %v3835 = vpack.c.b16 %v2749, %v2748
  %v3836 = vpack.c.b16 %v2751, %v2750
  %v3837 = vpack.c.b16 %v2753, %v2752
  %v3838 = vpack.c.b16 %v2755, %v2754
  %v3839 = vpack.c.b16 %v2757, %v2756
  %v3840 = vpack.c.b16 %v2759, %v2758
  %v3841 = vpack.c.b16 %v2761, %v2760
  %v3842 = vpack.c.b16 %v2763, %v2762
  %v3843 = vpack.c.b16 %v2765, %v2764
  %v3844 = vpack.c.b16 %v2767, %v2766
  %v3845 = vpack.c.b16 %v2769, %v2768
  %v3846 = vpack.c.b16 %v2771, %v2770
  %v3847 = vpack.c.b16 %v2773, %v2772
  %v3848 = vpack.c.b16 %v2775, %v2774
  %v3849 = vpack.c.b16 %v2777, %v2776
  %v3850 = vpack.c.b16 %v2779, %v2778
  %v3851 = vpack.c.b16 %v2781, %v2780
  %v3852 = vpack.c.b16 %v2783, %v2782
  %v3853 = vpack.c.b16 %v2785, %v2784
  %v3854 = vpack.c.b16 %v2787, %v2786
  %v3855 = vpack.c.b16 %v2789, %v2788
  %v3856 = vpack.c.b16 %v2791, %v2790
  %v3857 = vpack.c.b16 %v2793, %v2792
  %v3858 = vpack.c.b16 %v2795, %v2794
  %v3859 = vpack.c.b16 %v2797, %v2796
  %v3860 = vpack.c.b16 %v2799, %v2798
  %v3861 = vpack.c.b16 %v2801, %v2800
  %v3862 = vpack.c.b16 %v2803, %v2802
  %v3863 = vpack.c.b16 %v2805, %v2804
  %v3864 = vpack.c.b16 %v2807, %v2806
  %v3865 = vpack.c.b16 %v2809, %v2808
  %v3866 = vpack.c.b16 %v2811, %v2810
  %v3867 = vpack.c.b16 %v2813, %v2812
  %v3868 = vpack.c.b16 %v2815, %v2814
  %v3869 = vpack.c.b16 %v2817, %v2816
  %v3870 = vpack.c.b16 %v2819, %v2818
  %v3871 = vpack.c.b16 %v2821, %v2820
  %v3872 = vpack.c.b16 %v2823, %v2822
  %v3873 = vpack.c.b16 %v2825, %v2824
  %v3874 = vpack.c.b16 %v2827, %v2826
  %v3875 = vpack.c.b16 %v2829, %v2828
  %v3876 = vpack.c.b16 %v2831, %v2830
  %v3877 = vpack.c.b16 %v2833, %v2832
  %v3878 = vpack.c.b16 %v2835, %v2834
  %v3879 = vpack.c.b16 %v2837, %v2836
  %v3880 = vpack.c.b16 %v2839, %v2838
  %v3881 = vpack.c.b16 %v2841, %v2840
  %v3882 = vpack.c.b16 %v2843, %v2842
  %v3883 = vpack.c.b16 %v2845, %v2844
  %v3884 = vpack.c.b16 %v2847, %v2846
  %v3885 = vpack.c.b16 %v2849, %v2848
  %v3886 = vpack.c.b16 %v2851, %v2850
  %v3887 = vpack.c.b16 %v2853, %v2852
  %v3888 = vpack.c.b16 %v2855, %v2854
  %v3889 = vpack.c.b16 %v2857, %v2856
  %v3890 = vpack.c.b16 %v2859, %v2858
  %v3891 = vpack.c.b16 %v2861, %v2860
  %v3892 = vpack.c.b16 %v2863, %v2862
  %v3893 = vpack.c.b16 %v2865, %v2864
  %v3894 = vpack.c.b16 %v2867, %v2866
  %v3895 = vpack.c.b16 %v2869, %v2868
  %v3896 = vpack.c.b16 %v2871, %v2870
  %v3897 = vpack.c.b16 %v2873, %v2872
  %v3898 = vpack.c.b16 %v2875, %v2874
  %v3899 = vpack.c.b16 %v2877, %v2876
  %v3900 = vpack.c.b16 %v2879, %v2878
  %v3901 = vpack.c.b16 %v2881, %v2880
  %v3902 = vpack.c.b16 %v2883, %v2882
  %v3903 = vpack.c.b16 %v2885, %v2884
  %v3904 = vpack.c.b16 %v2887, %v2886
  %v3905 = vpack.c.b16 %v2889, %v2888
  %v3906 = vpack.c.b16 %v2891, %v2890
  %v3907 = vpack.c.b16 %v2893, %v2892
  %v3908 = vpack.c.b16 %v2895, %v2894
  %v3909 = vpack.c.b16 %v2897, %v2896
  %v3910 = vpack.c.b16 %v2899, %v2898
  %v3911 = vpack.c.b16 %v2901, %v2900
  %v3912 = vpack.c.b16 %v2903, %v2902
  %v3913 = vpack.c.b16 %v2905, %v2904
  %v3914 = vpack.c.b16 %v2907, %v2906
  %v3915 = vpack.c.b16 %v2909, %v2908
  %v3916 = vpack.c.b16 %v2911, %v2910
  %v3917 = vpack.c.b16 %v2913, %v2912
  %v3918 = vpack.c.b16 %v2915, %v2914
  %v3919 = vpack.c.b16 %v2917, %v2916
  %v3920 = vpack.c.b16 %v2919, %v2918
  %v3921 = vpack.c.b16 %v2921, %v2920
  %v3922 = vpack.c.b16 %v2923, %v2922
  %v3923 = vpack.c.b16 %v2925, %v2924
  %v3924 = vpack.c.b16 %v2927, %v2926
  %v3925 = vpack.c.b16 %v2929, %v2928
  %v3926 = vpack.c.b16 %v2931, %v2930
  %v3927 = vpack.c.b16 %v2933, %v2932
  %v3928 = vpack.c.b16 %v2935, %v2934
  %v3929 = vpack.c.b16 %v2937, %v2936
  %v3930 = vpack.c.b16 %v2939, %v2938
  %v3931 = vpack.c.b16 %v2941, %v2940
  %v3932 = vpack.c.b16 %v2943, %v2942
  %v3933 = vpack.c.b16 %v2945, %v2944
  %v3934 = vpack.c.b16 %v2947, %v2946
  %v3935 = vpack.c.b16 %v2949, %v2948
  %v3936 = vpack.c.b16 %v2951, %v2950
  %v3937 = vpack.c.b16 %v2953, %v2952
  %v3938 = vpack.c.b16 %v2955, %v2954
  %v3939 = vpack.c.b16 %v2957, %v2956
  %v3940 = vpack.c.b16 %v2959, %v2958
  %v3941 = vpack.c.b16 %v2961, %v2960
  %v3942 = vpack.c.b16 %v2963, %v2962
  %v3943 = vpack.c.b16 %v2965, %v2964
  %v3944 = vpack.c.b16 %v2967, %v2966
  %v3945 = vpack.c.b16 %v2969, %v2968
  %v3946 = vpack.c.b16 %v2971, %v2970
  %v3947 = vpack.c.b16 %v2973, %v2972
  %v3948 = vpack.c.b16 %v2975, %v2974
  %v3949 = vpack.c.b16 %v2977, %v2976
  %v3950 = vpack.c.b16 %v2979, %v2978
  %v3951 = vpack.c.b16 %v2981, %v2980
  %v3952 = vpack.c.b16 %v2983, %v2982
  %v3953 = vpack.c.b16 %v2985, %v2984
  %v3954 = vpack.c.b16 %v2987, %v2986
  %v3955 = vpack.c.b16 %v2989, %v2988
  %v3956 = vpack.c.b16 %v2991, %v2990
  %v3957 = vpack.c.b16 %v2993, %v2992
  %v3958 = vpack.c.b16 %v2995, %v2994
  %v3959 = vpack.c.b16 %v2997, %v2996
  %v3960 = vpack.c.b16 %v2999, %v2998
  %v3961 = vpack.c.b16 %v3001, %v3000
  %v3962 = vpack.c.b16 %v3003, %v3002
  %v3963 = vpack.c.b16 %v3005, %v3004
  %v3964 = vpack.c.b16 %v3007, %v3006
  %v3965 = vpack.c.b16 %v3009, %v3008
  %v3966 = vpack.c.b16 %v3011, %v3010
  %v3967 = vpack.c.b16 %v3013, %v3012
  %v3968 = vpack.c.b16 %v3015, %v3014
  %v3969 = vpack.c.b16 %v3017, %v3016
  %v3970 = vpack.c.b16 %v3019, %v3018
  %v3971 = vpack.c.b16 %v3021, %v3020
  %v3972 = vpack.c.b16 %v3023, %v3022
  %v3973 = vpack.c.b16 %v3025, %v3024
  %v3974 = vpack.c.b16 %v3027, %v3026
  %v3975 = vpack.c.b16 %v3029, %v3028
  %v3976 = vpack.c.b16 %v3031, %v3030
  %v3977 = vpack.c.b16 %v3033, %v3032
  %v3978 = vpack.c.b16 %v3035, %v3034
  %v3979 = vpack.c.b16 %v3037, %v3036
  %v3980 = vpack.c.b16 %v3039, %v3038
  %v3981 = vpack.c.b16 %v3041, %v3040
  %v3982 = vpack.c.b16 %v3043, %v3042
  %v3983 = vpack.c.b16 %v3045, %v3044
  %v3984 = vpack.c.b16 %v3047, %v3046
  %v3985 = vpack.c.b16 %v3049, %v3048
  %v3986 = vpack.c.b16 %v3051, %v3050
  %v3987 = vpack.c.b16 %v3053, %v3052
  %v3988 = vpack.c.b16 %v3055, %v3054
  %v3989 = vpack.c.b16 %v3057, %v3056
  %v3990 = vpack.c.b16 %v3059, %v3058
  %v3991 = vpack.c.b16 %v3061, %v3060
  %v3992 = vpack.c.b16 %v3063, %v3062
  %v3993 = vpack.c.b16 %v3065, %v3064
  %v3994 = vpack.c.b16 %v3067, %v3066
  %v3995 = vpack.c.b16 %v3069, %v3068
  %v3996 = vpack.c.b16 %v3071, %v3070
  %v3997 = vpack.c.b16 %v3073, %v3072
  %v3998 = vpack.c.b16 %v3075, %v3074
  %v3999 = vpack.c.b16 %v3077, %v3076
  %v4000 = vpack.c.b16 %v3079, %v3078
  %v4001 = vpack.c.b16 %v3081, %v3080
  %v4002 = vpack.c.b16 %v3083, %v3082
  %v4003 = vpack.c.b16 %v3085, %v3084
  %v4004 = vpack.c.b16 %v3087, %v3086
  %v4005 = vpack.c.b16 %v3089, %v3088
  %v4006 = vpack.c.b16 %v3091, %v3090
  %v4007 = vpack.c.b16 %v3093, %v3092
  %v4008 = vpack.c.b16 %v3095, %v3094
  %v4009 = vpack.c.b16 %v3097, %v3096
  %v4010 = vpack.c.b16 %v3099, %v3098
  %v4011 = vpack.c.b16 %v3101, %v3100
  %v4012 = vpack.c.b16 %v3103, %v3102
  %v4013 = vpack.c.b16 %v3105, %v3104
  %v4014 = vpack.c.b16 %v3107, %v3106
  %v4015 = vpack.c.b16 %v3109, %v3108
  %v4016 = vpack.c.b16 %v3111, %v3110
  %v4017 = vpack.c.b16 %v3113, %v3112
  %v4018 = vpack.c.b16 %v3115, %v3114
  %v4019 = vpack.c.b16 %v3117, %v3116
  %v4020 = vpack.c.b16 %v3119, %v3118
  %v4021 = vpack.c.b16 %v3121, %v3120
  %v4022 = vpack.c.b16 %v3123, %v3122
  %v4023 = vpack.c.b16 %v3125, %v3124
  %v4024 = vpack.c.b16 %v3127, %v3126
  %v4025 = vpack.c.b16 %v3129, %v3128
  %v4026 = vpack.c.b16 %v3131, %v3130
  %v4027 = vpack.c.b16 %v3133, %v3132
  %v4028 = vpack.c.b16 %v3135, %v3134
  %v4029 = vpack.c.b16 %v3137, %v3136
  %v4030 = vpack.c.b16 %v3139, %v3138
  %v4031 = vpack.c.b16 %v3141, %v3140
  %v4032 = vpack.c.b16 %v3143, %v3142
  %v4033 = vpack.c.b16 %v3145, %v3144
  %v4034 = vpack.c.b16 %v3147, %v3146
  %v4035 = vpack.c.b16 %v3149, %v3148
  %v4036 = vpack.c.b16 %v3151, %v3150
  %v4037 = vpack.c.b16 %v3153, %v3152
  %v4038 = vpack.c.b16 %v3155, %v3154
  %v4039 = vpack.c.b16 %v3157, %v3156
  %v4040 = vpack.c.b16 %v3159, %v3158
  %v4041 = vpack.c.b16 %v3161, %v3160
  %v4042 = vpack.c.b16 %v3163, %v3162
  %v4043 = vpack.c.b16 %v3165, %v3164
  %v4044 = vpack.c.b16 %v3167, %v3166
  %v4045 = vpack.c.b16 %v3169, %v3168
  %v4046 = vpack.c.b16 %v3171, %v3170
  %v4047 = vpack.c.b16 %v3173, %v3172
  %v4048 = vpack.c.b16 %v3175, %v3174
  %v4049 = vpack.c.b16 %v3177, %v3176
  %v4050 = vpack.c.b16 %v3179, %v3178
  %v4051 = vpack.c.b16 %v3181, %v3180
  %v4052 = vpack.c.b16 %v3183, %v3182
  %v4053 = vpack.c.b16 %v3185, %v3184
  %v4054 = vpack.c.b16 %v3187, %v3186
  %v4055 = vpack.c.b16 %v3189, %v3188
  %v4056 = vpack.c.b16 %v3191, %v3190
  %v4057 = vpack.c.b16 %v3193, %v3192
  %v4058 = vpack.c.b16 %v3195, %v3194
  %v4059 = vpack.c.b16 %v3197, %v3196
  %v4060 = vpack.c.b16 %v3199, %v3198
  %v4061 = vpack.c.b16 %v3201, %v3200
  %v4062 = vpack.c.b16 %v3203, %v3202
  %v4063 = vpack.c.b16 %v3205, %v3204
  %v4064 = vpack.c.b16 %v3207, %v3206
  %v4065 = vpack.c.b16 %v3209, %v3208
  %v4066 = vpack.c.b16 %v3211, %v3210
  %v4067 = vpack.c.b16 %v3213, %v3212
  %v4068 = vpack.c.b16 %v3215, %v3214
  %v4069 = vpack.c.b16 %v3217, %v3216
  %v4070 = vpack.c.b16 %v3219, %v3218
  %v4071 = vpack.c.b16 %v3221, %v3220
  %v4072 = vpack.c.b16 %v3223, %v3222
  %v4073 = vpack.c.b16 %v3225, %v3224
  %v4074 = vpack.c.b16 %v3227, %v3226
  %v4075 = vpack.c.b16 %v3229, %v3228
  %v4076 = vpack.c.b16 %v3231, %v3230
  %v4077 = vpack.c.b16 %v3233, %v3232
  %v4078 = vpack.c.b16 %v3235, %v3234
  %v4079 = vpack.c.b16 %v3237, %v3236
  %v4080 = vpack.c.b16 %v3239, %v3238
  %v4081 = vpack.c.b16 %v3241, %v3240
  %v4082 = vpack.c.b16 %v3243, %v3242
  %v4083 = vpack.c.b16 %v3245, %v3244
  %v4084 = vpack.c.b16 %v3247, %v3246
  %v4085 = vpack.c.b16 %v3249, %v3248
  %v4086 = vpack.c.b16 %v3251, %v3250
  %v4087 = vpack.c.b16 %v3253, %v3252
  %v4088 = vpack.c.b16 %v3255, %v3254
  %v4089 = vpack.c.b16 %v3257, %v3256
  %v4090 = vpack.c.b16 %v3259, %v3258
  %v4091 = vpack.c.b16 %v3261, %v3260
  %v4092 = vpack.c.b16 %v3263, %v3262
  %v4093 = vpack.c.b16 %v3265, %v3264
  %v4094 = vpack.c.b16 %v3267, %v3266
  %v4095 = vpack.c.b16 %v3269, %v3268
  %v4096 = vpack.c.b16 %v3271, %v3270
  %v4097 = vpack.c.b16 %v3273, %v3272
  %v4098 = vpack.c.b16 %v3275, %v3274
  %v4099 = vpack.c.b16 %v3277, %v3276
  %v4100 = vpack.c.b16 %v3279, %v3278
  %v4101 = vpack.c.b16 %v3281, %v3280
  %v4102 = vpack.c.b16 %v3283, %v3282
  %v4103 = vpack.c.b16 %v3285, %v3284
  %v4104 = vpack.c.b16 %v3287, %v3286
  %v4105 = vpack.c.b16 %v3289, %v3288
  %v4106 = vpack.c.b16 %v3291, %v3290
  %v4107 = vpack.c.b16 %v3293, %v3292
  %v4108 = vpack.c.b16 %v3295, %v3294
  %v4109 = vpack.c.b16 %v3297, %v3296
  %v4110 = vpack.c.b16 %v3299, %v3298
  %v4111 = vpack.c.b16 %v3301, %v3300
  %v4112 = vpack.c.b16 %v3303, %v3302
  %v4113 = vpack.c.b16 %v3305, %v3304
  %v4114 = vpack.c.b16 %v3307, %v3306
  %v4115 = vpack.c.b16 %v3309, %v3308
  %v4116 = vpack.c.b16 %v3311, %v3310
  %v4117 = vpack.c.b16 %v3313, %v3312
  %v4118 = vpack.c.b16 %v3315, %v3314
  %v4119 = vpack.c.b16 %v3317, %v3316
  %v4120 = vpack.c.b16 %v3319, %v3318
  %v4121 = vpack.c.b16 %v3321, %v3320
  %v4122 = vpack.c.b16 %v3323, %v3322
  %v4123 = vpack.c.b16 %v3325, %v3324
  %v4124 = vpack.c.b16 %v3327, %v3326
  %v4125 = vpack.c.b16 %v3329, %v3328
  %v4126 = vpack.c.b16 %v3331, %v3330
  %v4127 = vpack.c.b16 %v3333, %v3332
  %v4128 = vpack.c.b16 %v3335, %v3334
  %v4129 = vpack.c.b16 %v3337, %v3336
  %v4130 = vpack.c.b16 %v3339, %v3338
  %v4131 = vpack.c.b16 %v3341, %v3340
  %v4132 = vpack.c.b16 %v3343, %v3342
  %v4133 = vpack.c.b16 %v3345, %v3344
  %v4134 = vpack.c.b16 %v3347, %v3346
  %v4135 = vpack.c.b16 %v3349, %v3348
  %v4136 = vpack.c.b16 %v3351, %v3350
  %v4137 = vpack.c.b16 %v3353, %v3352
  %v4138 = vpack.c.b16 %v3355, %v3354
  %v4139 = vpack.c.b16 %v3357, %v3356
  %v4140 = vpack.c.b16 %v3359, %v3358
  %v4141 = vpack.c.b16 %v3361, %v3360
  %v4142 = vpack.c.b16 %v3363, %v3362
  %v4143 = vpack.c.b16 %v3365, %v3364
  %v4144 = vpack.c.b16 %v3367, %v3366
  %v4145 = vpack.c.b16 %v3369, %v3368
  %v4146 = vpack.c.b16 %v3371, %v3370
  %v4147 = vpack.c.b16 %v3373, %v3372
  %v4148 = vpack.c.b16 %v3375, %v3374
  %v4149 = vpack.c.b16 %v3377, %v3376
  %v4150 = vpack.c.b16 %v3379, %v3378
  %v4151 = vpack.c.b16 %v3381, %v3380
  %v4152 = vpack.c.b16 %v3383, %v3382
  %v4153 = vpack.c.b16 %v3385, %v3384
  %v4154 = vpack.c.b16 %v3387, %v3386
  %v4155 = vpack.c.b16 %v3389, %v3388
  %v4156 = vpack.c.b16 %v3391, %v3390
  %v4157 = vpack.c.b16 %v3393, %v3392
  %v4158 = vpack.c.b16 %v3395, %v3394
  %v4159 = vpack.c.b16 %v3397, %v3396
  %v4160 = vpack.c.b16 %v3399, %v3398
  %v4161 = vpack.c.b16 %v3401, %v3400
  %v4162 = vpack.c.b16 %v3403, %v3402
  %v4163 = vpack.c.b16 %v3405, %v3404
  %v4164 = vpack.c.b16 %v3407, %v3406
  %v4165 = vpack.c.b16 %v3409, %v3408
  %v4166 = vpack.c.b16 %v3411, %v3410
  %v4167 = vpack.c.b16 %v3413, %v3412
  %v4168 = vpack.c.b16 %v3415, %v3414
  %v4169 = vpack.c.b16 %v3417, %v3416
  %v4170 = vpack.c.b16 %v3419, %v3418
  %v4171 = vpack.c.b16 %v3421, %v3420
  %v4172 = vpack.c.b16 %v3423, %v3422
  %v4173 = vpack.c.b16 %v3425, %v3424
  %v4174 = vpack.c.b16 %v3427, %v3426
  %v4175 = vpack.c.b16 %v3429, %v3428
  %v4176 = vpack.c.b16 %v3431, %v3430
  %v4177 = vpack.c.b16 %v3433, %v3432
  %v4178 = vpack.c.b16 %v3435, %v3434
  %v4179 = vpack.c.b16 %v3437, %v3436
  %v4180 = vpack.c.b16 %v3439, %v3438
  %v4181 = vpack.c.b16 %v3441, %v3440
  %v4182 = vpack.c.b16 %v3443, %v3442
  %v4183 = vpack.c.b16 %v3445, %v3444
  %v4184 = vpack.c.b16 %v3447, %v3446
  %v4185 = vpack.c.b16 %v3449, %v3448
  %v4186 = vpack.c.b16 %v3451, %v3450
  %v4187 = vpack.c.b16 %v3453, %v3452
  %v4188 = vpack.c.b16 %v3455, %v3454
  %v4189 = vpack.c.b16 %v3457, %v3456
  %v4190 = vpack.c.b16 %v3459, %v3458
  %v4191 = vpack.c.b16 %v3461, %v3460
  %v4192 = vpack.c.b16 %v3463, %v3462
  %v4193 = vpack.c.b16 %v3465, %v3464
  %v4194 = vpack.c.b16 %v3467, %v3466
  %v4195 = vpack.c.b16 %v3469, %v3468
  %v4196 = vpack.c.b16 %v3471, %v3470
  %v4197 = vpack.c.b16 %v3473, %v3472
  %v4198 = vpack.c.b16 %v3475, %v3474
  %v4199 = vpack.c.b16 %v3477, %v3476
  %v4200 = vpack.c.b16 %v3479, %v3478
  %v4201 = vpack.c.b16 %v3481, %v3480
  %v4202 = vpack.c.b16 %v3483, %v3482
  %v4203 = vpack.c.b16 %v3485, %v3484
  %v4204 = vpack.c.b16 %v3487, %v3486
  %v4205 = vpack.c.b16 %v3489, %v3488
  %v4206 = vpack.c.b16 %v3491, %v3490
  %v4207 = vpack.c.b16 %v3493, %v3492
  %v4208 = vpack.c.b16 %v3495, %v3494
  %v4209 = vpack.c.b16 %v3497, %v3496
  %v4210 = vpack.c.b16 %v3499, %v3498
  %v4211 = vpack.c.b16 %v3501, %v3500
  %v4212 = vpack.c.b16 %v3503, %v3502
  %v4213 = vpack.c.b16 %v3505, %v3504
  %v4214 = vpack.c.b16 %v3507, %v3506
  %v4215 = vpack.c.b16 %v3509, %v3508
  %v4216 = vpack.c.b16 %v3511, %v3510
  %v4217 = vpack.c.b16 %v3513, %v3512
  %v4218 = vpack.c.b16 %v3515, %v3514
  %v4219 = vpack.c.b16 %v3517, %v3516
  %v4220 = vpack.c.b16 %v3519, %v3518
  %v4221 = vpack.c.b16 %v3521, %v3520
  %v4222 = vpack.c.b16 %v3523, %v3522
  %v4223 = vpack.c.b16 %v3525, %v3524
  %v4224 = vpack.c.b16 %v3527, %v3526
  %v4225 = vpack.c.b16 %v3529, %v3528
  %v4226 = vpack.c.b16 %v3531, %v3530
  %v4227 = vpack.c.b16 %v3533, %v3532
  %v4228 = vpack.c.b16 %v3535, %v3534
  %v4229 = vpack.c.b16 %v3537, %v3536
  %v4230 = vpack.c.b16 %v3539, %v3538
  %v4231 = vpack.c.b16 %v3541, %v3540
  %v4232 = vpack.c.b16 %v3543, %v3542
  %v4233 = vpack.c.b16 %v3545, %v3544
  %v4234 = vpack.c.b16 %v3547, %v3546
  %v4235 = vpack.c.b16 %v3549, %v3548
  %v4236 = vpack.c.b16 %v3551, %v3550
  %v4237 = vpack.c.b16 %v3553, %v3552
  %v4238 = vpack.c.b16 %v3555, %v3554
  %v4239 = vpack.c.b16 %v3557, %v3556
  %v4240 = vpack.c.b16 %v3559, %v3558
  %v4241 = vpack.c.b16 %v3561, %v3560
  %v4242 = vpack.c.b16 %v3563, %v3562
  %v4243 = vpack.c.b16 %v3565, %v3564
  %v4244 = vpack.c.b16 %v3567, %v3566
  %v4245 = vpack.c.b16 %v3569, %v3568
  %v4246 = vpack.c.b16 %v3571, %v3570
  %v4247 = vpack.c.b16 %v3573, %v3572
  %v4248 = vpack.c.b16 %v3575, %v3574
  %v4249 = vpack.c.b16 %v3577, %v3576
  %v4250 = vpack.c.b16 %v3579, %v3578
  %v4251 = vpack.c.b16 %v3581, %v3580
  %v4252 = vpack.c.b16 %v3583, %v3582
  %v4253 = vpack.c.b16 %v3585, %v3584
  %v4254 = vpack.c.b16 %v3587, %v3586
  %v4255 = vpack.c.b16 %v3589, %v3588
  %v4256 = vpack.c.b16 %v3591, %v3590
  %v4257 = vpack.c.b16 %v3593, %v3592
  %v4258 = vpack.c.b16 %v3595, %v3594
  %v4259 = vpack.c.b16 %v3597, %v3596
  %v4260 = vpack.c.b16 %v3599, %v3598
  %v4261 = vpack.c.b16 %v3601, %v3600
  %v4262 = vpack.c.b16 %v3603, %v3602
  %v4263 = vpack.c.b16 %v3605, %v3604
  %v4264 = vpack.c.b16 %v3607, %v3606
  %v4265 = vpack.c.b16 %v3609, %v3608
  %v4266 = vpack.c.b16 %v3611, %v3610
  %v4267 = vpack.c.b16 %v3613, %v3612
  %v4268 = vpack.c.b16 %v3615, %v3614
  %v4269 = vpack.c.b16 %v3617, %v3616
  %v4270 = vpack.c.b16 %v3619, %v3618
  %v4271 = vpack.c.b16 %v3621, %v3620
  %v4272 = vpack.c.b16 %v3623, %v3622
  %v4273 = vpack.c.b16 %v3625, %v3624
  %v4274 = vpack.c.b16 %v3627, %v3626
  %v4275 = vpack.c.b16 %v3629, %v3628
  %v4276 = vpack.c.b16 %v3631, %v3630
  %v4277 = vpack.c.b16 %v3633, %v3632
  %v4278 = vpack.c.b16 %v3635, %v3634
  %v4279 = vpack.c.b16 %v3637, %v3636
  %v4280 = vpack.c.b16 %v3639, %v3638
  %v4281 = vpack.c.b16 %v3641, %v3640
  %v4282 = vpack.c.b16 %v3643, %v3642
  %v4283 = vpack.c.b16 %v3645, %v3644
  %v4284 = vpack.c.b16 %v3647, %v3646
  %v4285 = vpack.c.b16 %v3649, %v3648
  %v4286 = vpack.c.b16 %v3651, %v3650
  %v4287 = vpack.c.b16 %v3653, %v3652
  %v4288 = vpack.c.b16 %v3655, %v3654
  %v4289 = vpack.c.b16 %v3657, %v3656
  %v4290 = vpack.c.b16 %v3659, %v3658
  %v4291 = vpack.c.b16 %v3661, %v3660
  %v4292 = vpack.c.b16 %v3663, %v3662
  %v4293 = vpack.c.b16 %v3665, %v3664
  %v4294 = vpack.c.b16 %v3667, %v3666
  %v4295 = vpack.c.b16 %v3669, %v3668
  %v4296 = vpack.c.b16 %v3671, %v3670
  %v4297 = vpack.c.b16 %v3673, %v3672
  %v4298 = vpack.c.b16 %v3675, %v3674
  %v4299 = vpack.c.b16 %v3677, %v3676
  %v4300 = vpack.c.b16 %v3679, %v3678
  %v4301 = vpack.c.b16 %v3681, %v3680
  %v4302 = vpack.c.b16 %v3683, %v3682
  %v4303 = vpack.c.b16 %v3685, %v3684
  %v4304 = vpack.c.b16 %v3687, %v3686
  %v4305 = vpack.c.b16 %v3689, %v3688
  %v4306 = vpack.c.b16 %v3691, %v3690
  %v4307 = vpack.c.b16 %v3693, %v3692
  %v4308 = vpack.c.b16 %v3695, %v3694
  %v4309 = vpack.c.b16 %v3697, %v3696
  %v4310 = vpack.c.b16 %v3699, %v3698
  %v4311 = vpack.c.b16 %v3701, %v3700
  %v4312 = vpack.c.b16 %v3703, %v3702
  %v4313 = vpack.c.b16 %v3705, %v3704
  %v4314 = vpack.c.b16 %v3707, %v3706
  %v4315 = vpack.c.b16 %v3709, %v3708
  %v4316 = vpack.c.b16 %v3711, %v3710
  %v4317 = vpack.c.b16 %v3713, %v3712
  %v4318 = vpack.c.b16 %v3715, %v3714
  %v4319 = vpack.c.b16 %v3717, %v3716
  %v4320 = vpack.c.b16 %v3719, %v3718
  %v4321 = vpack.c.b16 %v3721, %v3720
  %v4322 = vpack.c.b16 %v3723, %v3722
  %v4323 = vpack.c.b16 %v3725, %v3724
  %v4324 = vpack.c.b16 %v3727, %v3726
  %v4325 = vpack.c.b16 %v3729, %v3728
  %v4326 = vpack.c.b16 %v3731, %v3730
  %v4327 = vpack.c.b16 %v3733, %v3732
  %v4328 = vpack.c.b16 %v3735, %v3734
  %v4329 = vpack.c.b16 %v3737, %v3736
  %v4330 = vpack.c.b16 %v3739, %v3738
  %v4331 = vpack.c.b16 %v3741, %v3740
  %v4332 = vpack.c.b16 %v3743, %v3742
  %v4333 = vpack.c.b16 %v3745, %v3744
  %v4334 = vpack.c.b16 %v3747, %v3746
  %v4335 = vpack.c.b16 %v3749, %v3748
  %v4336 = vpack.c.b16 %v3751, %v3750
  %v4337 = vpack.c.b16 %v3753, %v3752
  %v4338 = vpack.c.b16 %v3755, %v3754
  %v4339 = vpack.c.b16 %v3757, %v3756
  %v4340 = vpack.c.b16 %v3759, %v3758
  %v4341 = vpack.c.b16 %v3761, %v3760
  %v4342 = vpack.c.b16 %v3763, %v3762
  %v4343 = vpack.c.b16 %v3765, %v3764
  %v4344 = vpack.c.b16 %v3767, %v3766
  %v4345 = vpack.c.b16 %v3769, %v3768
  %4922 = vmatpush.bf16.msra.mxu0 %v3777
  %4923 = vmatpush.bf16.msra.mxu0 %v3776
  %4924 = vmatpush.bf16.msra.mxu0 %v3775
  %4925 = vmatpush.bf16.msra.mxu0 %v3774
  %4926 = vmatpush.bf16.msra.mxu0 %v3773
  %4927 = vmatpush.bf16.msra.mxu0 %v3772
  %4928 = vmatpush.bf16.msra.mxu0 %v3771
  %4929 = vmatpush.bf16.msra.mxu0 %v3770
  %4930 = vmatmul.bf16.gmra.mxu0 %v1322
  %v4931 = vpop.f32.mrf.mxu0
  %v4932 = vadd.f32 %v1212, %v4931
  %v4933 = vpop.f32.mrf.mxu0
  %4934 = vdwg.mxu0
  %4935 = vmatpush.bf16.msra.mxu0 %v3785
  %4936 = vmatpush.bf16.msra.mxu0 %v3784
  %4937 = vmatpush.bf16.msra.mxu0 %v3783
  %4938 = vmatpush.bf16.msra.mxu0 %v3782
  %4939 = vmatpush.bf16.msra.mxu0 %v3781
  %4940 = vmatpush.bf16.msra.mxu0 %v3780
  %4941 = vmatpush.bf16.msra.mxu0 %v3779
  %4942 = vmatpush.bf16.msra.mxu0 %v3778
  %4943 = vmatmul.bf16.gmra.mxu0 %v1323
  %v4944 = vpop.f32.mrf.mxu0
  %v4945 = vadd.f32 %v4932, %v4944
  %v4946 = vpop.f32.mrf.mxu0
  %4947 = vdwg.mxu0
  %4948 = vmatpush.bf16.msra.mxu0 %v3793
  %4949 = vmatpush.bf16.msra.mxu0 %v3792
  %4950 = vmatpush.bf16.msra.mxu0 %v3791
  %4951 = vmatpush.bf16.msra.mxu0 %v3790
  %4952 = vmatpush.bf16.msra.mxu0 %v3789
  %4953 = vmatpush.bf16.msra.mxu0 %v3788
  %4954 = vmatpush.bf16.msra.mxu0 %v3787
  %4955 = vmatpush.bf16.msra.mxu0 %v3786
  %4956 = vmatmul.bf16.gmra.mxu0 %v1324
  %v4957 = vpop.f32.mrf.mxu0
  %v4958 = vadd.f32 %v4945, %v4957
  %v4959 = vpop.f32.mrf.mxu0
  %4960 = vdwg.mxu0
  %4961 = vmatpush.bf16.msra.mxu0 %v3801
  %4962 = vmatpush.bf16.msra.mxu0 %v3800
  %4963 = vmatpush.bf16.msra.mxu0 %v3799
  %4964 = vmatpush.bf16.msra.mxu0 %v3798
  %4965 = vmatpush.bf16.msra.mxu0 %v3797
  %4966 = vmatpush.bf16.msra.mxu0 %v3796
  %4967 = vmatpush.bf16.msra.mxu0 %v3795
  %4968 = vmatpush.bf16.msra.mxu0 %v3794
  %4969 = vmatmul.bf16.gmra.mxu0 %v1325
  %v4970 = vpop.f32.mrf.mxu0
  %v4971 = vadd.f32 %v4958, %v4970
  %v4972 = vpop.f32.mrf.mxu0
  %4973 = vdwg.mxu0
  %4974 = vmatpush.bf16.msra.mxu0 %v3809
  %4975 = vmatpush.bf16.msra.mxu0 %v3808
  %4976 = vmatpush.bf16.msra.mxu0 %v3807
  %4977 = vmatpush.bf16.msra.mxu0 %v3806
  %4978 = vmatpush.bf16.msra.mxu0 %v3805
  %4979 = vmatpush.bf16.msra.mxu0 %v3804
  %4980 = vmatpush.bf16.msra.mxu0 %v3803
  %4981 = vmatpush.bf16.msra.mxu0 %v3802
  %4982 = vmatmul.bf16.gmra.mxu0 %v1326
  %v4983 = vpop.f32.mrf.mxu0
  %v4984 = vadd.f32 %v4971, %v4983
  %v4985 = vpop.f32.mrf.mxu0
  %4986 = vdwg.mxu0
  %4987 = vmatpush.bf16.msra.mxu0 %v3817
  %4988 = vmatpush.bf16.msra.mxu0 %v3816
  %4989 = vmatpush.bf16.msra.mxu0 %v3815
  %4990 = vmatpush.bf16.msra.mxu0 %v3814
  %4991 = vmatpush.bf16.msra.mxu0 %v3813
  %4992 = vmatpush.bf16.msra.mxu0 %v3812
  %4993 = vmatpush.bf16.msra.mxu0 %v3811
  %4994 = vmatpush.bf16.msra.mxu0 %v3810
  %4995 = vmatmul.bf16.gmra.mxu0 %v1327
  %v4996 = vpop.f32.mrf.mxu0
  %v4997 = vadd.f32 %v4984, %v4996
  %v4998 = vpop.f32.mrf.mxu0
  %4999 = vdwg.mxu0
  %5000 = vmatpush.bf16.msra.mxu0 %v3825
  %5001 = vmatpush.bf16.msra.mxu0 %v3824
  %5002 = vmatpush.bf16.msra.mxu0 %v3823
  %5003 = vmatpush.bf16.msra.mxu0 %v3822
  %5004 = vmatpush.bf16.msra.mxu0 %v3821
  %5005 = vmatpush.bf16.msra.mxu0 %v3820
  %5006 = vmatpush.bf16.msra.mxu0 %v3819
  %5007 = vmatpush.bf16.msra.mxu0 %v3818
  %5008 = vmatmul.bf16.gmra.mxu0 %v1328
  %v5009 = vpop.f32.mrf.mxu0
  %v5010 = vadd.f32 %v4997, %v5009
  %v5011 = vpop.f32.mrf.mxu0
  %5012 = vdwg.mxu0
  %5013 = vmatpush.bf16.msra.mxu0 %v3833
  %5014 = vmatpush.bf16.msra.mxu0 %v3832
  %5015 = vmatpush.bf16.msra.mxu0 %v3831
  %5016 = vmatpush.bf16.msra.mxu0 %v3830
  %5017 = vmatpush.bf16.msra.mxu0 %v3829
  %5018 = vmatpush.bf16.msra.mxu0 %v3828
  %5019 = vmatpush.bf16.msra.mxu0 %v3827
  %5020 = vmatpush.bf16.msra.mxu0 %v3826
  %5021 = vmatmul.bf16.gmra.mxu0 %v1329
  %v5022 = vpop.f32.mrf.mxu0
  %v5023 = vadd.f32 %v5010, %v5022
  %v5024 = vpop.f32.mrf.mxu0
  %5025 = vdwg.mxu0
  %5026 = vmatpush.bf16.msra.mxu0 %v3841
  %5027 = vmatpush.bf16.msra.mxu0 %v3840
  %5028 = vmatpush.bf16.msra.mxu0 %v3839
  %5029 = vmatpush.bf16.msra.mxu0 %v3838
  %5030 = vmatpush.bf16.msra.mxu0 %v3837
  %5031 = vmatpush.bf16.msra.mxu0 %v3836
  %5032 = vmatpush.bf16.msra.mxu0 %v3835
  %5033 = vmatpush.bf16.msra.mxu0 %v3834
  %5034 = vmatmul.bf16.gmra.mxu0 %v1330
  %v5035 = vpop.f32.mrf.mxu0
  %v5036 = vadd.f32 %v5023, %v5035
  %v5037 = vpop.f32.mrf.mxu0
  %5038 = vdwg.mxu0
  %5039 = vmatpush.bf16.msra.mxu0 %v3849
  %5040 = vmatpush.bf16.msra.mxu0 %v3848
  %5041 = vmatpush.bf16.msra.mxu0 %v3847
  %5042 = vmatpush.bf16.msra.mxu0 %v3846
  %5043 = vmatpush.bf16.msra.mxu0 %v3845
  %5044 = vmatpush.bf16.msra.mxu0 %v3844
  %5045 = vmatpush.bf16.msra.mxu0 %v3843
  %5046 = vmatpush.bf16.msra.mxu0 %v3842
  %5047 = vmatmul.bf16.gmra.mxu0 %v1331
  %v5048 = vpop.f32.mrf.mxu0
  %v5049 = vadd.f32 %v5036, %v5048
  %v5050 = vpop.f32.mrf.mxu0
  %5051 = vdwg.mxu0
  %5052 = vmatpush.bf16.msra.mxu0 %v3857
  %5053 = vmatpush.bf16.msra.mxu0 %v3856
  %5054 = vmatpush.bf16.msra.mxu0 %v3855
  %5055 = vmatpush.bf16.msra.mxu0 %v3854
  %5056 = vmatpush.bf16.msra.mxu0 %v3853
  %5057 = vmatpush.bf16.msra.mxu0 %v3852
  %5058 = vmatpush.bf16.msra.mxu0 %v3851
  %5059 = vmatpush.bf16.msra.mxu0 %v3850
  %5060 = vmatmul.bf16.gmra.mxu0 %v1332
  %v5061 = vpop.f32.mrf.mxu0
  %v5062 = vadd.f32 %v5049, %v5061
  %v5063 = vpop.f32.mrf.mxu0
  %5064 = vdwg.mxu0
  %5065 = vmatpush.bf16.msra.mxu0 %v3865
  %5066 = vmatpush.bf16.msra.mxu0 %v3864
  %5067 = vmatpush.bf16.msra.mxu0 %v3863
  %5068 = vmatpush.bf16.msra.mxu0 %v3862
  %5069 = vmatpush.bf16.msra.mxu0 %v3861
  %5070 = vmatpush.bf16.msra.mxu0 %v3860
  %5071 = vmatpush.bf16.msra.mxu0 %v3859
  %5072 = vmatpush.bf16.msra.mxu0 %v3858
  %5073 = vmatmul.bf16.gmra.mxu0 %v1333
  %v5074 = vpop.f32.mrf.mxu0
  %v5075 = vadd.f32 %v5062, %v5074
  %v5076 = vpop.f32.mrf.mxu0
  %5077 = vdwg.mxu0
  %5078 = vmatpush.bf16.msra.mxu0 %v3873
  %5079 = vmatpush.bf16.msra.mxu0 %v3872
  %5080 = vmatpush.bf16.msra.mxu0 %v3871
  %5081 = vmatpush.bf16.msra.mxu0 %v3870
  %5082 = vmatpush.bf16.msra.mxu0 %v3869
  %5083 = vmatpush.bf16.msra.mxu0 %v3868
  %5084 = vmatpush.bf16.msra.mxu0 %v3867
  %5085 = vmatpush.bf16.msra.mxu0 %v3866
  %5086 = vmatmul.bf16.gmra.mxu0 %v1334
  %v5087 = vpop.f32.mrf.mxu0
  %v5088 = vadd.f32 %v5075, %v5087
  %v5089 = vpop.f32.mrf.mxu0
  %5090 = vdwg.mxu0
  %5091 = vmatpush.bf16.msra.mxu0 %v3881
  %5092 = vmatpush.bf16.msra.mxu0 %v3880
  %5093 = vmatpush.bf16.msra.mxu0 %v3879
  %5094 = vmatpush.bf16.msra.mxu0 %v3878
  %5095 = vmatpush.bf16.msra.mxu0 %v3877
  %5096 = vmatpush.bf16.msra.mxu0 %v3876
  %5097 = vmatpush.bf16.msra.mxu0 %v3875
  %5098 = vmatpush.bf16.msra.mxu0 %v3874
  %5099 = vmatmul.bf16.gmra.mxu0 %v1335
  %v5100 = vpop.f32.mrf.mxu0
  %v5101 = vadd.f32 %v5088, %v5100
  %v5102 = vpop.f32.mrf.mxu0
  %5103 = vdwg.mxu0
  %5104 = vmatpush.bf16.msra.mxu0 %v3889
  %5105 = vmatpush.bf16.msra.mxu0 %v3888
  %5106 = vmatpush.bf16.msra.mxu0 %v3887
  %5107 = vmatpush.bf16.msra.mxu0 %v3886
  %5108 = vmatpush.bf16.msra.mxu0 %v3885
  %5109 = vmatpush.bf16.msra.mxu0 %v3884
  %5110 = vmatpush.bf16.msra.mxu0 %v3883
  %5111 = vmatpush.bf16.msra.mxu0 %v3882
  %5112 = vmatmul.bf16.gmra.mxu0 %v1336
  %v5113 = vpop.f32.mrf.mxu0
  %v5114 = vadd.f32 %v5101, %v5113
  %v5115 = vpop.f32.mrf.mxu0
  %5116 = vdwg.mxu0
  %5117 = vmatpush.bf16.msra.mxu0 %v3897
  %5118 = vmatpush.bf16.msra.mxu0 %v3896
  %5119 = vmatpush.bf16.msra.mxu0 %v3895
  %5120 = vmatpush.bf16.msra.mxu0 %v3894
  %5121 = vmatpush.bf16.msra.mxu0 %v3893
  %5122 = vmatpush.bf16.msra.mxu0 %v3892
  %5123 = vmatpush.bf16.msra.mxu0 %v3891
  %5124 = vmatpush.bf16.msra.mxu0 %v3890
  %5125 = vmatmul.bf16.gmra.mxu0 %v1337
  %v5126 = vpop.f32.mrf.mxu0
  %v5127 = vadd.f32 %v5114, %v5126
  %v5128 = vpop.f32.mrf.mxu0
  %5129 = vdwg.mxu0
  %5130 = vmatpush.bf16.msra.mxu0 %v3905
  %5131 = vmatpush.bf16.msra.mxu0 %v3904
  %5132 = vmatpush.bf16.msra.mxu0 %v3903
  %5133 = vmatpush.bf16.msra.mxu0 %v3902
  %5134 = vmatpush.bf16.msra.mxu0 %v3901
  %5135 = vmatpush.bf16.msra.mxu0 %v3900
  %5136 = vmatpush.bf16.msra.mxu0 %v3899
  %5137 = vmatpush.bf16.msra.mxu0 %v3898
  %5138 = vmatmul.bf16.gmra.mxu0 %v1338
  %v5139 = vpop.f32.mrf.mxu0
  %v5140 = vadd.f32 %v5127, %v5139
  %v5141 = vpop.f32.mrf.mxu0
  %5142 = vdwg.mxu0
  %5143 = vmatpush.bf16.msra.mxu0 %v3913
  %5144 = vmatpush.bf16.msra.mxu0 %v3912
  %5145 = vmatpush.bf16.msra.mxu0 %v3911
  %5146 = vmatpush.bf16.msra.mxu0 %v3910
  %5147 = vmatpush.bf16.msra.mxu0 %v3909
  %5148 = vmatpush.bf16.msra.mxu0 %v3908
  %5149 = vmatpush.bf16.msra.mxu0 %v3907
  %5150 = vmatpush.bf16.msra.mxu0 %v3906
  %5151 = vmatmul.bf16.gmra.mxu0 %v1339
  %v5152 = vpop.f32.mrf.mxu0
  %v5153 = vadd.f32 %v5140, %v5152
  %v5154 = vpop.f32.mrf.mxu0
  %5155 = vdwg.mxu0
  %5156 = vmatpush.bf16.msra.mxu0 %v3921
  %5157 = vmatpush.bf16.msra.mxu0 %v3920
  %5158 = vmatpush.bf16.msra.mxu0 %v3919
  %5159 = vmatpush.bf16.msra.mxu0 %v3918
  %5160 = vmatpush.bf16.msra.mxu0 %v3917
  %5161 = vmatpush.bf16.msra.mxu0 %v3916
  %5162 = vmatpush.bf16.msra.mxu0 %v3915
  %5163 = vmatpush.bf16.msra.mxu0 %v3914
  %5164 = vmatmul.bf16.gmra.mxu0 %v1340
  %v5165 = vpop.f32.mrf.mxu0
  %v5166 = vadd.f32 %v5153, %v5165
  %v5167 = vpop.f32.mrf.mxu0
  %5168 = vdwg.mxu0
  %5169 = vmatpush.bf16.msra.mxu0 %v3929
  %5170 = vmatpush.bf16.msra.mxu0 %v3928
  %5171 = vmatpush.bf16.msra.mxu0 %v3927
  %5172 = vmatpush.bf16.msra.mxu0 %v3926
  %5173 = vmatpush.bf16.msra.mxu0 %v3925
  %5174 = vmatpush.bf16.msra.mxu0 %v3924
  %5175 = vmatpush.bf16.msra.mxu0 %v3923
  %5176 = vmatpush.bf16.msra.mxu0 %v3922
  %5177 = vmatmul.bf16.gmra.mxu0 %v1341
  %v5178 = vpop.f32.mrf.mxu0
  %v5179 = vadd.f32 %v5166, %v5178
  %v5180 = vpop.f32.mrf.mxu0
  %5181 = vdwg.mxu0
  %5182 = vmatpush.bf16.msra.mxu0 %v3937
  %5183 = vmatpush.bf16.msra.mxu0 %v3936
  %5184 = vmatpush.bf16.msra.mxu0 %v3935
  %5185 = vmatpush.bf16.msra.mxu0 %v3934
  %5186 = vmatpush.bf16.msra.mxu0 %v3933
  %5187 = vmatpush.bf16.msra.mxu0 %v3932
  %5188 = vmatpush.bf16.msra.mxu0 %v3931
  %5189 = vmatpush.bf16.msra.mxu0 %v3930
  %5190 = vmatmul.bf16.gmra.mxu0 %v1342
  %v5191 = vpop.f32.mrf.mxu0
  %v5192 = vadd.f32 %v5179, %v5191
  %v5193 = vpop.f32.mrf.mxu0
  %5194 = vdwg.mxu0
  %5195 = vmatpush.bf16.msra.mxu0 %v3945
  %5196 = vmatpush.bf16.msra.mxu0 %v3944
  %5197 = vmatpush.bf16.msra.mxu0 %v3943
  %5198 = vmatpush.bf16.msra.mxu0 %v3942
  %5199 = vmatpush.bf16.msra.mxu0 %v3941
  %5200 = vmatpush.bf16.msra.mxu0 %v3940
  %5201 = vmatpush.bf16.msra.mxu0 %v3939
  %5202 = vmatpush.bf16.msra.mxu0 %v3938
  %5203 = vmatmul.bf16.gmra.mxu0 %v1343
  %v5204 = vpop.f32.mrf.mxu0
  %v5205 = vadd.f32 %v5192, %v5204
  %v5206 = vpop.f32.mrf.mxu0
  %5207 = vdwg.mxu0
  %5208 = vmatpush.bf16.msra.mxu0 %v3953
  %5209 = vmatpush.bf16.msra.mxu0 %v3952
  %5210 = vmatpush.bf16.msra.mxu0 %v3951
  %5211 = vmatpush.bf16.msra.mxu0 %v3950
  %5212 = vmatpush.bf16.msra.mxu0 %v3949
  %5213 = vmatpush.bf16.msra.mxu0 %v3948
  %5214 = vmatpush.bf16.msra.mxu0 %v3947
  %5215 = vmatpush.bf16.msra.mxu0 %v3946
  %5216 = vmatmul.bf16.gmra.mxu0 %v1344
  %v5217 = vpop.f32.mrf.mxu0
  %v5218 = vadd.f32 %v5205, %v5217
  %v5219 = vpop.f32.mrf.mxu0
  %5220 = vdwg.mxu0
  %5221 = vmatpush.bf16.msra.mxu0 %v3961
  %5222 = vmatpush.bf16.msra.mxu0 %v3960
  %5223 = vmatpush.bf16.msra.mxu0 %v3959
  %5224 = vmatpush.bf16.msra.mxu0 %v3958
  %5225 = vmatpush.bf16.msra.mxu0 %v3957
  %5226 = vmatpush.bf16.msra.mxu0 %v3956
  %5227 = vmatpush.bf16.msra.mxu0 %v3955
  %5228 = vmatpush.bf16.msra.mxu0 %v3954
  %5229 = vmatmul.bf16.gmra.mxu0 %v1345
  %v5230 = vpop.f32.mrf.mxu0
  %v5231 = vadd.f32 %v5218, %v5230
  %v5232 = vpop.f32.mrf.mxu0
  %5233 = vdwg.mxu0
  %5234 = vmatpush.bf16.msra.mxu0 %v3969
  %5235 = vmatpush.bf16.msra.mxu0 %v3968
  %5236 = vmatpush.bf16.msra.mxu0 %v3967
  %5237 = vmatpush.bf16.msra.mxu0 %v3966
  %5238 = vmatpush.bf16.msra.mxu0 %v3965
  %5239 = vmatpush.bf16.msra.mxu0 %v3964
  %5240 = vmatpush.bf16.msra.mxu0 %v3963
  %5241 = vmatpush.bf16.msra.mxu0 %v3962
  %5242 = vmatmul.bf16.gmra.mxu0 %v1346
  %v5243 = vpop.f32.mrf.mxu0
  %v5244 = vadd.f32 %v5231, %v5243
  %v5245 = vpop.f32.mrf.mxu0
  %5246 = vdwg.mxu0
  %5247 = vmatpush.bf16.msra.mxu0 %v3977
  %5248 = vmatpush.bf16.msra.mxu0 %v3976
  %5249 = vmatpush.bf16.msra.mxu0 %v3975
  %5250 = vmatpush.bf16.msra.mxu0 %v3974
  %5251 = vmatpush.bf16.msra.mxu0 %v3973
  %5252 = vmatpush.bf16.msra.mxu0 %v3972
  %5253 = vmatpush.bf16.msra.mxu0 %v3971
  %5254 = vmatpush.bf16.msra.mxu0 %v3970
  %5255 = vmatmul.bf16.gmra.mxu0 %v1347
  %v5256 = vpop.f32.mrf.mxu0
  %v5257 = vadd.f32 %v5244, %v5256
  %v5258 = vpop.f32.mrf.mxu0
  %5259 = vdwg.mxu0
  %5260 = vmatpush.bf16.msra.mxu0 %v3985
  %5261 = vmatpush.bf16.msra.mxu0 %v3984
  %5262 = vmatpush.bf16.msra.mxu0 %v3983
  %5263 = vmatpush.bf16.msra.mxu0 %v3982
  %5264 = vmatpush.bf16.msra.mxu0 %v3981
  %5265 = vmatpush.bf16.msra.mxu0 %v3980
  %5266 = vmatpush.bf16.msra.mxu0 %v3979
  %5267 = vmatpush.bf16.msra.mxu0 %v3978
  %5268 = vmatmul.bf16.gmra.mxu0 %v1348
  %v5269 = vpop.f32.mrf.mxu0
  %v5270 = vadd.f32 %v5257, %v5269
  %v5271 = vpop.f32.mrf.mxu0
  %5272 = vdwg.mxu0
  %5273 = vmatpush.bf16.msra.mxu0 %v3993
  %5274 = vmatpush.bf16.msra.mxu0 %v3992
  %5275 = vmatpush.bf16.msra.mxu0 %v3991
  %5276 = vmatpush.bf16.msra.mxu0 %v3990
  %5277 = vmatpush.bf16.msra.mxu0 %v3989
  %5278 = vmatpush.bf16.msra.mxu0 %v3988
  %5279 = vmatpush.bf16.msra.mxu0 %v3987
  %5280 = vmatpush.bf16.msra.mxu0 %v3986
  %5281 = vmatmul.bf16.gmra.mxu0 %v1349
  %v5282 = vpop.f32.mrf.mxu0
  %v5283 = vadd.f32 %v5270, %v5282
  %v5284 = vpop.f32.mrf.mxu0
  %5285 = vdwg.mxu0
  %5286 = vmatpush.bf16.msra.mxu0 %v4001
  %5287 = vmatpush.bf16.msra.mxu0 %v4000
  %5288 = vmatpush.bf16.msra.mxu0 %v3999
  %5289 = vmatpush.bf16.msra.mxu0 %v3998
  %5290 = vmatpush.bf16.msra.mxu0 %v3997
  %5291 = vmatpush.bf16.msra.mxu0 %v3996
  %5292 = vmatpush.bf16.msra.mxu0 %v3995
  %5293 = vmatpush.bf16.msra.mxu0 %v3994
  %5294 = vmatmul.bf16.gmra.mxu0 %v1350
  %v5295 = vpop.f32.mrf.mxu0
  %v5296 = vadd.f32 %v5283, %v5295
  %v5297 = vpop.f32.mrf.mxu0
  %5298 = vdwg.mxu0
  %5299 = vmatpush.bf16.msra.mxu0 %v4009
  %5300 = vmatpush.bf16.msra.mxu0 %v4008
  %5301 = vmatpush.bf16.msra.mxu0 %v4007
  %5302 = vmatpush.bf16.msra.mxu0 %v4006
  %5303 = vmatpush.bf16.msra.mxu0 %v4005
  %5304 = vmatpush.bf16.msra.mxu0 %v4004
  %5305 = vmatpush.bf16.msra.mxu0 %v4003
  %5306 = vmatpush.bf16.msra.mxu0 %v4002
  %5307 = vmatmul.bf16.gmra.mxu0 %v1351
  %v5308 = vpop.f32.mrf.mxu0
  %v5309 = vadd.f32 %v5296, %v5308
  %v5310 = vpop.f32.mrf.mxu0
  %5311 = vdwg.mxu0
  %5312 = vmatpush.bf16.msra.mxu0 %v4017
  %5313 = vmatpush.bf16.msra.mxu0 %v4016
  %5314 = vmatpush.bf16.msra.mxu0 %v4015
  %5315 = vmatpush.bf16.msra.mxu0 %v4014
  %5316 = vmatpush.bf16.msra.mxu0 %v4013
  %5317 = vmatpush.bf16.msra.mxu0 %v4012
  %5318 = vmatpush.bf16.msra.mxu0 %v4011
  %5319 = vmatpush.bf16.msra.mxu0 %v4010
  %5320 = vmatmul.bf16.gmra.mxu0 %v1352
  %v5321 = vpop.f32.mrf.mxu0
  %v5322 = vadd.f32 %v5309, %v5321
  %v5323 = vpop.f32.mrf.mxu0
  %5324 = vdwg.mxu0
  %5325 = vmatpush.bf16.msra.mxu0 %v4025
  %5326 = vmatpush.bf16.msra.mxu0 %v4024
  %5327 = vmatpush.bf16.msra.mxu0 %v4023
  %5328 = vmatpush.bf16.msra.mxu0 %v4022
  %5329 = vmatpush.bf16.msra.mxu0 %v4021
  %5330 = vmatpush.bf16.msra.mxu0 %v4020
  %5331 = vmatpush.bf16.msra.mxu0 %v4019
  %5332 = vmatpush.bf16.msra.mxu0 %v4018
  %5333 = vmatmul.bf16.gmra.mxu0 %v1353
  %v5334 = vpop.f32.mrf.mxu0
  %v5335 = vadd.f32 %v5322, %v5334
  %v5336 = vpop.f32.mrf.mxu0
  %5337 = vdwg.mxu0
  %5338 = vmatpush.bf16.msra.mxu0 %v4033
  %5339 = vmatpush.bf16.msra.mxu0 %v4032
  %5340 = vmatpush.bf16.msra.mxu0 %v4031
  %5341 = vmatpush.bf16.msra.mxu0 %v4030
  %5342 = vmatpush.bf16.msra.mxu0 %v4029
  %5343 = vmatpush.bf16.msra.mxu0 %v4028
  %5344 = vmatpush.bf16.msra.mxu0 %v4027
  %5345 = vmatpush.bf16.msra.mxu0 %v4026
  %5346 = vmatmul.bf16.gmra.mxu0 %v1354
  %v5347 = vpop.f32.mrf.mxu0
  %v5348 = vadd.f32 %v5335, %v5347
  %v5349 = vpop.f32.mrf.mxu0
  %5350 = vdwg.mxu0
  %5351 = vmatpush.bf16.msra.mxu0 %v4041
  %5352 = vmatpush.bf16.msra.mxu0 %v4040
  %5353 = vmatpush.bf16.msra.mxu0 %v4039
  %5354 = vmatpush.bf16.msra.mxu0 %v4038
  %5355 = vmatpush.bf16.msra.mxu0 %v4037
  %5356 = vmatpush.bf16.msra.mxu0 %v4036
  %5357 = vmatpush.bf16.msra.mxu0 %v4035
  %5358 = vmatpush.bf16.msra.mxu0 %v4034
  %5359 = vmatmul.bf16.gmra.mxu0 %v1355
  %v5360 = vpop.f32.mrf.mxu0
  %v5361 = vadd.f32 %v5348, %v5360
  %v5362 = vpop.f32.mrf.mxu0
  %5363 = vdwg.mxu0
  %5364 = vmatpush.bf16.msra.mxu0 %v4049
  %5365 = vmatpush.bf16.msra.mxu0 %v4048
  %5366 = vmatpush.bf16.msra.mxu0 %v4047
  %5367 = vmatpush.bf16.msra.mxu0 %v4046
  %5368 = vmatpush.bf16.msra.mxu0 %v4045
  %5369 = vmatpush.bf16.msra.mxu0 %v4044
  %5370 = vmatpush.bf16.msra.mxu0 %v4043
  %5371 = vmatpush.bf16.msra.mxu0 %v4042
  %5372 = vmatmul.bf16.gmra.mxu0 %v1356
  %v5373 = vpop.f32.mrf.mxu0
  %v5374 = vadd.f32 %v5361, %v5373
  %v5375 = vpop.f32.mrf.mxu0
  %5376 = vdwg.mxu0
  %5377 = vmatpush.bf16.msra.mxu0 %v4057
  %5378 = vmatpush.bf16.msra.mxu0 %v4056
  %5379 = vmatpush.bf16.msra.mxu0 %v4055
  %5380 = vmatpush.bf16.msra.mxu0 %v4054
  %5381 = vmatpush.bf16.msra.mxu0 %v4053
  %5382 = vmatpush.bf16.msra.mxu0 %v4052
  %5383 = vmatpush.bf16.msra.mxu0 %v4051
  %5384 = vmatpush.bf16.msra.mxu0 %v4050
  %5385 = vmatmul.bf16.gmra.mxu0 %v1357
  %v5386 = vpop.f32.mrf.mxu0
  %v5387 = vadd.f32 %v5374, %v5386
  %v5388 = vpop.f32.mrf.mxu0
  %5389 = vdwg.mxu0
  %5390 = vmatpush.bf16.msra.mxu0 %v4065
  %5391 = vmatpush.bf16.msra.mxu0 %v4064
  %5392 = vmatpush.bf16.msra.mxu0 %v4063
  %5393 = vmatpush.bf16.msra.mxu0 %v4062
  %5394 = vmatpush.bf16.msra.mxu0 %v4061
  %5395 = vmatpush.bf16.msra.mxu0 %v4060
  %5396 = vmatpush.bf16.msra.mxu0 %v4059
  %5397 = vmatpush.bf16.msra.mxu0 %v4058
  %5398 = vmatmul.bf16.gmra.mxu0 %v1358
  %v5399 = vpop.f32.mrf.mxu0
  %v5400 = vadd.f32 %v5387, %v5399
  %v5401 = vpop.f32.mrf.mxu0
  %5402 = vdwg.mxu0
  %5403 = vmatpush.bf16.msra.mxu0 %v4073
  %5404 = vmatpush.bf16.msra.mxu0 %v4072
  %5405 = vmatpush.bf16.msra.mxu0 %v4071
  %5406 = vmatpush.bf16.msra.mxu0 %v4070
  %5407 = vmatpush.bf16.msra.mxu0 %v4069
  %5408 = vmatpush.bf16.msra.mxu0 %v4068
  %5409 = vmatpush.bf16.msra.mxu0 %v4067
  %5410 = vmatpush.bf16.msra.mxu0 %v4066
  %5411 = vmatmul.bf16.gmra.mxu0 %v1359
  %v5412 = vpop.f32.mrf.mxu0
  %v5413 = vadd.f32 %v5400, %v5412
  %v5414 = vpop.f32.mrf.mxu0
  %5415 = vdwg.mxu0
  %5416 = vmatpush.bf16.msra.mxu0 %v4081
  %5417 = vmatpush.bf16.msra.mxu0 %v4080
  %5418 = vmatpush.bf16.msra.mxu0 %v4079
  %5419 = vmatpush.bf16.msra.mxu0 %v4078
  %5420 = vmatpush.bf16.msra.mxu0 %v4077
  %5421 = vmatpush.bf16.msra.mxu0 %v4076
  %5422 = vmatpush.bf16.msra.mxu0 %v4075
  %5423 = vmatpush.bf16.msra.mxu0 %v4074
  %5424 = vmatmul.bf16.gmra.mxu0 %v1360
  %v5425 = vpop.f32.mrf.mxu0
  %v5426 = vadd.f32 %v5413, %v5425
  %v5427 = vpop.f32.mrf.mxu0
  %5428 = vdwg.mxu0
  %5429 = vmatpush.bf16.msra.mxu0 %v4089
  %5430 = vmatpush.bf16.msra.mxu0 %v4088
  %5431 = vmatpush.bf16.msra.mxu0 %v4087
  %5432 = vmatpush.bf16.msra.mxu0 %v4086
  %5433 = vmatpush.bf16.msra.mxu0 %v4085
  %5434 = vmatpush.bf16.msra.mxu0 %v4084
  %5435 = vmatpush.bf16.msra.mxu0 %v4083
  %5436 = vmatpush.bf16.msra.mxu0 %v4082
  %5437 = vmatmul.bf16.gmra.mxu0 %v1361
  %v5438 = vpop.f32.mrf.mxu0
  %v5439 = vadd.f32 %v5426, %v5438
  %v5440 = vpop.f32.mrf.mxu0
  %5441 = vdwg.mxu0
  %5442 = vmatpush.bf16.msra.mxu0 %v4097
  %5443 = vmatpush.bf16.msra.mxu0 %v4096
  %5444 = vmatpush.bf16.msra.mxu0 %v4095
  %5445 = vmatpush.bf16.msra.mxu0 %v4094
  %5446 = vmatpush.bf16.msra.mxu0 %v4093
  %5447 = vmatpush.bf16.msra.mxu0 %v4092
  %5448 = vmatpush.bf16.msra.mxu0 %v4091
  %5449 = vmatpush.bf16.msra.mxu0 %v4090
  %5450 = vmatmul.bf16.gmra.mxu0 %v1362
  %v5451 = vpop.f32.mrf.mxu0
  %v5452 = vadd.f32 %v5439, %v5451
  %v5453 = vpop.f32.mrf.mxu0
  %5454 = vdwg.mxu0
  %5455 = vmatpush.bf16.msra.mxu0 %v4105
  %5456 = vmatpush.bf16.msra.mxu0 %v4104
  %5457 = vmatpush.bf16.msra.mxu0 %v4103
  %5458 = vmatpush.bf16.msra.mxu0 %v4102
  %5459 = vmatpush.bf16.msra.mxu0 %v4101
  %5460 = vmatpush.bf16.msra.mxu0 %v4100
  %5461 = vmatpush.bf16.msra.mxu0 %v4099
  %5462 = vmatpush.bf16.msra.mxu0 %v4098
  %5463 = vmatmul.bf16.gmra.mxu0 %v1363
  %v5464 = vpop.f32.mrf.mxu0
  %v5465 = vadd.f32 %v5452, %v5464
  %v5466 = vpop.f32.mrf.mxu0
  %5467 = vdwg.mxu0
  %5468 = vmatpush.bf16.msra.mxu0 %v4113
  %5469 = vmatpush.bf16.msra.mxu0 %v4112
  %5470 = vmatpush.bf16.msra.mxu0 %v4111
  %5471 = vmatpush.bf16.msra.mxu0 %v4110
  %5472 = vmatpush.bf16.msra.mxu0 %v4109
  %5473 = vmatpush.bf16.msra.mxu0 %v4108
  %5474 = vmatpush.bf16.msra.mxu0 %v4107
  %5475 = vmatpush.bf16.msra.mxu0 %v4106
  %5476 = vmatmul.bf16.gmra.mxu0 %v1364
  %v5477 = vpop.f32.mrf.mxu0
  %v5478 = vadd.f32 %v5465, %v5477
  %v5479 = vpop.f32.mrf.mxu0
  %5480 = vdwg.mxu0
  %5481 = vmatpush.bf16.msra.mxu0 %v4121
  %5482 = vmatpush.bf16.msra.mxu0 %v4120
  %5483 = vmatpush.bf16.msra.mxu0 %v4119
  %5484 = vmatpush.bf16.msra.mxu0 %v4118
  %5485 = vmatpush.bf16.msra.mxu0 %v4117
  %5486 = vmatpush.bf16.msra.mxu0 %v4116
  %5487 = vmatpush.bf16.msra.mxu0 %v4115
  %5488 = vmatpush.bf16.msra.mxu0 %v4114
  %5489 = vmatmul.bf16.gmra.mxu0 %v1365
  %v5490 = vpop.f32.mrf.mxu0
  %v5491 = vadd.f32 %v5478, %v5490
  %v5492 = vpop.f32.mrf.mxu0
  %5493 = vdwg.mxu0
  %5494 = vmatpush.bf16.msra.mxu0 %v4129
  %5495 = vmatpush.bf16.msra.mxu0 %v4128
  %5496 = vmatpush.bf16.msra.mxu0 %v4127
  %5497 = vmatpush.bf16.msra.mxu0 %v4126
  %5498 = vmatpush.bf16.msra.mxu0 %v4125
  %5499 = vmatpush.bf16.msra.mxu0 %v4124
  %5500 = vmatpush.bf16.msra.mxu0 %v4123
  %5501 = vmatpush.bf16.msra.mxu0 %v4122
  %5502 = vmatmul.bf16.gmra.mxu0 %v1366
  %v5503 = vpop.f32.mrf.mxu0
  %v5504 = vadd.f32 %v5491, %v5503
  %v5505 = vpop.f32.mrf.mxu0
  %5506 = vdwg.mxu0
  %5507 = vmatpush.bf16.msra.mxu0 %v4137
  %5508 = vmatpush.bf16.msra.mxu0 %v4136
  %5509 = vmatpush.bf16.msra.mxu0 %v4135
  %5510 = vmatpush.bf16.msra.mxu0 %v4134
  %5511 = vmatpush.bf16.msra.mxu0 %v4133
  %5512 = vmatpush.bf16.msra.mxu0 %v4132
  %5513 = vmatpush.bf16.msra.mxu0 %v4131
  %5514 = vmatpush.bf16.msra.mxu0 %v4130
  %5515 = vmatmul.bf16.gmra.mxu0 %v1367
  %v5516 = vpop.f32.mrf.mxu0
  %v5517 = vadd.f32 %v5504, %v5516
  %v5518 = vpop.f32.mrf.mxu0
  %5519 = vdwg.mxu0
  %5520 = vmatpush.bf16.msra.mxu0 %v4145
  %5521 = vmatpush.bf16.msra.mxu0 %v4144
  %5522 = vmatpush.bf16.msra.mxu0 %v4143
  %5523 = vmatpush.bf16.msra.mxu0 %v4142
  %5524 = vmatpush.bf16.msra.mxu0 %v4141
  %5525 = vmatpush.bf16.msra.mxu0 %v4140
  %5526 = vmatpush.bf16.msra.mxu0 %v4139
  %5527 = vmatpush.bf16.msra.mxu0 %v4138
  %5528 = vmatmul.bf16.gmra.mxu0 %v1368
  %v5529 = vpop.f32.mrf.mxu0
  %v5530 = vadd.f32 %v5517, %v5529
  %v5531 = vpop.f32.mrf.mxu0
  %5532 = vdwg.mxu0
  %5533 = vmatpush.bf16.msra.mxu0 %v4153
  %5534 = vmatpush.bf16.msra.mxu0 %v4152
  %5535 = vmatpush.bf16.msra.mxu0 %v4151
  %5536 = vmatpush.bf16.msra.mxu0 %v4150
  %5537 = vmatpush.bf16.msra.mxu0 %v4149
  %5538 = vmatpush.bf16.msra.mxu0 %v4148
  %5539 = vmatpush.bf16.msra.mxu0 %v4147
  %5540 = vmatpush.bf16.msra.mxu0 %v4146
  %5541 = vmatmul.bf16.gmra.mxu0 %v1369
  %v5542 = vpop.f32.mrf.mxu0
  %v5543 = vadd.f32 %v5530, %v5542
  %v5544 = vpop.f32.mrf.mxu0
  %5545 = vdwg.mxu0
  %5546 = vmatpush.bf16.msra.mxu0 %v4161
  %5547 = vmatpush.bf16.msra.mxu0 %v4160
  %5548 = vmatpush.bf16.msra.mxu0 %v4159
  %5549 = vmatpush.bf16.msra.mxu0 %v4158
  %5550 = vmatpush.bf16.msra.mxu0 %v4157
  %5551 = vmatpush.bf16.msra.mxu0 %v4156
  %5552 = vmatpush.bf16.msra.mxu0 %v4155
  %5553 = vmatpush.bf16.msra.mxu0 %v4154
  %5554 = vmatmul.bf16.gmra.mxu0 %v1370
  %v5555 = vpop.f32.mrf.mxu0
  %v5556 = vadd.f32 %v5543, %v5555
  %v5557 = vpop.f32.mrf.mxu0
  %5558 = vdwg.mxu0
  %5559 = vmatpush.bf16.msra.mxu0 %v4169
  %5560 = vmatpush.bf16.msra.mxu0 %v4168
  %5561 = vmatpush.bf16.msra.mxu0 %v4167
  %5562 = vmatpush.bf16.msra.mxu0 %v4166
  %5563 = vmatpush.bf16.msra.mxu0 %v4165
  %5564 = vmatpush.bf16.msra.mxu0 %v4164
  %5565 = vmatpush.bf16.msra.mxu0 %v4163
  %5566 = vmatpush.bf16.msra.mxu0 %v4162
  %5567 = vmatmul.bf16.gmra.mxu0 %v1371
  %v5568 = vpop.f32.mrf.mxu0
  %v5569 = vadd.f32 %v5556, %v5568
  %v5570 = vpop.f32.mrf.mxu0
  %5571 = vdwg.mxu0
  %5572 = vmatpush.bf16.msra.mxu0 %v4177
  %5573 = vmatpush.bf16.msra.mxu0 %v4176
  %5574 = vmatpush.bf16.msra.mxu0 %v4175
  %5575 = vmatpush.bf16.msra.mxu0 %v4174
  %5576 = vmatpush.bf16.msra.mxu0 %v4173
  %5577 = vmatpush.bf16.msra.mxu0 %v4172
  %5578 = vmatpush.bf16.msra.mxu0 %v4171
  %5579 = vmatpush.bf16.msra.mxu0 %v4170
  %5580 = vmatmul.bf16.gmra.mxu0 %v1372
  %v5581 = vpop.f32.mrf.mxu0
  %v5582 = vadd.f32 %v5569, %v5581
  %v5583 = vpop.f32.mrf.mxu0
  %5584 = vdwg.mxu0
  %5585 = vmatpush.bf16.msra.mxu0 %v4185
  %5586 = vmatpush.bf16.msra.mxu0 %v4184
  %5587 = vmatpush.bf16.msra.mxu0 %v4183
  %5588 = vmatpush.bf16.msra.mxu0 %v4182
  %5589 = vmatpush.bf16.msra.mxu0 %v4181
  %5590 = vmatpush.bf16.msra.mxu0 %v4180
  %5591 = vmatpush.bf16.msra.mxu0 %v4179
  %5592 = vmatpush.bf16.msra.mxu0 %v4178
  %5593 = vmatmul.bf16.gmra.mxu0 %v1373
  %v5594 = vpop.f32.mrf.mxu0
  %v5595 = vadd.f32 %v5582, %v5594
  %v5596 = vpop.f32.mrf.mxu0
  %5597 = vdwg.mxu0
  %5598 = vmatpush.bf16.msra.mxu0 %v4193
  %5599 = vmatpush.bf16.msra.mxu0 %v4192
  %5600 = vmatpush.bf16.msra.mxu0 %v4191
  %5601 = vmatpush.bf16.msra.mxu0 %v4190
  %5602 = vmatpush.bf16.msra.mxu0 %v4189
  %5603 = vmatpush.bf16.msra.mxu0 %v4188
  %5604 = vmatpush.bf16.msra.mxu0 %v4187
  %5605 = vmatpush.bf16.msra.mxu0 %v4186
  %5606 = vmatmul.bf16.gmra.mxu0 %v1374
  %v5607 = vpop.f32.mrf.mxu0
  %v5608 = vadd.f32 %v5595, %v5607
  %v5609 = vpop.f32.mrf.mxu0
  %5610 = vdwg.mxu0
  %5611 = vmatpush.bf16.msra.mxu0 %v4201
  %5612 = vmatpush.bf16.msra.mxu0 %v4200
  %5613 = vmatpush.bf16.msra.mxu0 %v4199
  %5614 = vmatpush.bf16.msra.mxu0 %v4198
  %5615 = vmatpush.bf16.msra.mxu0 %v4197
  %5616 = vmatpush.bf16.msra.mxu0 %v4196
  %5617 = vmatpush.bf16.msra.mxu0 %v4195
  %5618 = vmatpush.bf16.msra.mxu0 %v4194
  %5619 = vmatmul.bf16.gmra.mxu0 %v1375
  %v5620 = vpop.f32.mrf.mxu0
  %v5621 = vadd.f32 %v5608, %v5620
  %v5622 = vpop.f32.mrf.mxu0
  %5623 = vdwg.mxu0
  %5624 = vmatpush.bf16.msra.mxu0 %v4209
  %5625 = vmatpush.bf16.msra.mxu0 %v4208
  %5626 = vmatpush.bf16.msra.mxu0 %v4207
  %5627 = vmatpush.bf16.msra.mxu0 %v4206
  %5628 = vmatpush.bf16.msra.mxu0 %v4205
  %5629 = vmatpush.bf16.msra.mxu0 %v4204
  %5630 = vmatpush.bf16.msra.mxu0 %v4203
  %5631 = vmatpush.bf16.msra.mxu0 %v4202
  %5632 = vmatmul.bf16.gmra.mxu0 %v1376
  %v5633 = vpop.f32.mrf.mxu0
  %v5634 = vadd.f32 %v5621, %v5633
  %v5635 = vpop.f32.mrf.mxu0
  %5636 = vdwg.mxu0
  %5637 = vmatpush.bf16.msra.mxu0 %v4217
  %5638 = vmatpush.bf16.msra.mxu0 %v4216
  %5639 = vmatpush.bf16.msra.mxu0 %v4215
  %5640 = vmatpush.bf16.msra.mxu0 %v4214
  %5641 = vmatpush.bf16.msra.mxu0 %v4213
  %5642 = vmatpush.bf16.msra.mxu0 %v4212
  %5643 = vmatpush.bf16.msra.mxu0 %v4211
  %5644 = vmatpush.bf16.msra.mxu0 %v4210
  %5645 = vmatmul.bf16.gmra.mxu0 %v1377
  %v5646 = vpop.f32.mrf.mxu0
  %v5647 = vadd.f32 %v5634, %v5646
  %v5648 = vpop.f32.mrf.mxu0
  %5649 = vdwg.mxu0
  %5650 = vmatpush.bf16.msra.mxu0 %v4225
  %5651 = vmatpush.bf16.msra.mxu0 %v4224
  %5652 = vmatpush.bf16.msra.mxu0 %v4223
  %5653 = vmatpush.bf16.msra.mxu0 %v4222
  %5654 = vmatpush.bf16.msra.mxu0 %v4221
  %5655 = vmatpush.bf16.msra.mxu0 %v4220
  %5656 = vmatpush.bf16.msra.mxu0 %v4219
  %5657 = vmatpush.bf16.msra.mxu0 %v4218
  %5658 = vmatmul.bf16.gmra.mxu0 %v1378
  %v5659 = vpop.f32.mrf.mxu0
  %v5660 = vadd.f32 %v5647, %v5659
  %v5661 = vpop.f32.mrf.mxu0
  %5662 = vdwg.mxu0
  %5663 = vmatpush.bf16.msra.mxu0 %v4233
  %5664 = vmatpush.bf16.msra.mxu0 %v4232
  %5665 = vmatpush.bf16.msra.mxu0 %v4231
  %5666 = vmatpush.bf16.msra.mxu0 %v4230
  %5667 = vmatpush.bf16.msra.mxu0 %v4229
  %5668 = vmatpush.bf16.msra.mxu0 %v4228
  %5669 = vmatpush.bf16.msra.mxu0 %v4227
  %5670 = vmatpush.bf16.msra.mxu0 %v4226
  %5671 = vmatmul.bf16.gmra.mxu0 %v1379
  %v5672 = vpop.f32.mrf.mxu0
  %v5673 = vadd.f32 %v5660, %v5672
  %v5674 = vpop.f32.mrf.mxu0
  %5675 = vdwg.mxu0
  %5676 = vmatpush.bf16.msra.mxu0 %v4241
  %5677 = vmatpush.bf16.msra.mxu0 %v4240
  %5678 = vmatpush.bf16.msra.mxu0 %v4239
  %5679 = vmatpush.bf16.msra.mxu0 %v4238
  %5680 = vmatpush.bf16.msra.mxu0 %v4237
  %5681 = vmatpush.bf16.msra.mxu0 %v4236
  %5682 = vmatpush.bf16.msra.mxu0 %v4235
  %5683 = vmatpush.bf16.msra.mxu0 %v4234
  %5684 = vmatmul.bf16.gmra.mxu0 %v1380
  %v5685 = vpop.f32.mrf.mxu0
  %v5686 = vadd.f32 %v5673, %v5685
  %v5687 = vpop.f32.mrf.mxu0
  %5688 = vdwg.mxu0
  %5689 = vmatpush.bf16.msra.mxu0 %v4249
  %5690 = vmatpush.bf16.msra.mxu0 %v4248
  %5691 = vmatpush.bf16.msra.mxu0 %v4247
  %5692 = vmatpush.bf16.msra.mxu0 %v4246
  %5693 = vmatpush.bf16.msra.mxu0 %v4245
  %5694 = vmatpush.bf16.msra.mxu0 %v4244
  %5695 = vmatpush.bf16.msra.mxu0 %v4243
  %5696 = vmatpush.bf16.msra.mxu0 %v4242
  %5697 = vmatmul.bf16.gmra.mxu0 %v1381
  %v5698 = vpop.f32.mrf.mxu0
  %v5699 = vadd.f32 %v5686, %v5698
  %v5700 = vpop.f32.mrf.mxu0
  %5701 = vdwg.mxu0
  %5702 = vmatpush.bf16.msra.mxu0 %v4257
  %5703 = vmatpush.bf16.msra.mxu0 %v4256
  %5704 = vmatpush.bf16.msra.mxu0 %v4255
  %5705 = vmatpush.bf16.msra.mxu0 %v4254
  %5706 = vmatpush.bf16.msra.mxu0 %v4253
  %5707 = vmatpush.bf16.msra.mxu0 %v4252
  %5708 = vmatpush.bf16.msra.mxu0 %v4251
  %5709 = vmatpush.bf16.msra.mxu0 %v4250
  %5710 = vmatmul.bf16.gmra.mxu0 %v1382
  %v5711 = vpop.f32.mrf.mxu0
  %v5712 = vadd.f32 %v5699, %v5711
  %v5713 = vpop.f32.mrf.mxu0
  %5714 = vdwg.mxu0
  %5715 = vmatpush.bf16.msra.mxu0 %v4265
  %5716 = vmatpush.bf16.msra.mxu0 %v4264
  %5717 = vmatpush.bf16.msra.mxu0 %v4263
  %5718 = vmatpush.bf16.msra.mxu0 %v4262
  %5719 = vmatpush.bf16.msra.mxu0 %v4261
  %5720 = vmatpush.bf16.msra.mxu0 %v4260
  %5721 = vmatpush.bf16.msra.mxu0 %v4259
  %5722 = vmatpush.bf16.msra.mxu0 %v4258
  %5723 = vmatmul.bf16.gmra.mxu0 %v1383
  %v5724 = vpop.f32.mrf.mxu0
  %v5725 = vadd.f32 %v5712, %v5724
  %v5726 = vpop.f32.mrf.mxu0
  %5727 = vdwg.mxu0
  %5728 = vmatpush.bf16.msra.mxu0 %v4273
  %5729 = vmatpush.bf16.msra.mxu0 %v4272
  %5730 = vmatpush.bf16.msra.mxu0 %v4271
  %5731 = vmatpush.bf16.msra.mxu0 %v4270
  %5732 = vmatpush.bf16.msra.mxu0 %v4269
  %5733 = vmatpush.bf16.msra.mxu0 %v4268
  %5734 = vmatpush.bf16.msra.mxu0 %v4267
  %5735 = vmatpush.bf16.msra.mxu0 %v4266
  %5736 = vmatmul.bf16.gmra.mxu0 %v1384
  %v5737 = vpop.f32.mrf.mxu0
  %v5738 = vadd.f32 %v5725, %v5737
  %v5739 = vpop.f32.mrf.mxu0
  %5740 = vdwg.mxu0
  %5741 = vmatpush.bf16.msra.mxu0 %v4281
  %5742 = vmatpush.bf16.msra.mxu0 %v4280
  %5743 = vmatpush.bf16.msra.mxu0 %v4279
  %5744 = vmatpush.bf16.msra.mxu0 %v4278
  %5745 = vmatpush.bf16.msra.mxu0 %v4277
  %5746 = vmatpush.bf16.msra.mxu0 %v4276
  %5747 = vmatpush.bf16.msra.mxu0 %v4275
  %5748 = vmatpush.bf16.msra.mxu0 %v4274
  %5749 = vmatmul.bf16.gmra.mxu0 %v1385
  %v5750 = vpop.f32.mrf.mxu0
  %v5751 = vadd.f32 %v5738, %v5750
  %v5752 = vpop.f32.mrf.mxu0
  %5753 = vdwg.mxu0
  %5754 = vmatpush.bf16.msra.mxu0 %v4289
  %5755 = vmatpush.bf16.msra.mxu0 %v4288
  %5756 = vmatpush.bf16.msra.mxu0 %v4287
  %5757 = vmatpush.bf16.msra.mxu0 %v4286
  %5758 = vmatpush.bf16.msra.mxu0 %v4285
  %5759 = vmatpush.bf16.msra.mxu0 %v4284
  %5760 = vmatpush.bf16.msra.mxu0 %v4283
  %5761 = vmatpush.bf16.msra.mxu0 %v4282
  %5762 = vmatmul.bf16.gmra.mxu0 %v1386
  %v5763 = vpop.f32.mrf.mxu0
  %v5764 = vadd.f32 %v5751, %v5763
  %v5765 = vpop.f32.mrf.mxu0
  %5766 = vdwg.mxu0
  %5767 = vmatpush.bf16.msra.mxu0 %v4297
  %5768 = vmatpush.bf16.msra.mxu0 %v4296
  %5769 = vmatpush.bf16.msra.mxu0 %v4295
  %5770 = vmatpush.bf16.msra.mxu0 %v4294
  %5771 = vmatpush.bf16.msra.mxu0 %v4293
  %5772 = vmatpush.bf16.msra.mxu0 %v4292
  %5773 = vmatpush.bf16.msra.mxu0 %v4291
  %5774 = vmatpush.bf16.msra.mxu0 %v4290
  %5775 = vmatmul.bf16.gmra.mxu0 %v1387
  %v5776 = vpop.f32.mrf.mxu0
  %v5777 = vadd.f32 %v5764, %v5776
  %v5778 = vpop.f32.mrf.mxu0
  %5779 = vdwg.mxu0
  %5780 = vmatpush.bf16.msra.mxu0 %v4305
  %5781 = vmatpush.bf16.msra.mxu0 %v4304
  %5782 = vmatpush.bf16.msra.mxu0 %v4303
  %5783 = vmatpush.bf16.msra.mxu0 %v4302
  %5784 = vmatpush.bf16.msra.mxu0 %v4301
  %5785 = vmatpush.bf16.msra.mxu0 %v4300
  %5786 = vmatpush.bf16.msra.mxu0 %v4299
  %5787 = vmatpush.bf16.msra.mxu0 %v4298
  %5788 = vmatmul.bf16.gmra.mxu0 %v1388
  %v5789 = vpop.f32.mrf.mxu0
  %v5790 = vadd.f32 %v5777, %v5789
  %v5791 = vpop.f32.mrf.mxu0
  %5792 = vdwg.mxu0
  %5793 = vmatpush.bf16.msra.mxu0 %v4313
  %5794 = vmatpush.bf16.msra.mxu0 %v4312
  %5795 = vmatpush.bf16.msra.mxu0 %v4311
  %5796 = vmatpush.bf16.msra.mxu0 %v4310
  %5797 = vmatpush.bf16.msra.mxu0 %v4309
  %5798 = vmatpush.bf16.msra.mxu0 %v4308
  %5799 = vmatpush.bf16.msra.mxu0 %v4307
  %5800 = vmatpush.bf16.msra.mxu0 %v4306
  %5801 = vmatmul.bf16.gmra.mxu0 %v1389
  %v5802 = vpop.f32.mrf.mxu0
  %v5803 = vadd.f32 %v5790, %v5802
  %v5804 = vpop.f32.mrf.mxu0
  %5805 = vdwg.mxu0
  %5806 = vmatpush.bf16.msra.mxu0 %v4321
  %5807 = vmatpush.bf16.msra.mxu0 %v4320
  %5808 = vmatpush.bf16.msra.mxu0 %v4319
  %5809 = vmatpush.bf16.msra.mxu0 %v4318
  %5810 = vmatpush.bf16.msra.mxu0 %v4317
  %5811 = vmatpush.bf16.msra.mxu0 %v4316
  %5812 = vmatpush.bf16.msra.mxu0 %v4315
  %5813 = vmatpush.bf16.msra.mxu0 %v4314
  %5814 = vmatmul.bf16.gmra.mxu0 %v1390
  %v5815 = vpop.f32.mrf.mxu0
  %v5816 = vadd.f32 %v5803, %v5815
  %v5817 = vpop.f32.mrf.mxu0
  %5818 = vdwg.mxu0
  %5819 = vmatpush.bf16.msra.mxu0 %v4329
  %5820 = vmatpush.bf16.msra.mxu0 %v4328
  %5821 = vmatpush.bf16.msra.mxu0 %v4327
  %5822 = vmatpush.bf16.msra.mxu0 %v4326
  %5823 = vmatpush.bf16.msra.mxu0 %v4325
  %5824 = vmatpush.bf16.msra.mxu0 %v4324
  %5825 = vmatpush.bf16.msra.mxu0 %v4323
  %5826 = vmatpush.bf16.msra.mxu0 %v4322
  %5827 = vmatmul.bf16.gmra.mxu0 %v1391
  %v5828 = vpop.f32.mrf.mxu0
  %v5829 = vadd.f32 %v5816, %v5828
  %v5830 = vpop.f32.mrf.mxu0
  %5831 = vdwg.mxu0
  %5832 = vmatpush.bf16.msra.mxu0 %v4337
  %5833 = vmatpush.bf16.msra.mxu0 %v4336
  %5834 = vmatpush.bf16.msra.mxu0 %v4335
  %5835 = vmatpush.bf16.msra.mxu0 %v4334
  %5836 = vmatpush.bf16.msra.mxu0 %v4333
  %5837 = vmatpush.bf16.msra.mxu0 %v4332
  %5838 = vmatpush.bf16.msra.mxu0 %v4331
  %5839 = vmatpush.bf16.msra.mxu0 %v4330
  %5840 = vmatmul.bf16.gmra.mxu0 %v1392
  %v5841 = vpop.f32.mrf.mxu0
  %v5842 = vadd.f32 %v5829, %v5841
  %v5843 = vpop.f32.mrf.mxu0
  %5844 = vdwg.mxu0
  %5845 = vmatpush.bf16.msra.mxu0 %v4345
  %5846 = vmatpush.bf16.msra.mxu0 %v4344
  %5847 = vmatpush.bf16.msra.mxu0 %v4343
  %5848 = vmatpush.bf16.msra.mxu0 %v4342
  %5849 = vmatpush.bf16.msra.mxu0 %v4341
  %5850 = vmatpush.bf16.msra.mxu0 %v4340
  %5851 = vmatpush.bf16.msra.mxu0 %v4339
  %5852 = vmatpush.bf16.msra.mxu0 %v4338
  %5853 = vmatmul.bf16.gmra.mxu0 %v1393
  %v5854 = vpop.f32.mrf.mxu0
  %v5855 = vadd.f32 %v5842, %v5854
  %v5856 = vpop.f32.mrf.mxu0
  %5857 = vdwg.mxu0
  %v5858 = vtanh.pop %v5855
  %5859 = vst [vmem:[%s6] sm:$0xff] %v5858
  %v5860 = vpack.c.bf16 %v5858, %v5858
  %v5861 = vld [vmem:[%s3] sm:$0xf]
  %v5862 = vld [vmem:[%s3 + $0x4] sm:$0xf]
  %v5863 = vld [vmem:[%s3 + $0x8] sm:$0xf]
  %v5864 = vld [vmem:[%s3 + $0xc] sm:$0xf]
  %v5865 = vld [vmem:[%s3 + $0x10] sm:$0xf]
  %v5866 = vld [vmem:[%s3 + $0x14] sm:$0xf]
  %v5867 = vld [vmem:[%s3 + $0x18] sm:$0xf]
  %v5868 = vld [vmem:[%s3 + $0x1c] sm:$0xf]
  %v5869 = vld [vmem:[%s3 + $0x20] sm:$0xf]
  %v5870 = vld [vmem:[%s3 + $0x24] sm:$0xf]
  %v5871 = vld [vmem:[%s3 + $0x28] sm:$0xf]
  %v5872 = vld [vmem:[%s3 + $0x2c] sm:$0xf]
  %v5873 = vld [vmem:[%s3 + $0x30] sm:$0xf]
  %v5874 = vld [vmem:[%s3 + $0x34] sm:$0xf]
  %v5875 = vld [vmem:[%s3 + $0x38] sm:$0xf]
  %v5876 = vld [vmem:[%s3 + $0x3c] sm:$0xf]
  %v5877 = vld [vmem:[%s4] sm:$0x1]
  %v5879 = vperm.slane %v5877, 0
  %v5897 = vunpack.c.l.b16 %v5861
  %v5898 = vunpack.c.l.b16 %v5862
  %v5899 = vunpack.c.l.b16 %v5863
  %v5900 = vunpack.c.l.b16 %v5864
  %v5901 = vunpack.c.l.b16 %v5865
  %v5902 = vunpack.c.l.b16 %v5866
  %v5903 = vunpack.c.l.b16 %v5867
  %v5904 = vunpack.c.l.b16 %v5868
  %v5905 = vunpack.c.l.b16 %v5869
  %v5906 = vunpack.c.l.b16 %v5870
  %v5907 = vunpack.c.l.b16 %v5871
  %v5908 = vunpack.c.l.b16 %v5872
  %v5909 = vunpack.c.l.b16 %v5873
  %v5910 = vunpack.c.l.b16 %v5874
  %v5911 = vunpack.c.l.b16 %v5875
  %v5912 = vunpack.c.l.b16 %v5876
  %v5913 = vpack.c.b16 %v5898, %v5897
  %v5914 = vpack.c.b16 %v5900, %v5899
  %v5915 = vpack.c.b16 %v5902, %v5901
  %v5916 = vpack.c.b16 %v5904, %v5903
  %v5917 = vpack.c.b16 %v5906, %v5905
  %v5918 = vpack.c.b16 %v5908, %v5907
  %v5919 = vpack.c.b16 %v5910, %v5909
  %v5920 = vpack.c.b16 %v5912, %v5911
  %5929 = vmatpush.bf16.msra.mxu0 %v5920
  %5930 = vmatpush.bf16.msra.mxu0 %v5919
  %5931 = vmatpush.bf16.msra.mxu0 %v5918
  %5932 = vmatpush.bf16.msra.mxu0 %v5917
  %5933 = vmatpush.bf16.msra.mxu0 %v5916
  %5934 = vmatpush.bf16.msra.mxu0 %v5915
  %5935 = vmatpush.bf16.msra.mxu0 %v5914
  %5936 = vmatpush.bf16.msra.mxu0 %v5913
  %5937 = vmatmul.bf16.gmra.mxu0 %v5860
  %v5938 = vpop.f32.mrf.mxu0
  %v5939 = vadd.f32 %v5879, %v5938
  %v5940 = vpop.f32.mrf.mxu0
  %5941 = vdwg.mxu0
  %5942 = vmax.xlane.f32.xlu0 %v5939
  %v5943 = vpop.xlane.xlu0 %5942
  %v5944 = vsub.f32 %v5939, %v5943
  %v5945 = vmul.f32 %v5944, 1.442695
  %v5946 = vpow.pop %v5945
  %5947 = vadd.xlane.f32.xlu0 %v5946
  %v5948 = vpop.xlane.xlu0 %5947
  %v5949 = vrcp.pop %v5948
  %v5950 = vmul.f32 %v5948, %v5949
  %v5951 = vsub.f32 1.0, %v5950
  %v5952 = vmul.f32 %v5949, %v5951
  %v5953 = vadd.f32 %v5949, %v5952
  %vm5954 = vweird.f32 %v5948
  %vm5955 = vweird.f32 %v5949
  %vm5956 = vmor %vm5954, %vm5955
  %v5957 = vsel %vm5956, %v5949, %v5953
  %v5958 = vand.u32 2147483647, %v5948
  %vm5959 = vcmp.eq.f32.partialorder %v5958, 8.507059e+37
  %v5960 = vand.u32 %v5948, 2147483648
  %v5961 = vor.u32 1.1754944e-38, %v5960
  %v5962 = vsel %vm5959, %v5961, %v5957
  %v5963 = vmul.f32 %v5946, %v5962
  %5964 = vst [vmem:[%s5] sm:$0xff] %v5963
  // Predicated region
  $region22: #{generator_forward.3} parent=0 // pred_check
    _
  $region23: #{generator_forward.3} parent=0 // pred_check_branch
    %5966 = sbr.rel (0) target = $region25
  $region24: #{generator_forward.3} parent=0 // pred_region
    _
  $region25: #{generator_forward.3} parent=0 // pred_fallthru
    _
  // Predicated region
  $region26: #{generator_forward.3} parent=0 // pred_check
    _
  $region27: #{generator_forward.3} parent=0 // pred_check_branch
    %5968 = sbr.rel (0) target = $region29
  $region28: #{generator_forward.3} parent=0 // pred_region
    _
  $region29: #{generator_forward.3} parent=0 // pred_fallthru
    _
  // Predicated region
  $region30: #{generator_forward.3} parent=0 // pred_check
    _
  $region31: #{generator_forward.3} parent=0 // pred_check_branch
    %5970 = sbr.rel (0) target = $region33
  $region32: #{generator_forward.3} parent=0 // pred_region
    _
  $region33: #{generator_forward.3} parent=0 // pred_fallthru
    _
  // Predicated region
  $region34: #{generator_forward.3} parent=0 // pred_check
    _
  $region35: #{generator_forward.3} parent=0 // pred_check_branch
    %5972 = sbr.rel (0) target = $region37
  $region36: #{generator_forward.3} parent=0 // pred_region
    _
  $region37: #{generator_forward.3} parent=0 // pred_fallthru
    _

</llo_original>
